<compile_context>
chip_gen: v5e
topology: v5e:2x2
jax: 0.10.0
libtpu: 0.0.40
codegen_flags: <defaults>
</compile_context>

<pallas_src>
import functools
from typing import NamedTuple

import jax
import jax.numpy as jnp
from jax.experimental import pallas as pl
from jax.experimental.pallas import tpu as pltpu


# ----------------------------------------------------------------------------
# static planning (generation / VMEM aware)
# ----------------------------------------------------------------------------
def _vmem_capacity_bytes():
    """Per-core VMEM capacity; conservative fallback (v7x: 64 MiB / TC)."""
    try:
        return int(pltpu.get_tpu_info().vmem_capacity_bytes)
    except Exception:  # query unavailable -> assume the smallest generation
        return 64 * 1024 * 1024


def _divisors_desc(n):
    return [d for d in range(n, 0, -1) if n % d == 0]


def _k1_step_bytes(h, w, cin, cpad, th):
    """VMEM estimate for one kernel-1 grid step (x2 for double-buffered blocks)."""
    rt, w2 = 2 * th, 2 * w
    b = ((h + 2) * (w2 + 2) * cin * 2) * 2        # resident padded input (bf16)
    b += (9 * cin * cpad * 2) * 2                 # folded conv weights (bf16)
    b += (rt * w2 * cpad * 2) * 2                 # conv-output block (bf16)
    b += (2 * cpad * 4) * 2                       # per-tile stats block
    b += (th + 2) * (w2 + 2) * cin * 4            # xs (f32)
    b += (rt + 2) * (w2 + 2) * cin * 4 * 2        # H-blend rows + interleaved uh
    b += 3 * (rt + 2) * w2 * cin * 2              # 3 kw-shifted bf16 views
    b += rt * w2 * cpad * 4 * 2                   # f32 accumulator + dot result
    return int(b * 1.25)


def _k2_step_bytes(w, cout, cpad, ht2):
    w2 = 2 * w
    m = ht2 * w2
    b = (m * cpad * 2) * 2                        # input block (bf16)
    b += (cout * m * 4) * 2                       # output block (f32)
    b += m * cpad * 4 * 3                         # f32 temps (cast / BN / transpose)
    b += cpad * 4 * 4                             # scale / shift rows
    return int(b * 1.25)


class _Plan(NamedTuple):
    cpad: int        # out channels padded to a multiple of 128 (lane-dense)
    th: int          # pre-upsample rows per kernel-1 step
    ht2: int         # upsampled rows per kernel-2 step
    vmem_limit: int  # Mosaic scoped-VMEM limit


def _plan(n, cin, h, w, cout):
    cpad = -(-cout // 128) * 128
    cap = _vmem_capacity_bytes()
    budget = cap // 2                              # headroom for Mosaic scratch

    # kernel 1: largest divisor of H that fits the budget; cap the conv-output
    # block at 8 MiB and keep >= 2 grid steps for megacore when N == 1.
    th = 1
    for d in _divisors_desc(h):
        if n == 1 and h > 1 and d == h:
            continue
        if (2 * d) * (2 * w) * cpad * 2 > 8 * 1024 * 1024:
            continue
        if _k1_step_bytes(h, w, cin, cpad, d) <= budget:
            th = d
            break

    # kernel 2: row tile whose flattened spatial extent is lane-dense
    # (HT2 * 2W % 128 == 0); the legal fallback is the full spatial plane.
    h2 = 2 * h
    ht2 = h2
    for d in _divisors_desc(h2):
        if (d * 2 * w) % 128 != 0:
            continue
        if n == 1 and h2 > 1 and d == h2:
            continue
        if d * 2 * w * cpad * 2 > 4 * 1024 * 1024:
            continue
        if _k2_step_bytes(w, cout, cpad, d) <= budget:
            ht2 = d
            break

    vmem_limit = min(int(cap * 0.9), 128 * 1024 * 1024)
    return _Plan(cpad, th, ht2, vmem_limit)


# ----------------------------------------------------------------------------
# Pallas kernel 1: fused H-upsample (2x bilinear) + 3x3 conv + partial BN stats
# ----------------------------------------------------------------------------
def _upconv_kernel(xp_ref, w_ref, y_ref, st_ref):
    # xp_ref : (1, H+2, 2W+2, Cin) bf16  W-upsampled image, H edge-padded rows
    #                                    (bilinear clamp), zero conv-pad columns
    # w_ref  : (9*Cin, Cpad)       bf16  conv taps ordered (kh, kw, cin)
    # y_ref  : (1, RT, 2W, Cpad)   bf16  conv-output row strip (lane-dense)
    # st_ref : (1, 1, 2, Cpad)     f32   per-tile [channel mean ; channel M2]
    _, RT, W2, Cpad = y_ref.shape
    Cin = xp_ref.shape[-1]
    TH = RT // 2

    t = pl.program_id(1)
    nt = pl.num_programs(1)

    # the TH+2 pre-upsample rows this output strip depends on (1-row halo)
    row0 = pl.multiple_of(t * TH, TH)
    xs = xp_ref[0, pl.ds(row0, TH + 2), :, :].astype(jnp.float32)

    # 2x bilinear upsample along H (align_corners=False): 0.25/0.75 blends.
    top = xs[0:TH + 1]
    bot = xs[1:TH + 2]
    h_odd = 0.75 * top + 0.25 * bot            # upsampled rows 2*(row0+k) - 1
    h_even = 0.25 * top + 0.75 * bot           # upsampled rows 2*(row0+k)
    uh = jnp.stack([h_odd, h_even], axis=1).reshape(RT + 2, W2 + 2, Cin)

    # conv zero-padding rows at the global top / bottom of the image
    ridx = jax.lax.broadcasted_iota(jnp.int32, (RT + 2, 1, 1), 0)
    kill = ((t == 0) & (ridx == 0)) | ((t == nt - 1) & (ridx == RT + 1))
    uh = jnp.where(kill, 0.0, uh).astype(jnp.bfloat16)

    # three kw-shifted flattened views (the only relayout copies)
    shifted = [uh[:, kw:kw + W2, :].reshape((RT + 2) * W2, Cin)
               for kw in range(3)]

    # 3x3 conv as 9 accumulated (RT*2W, Cin) @ (Cin, Cpad) matmuls (no im2col)
    acc = None
    for kh in range(3):
        for kw in range(3):
            tap = shifted[kw][kh * W2:(kh + RT) * W2, :]
            wk = w_ref[(kh * 3 + kw) * Cin:(kh * 3 + kw + 1) * Cin, :]
            d = jnp.dot(tap, wk, preferred_element_type=jnp.float32)
            acc = d if acc is None else acc + d

    y_ref[0] = acc.reshape(RT, W2, Cpad).astype(y_ref.dtype)

    # per-tile BatchNorm partial statistics: (mean, M2), Chan-combinable
    cnt = jnp.float32(RT * W2)
    tmean = jnp.sum(acc, axis=0, keepdims=True) / cnt
    tm2 = jnp.sum((acc - tmean) ** 2, axis=0, keepdims=True)
    st_ref[0, 0] = jnp.concatenate([tmean, tm2], axis=0)


# ----------------------------------------------------------------------------
# Pallas kernel 2: fused affine BatchNorm + PReLU + NHWC -> NCHW transpose
# ----------------------------------------------------------------------------
def _bn_prelu_nchw_kernel(y_ref, sc_ref, sh_ref, alpha_ref, o_ref):
    # y_ref  : (1, HT2, 2W, Cpad) bf16   conv output row strip
    # sc/sh  : (1, Cpad)          f32    per-channel BN scale / shift
    # alpha  : (1, 1)             f32    PReLU slope (SMEM)
    # o_ref  : (1, Cout, HT2*2W)  f32    NCHW output, flattened spatial on lanes
    _, HT2, W2, Cpad = y_ref.shape
    cout = o_ref.shape[1]
    m = HT2 * W2

    x = y_ref[0].astype(jnp.float32).reshape(m, Cpad)
    z = x * sc_ref[...] + sh_ref[...]
    a = alpha_ref[0, 0]
    z = jnp.where(z >= 0.0, z, a * z)
    zt = jnp.transpose(z)                     # (Cpad, m): channel-major, lane-dense
    o_ref[0] = zt[:cout, :]                   # drop zero-padded channels


# ----------------------------------------------------------------------------
# forward, mirroring PSPUpsampleTorch(in_ch, out_ch, n_dim=2).forward
# ----------------------------------------------------------------------------
@functools.partial(jax.jit, static_argnames=("eps", "plan"))
def _forward(x, w_oihw, gamma, beta, alpha, *, eps, plan):
    n, cin, h, w = x.shape
    cout = w_oihw.shape[0]
    cpad, th, ht2 = plan.cpad, plan.th, plan.ht2
    w2 = 2 * w

    # ---- W-direction bilinear 2x upsample + padding (XLA, small tensor) -----
    x_nhwc = jnp.transpose(x, (0, 2, 3, 1)).astype(jnp.float32)
    xl = jnp.concatenate([x_nhwc[:, :, :1, :], x_nhwc[:, :, :-1, :]], axis=2)
    xr = jnp.concatenate([x_nhwc[:, :, 1:, :], x_nhwc[:, :, -1:, :]], axis=2)
    xe = 0.25 * xl + 0.75 * x_nhwc                      # even output columns
    xo = 0.75 * x_nhwc + 0.25 * xr                      # odd output columns
    xw = jnp.stack([xe, xo], axis=3).reshape(n, h, w2, cin)
    xw = jnp.pad(xw, ((0, 0), (1, 1), (0, 0), (0, 0)), mode="edge")  # H clamp
    xw = jnp.pad(xw, ((0, 0), (0, 0), (1, 1), (0, 0)))               # conv W pad
    xw = xw.astype(jnp.bfloat16)

    # conv weights -> rows ordered (kh, kw, cin); zero-pad out channels to Cpad
    w9 = jnp.transpose(w_oihw, (2, 3, 1, 0)).reshape(9 * cin, cout)
    w9 = jnp.pad(w9, ((0, 0), (0, cpad - cout))).astype(jnp.bfloat16)

    # ---- kernel 1: H-upsample + conv + per-tile stats ------------------------
    t_tiles = h // th
    rt = 2 * th
    y, stats = pl.pallas_call(
        _upconv_kernel,
        out_shape=(
            jax.ShapeDtypeStruct((n, 2 * h, w2, cpad), jnp.bfloat16),
            jax.ShapeDtypeStruct((n, t_tiles, 2, cpad), jnp.float32),
        ),
        grid=(n, t_tiles),
        in_specs=[
            # whole (small) padded image, resident across its row tiles
            pl.BlockSpec((1, h + 2, w2 + 2, cin), lambda i, t: (i, 0, 0, 0)),
            pl.BlockSpec((9 * cin, cpad), lambda i, t: (0, 0)),
        ],
        out_specs=(
            pl.BlockSpec((1, rt, w2, cpad), lambda i, t: (i, t, 0, 0)),
            pl.BlockSpec((1, 1, 2, cpad), lambda i, t: (i, t, 0, 0)),
        ),
        compiler_params=pltpu.CompilerParams(
            dimension_semantics=("parallel", "parallel"),
            vmem_limit_bytes=plan.vmem_limit,
        ),
    )(xw, w9)

    # ---- BatchNorm2d training-mode statistics (Chan-style combine) -----------
    tile_mean = stats[:, :, 0, :]                       # (N, T, Cpad)
    tile_m2 = stats[:, :, 1, :]
    n_tile = jnp.float32(rt * w2)
    mean = jnp.mean(tile_mean, axis=(0, 1))
    m2 = (jnp.sum(tile_m2, axis=(0, 1))
          + n_tile * jnp.sum((tile_mean - mean) ** 2, axis=(0, 1)))
    var = jnp.maximum(m2 / (n_tile * n * t_tiles), 0.0)
    invstd = jax.lax.rsqrt(var + eps)
    gamma_p = jnp.pad(gamma.astype(jnp.float32), (0, cpad - cout))
    beta_p = jnp.pad(beta.astype(jnp.float32), (0, cpad - cout))
    scale = (gamma_p * invstd).reshape(1, cpad)
    shift = (beta_p - mean * gamma_p * invstd).reshape(1, cpad)

    # ---- kernel 2: BN + PReLU + transpose to NCHW, lane-dense output ---------
    r_tiles = (2 * h) // ht2
    alpha_arr = jnp.asarray(alpha, jnp.float32).reshape(1, 1)
    out = pl.pallas_call(
        _bn_prelu_nchw_kernel,
        out_shape=jax.ShapeDtypeStruct((n, cout, 2 * h * w2), jnp.float32),
        grid=(n, r_tiles),
        in_specs=[
            pl.BlockSpec((1, ht2, w2, cpad), lambda i, r: (i, r, 0, 0)),
            pl.BlockSpec((1, cpad), lambda i, r: (0, 0)),
            pl.BlockSpec((1, cpad), lambda i, r: (0, 0)),
            pl.BlockSpec(memory_space=pltpu.MemorySpace.SMEM),
        ],
        out_specs=pl.BlockSpec((1, cout, ht2 * w2), lambda i, r: (i, 0, r)),
        compiler_params=pltpu.CompilerParams(
            dimension_semantics=("parallel", "parallel"),
            vmem_limit_bytes=plan.vmem_limit,
        ),
    )(y, scale, shift, alpha_arr)

    # free (metadata-only) reshape back to NCHW
    return out.reshape(n, cout, 2 * h, 2 * w)


def psp_upsample_forward(x, w, b, gamma, beta, prelu_alpha, eps=1e-5):
    # conv bias cancels exactly under training-mode BatchNorm (batch stats).
    del b
    n, cin, h, w_sp = x.shape
    plan = _plan(n, cin, h, w_sp, w.shape[0])
    return _forward(x, w, gamma, beta, jnp.asarray(prelu_alpha, jnp.float32),
                    eps=float(eps), plan=plan)


# ----------------------------------------------------------------------------
# plain-JAX reference (numerical cross-check only)
# ----------------------------------------------------------------------------
def _upsample2x_bilinear_nchw_ref(x):
    _, _, h, w = x.shape

    def idx_frac(n_in):
        o = jnp.arange(2 * n_in, dtype=jnp.float32)
        coord = (o + 0.5) / 2.0 - 0.5
        lo = jnp.floor(coord)
        frac = coord - lo
        lo_i = jnp.clip(lo, 0, n_in - 1).astype(jnp.int32)
        hi_i = jnp.clip(lo + 1, 0, n_in - 1).astype(jnp.int32)
        return lo_i, hi_i, frac

    lh, hh, fh = idx_frac(h)
    lw, hw, fw = idx_frac(w)
    xh = (x[:, :, lh, :] * (1.0 - fh)[None, None, :, None]
          + x[:, :, hh, :] * fh[None, None, :, None])
    return (xh[:, :, :, lw] * (1.0 - fw)[None, None, None, :]
            + xh[:, :, :, hw] * fw[None, None, None, :])


def _reference_forward(x, w, b, gamma, beta, alpha, eps=1e-5):
    xu = _upsample2x_bilinear_nchw_ref(x)
    y = jax.lax.conv_general_dilated(
        xu, w, window_strides=(1, 1), padding=((1, 1), (1, 1)),
        dimension_numbers=("NCHW", "OIHW", "NCHW"))
    y = y + b.reshape(1, -1, 1, 1)
    mean = jnp.mean(y, axis=(0, 2, 3), keepdims=True)
    var = jnp.mean((y - mean) ** 2, axis=(0, 2, 3), keepdims=True)
    yn = ((y - mean) / jnp.sqrt(var + eps) * gamma.reshape(1, -1, 1, 1)
          + beta.reshape(1, -1, 1, 1))
    return jnp.where(yn >= 0, yn, alpha * yn)


if __name__ == "__main__":
    N, Cin, H, W = 2, 4, 16, 16
    Cout = 8

    key = jax.random.PRNGKey(0)
    kx, kw, kb = jax.random.split(key, 3)
    x = jax.random.normal(kx, (N, Cin, H, W), jnp.float32)

    # Parameters with the same shapes as the torch module:
    w = jax.random.normal(kw, (Cout, Cin, 3, 3), jnp.float32) * 0.1
    b = jax.random.normal(kb, (Cout,), jnp.float32) * 0.1
    gamma = jnp.ones((Cout,), jnp.float32)        # BatchNorm2d default init
    beta = jnp.zeros((Cout,), jnp.float32)
    prelu_alpha = 0.25                            # PReLU default init

    out = jax.block_until_ready(
        psp_upsample_forward(x, w, b, gamma, beta, prelu_alpha))
    assert out.shape == (N, Cout, 2 * H, 2 * W), out.shape

    # Numerical cross-check (reference keeps the conv bias; it cancels under
    # training-mode BN, so outputs must agree up to bf16 matmul rounding).
    ref = jax.block_until_ready(
        _reference_forward(x, w, b, gamma, beta, prelu_alpha))
    if not bool(jnp.allclose(out, ref, rtol=5e-2, atol=5e-2)):
        max_err = float(jnp.max(jnp.abs(out - ref)))
        raise SystemExit(f"mismatch vs reference, max abs err = {max_err}")

    print("KERNEL_OK")
</pallas_src>

<mosaic_0001>
module attributes {stable_mosaic.version = 11 : i64} {
  func.func @_upconv_kernel(%arg0: i32, %arg1: i32, %arg2: memref<1x18x34x4xbf16, #tpu.memory_space<vmem>>, %arg3: memref<36x128xbf16, #tpu.memory_space<vmem>>, %arg4: memref<1x32x32x128xbf16, #tpu.memory_space<vmem>>, %arg5: memref<1x1x2x128xf32, #tpu.memory_space<vmem>>) attributes {dimension_semantics = [#tpu.dimension_semantics<parallel>, #tpu.dimension_semantics<parallel>], iteration_bounds = array<i64: 2, 1>, scalar_prefetch = 0 : i64, scratch_operands = 0 : i64, tpu.core_type = #tpu.core_type<tc>, window_params = [{transform_indices = @transform_0, window_bounds = array<i64: 1, 18, 34, 4>}, {pipeline_mode = #tpu.pipeline_mode<synchronous>, transform_indices = @transform_1, window_bounds = array<i64: 36, 128>}, {transform_indices = @transform_2, window_bounds = array<i64: 1, 32, 32, 128>}, {transform_indices = @transform_3, window_bounds = array<i64: 1, 1, 2, 128>}]} {
    %c16_i32 = arith.constant 16 : i32
    %0 = arith.muli %arg1, %c16_i32 : i32
    %1 = tpu.assume_multiple %0, 16 : i32
    %c0 = arith.constant 0 : index
    %2 = arith.index_cast %1 : i32 to index
    %c0_0 = arith.constant 0 : index
    %c0_1 = arith.constant 0 : index
    %3 = vector.load %arg2[%c0, %2, %c0_0, %c0_1] : memref<1x18x34x4xbf16, #tpu.memory_space<vmem>>, vector<1x18x34x4xbf16>
    %4 = vector.shape_cast %3 : vector<1x18x34x4xbf16> to vector<18x34x4xbf16>
    %5 = arith.extf %4 : vector<18x34x4xbf16> to vector<18x34x4xf32>
    %6 = vector.extract_strided_slice %5 {offsets = [0, 0, 0], sizes = [17, 34, 4], strides = [1, 1, 1]} : vector<18x34x4xf32> to vector<17x34x4xf32>
    %7 = vector.extract_strided_slice %5 {offsets = [1, 0, 0], sizes = [17, 34, 4], strides = [1, 1, 1]} : vector<18x34x4xf32> to vector<17x34x4xf32>
    %cst = arith.constant 7.500000e-01 : f32
    %8 = vector.broadcast %cst : f32 to vector<17x34x4xf32>
    %9 = arith.mulf %8, %6 : vector<17x34x4xf32>
    %cst_2 = arith.constant 2.500000e-01 : f32
    %10 = vector.broadcast %cst_2 : f32 to vector<17x34x4xf32>
    %11 = arith.mulf %10, %7 : vector<17x34x4xf32>
    %12 = arith.addf %9, %11 : vector<17x34x4xf32>
    %cst_3 = arith.constant 2.500000e-01 : f32
    %13 = vector.broadcast %cst_3 : f32 to vector<17x34x4xf32>
    %14 = arith.mulf %13, %6 : vector<17x34x4xf32>
    %cst_4 = arith.constant 7.500000e-01 : f32
    %15 = vector.broadcast %cst_4 : f32 to vector<17x34x4xf32>
    %16 = arith.mulf %15, %7 : vector<17x34x4xf32>
    %17 = arith.addf %14, %16 : vector<17x34x4xf32>
    %18 = vector.shape_cast %12 : vector<17x34x4xf32> to vector<17x1x34x4xf32>
    %19 = vector.shape_cast %17 : vector<17x34x4xf32> to vector<17x1x34x4xf32>
    %20 = tpu.concatenate %18, %19 in 1 : vector<17x1x34x4xf32>, vector<17x1x34x4xf32> -> vector<17x2x34x4xf32>
    %21 = vector.shape_cast %20 : vector<17x2x34x4xf32> to vector<34x34x4xf32>
    %22 = tpu.iota {dimensions = array<i32: 0>} : vector<34x1x1xi32>
    %c0_i32 = arith.constant 0 : i32
    %23 = arith.cmpi eq, %arg1, %c0_i32 : i32
    %c0_i32_5 = arith.constant 0 : i32
    %24 = vector.broadcast %c0_i32_5 : i32 to vector<34x1x1xi32>
    %25 = arith.cmpi eq, %22, %24 : vector<34x1x1xi32>
    %26 = vector.broadcast %23 : i1 to vector<34x1x1xi1>
    %27 = arith.andi %26, %25 : vector<34x1x1xi1>
    %c0_i32_6 = arith.constant 0 : i32
    %28 = arith.cmpi eq, %arg1, %c0_i32_6 : i32
    %c33_i32 = arith.constant 33 : i32
    %29 = vector.broadcast %c33_i32 : i32 to vector<34x1x1xi32>
    %30 = arith.cmpi eq, %22, %29 : vector<34x1x1xi32>
    %31 = vector.broadcast %28 : i1 to vector<34x1x1xi1>
    %32 = arith.andi %31, %30 : vector<34x1x1xi1>
    %33 = arith.ori %27, %32 : vector<34x1x1xi1>
    %cst_7 = arith.constant 0.000000e+00 : f32
    %34 = vector.shape_cast %33 : vector<34x1x1xi1> to vector<34x1x1xi1>
    %35 = vector.broadcast %34 : vector<34x1x1xi1> to vector<34x34x4xi1>
    %36 = vector.broadcast %cst_7 : f32 to vector<34x34x4xf32>
    %37 = arith.select %35, %36, %21 : vector<34x34x4xi1>, vector<34x34x4xf32>
    %38 = arith.truncf %37 : vector<34x34x4xf32> to vector<34x34x4xbf16>
    %39 = vector.extract_strided_slice %38 {offsets = [0, 0, 0], sizes = [34, 32, 4], strides = [1, 1, 1]} : vector<34x34x4xbf16> to vector<34x32x4xbf16>
    %40 = vector.shape_cast %39 : vector<34x32x4xbf16> to vector<1088x4xbf16>
    %41 = vector.extract_strided_slice %38 {offsets = [0, 1, 0], sizes = [34, 32, 4], strides = [1, 1, 1]} : vector<34x34x4xbf16> to vector<34x32x4xbf16>
    %42 = vector.shape_cast %41 : vector<34x32x4xbf16> to vector<1088x4xbf16>
    %43 = vector.extract_strided_slice %38 {offsets = [0, 2, 0], sizes = [34, 32, 4], strides = [1, 1, 1]} : vector<34x34x4xbf16> to vector<34x32x4xbf16>
    %44 = vector.shape_cast %43 : vector<34x32x4xbf16> to vector<1088x4xbf16>
    %45 = vector.extract_strided_slice %40 {offsets = [0, 0], sizes = [1024, 4], strides = [1, 1]} : vector<1088x4xbf16> to vector<1024x4xbf16>
    %c0_8 = arith.constant 0 : index
    %c0_9 = arith.constant 0 : index
    %46 = vector.load %arg3[%c0_8, %c0_9] : memref<36x128xbf16, #tpu.memory_space<vmem>>, vector<4x128xbf16>
    %cst_10 = arith.constant dense<0.000000e+00> : vector<1024x128xf32>
    %47 = tpu.matmul %45, %46, %cst_10 {dimension_numbers = #tpu.dot_dimension_numbers<[1], [0], [0], [1], [0, 0, 1, 1], [], []>} : vector<1024x4xbf16>, vector<4x128xbf16>, vector<1024x128xf32> -> vector<1024x128xf32>
    %48 = vector.extract_strided_slice %42 {offsets = [0, 0], sizes = [1024, 4], strides = [1, 1]} : vector<1088x4xbf16> to vector<1024x4xbf16>
    %c4 = arith.constant 4 : index
    %c0_11 = arith.constant 0 : index
    %49 = vector.load %arg3[%c4, %c0_11] : memref<36x128xbf16, #tpu.memory_space<vmem>>, vector<4x128xbf16>
    %cst_12 = arith.constant dense<0.000000e+00> : vector<1024x128xf32>
    %50 = tpu.matmul %48, %49, %cst_12 {dimension_numbers = #tpu.dot_dimension_numbers<[1], [0], [0], [1], [0, 0, 1, 1], [], []>} : vector<1024x4xbf16>, vector<4x128xbf16>, vector<1024x128xf32> -> vector<1024x128xf32>
    %51 = arith.addf %47, %50 : vector<1024x128xf32>
    %52 = vector.extract_strided_slice %44 {offsets = [0, 0], sizes = [1024, 4], strides = [1, 1]} : vector<1088x4xbf16> to vector<1024x4xbf16>
    %c8 = arith.constant 8 : index
    %c0_13 = arith.constant 0 : index
    %53 = vector.load %arg3[%c8, %c0_13] : memref<36x128xbf16, #tpu.memory_space<vmem>>, vector<4x128xbf16>
    %cst_14 = arith.constant dense<0.000000e+00> : vector<1024x128xf32>
    %54 = tpu.matmul %52, %53, %cst_14 {dimension_numbers = #tpu.dot_dimension_numbers<[1], [0], [0], [1], [0, 0, 1, 1], [], []>} : vector<1024x4xbf16>, vector<4x128xbf16>, vector<1024x128xf32> -> vector<1024x128xf32>
    %55 = arith.addf %51, %54 : vector<1024x128xf32>
    %56 = vector.extract_strided_slice %40 {offsets = [32, 0], sizes = [1024, 4], strides = [1, 1]} : vector<1088x4xbf16> to vector<1024x4xbf16>
    %c12 = arith.constant 12 : index
    %c0_15 = arith.constant 0 : index
    %57 = vector.load %arg3[%c12, %c0_15] : memref<36x128xbf16, #tpu.memory_space<vmem>>, vector<4x128xbf16>
    %cst_16 = arith.constant dense<0.000000e+00> : vector<1024x128xf32>
    %58 = tpu.matmul %56, %57, %cst_16 {dimension_numbers = #tpu.dot_dimension_numbers<[1], [0], [0], [1], [0, 0, 1, 1], [], []>} : vector<1024x4xbf16>, vector<4x128xbf16>, vector<1024x128xf32> -> vector<1024x128xf32>
    %59 = arith.addf %55, %58 : vector<1024x128xf32>
    %60 = vector.extract_strided_slice %42 {offsets = [32, 0], sizes = [1024, 4], strides = [1, 1]} : vector<1088x4xbf16> to vector<1024x4xbf16>
    %c16 = arith.constant 16 : index
    %c0_17 = arith.constant 0 : index
    %61 = vector.load %arg3[%c16, %c0_17] : memref<36x128xbf16, #tpu.memory_space<vmem>>, vector<4x128xbf16>
    %cst_18 = arith.constant dense<0.000000e+00> : vector<1024x128xf32>
    %62 = tpu.matmul %60, %61, %cst_18 {dimension_numbers = #tpu.dot_dimension_numbers<[1], [0], [0], [1], [0, 0, 1, 1], [], []>} : vector<1024x4xbf16>, vector<4x128xbf16>, vector<1024x128xf32> -> vector<1024x128xf32>
    %63 = arith.addf %59, %62 : vector<1024x128xf32>
    %64 = vector.extract_strided_slice %44 {offsets = [32, 0], sizes = [1024, 4], strides = [1, 1]} : vector<1088x4xbf16> to vector<1024x4xbf16>
    %c20 = arith.constant 20 : index
    %c0_19 = arith.constant 0 : index
    %65 = vector.load %arg3[%c20, %c0_19] : memref<36x128xbf16, #tpu.memory_space<vmem>>, vector<4x128xbf16>
    %cst_20 = arith.constant dense<0.000000e+00> : vector<1024x128xf32>
    %66 = tpu.matmul %64, %65, %cst_20 {dimension_numbers = #tpu.dot_dimension_numbers<[1], [0], [0], [1], [0, 0, 1, 1], [], []>} : vector<1024x4xbf16>, vector<4x128xbf16>, vector<1024x128xf32> -> vector<1024x128xf32>
    %67 = arith.addf %63, %66 : vector<1024x128xf32>
    %68 = vector.extract_strided_slice %40 {offsets = [64, 0], sizes = [1024, 4], strides = [1, 1]} : vector<1088x4xbf16> to vector<1024x4xbf16>
    %c24 = arith.constant 24 : index
    %c0_21 = arith.constant 0 : index
    %69 = vector.load %arg3[%c24, %c0_21] : memref<36x128xbf16, #tpu.memory_space<vmem>>, vector<4x128xbf16>
    %cst_22 = arith.constant dense<0.000000e+00> : vector<1024x128xf32>
    %70 = tpu.matmul %68, %69, %cst_22 {dimension_numbers = #tpu.dot_dimension_numbers<[1], [0], [0], [1], [0, 0, 1, 1], [], []>} : vector<1024x4xbf16>, vector<4x128xbf16>, vector<1024x128xf32> -> vector<1024x128xf32>
    %71 = arith.addf %67, %70 : vector<1024x128xf32>
    %72 = vector.extract_strided_slice %42 {offsets = [64, 0], sizes = [1024, 4], strides = [1, 1]} : vector<1088x4xbf16> to vector<1024x4xbf16>
    %c28 = arith.constant 28 : index
    %c0_23 = arith.constant 0 : index
    %73 = vector.load %arg3[%c28, %c0_23] : memref<36x128xbf16, #tpu.memory_space<vmem>>, vector<4x128xbf16>
    %cst_24 = arith.constant dense<0.000000e+00> : vector<1024x128xf32>
    %74 = tpu.matmul %72, %73, %cst_24 {dimension_numbers = #tpu.dot_dimension_numbers<[1], [0], [0], [1], [0, 0, 1, 1], [], []>} : vector<1024x4xbf16>, vector<4x128xbf16>, vector<1024x128xf32> -> vector<1024x128xf32>
    %75 = arith.addf %71, %74 : vector<1024x128xf32>
    %76 = vector.extract_strided_slice %44 {offsets = [64, 0], sizes = [1024, 4], strides = [1, 1]} : vector<1088x4xbf16> to vector<1024x4xbf16>
    %c32 = arith.constant 32 : index
    %c0_25 = arith.constant 0 : index
    %77 = vector.load %arg3[%c32, %c0_25] : memref<36x128xbf16, #tpu.memory_space<vmem>>, vector<4x128xbf16>
    %cst_26 = arith.constant dense<0.000000e+00> : vector<1024x128xf32>
    %78 = tpu.matmul %76, %77, %cst_26 {dimension_numbers = #tpu.dot_dimension_numbers<[1], [0], [0], [1], [0, 0, 1, 1], [], []>} : vector<1024x4xbf16>, vector<4x128xbf16>, vector<1024x128xf32> -> vector<1024x128xf32>
    %79 = arith.addf %75, %78 : vector<1024x128xf32>
    %80 = vector.shape_cast %79 : vector<1024x128xf32> to vector<32x32x128xf32>
    %81 = arith.truncf %80 : vector<32x32x128xf32> to vector<32x32x128xbf16>
    %c0_27 = arith.constant 0 : index
    %c0_28 = arith.constant 0 : index
    %c0_29 = arith.constant 0 : index
    %c0_30 = arith.constant 0 : index
    %82 = vector.load %arg4[%c0_27, %c0_28, %c0_29, %c0_30] : memref<1x32x32x128xbf16, #tpu.memory_space<vmem>>, vector<1x32x32x128xbf16>
    %83 = vector.shape_cast %82 : vector<1x32x32x128xbf16> to vector<32x32x128xbf16>
    %84 = vector.shape_cast %81 : vector<32x32x128xbf16> to vector<1x32x32x128xbf16>
    tpu.vector_store %arg4[%c0_27, %c0_28, %c0_29, %c0_30], %84 {strides = array<i32>} : memref<1x32x32x128xbf16, #tpu.memory_space<vmem>>, vector<1x32x32x128xbf16>,
    %cst_31 = arith.constant dense<0.000000e+00> : vector<128xf32>
    %85 = vector.multi_reduction <add>, %79, %cst_31 [0] : vector<1024x128xf32> to vector<128xf32>
    %86 = vector.shape_cast %85 : vector<128xf32> to vector<1x128xf32>
    %cst_32 = arith.constant 1.024000e+03 : f32
    %87 = vector.broadcast %cst_32 : f32 to vector<1x128xf32>
    %88 = arith.divf %86, %87 : vector<1x128xf32>
    %89 = vector.broadcast %88 : vector<1x128xf32> to vector<1024x128xf32>
    %90 = arith.subf %79, %89 : vector<1024x128xf32>
    %91 = arith.mulf %90, %90 : vector<1024x128xf32>
    %cst_33 = arith.constant dense<0.000000e+00> : vector<128xf32>
    %92 = vector.multi_reduction <add>, %91, %cst_33 [0] : vector<1024x128xf32> to vector<128xf32>
    %93 = vector.shape_cast %92 : vector<128xf32> to vector<1x128xf32>
    %94 = tpu.concatenate %88, %93 in 0 : vector<1x128xf32>, vector<1x128xf32> -> vector<2x128xf32>
    %c0_34 = arith.constant 0 : index
    %c0_35 = arith.constant 0 : index
    %c0_36 = arith.constant 0 : index
    %c0_37 = arith.constant 0 : index
    %95 = vector.load %arg5[%c0_34, %c0_35, %c0_36, %c0_37] : memref<1x1x2x128xf32, #tpu.memory_space<vmem>>, vector<1x1x2x128xf32>
    %96 = vector.shape_cast %95 : vector<1x1x2x128xf32> to vector<2x128xf32>
    %97 = vector.shape_cast %94 : vector<2x128xf32> to vector<1x1x2x128xf32>
    tpu.vector_store %arg5[%c0_34, %c0_35, %c0_36, %c0_37], %97 {strides = array<i32>} : memref<1x1x2x128xf32, #tpu.memory_space<vmem>>, vector<1x1x2x128xf32>,
    return
  }
  func.func @transform_0(%arg0: i32, %arg1: i32) -> (i32, i32, i32, i32) {
    %c0_i32 = arith.constant 0 : i32
    %c0_i32_0 = arith.constant 0 : i32
    %c0_i32_1 = arith.constant 0 : i32
    %c0_i32_2 = arith.constant 0 : i32
    return %arg0, %c0_i32, %c0_i32_0, %c0_i32_1 : i32, i32, i32, i32
  }
  func.func @transform_1(%arg0: i32, %arg1: i32) -> (i32, i32) {
    %c0_i32 = arith.constant 0 : i32
    %c0_i32_0 = arith.constant 0 : i32
    %c0_i32_1 = arith.constant 0 : i32
    return %c0_i32, %c0_i32_0 : i32, i32
  }
  func.func @transform_2(%arg0: i32, %arg1: i32) -> (i32, i32, i32, i32) {
    %c0_i32 = arith.constant 0 : i32
    %c0_i32_0 = arith.constant 0 : i32
    %c0_i32_1 = arith.constant 0 : i32
    return %arg0, %arg1, %c0_i32, %c0_i32_0 : i32, i32, i32, i32
  }
  func.func @transform_3(%arg0: i32, %arg1: i32) -> (i32, i32, i32, i32) {
    %c0_i32 = arith.constant 0 : i32
    %c0_i32_0 = arith.constant 0 : i32
    %c0_i32_1 = arith.constant 0 : i32
    return %arg0, %arg1, %c0_i32, %c0_i32_0 : i32, i32, i32, i32
  }
}

module attributes {stable_mosaic.version = 11 : i64} {
  func.func @_bn_prelu_nchw_kernel(%arg0: i32, %arg1: i32, %arg2: memref<1x32x32x128xbf16, #tpu.memory_space<vmem>>, %arg3: memref<1x128xf32, #tpu.memory_space<vmem>>, %arg4: memref<1x128xf32, #tpu.memory_space<vmem>>, %arg5: memref<1x1xf32, #tpu.memory_space<smem>>, %arg6: memref<1x8x1024xf32, #tpu.memory_space<vmem>>) attributes {dimension_semantics = [#tpu.dimension_semantics<parallel>, #tpu.dimension_semantics<parallel>], iteration_bounds = array<i64: 2, 1>, scalar_prefetch = 0 : i64, scratch_operands = 0 : i64, tpu.core_type = #tpu.core_type<tc>, window_params = [{transform_indices = @transform_0, window_bounds = array<i64: 1, 32, 32, 128>}, {pipeline_mode = #tpu.pipeline_mode<synchronous>, transform_indices = @transform_1, window_bounds = array<i64: 1, 128>}, {pipeline_mode = #tpu.pipeline_mode<synchronous>, transform_indices = @transform_2, window_bounds = array<i64: 1, 128>}, {transform_indices = @transform_3, window_bounds = array<i64: 1, 1>}, {transform_indices = @transform_4, window_bounds = array<i64: 1, 8, 1024>}]} {
    %c0 = arith.constant 0 : index
    %c0_0 = arith.constant 0 : index
    %c0_1 = arith.constant 0 : index
    %c0_2 = arith.constant 0 : index
    %0 = vector.load %arg2[%c0, %c0_0, %c0_1, %c0_2] : memref<1x32x32x128xbf16, #tpu.memory_space<vmem>>, vector<1x32x32x128xbf16>
    %1 = vector.shape_cast %0 : vector<1x32x32x128xbf16> to vector<32x32x128xbf16>
    %2 = arith.extf %1 : vector<32x32x128xbf16> to vector<32x32x128xf32>
    %3 = vector.shape_cast %2 : vector<32x32x128xf32> to vector<1024x128xf32>
    %c0_3 = arith.constant 0 : index
    %c0_4 = arith.constant 0 : index
    %4 = vector.load %arg3[%c0_3, %c0_4] : memref<1x128xf32, #tpu.memory_space<vmem>>, vector<1x128xf32>
    %5 = vector.broadcast %4 : vector<1x128xf32> to vector<1024x128xf32>
    %6 = arith.mulf %3, %5 : vector<1024x128xf32>
    %c0_5 = arith.constant 0 : index
    %c0_6 = arith.constant 0 : index
    %7 = vector.load %arg4[%c0_5, %c0_6] : memref<1x128xf32, #tpu.memory_space<vmem>>, vector<1x128xf32>
    %8 = vector.broadcast %7 : vector<1x128xf32> to vector<1024x128xf32>
    %9 = arith.addf %6, %8 : vector<1024x128xf32>
    %c0_7 = arith.constant 0 : index
    %c0_8 = arith.constant 0 : index
    %10 = memref.load %arg5[%c0_7, %c0_8] : memref<1x1xf32, #tpu.memory_space<smem>>
    %cst = arith.constant 0.000000e+00 : f32
    %11 = vector.broadcast %cst : f32 to vector<1024x128xf32>
    %12 = arith.cmpf oge, %9, %11 : vector<1024x128xf32>
    %13 = vector.broadcast %10 : f32 to vector<1024x128xf32>
    %14 = arith.mulf %13, %9 : vector<1024x128xf32>
    %15 = arith.select %12, %9, %14 : vector<1024x128xi1>, vector<1024x128xf32>
    %16 = tpu.transpose %15, [1, 0] : vector<1024x128xf32> -> vector<128x1024xf32>
    %17 = vector.extract_strided_slice %16 {offsets = [0, 0], sizes = [8, 1024], strides = [1, 1]} : vector<128x1024xf32> to vector<8x1024xf32>
    %c0_9 = arith.constant 0 : index
    %c0_10 = arith.constant 0 : index
    %c0_11 = arith.constant 0 : index
    %18 = vector.load %arg6[%c0_9, %c0_10, %c0_11] : memref<1x8x1024xf32, #tpu.memory_space<vmem>>, vector<1x8x1024xf32>
    %19 = vector.shape_cast %18 : vector<1x8x1024xf32> to vector<8x1024xf32>
    %20 = vector.shape_cast %17 : vector<8x1024xf32> to vector<1x8x1024xf32>
    tpu.vector_store %arg6[%c0_9, %c0_10, %c0_11], %20 {strides = array<i32>} : memref<1x8x1024xf32, #tpu.memory_space<vmem>>, vector<1x8x1024xf32>,
    return
  }
  func.func @transform_0(%arg0: i32, %arg1: i32) -> (i32, i32, i32, i32) {
    %c0_i32 = arith.constant 0 : i32
    %c0_i32_0 = arith.constant 0 : i32
    %c0_i32_1 = arith.constant 0 : i32
    return %arg0, %arg1, %c0_i32, %c0_i32_0 : i32, i32, i32, i32
  }
  func.func @transform_1(%arg0: i32, %arg1: i32) -> (i32, i32) {
    %c0_i32 = arith.constant 0 : i32
    %c0_i32_0 = arith.constant 0 : i32
    %c0_i32_1 = arith.constant 0 : i32
    return %c0_i32, %c0_i32_0 : i32, i32
  }
  func.func @transform_2(%arg0: i32, %arg1: i32) -> (i32, i32) {
    %c0_i32 = arith.constant 0 : i32
    %c0_i32_0 = arith.constant 0 : i32
    %c0_i32_1 = arith.constant 0 : i32
    return %c0_i32, %c0_i32_0 : i32, i32
  }
  func.func @transform_3(%arg0: i32, %arg1: i32) -> (i32, i32) {
    %c0_i32 = arith.constant 0 : i32
    %c0_i32_0 = arith.constant 0 : i32
    %c0_i32_1 = arith.constant 0 : i32
    return %c0_i32, %c0_i32_0 : i32, i32
  }
  func.func @transform_4(%arg0: i32, %arg1: i32) -> (i32, i32, i32) {
    %c0_i32 = arith.constant 0 : i32
    %c0_i32_0 = arith.constant 0 : i32
    return %arg0, %c0_i32, %arg1 : i32, i32, i32
  }
}

</mosaic_0001>

<llo_original>
// kernel: _forward.3
$region0: #{_forward.3}
  #allocation0 [shape = 'u32[]', space=smem, size = 0x4, offset = 0x4, fixed_abs, tag = 'smem constant byte address 0x4 - core index']
  #allocation1 [shape = 'u32[72,128]{1,0:T(1,128)}', space=vmem, size = 0x9000, scoped, tag = 'internal scratch']
  #allocation2 [shape = 'f32[1,1]{1,0:T(1,128)S(6)}', space=smem, size = 0x200, scoped, tag = 'scoped memory for _forward.3']
  %s0 = inlined_call_operand.vmem [shape: bf16[2,32,32,128], index: 0, kind: input, shape index: {}]
  %s1 = inlined_call_operand.vmem [shape: f32[1,128], index: 1, kind: input, shape index: {}]
  %s2 = inlined_call_operand.vmem [shape: f32[1,128], index: 2, kind: input, shape index: {}]
  %s3 = inlined_call_operand.<no memory space> [shape: f32[1,1], index: 3, kind: input, shape index: {}]
  %s4 = inlined_call_operand.vmem [shape: f32[2,8,1024], index: 4, kind: output, shape index: {}]
  %s5 = sld [smem:[#allocation0]]
  $region49: #{_forward.3} parent=0
    _
  %s7 = ssub.s32 1, %s5
  %s8 = scalar_select 0, %s7, %s5
  %9 = sst [smem:[#allocation2]] %s3
  loop: start=0, step=1, limit=4
  $region2: #{_forward.3} parent=0 // loop_pre_header
    _
  $region3: #{_forward.3} parent=0 // loop_header
    %s11 = sphi 0, %s15
    %p12 = scmp.ge.s32.totalorder %s11, 4
    %s18 = sphi 0, %s30
    %s19 = sphi 0, %s26
    %s20 = sphi 0, %s18
    %s21 = sphi 0, %s19
    %s22 = sphi 0, %s20
    %s23 = sphi 0, %s21
    %s35 = sphi 0, %s37
    %s38 = sphi 0, %s35
    %s39 = sphi 0, %s38
    %s55 = sphi 0, %s39
    %s59 = sphi 0, %s59
    %s61 = sphi 0, %s59
    %s62 = sphi 0, %s61
    %s76 = sphi 0, %s62
    %s80 = sphi 0, %s80
    %s82 = sphi 0, %s80
    %s83 = sphi 0, %s82
    %s97 = sphi 0, %s83
    %s101 = sphi 0, %s101
    %s103 = sphi 0, %s101
    %s104 = sphi 0, %s103
    %s118 = sphi 0, %s104
    %s126 = sphi 0, %s128
    %s129 = sphi 0, %s126
    %s130 = sphi 0, %s129
    %s146 = sphi 0, %s130
  $region4: #{_forward.3} parent=0 // loop_header_branch
    %14 = sbr.rel (%p12) target = $region8
  $region5: #{_forward.3} parent=0 // loop_body
    %s16 = ssub.s32 %s11, 1
    %s17 = ssub.s32 %s11, 2
    %s24 = sadd.s32 1, %s19
    %p25 = scmp.ge.s32.totalorder %s24, 1
    %s26 = scalar_select %p25, 0, %s24
    %s27 = sadd.s32 1, %s18
    %s28 = scalar_select %p25, %s27, %s18
    %p29 = scmp.ge.s32.totalorder %s28, 2
    %s30 = scalar_select %p29, 0, %s28
    %s31 = ssub.s32 %s18, %s30
    %s32 = ssub.s32 %s19, %s26
    %s33 = sor.u32 %s31, %s32
    %p34 = scmp.eq.s32.totalorder %s33, 0
    %s36 = sadd.s32 %s35, 1
    %s37 = scalar_select %p34, %s35, %s36
    %p40 = pneg %p34
    %p41 = scmp.eq.s32.totalorder %s11, 1
    %p42 = por %p40, %p41
    %p43 = scmp.ne.s32.totalorder %s35, %s38
    %p44 = scmp.eq.s32.totalorder %s11, 0
    %p45 = por %p43, %p44
    %p46 = scmp.ne.s32.totalorder %s35, %s38
    %p47 = scmp.eq.s32.totalorder %s16, 1
    %p48 = por %p46, %p47
    %p49 = scmp.ne.s32.totalorder %s38, %s39
    %p50 = scmp.eq.s32.totalorder %s16, 0
    %p51 = por %p49, %p50
    %p52 = scmp.ne.s32.totalorder %s38, %s39
    %p53 = scmp.eq.s32.totalorder %s17, 1
    %p54 = por %p52, %p53
    %p56 = scmp.ne.s32.totalorder %s39, %s55
    %p57 = scmp.eq.s32.totalorder %s17, 0
    %p58 = por %p56, %p57
    %s60 = sadd.s32 %s59, 1
    %p63 = scmp.eq.s32.totalorder %s11, 1
    %p64 = scmp.ne.s32.totalorder %s59, %s61
    %p65 = scmp.eq.s32.totalorder %s11, 0
    %p66 = por %p64, %p65
    %p67 = scmp.ne.s32.totalorder %s59, %s61
    %p68 = scmp.eq.s32.totalorder %s16, 1
    %p69 = por %p67, %p68
    %p70 = scmp.ne.s32.totalorder %s61, %s62
    %p71 = scmp.eq.s32.totalorder %s16, 0
    %p72 = por %p70, %p71
    %p73 = scmp.ne.s32.totalorder %s61, %s62
    %p74 = scmp.eq.s32.totalorder %s17, 1
    %p75 = por %p73, %p74
    %p77 = scmp.ne.s32.totalorder %s62, %s76
    %p78 = scmp.eq.s32.totalorder %s17, 0
    %p79 = por %p77, %p78
    %s81 = sadd.s32 %s80, 1
    %p84 = scmp.eq.s32.totalorder %s11, 1
    %p85 = scmp.ne.s32.totalorder %s80, %s82
    %p86 = scmp.eq.s32.totalorder %s11, 0
    %p87 = por %p85, %p86
    %p88 = scmp.ne.s32.totalorder %s80, %s82
    %p89 = scmp.eq.s32.totalorder %s16, 1
    %p90 = por %p88, %p89
    %p91 = scmp.ne.s32.totalorder %s82, %s83
    %p92 = scmp.eq.s32.totalorder %s16, 0
    %p93 = por %p91, %p92
    %p94 = scmp.ne.s32.totalorder %s82, %s83
    %p95 = scmp.eq.s32.totalorder %s17, 1
    %p96 = por %p94, %p95
    %p98 = scmp.ne.s32.totalorder %s83, %s97
    %p99 = scmp.eq.s32.totalorder %s17, 0
    %p100 = por %p98, %p99
    %s102 = sadd.s32 %s101, 1
    %p105 = scmp.eq.s32.totalorder %s11, 1
    %p106 = scmp.ne.s32.totalorder %s101, %s103
    %p107 = scmp.eq.s32.totalorder %s11, 0
    %p108 = por %p106, %p107
    %p109 = scmp.ne.s32.totalorder %s101, %s103
    %p110 = scmp.eq.s32.totalorder %s16, 1
    %p111 = por %p109, %p110
    %p112 = scmp.ne.s32.totalorder %s103, %s104
    %p113 = scmp.eq.s32.totalorder %s16, 0
    %p114 = por %p112, %p113
    %p115 = scmp.ne.s32.totalorder %s103, %s104
    %p116 = scmp.eq.s32.totalorder %s17, 1
    %p117 = por %p115, %p116
    %p119 = scmp.ne.s32.totalorder %s104, %s118
    %p120 = scmp.eq.s32.totalorder %s17, 0
    %p121 = por %p119, %p120
    %s122 = ssub.s32 %s18, %s30
    %s123 = ssub.s32 %s19, %s26
    %s124 = sor.u32 %s122, %s123
    %p125 = scmp.eq.s32.totalorder %s124, 0
    %s127 = sadd.s32 %s126, 1
    %s128 = scalar_select %p125, %s126, %s127
    %p131 = pneg %p125
    %p132 = scmp.eq.s32.totalorder %s11, 1
    %p133 = por %p131, %p132
    %p134 = scmp.ne.s32.totalorder %s126, %s129
    %p135 = scmp.eq.s32.totalorder %s11, 0
    %p136 = por %p134, %p135
    %p137 = scmp.ne.s32.totalorder %s126, %s129
    %p138 = scmp.eq.s32.totalorder %s16, 1
    %p139 = por %p137, %p138
    %p140 = scmp.ne.s32.totalorder %s129, %s130
    %p141 = scmp.eq.s32.totalorder %s16, 0
    %p142 = por %p140, %p141
    %p143 = scmp.ne.s32.totalorder %s129, %s130
    %p144 = scmp.eq.s32.totalorder %s17, 1
    %p145 = por %p143, %p144
    %p147 = scmp.ne.s32.totalorder %s130, %s146
    %p148 = scmp.eq.s32.totalorder %s17, 0
    %p149 = por %p147, %p148
    %p150 = scmp.le.s32.totalorder 1, %s11
    %p151 = scmp.lt.s32.totalorder %s11, 3
    %p152 = pnand %p150, %p151
    %p153 = pneg %p152
    // Predicated region
    $region9: #{_forward.3} parent=5 // pred_check
      _
    $region10: #{_forward.3} parent=5 // pred_check_branch
      %155 = sbr.rel (%p152) target = $region12
    $region11: #{_forward.3} parent=5 // pred_region
      %s156 = ssub.s32 %s11, 1
      // Predicated region
      $region13: #{_forward.3} parent=11 // pred_check
        %p157 = pneg %p72
      $region14: #{_forward.3} parent=11 // pred_check_branch
        %159 = sbr.rel (%p157) target = $region16
      $region15: #{_forward.3} parent=11 // pred_region
        _
      $region16: #{_forward.3} parent=11 // pred_fallthru
        _
      // Predicated region
      $region17: #{_forward.3} parent=11 // pred_check
        %p160 = pneg %p93
      $region18: #{_forward.3} parent=11 // pred_check_branch
        %162 = sbr.rel (%p160) target = $region20
      $region19: #{_forward.3} parent=11 // pred_region
        _
      $region20: #{_forward.3} parent=11 // pred_fallthru
        _
      // Predicated region
      $region21: #{_forward.3} parent=11 // pred_check
        %p163 = pneg %p114
      $region22: #{_forward.3} parent=11 // pred_check_branch
        %165 = sbr.rel (%p163) target = $region24
      $region23: #{_forward.3} parent=11 // pred_region
        _
      $region24: #{_forward.3} parent=11 // pred_fallthru
        _
    $region12: #{_forward.3} parent=5 // pred_fallthru
      _
    %p166 = scmp.lt.s32.totalorder %s11, 2
    // Predicated region
    $region25: #{_forward.3} parent=5 // pred_check
      %p167 = pneg %p166
    $region26: #{_forward.3} parent=5 // pred_check_branch
      %169 = sbr.rel (%p167) target = $region28
    $region27: #{_forward.3} parent=5 // pred_region
      // Predicated region
      $region29: #{_forward.3} parent=27 // pred_check
        %p170 = pneg %p45
      $region30: #{_forward.3} parent=27 // pred_check_branch
        %172 = sbr.rel (%p170) target = $region32
      $region31: #{_forward.3} parent=27 // pred_region
        %s173 = smul.u32 32, %s19
        %p174 = scmp.lt.s32.totalorder %s18, 1
        %s175 = scalar_select %p174, %s18, 1
        %p176 = scmp.lt.s32.totalorder %s173, 31
        %s177 = scalar_select %p176, %s173, 31
        %s178 = smul.addr %s177, 4
        %s179 = smul.addr %s175, 128
        %s180 = sadd.s32 %s178, %s179
        %s181 = smul.addr %s180, 4
        %s182 = scalar_lea.vmem %s0, %s181
        %s183 = smul.u32 32, %s19
      $region32: #{_forward.3} parent=27 // pred_fallthru
        _
    $region28: #{_forward.3} parent=5 // pred_fallthru
      _
    %p184 = scmp.le.s32.totalorder 1, %s11
    %p185 = scmp.lt.s32.totalorder %s11, 3
    %p186 = pnand %p184, %p185
    %p187 = pneg %p186
    // Predicated region
    $region33: #{_forward.3} parent=5 // pred_check
      _
    $region34: #{_forward.3} parent=5 // pred_check_branch
      %189 = sbr.rel (%p186) target = $region36
    $region35: #{_forward.3} parent=5 // pred_region
      %s190 = ssub.s32 %s11, 1
      %s191 = smul.u32 32, %s21
      %p192 = scmp.lt.s32.totalorder %s20, 1
      %s193 = scalar_select %p192, %s20, 1
      %p194 = scmp.lt.s32.totalorder %s191, 31
      %s195 = scalar_select %p194, %s191, 31
      %s196 = smul.addr %s195, 4
      %s197 = smul.addr %s193, 128
      %s198 = sadd.s32 %s196, %s197
      %s199 = smul.addr %s198, 4
      %s200 = scalar_lea.vmem %s0, %s199
      %p201 = pneg %p51
      %p202 = pneg %p48
      %p203 = pneg %p72
      %p204 = pneg %p69
      %p205 = pneg %p93
      %p206 = pneg %p90
      %p207 = pneg %p114
      %p208 = pneg %p111
      %p209 = pneg %p142
      %p210 = pneg %p139
      %s211 = smul.u32 8, %s21
      %p212 = scmp.lt.s32.totalorder %s20, 1
      %s213 = scalar_select %p212, %s20, 1
      %p214 = scmp.lt.s32.totalorder %s211, 7
      %s215 = scalar_select %p214, %s211, 7
      %s216 = smul.addr %s213, 8
      %s217 = sadd.s32 %s215, %s216
      %s218 = smul.addr %s217, 8
      %s219 = scalar_lea.vmem %s4, %s218
      %s220 = smul.u32 32, %s21
      %p221 = scmp.lt.s32.totalorder %s20, 1
      %s222 = scalar_select %p221, %s20, 1
      %p223 = scmp.lt.s32.totalorder %s220, 31
      %s224 = scalar_select %p223, %s220, 31
      %s225 = smul.addr %s224, 4
      %s226 = smul.addr %s222, 128
      %s227 = sadd.s32 %s225, %s226
      %s228 = smul.addr %s227, 4
      %s229 = scalar_lea.vmem %s0, %s228
      %s230 = smul.u32 32, %s21
      %s231 = smul.u32 8, %s21
      %p232 = scmp.lt.s32.totalorder %s20, 1
      %s233 = scalar_select %p232, %s20, 1
      %p234 = scmp.lt.s32.totalorder %s231, 7
      %s235 = scalar_select %p234, %s231, 7
      %s236 = smul.addr %s233, 8
      %s237 = sadd.s32 %s235, %s236
      %s238 = smul.addr %s237, 8
      %s239 = scalar_lea.vmem %s4, %s238
      %s240 = smul.u32 8, %s21
      %v241 = vld [vmem:[%s229] sm:$0xf]
      %v242 = vld [vmem:[%s229 + $0x4] sm:$0xf]
      %v243 = vld [vmem:[%s229 + $0x8] sm:$0xf]
      %v244 = vld [vmem:[%s229 + $0xc] sm:$0xf]
      %v245 = vld [vmem:[%s229 + $0x10] sm:$0xf]
      %v246 = vld [vmem:[%s229 + $0x14] sm:$0xf]
      %v247 = vld [vmem:[%s229 + $0x18] sm:$0xf]
      %v248 = vld [vmem:[%s229 + $0x1c] sm:$0xf]
      %v249 = vld [vmem:[%s229 + $0x20] sm:$0xf]
      %v250 = vld [vmem:[%s229 + $0x24] sm:$0xf]
      %v251 = vld [vmem:[%s229 + $0x28] sm:$0xf]
      %v252 = vld [vmem:[%s229 + $0x2c] sm:$0xf]
      %v253 = vld [vmem:[%s229 + $0x30] sm:$0xf]
      %v254 = vld [vmem:[%s229 + $0x34] sm:$0xf]
      %v255 = vld [vmem:[%s229 + $0x38] sm:$0xf]
      %v256 = vld [vmem:[%s229 + $0x3c] sm:$0xf]
      %v257 = vld [vmem:[%s229 + $0x40] sm:$0xf]
      %v258 = vld [vmem:[%s229 + $0x44] sm:$0xf]
      %v259 = vld [vmem:[%s229 + $0x48] sm:$0xf]
      %v260 = vld [vmem:[%s229 + $0x4c] sm:$0xf]
      %v261 = vld [vmem:[%s229 + $0x50] sm:$0xf]
      %v262 = vld [vmem:[%s229 + $0x54] sm:$0xf]
      %v263 = vld [vmem:[%s229 + $0x58] sm:$0xf]
      %v264 = vld [vmem:[%s229 + $0x5c] sm:$0xf]
      %v265 = vld [vmem:[%s229 + $0x60] sm:$0xf]
      %v266 = vld [vmem:[%s229 + $0x64] sm:$0xf]
      %v267 = vld [vmem:[%s229 + $0x68] sm:$0xf]
      %v268 = vld [vmem:[%s229 + $0x6c] sm:$0xf]
      %v269 = vld [vmem:[%s229 + $0x70] sm:$0xf]
      %v270 = vld [vmem:[%s229 + $0x74] sm:$0xf]
      %v271 = vld [vmem:[%s229 + $0x78] sm:$0xf]
      %v272 = vld [vmem:[%s229 + $0x7c] sm:$0xf]
      %v273 = vld [vmem:[%s229 + $0x80] sm:$0xf]
      %v274 = vld [vmem:[%s229 + $0x84] sm:$0xf]
      %v275 = vld [vmem:[%s229 + $0x88] sm:$0xf]
      %v276 = vld [vmem:[%s229 + $0x8c] sm:$0xf]
      %v277 = vld [vmem:[%s229 + $0x90] sm:$0xf]
      %v278 = vld [vmem:[%s229 + $0x94] sm:$0xf]
      %v279 = vld [vmem:[%s229 + $0x98] sm:$0xf]
      %v280 = vld [vmem:[%s229 + $0x9c] sm:$0xf]
      %v281 = vld [vmem:[%s229 + $0xa0] sm:$0xf]
      %v282 = vld [vmem:[%s229 + $0xa4] sm:$0xf]
      %v283 = vld [vmem:[%s229 + $0xa8] sm:$0xf]
      %v284 = vld [vmem:[%s229 + $0xac] sm:$0xf]
      %v285 = vld [vmem:[%s229 + $0xb0] sm:$0xf]
      %v286 = vld [vmem:[%s229 + $0xb4] sm:$0xf]
      %v287 = vld [vmem:[%s229 + $0xb8] sm:$0xf]
      %v288 = vld [vmem:[%s229 + $0xbc] sm:$0xf]
      %v289 = vld [vmem:[%s229 + $0xc0] sm:$0xf]
      %v290 = vld [vmem:[%s229 + $0xc4] sm:$0xf]
      %v291 = vld [vmem:[%s229 + $0xc8] sm:$0xf]
      %v292 = vld [vmem:[%s229 + $0xcc] sm:$0xf]
      %v293 = vld [vmem:[%s229 + $0xd0] sm:$0xf]
      %v294 = vld [vmem:[%s229 + $0xd4] sm:$0xf]
      %v295 = vld [vmem:[%s229 + $0xd8] sm:$0xf]
      %v296 = vld [vmem:[%s229 + $0xdc] sm:$0xf]
      %v297 = vld [vmem:[%s229 + $0xe0] sm:$0xf]
      %v298 = vld [vmem:[%s229 + $0xe4] sm:$0xf]
      %v299 = vld [vmem:[%s229 + $0xe8] sm:$0xf]
      %v300 = vld [vmem:[%s229 + $0xec] sm:$0xf]
      %v301 = vld [vmem:[%s229 + $0xf0] sm:$0xf]
      %v302 = vld [vmem:[%s229 + $0xf4] sm:$0xf]
      %v303 = vld [vmem:[%s229 + $0xf8] sm:$0xf]
      %v304 = vld [vmem:[%s229 + $0xfc] sm:$0xf]
      %v305 = vld [vmem:[%s229 + $0x100] sm:$0xf]
      %v306 = vld [vmem:[%s229 + $0x104] sm:$0xf]
      %v307 = vld [vmem:[%s229 + $0x108] sm:$0xf]
      %v308 = vld [vmem:[%s229 + $0x10c] sm:$0xf]
      %v309 = vld [vmem:[%s229 + $0x110] sm:$0xf]
      %v310 = vld [vmem:[%s229 + $0x114] sm:$0xf]
      %v311 = vld [vmem:[%s229 + $0x118] sm:$0xf]
      %v312 = vld [vmem:[%s229 + $0x11c] sm:$0xf]
      %v313 = vld [vmem:[%s229 + $0x120] sm:$0xf]
      %v314 = vld [vmem:[%s229 + $0x124] sm:$0xf]
      %v315 = vld [vmem:[%s229 + $0x128] sm:$0xf]
      %v316 = vld [vmem:[%s229 + $0x12c] sm:$0xf]
      %v317 = vld [vmem:[%s229 + $0x130] sm:$0xf]
      %v318 = vld [vmem:[%s229 + $0x134] sm:$0xf]
      %v319 = vld [vmem:[%s229 + $0x138] sm:$0xf]
      %v320 = vld [vmem:[%s229 + $0x13c] sm:$0xf]
      %v321 = vld [vmem:[%s229 + $0x140] sm:$0xf]
      %v322 = vld [vmem:[%s229 + $0x144] sm:$0xf]
      %v323 = vld [vmem:[%s229 + $0x148] sm:$0xf]
      %v324 = vld [vmem:[%s229 + $0x14c] sm:$0xf]
      %v325 = vld [vmem:[%s229 + $0x150] sm:$0xf]
      %v326 = vld [vmem:[%s229 + $0x154] sm:$0xf]
      %v327 = vld [vmem:[%s229 + $0x158] sm:$0xf]
      %v328 = vld [vmem:[%s229 + $0x15c] sm:$0xf]
      %v329 = vld [vmem:[%s229 + $0x160] sm:$0xf]
      %v330 = vld [vmem:[%s229 + $0x164] sm:$0xf]
      %v331 = vld [vmem:[%s229 + $0x168] sm:$0xf]
      %v332 = vld [vmem:[%s229 + $0x16c] sm:$0xf]
      %v333 = vld [vmem:[%s229 + $0x170] sm:$0xf]
      %v334 = vld [vmem:[%s229 + $0x174] sm:$0xf]
      %v335 = vld [vmem:[%s229 + $0x178] sm:$0xf]
      %v336 = vld [vmem:[%s229 + $0x17c] sm:$0xf]
      %v337 = vld [vmem:[%s229 + $0x180] sm:$0xf]
      %v338 = vld [vmem:[%s229 + $0x184] sm:$0xf]
      %v339 = vld [vmem:[%s229 + $0x188] sm:$0xf]
      %v340 = vld [vmem:[%s229 + $0x18c] sm:$0xf]
      %v341 = vld [vmem:[%s229 + $0x190] sm:$0xf]
      %v342 = vld [vmem:[%s229 + $0x194] sm:$0xf]
      %v343 = vld [vmem:[%s229 + $0x198] sm:$0xf]
      %v344 = vld [vmem:[%s229 + $0x19c] sm:$0xf]
      %v345 = vld [vmem:[%s229 + $0x1a0] sm:$0xf]
      %v346 = vld [vmem:[%s229 + $0x1a4] sm:$0xf]
      %v347 = vld [vmem:[%s229 + $0x1a8] sm:$0xf]
      %v348 = vld [vmem:[%s229 + $0x1ac] sm:$0xf]
      %v349 = vld [vmem:[%s229 + $0x1b0] sm:$0xf]
      %v350 = vld [vmem:[%s229 + $0x1b4] sm:$0xf]
      %v351 = vld [vmem:[%s229 + $0x1b8] sm:$0xf]
      %v352 = vld [vmem:[%s229 + $0x1bc] sm:$0xf]
      %v353 = vld [vmem:[%s229 + $0x1c0] sm:$0xf]
      %v354 = vld [vmem:[%s229 + $0x1c4] sm:$0xf]
      %v355 = vld [vmem:[%s229 + $0x1c8] sm:$0xf]
      %v356 = vld [vmem:[%s229 + $0x1cc] sm:$0xf]
      %v357 = vld [vmem:[%s229 + $0x1d0] sm:$0xf]
      %v358 = vld [vmem:[%s229 + $0x1d4] sm:$0xf]
      %v359 = vld [vmem:[%s229 + $0x1d8] sm:$0xf]
      %v360 = vld [vmem:[%s229 + $0x1dc] sm:$0xf]
      %v361 = vld [vmem:[%s229 + $0x1e0] sm:$0xf]
      %v362 = vld [vmem:[%s229 + $0x1e4] sm:$0xf]
      %v363 = vld [vmem:[%s229 + $0x1e8] sm:$0xf]
      %v364 = vld [vmem:[%s229 + $0x1ec] sm:$0xf]
      %v365 = vld [vmem:[%s229 + $0x1f0] sm:$0xf]
      %v366 = vld [vmem:[%s229 + $0x1f4] sm:$0xf]
      %v367 = vld [vmem:[%s229 + $0x1f8] sm:$0xf]
      %v368 = vld [vmem:[%s229 + $0x1fc] sm:$0xf]
      %v369 = vunpack.c.l.bf16 %v241
      %v370 = vunpack.c.l.bf16 %v242
      %v371 = vunpack.c.l.bf16 %v243
      %v372 = vunpack.c.l.bf16 %v244
      %v373 = vunpack.c.l.bf16 %v245
      %v374 = vunpack.c.l.bf16 %v246
      %v375 = vunpack.c.l.bf16 %v247
      %v376 = vunpack.c.l.bf16 %v248
      %v377 = vunpack.c.l.bf16 %v249
      %v378 = vunpack.c.l.bf16 %v250
      %v379 = vunpack.c.l.bf16 %v251
      %v380 = vunpack.c.l.bf16 %v252
      %v381 = vunpack.c.l.bf16 %v253
      %v382 = vunpack.c.l.bf16 %v254
      %v383 = vunpack.c.l.bf16 %v255
      %v384 = vunpack.c.l.bf16 %v256
      %v385 = vunpack.c.l.bf16 %v257
      %v386 = vunpack.c.l.bf16 %v258
      %v387 = vunpack.c.l.bf16 %v259
      %v388 = vunpack.c.l.bf16 %v260
      %v389 = vunpack.c.l.bf16 %v261
      %v390 = vunpack.c.l.bf16 %v262
      %v391 = vunpack.c.l.bf16 %v263
      %v392 = vunpack.c.l.bf16 %v264
      %v393 = vunpack.c.l.bf16 %v265
      %v394 = vunpack.c.l.bf16 %v266
      %v395 = vunpack.c.l.bf16 %v267
      %v396 = vunpack.c.l.bf16 %v268
      %v397 = vunpack.c.l.bf16 %v269
      %v398 = vunpack.c.l.bf16 %v270
      %v399 = vunpack.c.l.bf16 %v271
      %v400 = vunpack.c.l.bf16 %v272
      %v401 = vunpack.c.l.bf16 %v273
      %v402 = vunpack.c.l.bf16 %v274
      %v403 = vunpack.c.l.bf16 %v275
      %v404 = vunpack.c.l.bf16 %v276
      %v405 = vunpack.c.l.bf16 %v277
      %v406 = vunpack.c.l.bf16 %v278
      %v407 = vunpack.c.l.bf16 %v279
      %v408 = vunpack.c.l.bf16 %v280
      %v409 = vunpack.c.l.bf16 %v281
      %v410 = vunpack.c.l.bf16 %v282
      %v411 = vunpack.c.l.bf16 %v283
      %v412 = vunpack.c.l.bf16 %v284
      %v413 = vunpack.c.l.bf16 %v285
      %v414 = vunpack.c.l.bf16 %v286
      %v415 = vunpack.c.l.bf16 %v287
      %v416 = vunpack.c.l.bf16 %v288
      %v417 = vunpack.c.l.bf16 %v289
      %v418 = vunpack.c.l.bf16 %v290
      %v419 = vunpack.c.l.bf16 %v291
      %v420 = vunpack.c.l.bf16 %v292
      %v421 = vunpack.c.l.bf16 %v293
      %v422 = vunpack.c.l.bf16 %v294
      %v423 = vunpack.c.l.bf16 %v295
      %v424 = vunpack.c.l.bf16 %v296
      %v425 = vunpack.c.l.bf16 %v297
      %v426 = vunpack.c.l.bf16 %v298
      %v427 = vunpack.c.l.bf16 %v299
      %v428 = vunpack.c.l.bf16 %v300
      %v429 = vunpack.c.l.bf16 %v301
      %v430 = vunpack.c.l.bf16 %v302
      %v431 = vunpack.c.l.bf16 %v303
      %v432 = vunpack.c.l.bf16 %v304
      %v433 = vunpack.c.l.bf16 %v305
      %v434 = vunpack.c.l.bf16 %v306
      %v435 = vunpack.c.l.bf16 %v307
      %v436 = vunpack.c.l.bf16 %v308
      %v437 = vunpack.c.l.bf16 %v309
      %v438 = vunpack.c.l.bf16 %v310
      %v439 = vunpack.c.l.bf16 %v311
      %v440 = vunpack.c.l.bf16 %v312
      %v441 = vunpack.c.l.bf16 %v313
      %v442 = vunpack.c.l.bf16 %v314
      %v443 = vunpack.c.l.bf16 %v315
      %v444 = vunpack.c.l.bf16 %v316
      %v445 = vunpack.c.l.bf16 %v317
      %v446 = vunpack.c.l.bf16 %v318
      %v447 = vunpack.c.l.bf16 %v319
      %v448 = vunpack.c.l.bf16 %v320
      %v449 = vunpack.c.l.bf16 %v321
      %v450 = vunpack.c.l.bf16 %v322
      %v451 = vunpack.c.l.bf16 %v323
      %v452 = vunpack.c.l.bf16 %v324
      %v453 = vunpack.c.l.bf16 %v325
      %v454 = vunpack.c.l.bf16 %v326
      %v455 = vunpack.c.l.bf16 %v327
      %v456 = vunpack.c.l.bf16 %v328
      %v457 = vunpack.c.l.bf16 %v329
      %v458 = vunpack.c.l.bf16 %v330
      %v459 = vunpack.c.l.bf16 %v331
      %v460 = vunpack.c.l.bf16 %v332
      %v461 = vunpack.c.l.bf16 %v333
      %v462 = vunpack.c.l.bf16 %v334
      %v463 = vunpack.c.l.bf16 %v335
      %v464 = vunpack.c.l.bf16 %v336
      %v465 = vunpack.c.l.bf16 %v337
      %v466 = vunpack.c.l.bf16 %v338
      %v467 = vunpack.c.l.bf16 %v339
      %v468 = vunpack.c.l.bf16 %v340
      %v469 = vunpack.c.l.bf16 %v341
      %v470 = vunpack.c.l.bf16 %v342
      %v471 = vunpack.c.l.bf16 %v343
      %v472 = vunpack.c.l.bf16 %v344
      %v473 = vunpack.c.l.bf16 %v345
      %v474 = vunpack.c.l.bf16 %v346
      %v475 = vunpack.c.l.bf16 %v347
      %v476 = vunpack.c.l.bf16 %v348
      %v477 = vunpack.c.l.bf16 %v349
      %v478 = vunpack.c.l.bf16 %v350
      %v479 = vunpack.c.l.bf16 %v351
      %v480 = vunpack.c.l.bf16 %v352
      %v481 = vunpack.c.l.bf16 %v353
      %v482 = vunpack.c.l.bf16 %v354
      %v483 = vunpack.c.l.bf16 %v355
      %v484 = vunpack.c.l.bf16 %v356
      %v485 = vunpack.c.l.bf16 %v357
      %v486 = vunpack.c.l.bf16 %v358
      %v487 = vunpack.c.l.bf16 %v359
      %v488 = vunpack.c.l.bf16 %v360
      %v489 = vunpack.c.l.bf16 %v361
      %v490 = vunpack.c.l.bf16 %v362
      %v491 = vunpack.c.l.bf16 %v363
      %v492 = vunpack.c.l.bf16 %v364
      %v493 = vunpack.c.l.bf16 %v365
      %v494 = vunpack.c.l.bf16 %v366
      %v495 = vunpack.c.l.bf16 %v367
      %v496 = vunpack.c.l.bf16 %v368
      %v497 = vld [vmem:[%s1] sm:$0x1]
      %v499 = vperm.slane %v497, 0
      %v501 = vmul.f32 %v369, %v499
      %v502 = vmul.f32 %v370, %v499
      %v503 = vmul.f32 %v371, %v499
      %v504 = vmul.f32 %v372, %v499
      %v505 = vmul.f32 %v373, %v499
      %v506 = vmul.f32 %v374, %v499
      %v507 = vmul.f32 %v375, %v499
      %v508 = vmul.f32 %v376, %v499
      %v509 = vmul.f32 %v377, %v499
      %v510 = vmul.f32 %v378, %v499
      %v511 = vmul.f32 %v379, %v499
      %v512 = vmul.f32 %v380, %v499
      %v513 = vmul.f32 %v381, %v499
      %v514 = vmul.f32 %v382, %v499
      %v515 = vmul.f32 %v383, %v499
      %v516 = vmul.f32 %v384, %v499
      %v517 = vmul.f32 %v385, %v499
      %v518 = vmul.f32 %v386, %v499
      %v519 = vmul.f32 %v387, %v499
      %v520 = vmul.f32 %v388, %v499
      %v521 = vmul.f32 %v389, %v499
      %v522 = vmul.f32 %v390, %v499
      %v523 = vmul.f32 %v391, %v499
      %v524 = vmul.f32 %v392, %v499
      %v525 = vmul.f32 %v393, %v499
      %v526 = vmul.f32 %v394, %v499
      %v527 = vmul.f32 %v395, %v499
      %v528 = vmul.f32 %v396, %v499
      %v529 = vmul.f32 %v397, %v499
      %v530 = vmul.f32 %v398, %v499
      %v531 = vmul.f32 %v399, %v499
      %v532 = vmul.f32 %v400, %v499
      %v533 = vmul.f32 %v401, %v499
      %v534 = vmul.f32 %v402, %v499
      %v535 = vmul.f32 %v403, %v499
      %v536 = vmul.f32 %v404, %v499
      %v537 = vmul.f32 %v405, %v499
      %v538 = vmul.f32 %v406, %v499
      %v539 = vmul.f32 %v407, %v499
      %v540 = vmul.f32 %v408, %v499
      %v541 = vmul.f32 %v409, %v499
      %v542 = vmul.f32 %v410, %v499
      %v543 = vmul.f32 %v411, %v499
      %v544 = vmul.f32 %v412, %v499
      %v545 = vmul.f32 %v413, %v499
      %v546 = vmul.f32 %v414, %v499
      %v547 = vmul.f32 %v415, %v499
      %v548 = vmul.f32 %v416, %v499
      %v549 = vmul.f32 %v417, %v499
      %v550 = vmul.f32 %v418, %v499
      %v551 = vmul.f32 %v419, %v499
      %v552 = vmul.f32 %v420, %v499
      %v553 = vmul.f32 %v421, %v499
      %v554 = vmul.f32 %v422, %v499
      %v555 = vmul.f32 %v423, %v499
      %v556 = vmul.f32 %v424, %v499
      %v557 = vmul.f32 %v425, %v499
      %v558 = vmul.f32 %v426, %v499
      %v559 = vmul.f32 %v427, %v499
      %v560 = vmul.f32 %v428, %v499
      %v561 = vmul.f32 %v429, %v499
      %v562 = vmul.f32 %v430, %v499
      %v563 = vmul.f32 %v431, %v499
      %v564 = vmul.f32 %v432, %v499
      %v565 = vmul.f32 %v433, %v499
      %v566 = vmul.f32 %v434, %v499
      %v567 = vmul.f32 %v435, %v499
      %v568 = vmul.f32 %v436, %v499
      %v569 = vmul.f32 %v437, %v499
      %v570 = vmul.f32 %v438, %v499
      %v571 = vmul.f32 %v439, %v499
      %v572 = vmul.f32 %v440, %v499
      %v573 = vmul.f32 %v441, %v499
      %v574 = vmul.f32 %v442, %v499
      %v575 = vmul.f32 %v443, %v499
      %v576 = vmul.f32 %v444, %v499
      %v577 = vmul.f32 %v445, %v499
      %v578 = vmul.f32 %v446, %v499
      %v579 = vmul.f32 %v447, %v499
      %v580 = vmul.f32 %v448, %v499
      %v581 = vmul.f32 %v449, %v499
      %v582 = vmul.f32 %v450, %v499
      %v583 = vmul.f32 %v451, %v499
      %v584 = vmul.f32 %v452, %v499
      %v585 = vmul.f32 %v453, %v499
      %v586 = vmul.f32 %v454, %v499
      %v587 = vmul.f32 %v455, %v499
      %v588 = vmul.f32 %v456, %v499
      %v589 = vmul.f32 %v457, %v499
      %v590 = vmul.f32 %v458, %v499
      %v591 = vmul.f32 %v459, %v499
      %v592 = vmul.f32 %v460, %v499
      %v593 = vmul.f32 %v461, %v499
      %v594 = vmul.f32 %v462, %v499
      %v595 = vmul.f32 %v463, %v499
      %v596 = vmul.f32 %v464, %v499
      %v597 = vmul.f32 %v465, %v499
      %v598 = vmul.f32 %v466, %v499
      %v599 = vmul.f32 %v467, %v499
      %v600 = vmul.f32 %v468, %v499
      %v601 = vmul.f32 %v469, %v499
      %v602 = vmul.f32 %v470, %v499
      %v603 = vmul.f32 %v471, %v499
      %v604 = vmul.f32 %v472, %v499
      %v605 = vmul.f32 %v473, %v499
      %v606 = vmul.f32 %v474, %v499
      %v607 = vmul.f32 %v475, %v499
      %v608 = vmul.f32 %v476, %v499
      %v609 = vmul.f32 %v477, %v499
      %v610 = vmul.f32 %v478, %v499
      %v611 = vmul.f32 %v479, %v499
      %v612 = vmul.f32 %v480, %v499
      %v613 = vmul.f32 %v481, %v499
      %v614 = vmul.f32 %v482, %v499
      %v615 = vmul.f32 %v483, %v499
      %v616 = vmul.f32 %v484, %v499
      %v617 = vmul.f32 %v485, %v499
      %v618 = vmul.f32 %v486, %v499
      %v619 = vmul.f32 %v487, %v499
      %v620 = vmul.f32 %v488, %v499
      %v621 = vmul.f32 %v489, %v499
      %v622 = vmul.f32 %v490, %v499
      %v623 = vmul.f32 %v491, %v499
      %v624 = vmul.f32 %v492, %v499
      %v625 = vmul.f32 %v493, %v499
      %v626 = vmul.f32 %v494, %v499
      %v627 = vmul.f32 %v495, %v499
      %v628 = vmul.f32 %v496, %v499
      %v629 = vld [vmem:[%s2] sm:$0x1]
      %v631 = vperm.slane %v629, 0
      %v633 = vadd.f32 %v501, %v631
      %v634 = vadd.f32 %v502, %v631
      %v635 = vadd.f32 %v503, %v631
      %v636 = vadd.f32 %v504, %v631
      %v637 = vadd.f32 %v505, %v631
      %v638 = vadd.f32 %v506, %v631
      %v639 = vadd.f32 %v507, %v631
      %v640 = vadd.f32 %v508, %v631
      %v641 = vadd.f32 %v509, %v631
      %v642 = vadd.f32 %v510, %v631
      %v643 = vadd.f32 %v511, %v631
      %v644 = vadd.f32 %v512, %v631
      %v645 = vadd.f32 %v513, %v631
      %v646 = vadd.f32 %v514, %v631
      %v647 = vadd.f32 %v515, %v631
      %v648 = vadd.f32 %v516, %v631
      %v649 = vadd.f32 %v517, %v631
      %v650 = vadd.f32 %v518, %v631
      %v651 = vadd.f32 %v519, %v631
      %v652 = vadd.f32 %v520, %v631
      %v653 = vadd.f32 %v521, %v631
      %v654 = vadd.f32 %v522, %v631
      %v655 = vadd.f32 %v523, %v631
      %v656 = vadd.f32 %v524, %v631
      %v657 = vadd.f32 %v525, %v631
      %v658 = vadd.f32 %v526, %v631
      %v659 = vadd.f32 %v527, %v631
      %v660 = vadd.f32 %v528, %v631
      %v661 = vadd.f32 %v529, %v631
      %v662 = vadd.f32 %v530, %v631
      %v663 = vadd.f32 %v531, %v631
      %v664 = vadd.f32 %v532, %v631
      %v665 = vadd.f32 %v533, %v631
      %v666 = vadd.f32 %v534, %v631
      %v667 = vadd.f32 %v535, %v631
      %v668 = vadd.f32 %v536, %v631
      %v669 = vadd.f32 %v537, %v631
      %v670 = vadd.f32 %v538, %v631
      %v671 = vadd.f32 %v539, %v631
      %v672 = vadd.f32 %v540, %v631
      %v673 = vadd.f32 %v541, %v631
      %v674 = vadd.f32 %v542, %v631
      %v675 = vadd.f32 %v543, %v631
      %v676 = vadd.f32 %v544, %v631
      %v677 = vadd.f32 %v545, %v631
      %v678 = vadd.f32 %v546, %v631
      %v679 = vadd.f32 %v547, %v631
      %v680 = vadd.f32 %v548, %v631
      %v681 = vadd.f32 %v549, %v631
      %v682 = vadd.f32 %v550, %v631
      %v683 = vadd.f32 %v551, %v631
      %v684 = vadd.f32 %v552, %v631
      %v685 = vadd.f32 %v553, %v631
      %v686 = vadd.f32 %v554, %v631
      %v687 = vadd.f32 %v555, %v631
      %v688 = vadd.f32 %v556, %v631
      %v689 = vadd.f32 %v557, %v631
      %v690 = vadd.f32 %v558, %v631
      %v691 = vadd.f32 %v559, %v631
      %v692 = vadd.f32 %v560, %v631
      %v693 = vadd.f32 %v561, %v631
      %v694 = vadd.f32 %v562, %v631
      %v695 = vadd.f32 %v563, %v631
      %v696 = vadd.f32 %v564, %v631
      %v697 = vadd.f32 %v565, %v631
      %v698 = vadd.f32 %v566, %v631
      %v699 = vadd.f32 %v567, %v631
      %v700 = vadd.f32 %v568, %v631
      %v701 = vadd.f32 %v569, %v631
      %v702 = vadd.f32 %v570, %v631
      %v703 = vadd.f32 %v571, %v631
      %v704 = vadd.f32 %v572, %v631
      %v705 = vadd.f32 %v573, %v631
      %v706 = vadd.f32 %v574, %v631
      %v707 = vadd.f32 %v575, %v631
      %v708 = vadd.f32 %v576, %v631
      %v709 = vadd.f32 %v577, %v631
      %v710 = vadd.f32 %v578, %v631
      %v711 = vadd.f32 %v579, %v631
      %v712 = vadd.f32 %v580, %v631
      %v713 = vadd.f32 %v581, %v631
      %v714 = vadd.f32 %v582, %v631
      %v715 = vadd.f32 %v583, %v631
      %v716 = vadd.f32 %v584, %v631
      %v717 = vadd.f32 %v585, %v631
      %v718 = vadd.f32 %v586, %v631
      %v719 = vadd.f32 %v587, %v631
      %v720 = vadd.f32 %v588, %v631
      %v721 = vadd.f32 %v589, %v631
      %v722 = vadd.f32 %v590, %v631
      %v723 = vadd.f32 %v591, %v631
      %v724 = vadd.f32 %v592, %v631
      %v725 = vadd.f32 %v593, %v631
      %v726 = vadd.f32 %v594, %v631
      %v727 = vadd.f32 %v595, %v631
      %v728 = vadd.f32 %v596, %v631
      %v729 = vadd.f32 %v597, %v631
      %v730 = vadd.f32 %v598, %v631
      %v731 = vadd.f32 %v599, %v631
      %v732 = vadd.f32 %v600, %v631
      %v733 = vadd.f32 %v601, %v631
      %v734 = vadd.f32 %v602, %v631
      %v735 = vadd.f32 %v603, %v631
      %v736 = vadd.f32 %v604, %v631
      %v737 = vadd.f32 %v605, %v631
      %v738 = vadd.f32 %v606, %v631
      %v739 = vadd.f32 %v607, %v631
      %v740 = vadd.f32 %v608, %v631
      %v741 = vadd.f32 %v609, %v631
      %v742 = vadd.f32 %v610, %v631
      %v743 = vadd.f32 %v611, %v631
      %v744 = vadd.f32 %v612, %v631
      %v745 = vadd.f32 %v613, %v631
      %v746 = vadd.f32 %v614, %v631
      %v747 = vadd.f32 %v615, %v631
      %v748 = vadd.f32 %v616, %v631
      %v749 = vadd.f32 %v617, %v631
      %v750 = vadd.f32 %v618, %v631
      %v751 = vadd.f32 %v619, %v631
      %v752 = vadd.f32 %v620, %v631
      %v753 = vadd.f32 %v621, %v631
      %v754 = vadd.f32 %v622, %v631
      %v755 = vadd.f32 %v623, %v631
      %v756 = vadd.f32 %v624, %v631
      %v757 = vadd.f32 %v625, %v631
      %v758 = vadd.f32 %v626, %v631
      %v759 = vadd.f32 %v627, %v631
      %v760 = vadd.f32 %v628, %v631
      %s761 = sld [smem:[#allocation2]]
      %vm762 = vcmp.ge.f32.partialorder %v633, 0.0
      %vm763 = vcmp.ge.f32.partialorder %v634, 0.0
      %vm764 = vcmp.ge.f32.partialorder %v635, 0.0
      %vm765 = vcmp.ge.f32.partialorder %v636, 0.0
      %vm766 = vcmp.ge.f32.partialorder %v637, 0.0
      %vm767 = vcmp.ge.f32.partialorder %v638, 0.0
      %vm768 = vcmp.ge.f32.partialorder %v639, 0.0
      %vm769 = vcmp.ge.f32.partialorder %v640, 0.0
      %vm770 = vcmp.ge.f32.partialorder %v641, 0.0
      %vm771 = vcmp.ge.f32.partialorder %v642, 0.0
      %vm772 = vcmp.ge.f32.partialorder %v643, 0.0
      %vm773 = vcmp.ge.f32.partialorder %v644, 0.0
      %vm774 = vcmp.ge.f32.partialorder %v645, 0.0
      %vm775 = vcmp.ge.f32.partialorder %v646, 0.0
      %vm776 = vcmp.ge.f32.partialorder %v647, 0.0
      %vm777 = vcmp.ge.f32.partialorder %v648, 0.0
      %vm778 = vcmp.ge.f32.partialorder %v649, 0.0
      %vm779 = vcmp.ge.f32.partialorder %v650, 0.0
      %vm780 = vcmp.ge.f32.partialorder %v651, 0.0
      %vm781 = vcmp.ge.f32.partialorder %v652, 0.0
      %vm782 = vcmp.ge.f32.partialorder %v653, 0.0
      %vm783 = vcmp.ge.f32.partialorder %v654, 0.0
      %vm784 = vcmp.ge.f32.partialorder %v655, 0.0
      %vm785 = vcmp.ge.f32.partialorder %v656, 0.0
      %vm786 = vcmp.ge.f32.partialorder %v657, 0.0
      %vm787 = vcmp.ge.f32.partialorder %v658, 0.0
      %vm788 = vcmp.ge.f32.partialorder %v659, 0.0
      %vm789 = vcmp.ge.f32.partialorder %v660, 0.0
      %vm790 = vcmp.ge.f32.partialorder %v661, 0.0
      %vm791 = vcmp.ge.f32.partialorder %v662, 0.0
      %vm792 = vcmp.ge.f32.partialorder %v663, 0.0
      %vm793 = vcmp.ge.f32.partialorder %v664, 0.0
      %vm794 = vcmp.ge.f32.partialorder %v665, 0.0
      %vm795 = vcmp.ge.f32.partialorder %v666, 0.0
      %vm796 = vcmp.ge.f32.partialorder %v667, 0.0
      %vm797 = vcmp.ge.f32.partialorder %v668, 0.0
      %vm798 = vcmp.ge.f32.partialorder %v669, 0.0
      %vm799 = vcmp.ge.f32.partialorder %v670, 0.0
      %vm800 = vcmp.ge.f32.partialorder %v671, 0.0
      %vm801 = vcmp.ge.f32.partialorder %v672, 0.0
      %vm802 = vcmp.ge.f32.partialorder %v673, 0.0
      %vm803 = vcmp.ge.f32.partialorder %v674, 0.0
      %vm804 = vcmp.ge.f32.partialorder %v675, 0.0
      %vm805 = vcmp.ge.f32.partialorder %v676, 0.0
      %vm806 = vcmp.ge.f32.partialorder %v677, 0.0
      %vm807 = vcmp.ge.f32.partialorder %v678, 0.0
      %vm808 = vcmp.ge.f32.partialorder %v679, 0.0
      %vm809 = vcmp.ge.f32.partialorder %v680, 0.0
      %vm810 = vcmp.ge.f32.partialorder %v681, 0.0
      %vm811 = vcmp.ge.f32.partialorder %v682, 0.0
      %vm812 = vcmp.ge.f32.partialorder %v683, 0.0
      %vm813 = vcmp.ge.f32.partialorder %v684, 0.0
      %vm814 = vcmp.ge.f32.partialorder %v685, 0.0
      %vm815 = vcmp.ge.f32.partialorder %v686, 0.0
      %vm816 = vcmp.ge.f32.partialorder %v687, 0.0
      %vm817 = vcmp.ge.f32.partialorder %v688, 0.0
      %vm818 = vcmp.ge.f32.partialorder %v689, 0.0
      %vm819 = vcmp.ge.f32.partialorder %v690, 0.0
      %vm820 = vcmp.ge.f32.partialorder %v691, 0.0
      %vm821 = vcmp.ge.f32.partialorder %v692, 0.0
      %vm822 = vcmp.ge.f32.partialorder %v693, 0.0
      %vm823 = vcmp.ge.f32.partialorder %v694, 0.0
      %vm824 = vcmp.ge.f32.partialorder %v695, 0.0
      %vm825 = vcmp.ge.f32.partialorder %v696, 0.0
      %vm826 = vcmp.ge.f32.partialorder %v697, 0.0
      %vm827 = vcmp.ge.f32.partialorder %v698, 0.0
      %vm828 = vcmp.ge.f32.partialorder %v699, 0.0
      %vm829 = vcmp.ge.f32.partialorder %v700, 0.0
      %vm830 = vcmp.ge.f32.partialorder %v701, 0.0
      %vm831 = vcmp.ge.f32.partialorder %v702, 0.0
      %vm832 = vcmp.ge.f32.partialorder %v703, 0.0
      %vm833 = vcmp.ge.f32.partialorder %v704, 0.0
      %vm834 = vcmp.ge.f32.partialorder %v705, 0.0
      %vm835 = vcmp.ge.f32.partialorder %v706, 0.0
      %vm836 = vcmp.ge.f32.partialorder %v707, 0.0
      %vm837 = vcmp.ge.f32.partialorder %v708, 0.0
      %vm838 = vcmp.ge.f32.partialorder %v709, 0.0
      %vm839 = vcmp.ge.f32.partialorder %v710, 0.0
      %vm840 = vcmp.ge.f32.partialorder %v711, 0.0
      %vm841 = vcmp.ge.f32.partialorder %v712, 0.0
      %vm842 = vcmp.ge.f32.partialorder %v713, 0.0
      %vm843 = vcmp.ge.f32.partialorder %v714, 0.0
      %vm844 = vcmp.ge.f32.partialorder %v715, 0.0
      %vm845 = vcmp.ge.f32.partialorder %v716, 0.0
      %vm846 = vcmp.ge.f32.partialorder %v717, 0.0
      %vm847 = vcmp.ge.f32.partialorder %v718, 0.0
      %vm848 = vcmp.ge.f32.partialorder %v719, 0.0
      %vm849 = vcmp.ge.f32.partialorder %v720, 0.0
      %vm850 = vcmp.ge.f32.partialorder %v721, 0.0
      %vm851 = vcmp.ge.f32.partialorder %v722, 0.0
      %vm852 = vcmp.ge.f32.partialorder %v723, 0.0
      %vm853 = vcmp.ge.f32.partialorder %v724, 0.0
      %vm854 = vcmp.ge.f32.partialorder %v725, 0.0
      %vm855 = vcmp.ge.f32.partialorder %v726, 0.0
      %vm856 = vcmp.ge.f32.partialorder %v727, 0.0
      %vm857 = vcmp.ge.f32.partialorder %v728, 0.0
      %vm858 = vcmp.ge.f32.partialorder %v729, 0.0
      %vm859 = vcmp.ge.f32.partialorder %v730, 0.0
      %vm860 = vcmp.ge.f32.partialorder %v731, 0.0
      %vm861 = vcmp.ge.f32.partialorder %v732, 0.0
      %vm862 = vcmp.ge.f32.partialorder %v733, 0.0
      %vm863 = vcmp.ge.f32.partialorder %v734, 0.0
      %vm864 = vcmp.ge.f32.partialorder %v735, 0.0
      %vm865 = vcmp.ge.f32.partialorder %v736, 0.0
      %vm866 = vcmp.ge.f32.partialorder %v737, 0.0
      %vm867 = vcmp.ge.f32.partialorder %v738, 0.0
      %vm868 = vcmp.ge.f32.partialorder %v739, 0.0
      %vm869 = vcmp.ge.f32.partialorder %v740, 0.0
      %vm870 = vcmp.ge.f32.partialorder %v741, 0.0
      %vm871 = vcmp.ge.f32.partialorder %v742, 0.0
      %vm872 = vcmp.ge.f32.partialorder %v743, 0.0
      %vm873 = vcmp.ge.f32.partialorder %v744, 0.0
      %vm874 = vcmp.ge.f32.partialorder %v745, 0.0
      %vm875 = vcmp.ge.f32.partialorder %v746, 0.0
      %vm876 = vcmp.ge.f32.partialorder %v747, 0.0
      %vm877 = vcmp.ge.f32.partialorder %v748, 0.0
      %vm878 = vcmp.ge.f32.partialorder %v749, 0.0
      %vm879 = vcmp.ge.f32.partialorder %v750, 0.0
      %vm880 = vcmp.ge.f32.partialorder %v751, 0.0
      %vm881 = vcmp.ge.f32.partialorder %v752, 0.0
      %vm882 = vcmp.ge.f32.partialorder %v753, 0.0
      %vm883 = vcmp.ge.f32.partialorder %v754, 0.0
      %vm884 = vcmp.ge.f32.partialorder %v755, 0.0
      %vm885 = vcmp.ge.f32.partialorder %v756, 0.0
      %vm886 = vcmp.ge.f32.partialorder %v757, 0.0
      %vm887 = vcmp.ge.f32.partialorder %v758, 0.0
      %vm888 = vcmp.ge.f32.partialorder %v759, 0.0
      %vm889 = vcmp.ge.f32.partialorder %v760, 0.0
      %v890 = vstv %s761
      %v891 = vmul.f32 %v890, %v633
      %v892 = vmul.f32 %v890, %v634
      %v893 = vmul.f32 %v890, %v635
      %v894 = vmul.f32 %v890, %v636
      %v895 = vmul.f32 %v890, %v637
      %v896 = vmul.f32 %v890, %v638
      %v897 = vmul.f32 %v890, %v639
      %v898 = vmul.f32 %v890, %v640
      %v899 = vmul.f32 %v890, %v641
      %v900 = vmul.f32 %v890, %v642
      %v901 = vmul.f32 %v890, %v643
      %v902 = vmul.f32 %v890, %v644
      %v903 = vmul.f32 %v890, %v645
      %v904 = vmul.f32 %v890, %v646
      %v905 = vmul.f32 %v890, %v647
      %v906 = vmul.f32 %v890, %v648
      %v907 = vmul.f32 %v890, %v649
      %v908 = vmul.f32 %v890, %v650
      %v909 = vmul.f32 %v890, %v651
      %v910 = vmul.f32 %v890, %v652
      %v911 = vmul.f32 %v890, %v653
      %v912 = vmul.f32 %v890, %v654
      %v913 = vmul.f32 %v890, %v655
      %v914 = vmul.f32 %v890, %v656
      %v915 = vmul.f32 %v890, %v657
      %v916 = vmul.f32 %v890, %v658
      %v917 = vmul.f32 %v890, %v659
      %v918 = vmul.f32 %v890, %v660
      %v919 = vmul.f32 %v890, %v661
      %v920 = vmul.f32 %v890, %v662
      %v921 = vmul.f32 %v890, %v663
      %v922 = vmul.f32 %v890, %v664
      %v923 = vmul.f32 %v890, %v665
      %v924 = vmul.f32 %v890, %v666
      %v925 = vmul.f32 %v890, %v667
      %v926 = vmul.f32 %v890, %v668
      %v927 = vmul.f32 %v890, %v669
      %v928 = vmul.f32 %v890, %v670
      %v929 = vmul.f32 %v890, %v671
      %v930 = vmul.f32 %v890, %v672
      %v931 = vmul.f32 %v890, %v673
      %v932 = vmul.f32 %v890, %v674
      %v933 = vmul.f32 %v890, %v675
      %v934 = vmul.f32 %v890, %v676
      %v935 = vmul.f32 %v890, %v677
      %v936 = vmul.f32 %v890, %v678
      %v937 = vmul.f32 %v890, %v679
      %v938 = vmul.f32 %v890, %v680
      %v939 = vmul.f32 %v890, %v681
      %v940 = vmul.f32 %v890, %v682
      %v941 = vmul.f32 %v890, %v683
      %v942 = vmul.f32 %v890, %v684
      %v943 = vmul.f32 %v890, %v685
      %v944 = vmul.f32 %v890, %v686
      %v945 = vmul.f32 %v890, %v687
      %v946 = vmul.f32 %v890, %v688
      %v947 = vmul.f32 %v890, %v689
      %v948 = vmul.f32 %v890, %v690
      %v949 = vmul.f32 %v890, %v691
      %v950 = vmul.f32 %v890, %v692
      %v951 = vmul.f32 %v890, %v693
      %v952 = vmul.f32 %v890, %v694
      %v953 = vmul.f32 %v890, %v695
      %v954 = vmul.f32 %v890, %v696
      %v955 = vmul.f32 %v890, %v697
      %v956 = vmul.f32 %v890, %v698
      %v957 = vmul.f32 %v890, %v699
      %v958 = vmul.f32 %v890, %v700
      %v959 = vmul.f32 %v890, %v701
      %v960 = vmul.f32 %v890, %v702
      %v961 = vmul.f32 %v890, %v703
      %v962 = vmul.f32 %v890, %v704
      %v963 = vmul.f32 %v890, %v705
      %v964 = vmul.f32 %v890, %v706
      %v965 = vmul.f32 %v890, %v707
      %v966 = vmul.f32 %v890, %v708
      %v967 = vmul.f32 %v890, %v709
      %v968 = vmul.f32 %v890, %v710
      %v969 = vmul.f32 %v890, %v711
      %v970 = vmul.f32 %v890, %v712
      %v971 = vmul.f32 %v890, %v713
      %v972 = vmul.f32 %v890, %v714
      %v973 = vmul.f32 %v890, %v715
      %v974 = vmul.f32 %v890, %v716
      %v975 = vmul.f32 %v890, %v717
      %v976 = vmul.f32 %v890, %v718
      %v977 = vmul.f32 %v890, %v719
      %v978 = vmul.f32 %v890, %v720
      %v979 = vmul.f32 %v890, %v721
      %v980 = vmul.f32 %v890, %v722
      %v981 = vmul.f32 %v890, %v723
      %v982 = vmul.f32 %v890, %v724
      %v983 = vmul.f32 %v890, %v725
      %v984 = vmul.f32 %v890, %v726
      %v985 = vmul.f32 %v890, %v727
      %v986 = vmul.f32 %v890, %v728
      %v987 = vmul.f32 %v890, %v729
      %v988 = vmul.f32 %v890, %v730
      %v989 = vmul.f32 %v890, %v731
      %v990 = vmul.f32 %v890, %v732
      %v991 = vmul.f32 %v890, %v733
      %v992 = vmul.f32 %v890, %v734
      %v993 = vmul.f32 %v890, %v735
      %v994 = vmul.f32 %v890, %v736
      %v995 = vmul.f32 %v890, %v737
      %v996 = vmul.f32 %v890, %v738
      %v997 = vmul.f32 %v890, %v739
      %v998 = vmul.f32 %v890, %v740
      %v999 = vmul.f32 %v890, %v741
      %v1000 = vmul.f32 %v890, %v742
      %v1001 = vmul.f32 %v890, %v743
      %v1002 = vmul.f32 %v890, %v744
      %v1003 = vmul.f32 %v890, %v745
      %v1004 = vmul.f32 %v890, %v746
      %v1005 = vmul.f32 %v890, %v747
      %v1006 = vmul.f32 %v890, %v748
      %v1007 = vmul.f32 %v890, %v749
      %v1008 = vmul.f32 %v890, %v750
      %v1009 = vmul.f32 %v890, %v751
      %v1010 = vmul.f32 %v890, %v752
      %v1011 = vmul.f32 %v890, %v753
      %v1012 = vmul.f32 %v890, %v754
      %v1013 = vmul.f32 %v890, %v755
      %v1014 = vmul.f32 %v890, %v756
      %v1015 = vmul.f32 %v890, %v757
      %v1016 = vmul.f32 %v890, %v758
      %v1017 = vmul.f32 %v890, %v759
      %v1018 = vmul.f32 %v890, %v760
      %v1019 = vsel %vm762, %v633, %v891
      %v1020 = vsel %vm763, %v634, %v892
      %v1021 = vsel %vm764, %v635, %v893
      %v1022 = vsel %vm765, %v636, %v894
      %v1023 = vsel %vm766, %v637, %v895
      %v1024 = vsel %vm767, %v638, %v896
      %v1025 = vsel %vm768, %v639, %v897
      %v1026 = vsel %vm769, %v640, %v898
      %v1027 = vsel %vm770, %v641, %v899
      %v1028 = vsel %vm771, %v642, %v900
      %v1029 = vsel %vm772, %v643, %v901
      %v1030 = vsel %vm773, %v644, %v902
      %v1031 = vsel %vm774, %v645, %v903
      %v1032 = vsel %vm775, %v646, %v904
      %v1033 = vsel %vm776, %v647, %v905
      %v1034 = vsel %vm777, %v648, %v906
      %v1035 = vsel %vm778, %v649, %v907
      %v1036 = vsel %vm779, %v650, %v908
      %v1037 = vsel %vm780, %v651, %v909
      %v1038 = vsel %vm781, %v652, %v910
      %v1039 = vsel %vm782, %v653, %v911
      %v1040 = vsel %vm783, %v654, %v912
      %v1041 = vsel %vm784, %v655, %v913
      %v1042 = vsel %vm785, %v656, %v914
      %v1043 = vsel %vm786, %v657, %v915
      %v1044 = vsel %vm787, %v658, %v916
      %v1045 = vsel %vm788, %v659, %v917
      %v1046 = vsel %vm789, %v660, %v918
      %v1047 = vsel %vm790, %v661, %v919
      %v1048 = vsel %vm791, %v662, %v920
      %v1049 = vsel %vm792, %v663, %v921
      %v1050 = vsel %vm793, %v664, %v922
      %v1051 = vsel %vm794, %v665, %v923
      %v1052 = vsel %vm795, %v666, %v924
      %v1053 = vsel %vm796, %v667, %v925
      %v1054 = vsel %vm797, %v668, %v926
      %v1055 = vsel %vm798, %v669, %v927
      %v1056 = vsel %vm799, %v670, %v928
      %v1057 = vsel %vm800, %v671, %v929
      %v1058 = vsel %vm801, %v672, %v930
      %v1059 = vsel %vm802, %v673, %v931
      %v1060 = vsel %vm803, %v674, %v932
      %v1061 = vsel %vm804, %v675, %v933
      %v1062 = vsel %vm805, %v676, %v934
      %v1063 = vsel %vm806, %v677, %v935
      %v1064 = vsel %vm807, %v678, %v936
      %v1065 = vsel %vm808, %v679, %v937
      %v1066 = vsel %vm809, %v680, %v938
      %v1067 = vsel %vm810, %v681, %v939
      %v1068 = vsel %vm811, %v682, %v940
      %v1069 = vsel %vm812, %v683, %v941
      %v1070 = vsel %vm813, %v684, %v942
      %v1071 = vsel %vm814, %v685, %v943
      %v1072 = vsel %vm815, %v686, %v944
      %v1073 = vsel %vm816, %v687, %v945
      %v1074 = vsel %vm817, %v688, %v946
      %v1075 = vsel %vm818, %v689, %v947
      %v1076 = vsel %vm819, %v690, %v948
      %v1077 = vsel %vm820, %v691, %v949
      %v1078 = vsel %vm821, %v692, %v950
      %v1079 = vsel %vm822, %v693, %v951
      %v1080 = vsel %vm823, %v694, %v952
      %v1081 = vsel %vm824, %v695, %v953
      %v1082 = vsel %vm825, %v696, %v954
      %v1083 = vsel %vm826, %v697, %v955
      %v1084 = vsel %vm827, %v698, %v956
      %v1085 = vsel %vm828, %v699, %v957
      %v1086 = vsel %vm829, %v700, %v958
      %v1087 = vsel %vm830, %v701, %v959
      %v1088 = vsel %vm831, %v702, %v960
      %v1089 = vsel %vm832, %v703, %v961
      %v1090 = vsel %vm833, %v704, %v962
      %v1091 = vsel %vm834, %v705, %v963
      %v1092 = vsel %vm835, %v706, %v964
      %v1093 = vsel %vm836, %v707, %v965
      %v1094 = vsel %vm837, %v708, %v966
      %v1095 = vsel %vm838, %v709, %v967
      %v1096 = vsel %vm839, %v710, %v968
      %v1097 = vsel %vm840, %v711, %v969
      %v1098 = vsel %vm841, %v712, %v970
      %v1099 = vsel %vm842, %v713, %v971
      %v1100 = vsel %vm843, %v714, %v972
      %v1101 = vsel %vm844, %v715, %v973
      %v1102 = vsel %vm845, %v716, %v974
      %v1103 = vsel %vm846, %v717, %v975
      %v1104 = vsel %vm847, %v718, %v976
      %v1105 = vsel %vm848, %v719, %v977
      %v1106 = vsel %vm849, %v720, %v978
      %v1107 = vsel %vm850, %v721, %v979
      %v1108 = vsel %vm851, %v722, %v980
      %v1109 = vsel %vm852, %v723, %v981
      %v1110 = vsel %vm853, %v724, %v982
      %v1111 = vsel %vm854, %v725, %v983
      %v1112 = vsel %vm855, %v726, %v984
      %v1113 = vsel %vm856, %v727, %v985
      %v1114 = vsel %vm857, %v728, %v986
      %v1115 = vsel %vm858, %v729, %v987
      %v1116 = vsel %vm859, %v730, %v988
      %v1117 = vsel %vm860, %v731, %v989
      %v1118 = vsel %vm861, %v732, %v990
      %v1119 = vsel %vm862, %v733, %v991
      %v1120 = vsel %vm863, %v734, %v992
      %v1121 = vsel %vm864, %v735, %v993
      %v1122 = vsel %vm865, %v736, %v994
      %v1123 = vsel %vm866, %v737, %v995
      %v1124 = vsel %vm867, %v738, %v996
      %v1125 = vsel %vm868, %v739, %v997
      %v1126 = vsel %vm869, %v740, %v998
      %v1127 = vsel %vm870, %v741, %v999
      %v1128 = vsel %vm871, %v742, %v1000
      %v1129 = vsel %vm872, %v743, %v1001
      %v1130 = vsel %vm873, %v744, %v1002
      %v1131 = vsel %vm874, %v745, %v1003
      %v1132 = vsel %vm875, %v746, %v1004
      %v1133 = vsel %vm876, %v747, %v1005
      %v1134 = vsel %vm877, %v748, %v1006
      %v1135 = vsel %vm878, %v749, %v1007
      %v1136 = vsel %vm879, %v750, %v1008
      %v1137 = vsel %vm880, %v751, %v1009
      %v1138 = vsel %vm881, %v752, %v1010
      %v1139 = vsel %vm882, %v753, %v1011
      %v1140 = vsel %vm883, %v754, %v1012
      %v1141 = vsel %vm884, %v755, %v1013
      %v1142 = vsel %vm885, %v756, %v1014
      %v1143 = vsel %vm886, %v757, %v1015
      %v1144 = vsel %vm887, %v758, %v1016
      %v1145 = vsel %vm888, %v759, %v1017
      %v1146 = vsel %vm889, %v760, %v1018
      %1147 = vxpose.xlu0.b32.start [1/16] %v1019, 128
      %1148 = vxpose.xlu0.b32.cont [2/16] %v1020, 128
      %1149 = vxpose.xlu0.b32.cont [3/16] %v1021, 128
      %1150 = vxpose.xlu0.b32.cont [4/16] %v1022, 128
      %1151 = vxpose.xlu0.b32.cont [5/16] %v1023, 128
      %1152 = vxpose.xlu0.b32.cont [6/16] %v1024, 128
      %1153 = vxpose.xlu0.b32.cont [7/16] %v1025, 128
      %1154 = vxpose.xlu0.b32.cont [8/16] %v1026, 128
      %1155 = vxpose.xlu0.b32.cont [9/16] %v1027, 128
      %1156 = vxpose.xlu0.b32.cont [10/16] %v1028, 128
      %1157 = vxpose.xlu0.b32.cont [11/16] %v1029, 128
      %1158 = vxpose.xlu0.b32.cont [12/16] %v1030, 128
      %1159 = vxpose.xlu0.b32.cont [13/16] %v1031, 128
      %1160 = vxpose.xlu0.b32.cont [14/16] %v1032, 128
      %1161 = vxpose.xlu0.b32.cont [15/16] %v1033, 128
      %1162 = vxpose.xlu0.b32.end [16/16] %v1034, 128
      %v1163 = vpop.trf.xlu0
      %v1164 = vpop.trf.xlu0
      %v1165 = vpop.trf.xlu0
      %v1166 = vpop.trf.xlu0
      %v1167 = vpop.trf.xlu0
      %v1168 = vpop.trf.xlu0
      %v1169 = vpop.trf.xlu0
      %v1170 = vpop.trf.xlu0
      %v1171 = vpop.trf.xlu0
      %v1172 = vpop.trf.xlu0
      %v1173 = vpop.trf.xlu0
      %v1174 = vpop.trf.xlu0
      %v1175 = vpop.trf.xlu0
      %v1176 = vpop.trf.xlu0
      %v1177 = vpop.trf.xlu0
      %v1178 = vpop.trf.xlu0
      %1179 = vxpose.xlu0.b32.start [1/16] %v1035, 128
      %1180 = vxpose.xlu0.b32.cont [2/16] %v1036, 128
      %1181 = vxpose.xlu0.b32.cont [3/16] %v1037, 128
      %1182 = vxpose.xlu0.b32.cont [4/16] %v1038, 128
      %1183 = vxpose.xlu0.b32.cont [5/16] %v1039, 128
      %1184 = vxpose.xlu0.b32.cont [6/16] %v1040, 128
      %1185 = vxpose.xlu0.b32.cont [7/16] %v1041, 128
      %1186 = vxpose.xlu0.b32.cont [8/16] %v1042, 128
      %1187 = vxpose.xlu0.b32.cont [9/16] %v1043, 128
      %1188 = vxpose.xlu0.b32.cont [10/16] %v1044, 128
      %1189 = vxpose.xlu0.b32.cont [11/16] %v1045, 128
      %1190 = vxpose.xlu0.b32.cont [12/16] %v1046, 128
      %1191 = vxpose.xlu0.b32.cont [13/16] %v1047, 128
      %1192 = vxpose.xlu0.b32.cont [14/16] %v1048, 128
      %1193 = vxpose.xlu0.b32.cont [15/16] %v1049, 128
      %1194 = vxpose.xlu0.b32.end [16/16] %v1050, 128
      %v1195 = vpop.trf.xlu0
      %v1196 = vpop.trf.xlu0
      %v1197 = vpop.trf.xlu0
      %v1198 = vpop.trf.xlu0
      %v1199 = vpop.trf.xlu0
      %v1200 = vpop.trf.xlu0
      %v1201 = vpop.trf.xlu0
      %v1202 = vpop.trf.xlu0
      %v1203 = vpop.trf.xlu0
      %v1204 = vpop.trf.xlu0
      %v1205 = vpop.trf.xlu0
      %v1206 = vpop.trf.xlu0
      %v1207 = vpop.trf.xlu0
      %v1208 = vpop.trf.xlu0
      %v1209 = vpop.trf.xlu0
      %v1210 = vpop.trf.xlu0
      %1211 = vxpose.xlu0.b32.start [1/16] %v1051, 128
      %1212 = vxpose.xlu0.b32.cont [2/16] %v1052, 128
      %1213 = vxpose.xlu0.b32.cont [3/16] %v1053, 128
      %1214 = vxpose.xlu0.b32.cont [4/16] %v1054, 128
      %1215 = vxpose.xlu0.b32.cont [5/16] %v1055, 128
      %1216 = vxpose.xlu0.b32.cont [6/16] %v1056, 128
      %1217 = vxpose.xlu0.b32.cont [7/16] %v1057, 128
      %1218 = vxpose.xlu0.b32.cont [8/16] %v1058, 128
      %1219 = vxpose.xlu0.b32.cont [9/16] %v1059, 128
      %1220 = vxpose.xlu0.b32.cont [10/16] %v1060, 128
      %1221 = vxpose.xlu0.b32.cont [11/16] %v1061, 128
      %1222 = vxpose.xlu0.b32.cont [12/16] %v1062, 128
      %1223 = vxpose.xlu0.b32.cont [13/16] %v1063, 128
      %1224 = vxpose.xlu0.b32.cont [14/16] %v1064, 128
      %1225 = vxpose.xlu0.b32.cont [15/16] %v1065, 128
      %1226 = vxpose.xlu0.b32.end [16/16] %v1066, 128
      %v1227 = vpop.trf.xlu0
      %v1228 = vpop.trf.xlu0
      %v1229 = vpop.trf.xlu0
      %v1230 = vpop.trf.xlu0
      %v1231 = vpop.trf.xlu0
      %v1232 = vpop.trf.xlu0
      %v1233 = vpop.trf.xlu0
      %v1234 = vpop.trf.xlu0
      %v1235 = vpop.trf.xlu0
      %v1236 = vpop.trf.xlu0
      %v1237 = vpop.trf.xlu0
      %v1238 = vpop.trf.xlu0
      %v1239 = vpop.trf.xlu0
      %v1240 = vpop.trf.xlu0
      %v1241 = vpop.trf.xlu0
      %v1242 = vpop.trf.xlu0
      %1243 = vxpose.xlu0.b32.start [1/16] %v1067, 128
      %1244 = vxpose.xlu0.b32.cont [2/16] %v1068, 128
      %1245 = vxpose.xlu0.b32.cont [3/16] %v1069, 128
      %1246 = vxpose.xlu0.b32.cont [4/16] %v1070, 128
      %1247 = vxpose.xlu0.b32.cont [5/16] %v1071, 128
      %1248 = vxpose.xlu0.b32.cont [6/16] %v1072, 128
      %1249 = vxpose.xlu0.b32.cont [7/16] %v1073, 128
      %1250 = vxpose.xlu0.b32.cont [8/16] %v1074, 128
      %1251 = vxpose.xlu0.b32.cont [9/16] %v1075, 128
      %1252 = vxpose.xlu0.b32.cont [10/16] %v1076, 128
      %1253 = vxpose.xlu0.b32.cont [11/16] %v1077, 128
      %1254 = vxpose.xlu0.b32.cont [12/16] %v1078, 128
      %1255 = vxpose.xlu0.b32.cont [13/16] %v1079, 128
      %1256 = vxpose.xlu0.b32.cont [14/16] %v1080, 128
      %1257 = vxpose.xlu0.b32.cont [15/16] %v1081, 128
      %1258 = vxpose.xlu0.b32.end [16/16] %v1082, 128
      %v1259 = vpop.trf.xlu0
      %v1260 = vpop.trf.xlu0
      %v1261 = vpop.trf.xlu0
      %v1262 = vpop.trf.xlu0
      %v1263 = vpop.trf.xlu0
      %v1264 = vpop.trf.xlu0
      %v1265 = vpop.trf.xlu0
      %v1266 = vpop.trf.xlu0
      %v1267 = vpop.trf.xlu0
      %v1268 = vpop.trf.xlu0
      %v1269 = vpop.trf.xlu0
      %v1270 = vpop.trf.xlu0
      %v1271 = vpop.trf.xlu0
      %v1272 = vpop.trf.xlu0
      %v1273 = vpop.trf.xlu0
      %v1274 = vpop.trf.xlu0
      %1275 = vxpose.xlu0.b32.start [1/16] %v1083, 128
      %1276 = vxpose.xlu0.b32.cont [2/16] %v1084, 128
      %1277 = vxpose.xlu0.b32.cont [3/16] %v1085, 128
      %1278 = vxpose.xlu0.b32.cont [4/16] %v1086, 128
      %1279 = vxpose.xlu0.b32.cont [5/16] %v1087, 128
      %1280 = vxpose.xlu0.b32.cont [6/16] %v1088, 128
      %1281 = vxpose.xlu0.b32.cont [7/16] %v1089, 128
      %1282 = vxpose.xlu0.b32.cont [8/16] %v1090, 128
      %1283 = vxpose.xlu0.b32.cont [9/16] %v1091, 128
      %1284 = vxpose.xlu0.b32.cont [10/16] %v1092, 128
      %1285 = vxpose.xlu0.b32.cont [11/16] %v1093, 128
      %1286 = vxpose.xlu0.b32.cont [12/16] %v1094, 128
      %1287 = vxpose.xlu0.b32.cont [13/16] %v1095, 128
      %1288 = vxpose.xlu0.b32.cont [14/16] %v1096, 128
      %1289 = vxpose.xlu0.b32.cont [15/16] %v1097, 128
      %1290 = vxpose.xlu0.b32.end [16/16] %v1098, 128
      %v1291 = vpop.trf.xlu0
      %v1292 = vpop.trf.xlu0
      %v1293 = vpop.trf.xlu0
      %v1294 = vpop.trf.xlu0
      %v1295 = vpop.trf.xlu0
      %v1296 = vpop.trf.xlu0
      %v1297 = vpop.trf.xlu0
      %v1298 = vpop.trf.xlu0
      %v1299 = vpop.trf.xlu0
      %v1300 = vpop.trf.xlu0
      %v1301 = vpop.trf.xlu0
      %v1302 = vpop.trf.xlu0
      %v1303 = vpop.trf.xlu0
      %v1304 = vpop.trf.xlu0
      %v1305 = vpop.trf.xlu0
      %v1306 = vpop.trf.xlu0
      %1307 = vxpose.xlu0.b32.start [1/16] %v1099, 128
      %1308 = vxpose.xlu0.b32.cont [2/16] %v1100, 128
      %1309 = vxpose.xlu0.b32.cont [3/16] %v1101, 128
      %1310 = vxpose.xlu0.b32.cont [4/16] %v1102, 128
      %1311 = vxpose.xlu0.b32.cont [5/16] %v1103, 128
      %1312 = vxpose.xlu0.b32.cont [6/16] %v1104, 128
      %1313 = vxpose.xlu0.b32.cont [7/16] %v1105, 128
      %1314 = vxpose.xlu0.b32.cont [8/16] %v1106, 128
      %1315 = vxpose.xlu0.b32.cont [9/16] %v1107, 128
      %1316 = vxpose.xlu0.b32.cont [10/16] %v1108, 128
      %1317 = vxpose.xlu0.b32.cont [11/16] %v1109, 128
      %1318 = vxpose.xlu0.b32.cont [12/16] %v1110, 128
      %1319 = vxpose.xlu0.b32.cont [13/16] %v1111, 128
      %1320 = vxpose.xlu0.b32.cont [14/16] %v1112, 128
      %1321 = vxpose.xlu0.b32.cont [15/16] %v1113, 128
      %1322 = vxpose.xlu0.b32.end [16/16] %v1114, 128
      %v1323 = vpop.trf.xlu0
      %v1324 = vpop.trf.xlu0
      %v1325 = vpop.trf.xlu0
      %v1326 = vpop.trf.xlu0
      %v1327 = vpop.trf.xlu0
      %v1328 = vpop.trf.xlu0
      %v1329 = vpop.trf.xlu0
      %v1330 = vpop.trf.xlu0
      %v1331 = vpop.trf.xlu0
      %v1332 = vpop.trf.xlu0
      %v1333 = vpop.trf.xlu0
      %v1334 = vpop.trf.xlu0
      %v1335 = vpop.trf.xlu0
      %v1336 = vpop.trf.xlu0
      %v1337 = vpop.trf.xlu0
      %v1338 = vpop.trf.xlu0
      %1339 = vxpose.xlu0.b32.start [1/16] %v1115, 128
      %1340 = vxpose.xlu0.b32.cont [2/16] %v1116, 128
      %1341 = vxpose.xlu0.b32.cont [3/16] %v1117, 128
      %1342 = vxpose.xlu0.b32.cont [4/16] %v1118, 128
      %1343 = vxpose.xlu0.b32.cont [5/16] %v1119, 128
      %1344 = vxpose.xlu0.b32.cont [6/16] %v1120, 128
      %1345 = vxpose.xlu0.b32.cont [7/16] %v1121, 128
      %1346 = vxpose.xlu0.b32.cont [8/16] %v1122, 128
      %1347 = vxpose.xlu0.b32.cont [9/16] %v1123, 128
      %1348 = vxpose.xlu0.b32.cont [10/16] %v1124, 128
      %1349 = vxpose.xlu0.b32.cont [11/16] %v1125, 128
      %1350 = vxpose.xlu0.b32.cont [12/16] %v1126, 128
      %1351 = vxpose.xlu0.b32.cont [13/16] %v1127, 128
      %1352 = vxpose.xlu0.b32.cont [14/16] %v1128, 128
      %1353 = vxpose.xlu0.b32.cont [15/16] %v1129, 128
      %1354 = vxpose.xlu0.b32.end [16/16] %v1130, 128
      %v1355 = vpop.trf.xlu0
      %v1356 = vpop.trf.xlu0
      %v1357 = vpop.trf.xlu0
      %v1358 = vpop.trf.xlu0
      %v1359 = vpop.trf.xlu0
      %v1360 = vpop.trf.xlu0
      %v1361 = vpop.trf.xlu0
      %v1362 = vpop.trf.xlu0
      %v1363 = vpop.trf.xlu0
      %v1364 = vpop.trf.xlu0
      %v1365 = vpop.trf.xlu0
      %v1366 = vpop.trf.xlu0
      %v1367 = vpop.trf.xlu0
      %v1368 = vpop.trf.xlu0
      %v1369 = vpop.trf.xlu0
      %v1370 = vpop.trf.xlu0
      %1371 = vxpose.xlu0.b32.start [1/16] %v1131, 128
      %1372 = vxpose.xlu0.b32.cont [2/16] %v1132, 128
      %1373 = vxpose.xlu0.b32.cont [3/16] %v1133, 128
      %1374 = vxpose.xlu0.b32.cont [4/16] %v1134, 128
      %1375 = vxpose.xlu0.b32.cont [5/16] %v1135, 128
      %1376 = vxpose.xlu0.b32.cont [6/16] %v1136, 128
      %1377 = vxpose.xlu0.b32.cont [7/16] %v1137, 128
      %1378 = vxpose.xlu0.b32.cont [8/16] %v1138, 128
      %1379 = vxpose.xlu0.b32.cont [9/16] %v1139, 128
      %1380 = vxpose.xlu0.b32.cont [10/16] %v1140, 128
      %1381 = vxpose.xlu0.b32.cont [11/16] %v1141, 128
      %1382 = vxpose.xlu0.b32.cont [12/16] %v1142, 128
      %1383 = vxpose.xlu0.b32.cont [13/16] %v1143, 128
      %1384 = vxpose.xlu0.b32.cont [14/16] %v1144, 128
      %1385 = vxpose.xlu0.b32.cont [15/16] %v1145, 128
      %1386 = vxpose.xlu0.b32.end [16/16] %v1146, 128
      %v1387 = vpop.trf.xlu0
      %v1388 = vpop.trf.xlu0
      %v1389 = vpop.trf.xlu0
      %v1390 = vpop.trf.xlu0
      %v1391 = vpop.trf.xlu0
      %v1392 = vpop.trf.xlu0
      %v1393 = vpop.trf.xlu0
      %v1394 = vpop.trf.xlu0
      %v1395 = vpop.trf.xlu0
      %v1396 = vpop.trf.xlu0
      %v1397 = vpop.trf.xlu0
      %v1398 = vpop.trf.xlu0
      %v1399 = vpop.trf.xlu0
      %v1400 = vpop.trf.xlu0
      %v1401 = vpop.trf.xlu0
      %v1402 = vpop.trf.xlu0
      %1403 = vst [vmem:[%s239] sm:$0xff] %v1163
      %1404 = vst [vmem:[%s239 + $0x8] sm:$0xff] %v1195
      %1405 = vst [vmem:[%s239 + $0x10] sm:$0xff] %v1227
      %1406 = vst [vmem:[%s239 + $0x18] sm:$0xff] %v1259
      %1407 = vst [vmem:[%s239 + $0x20] sm:$0xff] %v1291
      %1408 = vst [vmem:[%s239 + $0x28] sm:$0xff] %v1323
      %1409 = vst [vmem:[%s239 + $0x30] sm:$0xff] %v1355
      %1410 = vst [vmem:[%s239 + $0x38] sm:$0xff] %v1387
      %s1411 = smul.u32 8, %s21
      %p1412 = scmp.lt.s32.totalorder %s20, 1
      %s1413 = scalar_select %p1412, %s20, 1
      %p1414 = scmp.lt.s32.totalorder %s1411, 7
      %s1415 = scalar_select %p1414, %s1411, 7
      %s1416 = smul.addr %s1413, 8
      %s1417 = sadd.s32 %s1415, %s1416
      %s1418 = smul.addr %s1417, 8
      %s1419 = scalar_lea.vmem %s4, %s1418
      // Predicated region
      $region37: #{_forward.3} parent=35 // pred_check
        %p1420 = pneg %p139
      $region38: #{_forward.3} parent=35 // pred_check_branch
        %1422 = sbr.rel (%p1420) target = $region40
      $region39: #{_forward.3} parent=35 // pred_region
        %s1423 = smul.u32 8, %s21
      $region40: #{_forward.3} parent=35 // pred_fallthru
        _
    $region36: #{_forward.3} parent=5 // pred_fallthru
      _
    %p1424 = scmp.le.s32.totalorder 2, %s11
    // Predicated region
    $region41: #{_forward.3} parent=5 // pred_check
      %p1425 = pneg %p1424
    $region42: #{_forward.3} parent=5 // pred_check_branch
      %1427 = sbr.rel (%p1425) target = $region44
    $region43: #{_forward.3} parent=5 // pred_region
      %s1428 = ssub.s32 %s11, 2
      // Predicated region
      $region45: #{_forward.3} parent=43 // pred_check
        %p1429 = pneg %p145
      $region46: #{_forward.3} parent=43 // pred_check_branch
        %1431 = sbr.rel (%p1429) target = $region48
      $region47: #{_forward.3} parent=43 // pred_region
        %s1432 = smul.u32 8, %s23
        %p1433 = scmp.lt.s32.totalorder %s22, 1
        %s1434 = scalar_select %p1433, %s22, 1
        %p1435 = scmp.lt.s32.totalorder %s1432, 7
        %s1436 = scalar_select %p1435, %s1432, 7
        %s1437 = smul.addr %s1434, 8
        %s1438 = sadd.s32 %s1436, %s1437
        %s1439 = smul.addr %s1438, 8
        %s1440 = scalar_lea.vmem %s4, %s1439
      $region48: #{_forward.3} parent=43 // pred_fallthru
        _
    $region44: #{_forward.3} parent=5 // pred_fallthru
      _
  $region6: #{_forward.3} parent=0 // loop_footer
    %s15 = sadd.s32 1, %s11
  $region7: #{_forward.3} parent=0 // loop_footer_branch
    %10 = sbr.rel target = $region3
  $region8: #{_forward.3} parent=0 // loop_exit
    _

// kernel: _forward.2
$region0: #{_forward.2}
  #allocation0 [shape = 'u32[]', space=smem, size = 0x4, offset = 0x4, fixed_abs, tag = 'smem constant byte address 0x4 - core index']
  #allocation1 [shape = 'u32[72,128]{1,0:T(1,128)}', space=vmem, size = 0x9000, scoped, tag = 'internal scratch']
  %s0 = inlined_call_operand.vmem [shape: bf16[2,18,34,4], index: 0, kind: input, shape index: {}]
  %s1 = inlined_call_operand.vmem [shape: bf16[36,128], index: 1, kind: input, shape index: {}]
  %s2 = inlined_call_operand.vmem [shape: bf16[2,32,32,128], index: 2, kind: output, shape index: {0}]
  %s3 = inlined_call_operand.vmem [shape: f32[2,1,2,128], index: 3, kind: output, shape index: {1}]
  %4 = xla_tuple %s2, %s3
  %s5 = sld [smem:[#allocation0]]
  $region49: #{_forward.2} parent=0
    _
  %s7 = ssub.s32 1, %s5
  %s8 = scalar_select 0, %s7, %s5
  loop: start=0, step=1, limit=4
  $region2: #{_forward.2} parent=0 // loop_pre_header
    _
  $region3: #{_forward.2} parent=0 // loop_header
    %s10 = sphi 0, %s14
    %p11 = scmp.ge.s32.totalorder %s10, 4
    %s17 = sphi 0, %s29
    %s18 = sphi 0, %s25
    %s19 = sphi 0, %s17
    %s20 = sphi 0, %s18
    %s21 = sphi 0, %s19
    %s22 = sphi 0, %s20
    %s32 = sphi 0, %s34
    %s35 = sphi 0, %s32
    %s36 = sphi 0, %s35
    %s52 = sphi 0, %s36
    %s56 = sphi 0, %s56
    %s58 = sphi 0, %s56
    %s59 = sphi 0, %s58
    %s73 = sphi 0, %s59
    %s81 = sphi 0, %s83
    %s84 = sphi 0, %s81
    %s85 = sphi 0, %s84
    %s101 = sphi 0, %s85
    %s109 = sphi 0, %s111
    %s112 = sphi 0, %s109
    %s113 = sphi 0, %s112
    %s129 = sphi 0, %s113
  $region4: #{_forward.2} parent=0 // loop_header_branch
    %13 = sbr.rel (%p11) target = $region8
  $region5: #{_forward.2} parent=0 // loop_body
    %s15 = ssub.s32 %s10, 1
    %s16 = ssub.s32 %s10, 2
    %s23 = sadd.s32 1, %s18
    %p24 = scmp.ge.s32.totalorder %s23, 1
    %s25 = scalar_select %p24, 0, %s23
    %s26 = sadd.s32 1, %s17
    %s27 = scalar_select %p24, %s26, %s17
    %p28 = scmp.ge.s32.totalorder %s27, 2
    %s29 = scalar_select %p28, 0, %s27
    %s30 = ssub.s32 %s17, %s29
    %p31 = scmp.eq.s32.totalorder %s30, 0
    %s33 = sadd.s32 %s32, 1
    %s34 = scalar_select %p31, %s32, %s33
    %p37 = pneg %p31
    %p38 = scmp.eq.s32.totalorder %s10, 1
    %p39 = por %p37, %p38
    %p40 = scmp.ne.s32.totalorder %s32, %s35
    %p41 = scmp.eq.s32.totalorder %s10, 0
    %p42 = por %p40, %p41
    %p43 = scmp.ne.s32.totalorder %s32, %s35
    %p44 = scmp.eq.s32.totalorder %s15, 1
    %p45 = por %p43, %p44
    %p46 = scmp.ne.s32.totalorder %s35, %s36
    %p47 = scmp.eq.s32.totalorder %s15, 0
    %p48 = por %p46, %p47
    %p49 = scmp.ne.s32.totalorder %s35, %s36
    %p50 = scmp.eq.s32.totalorder %s16, 1
    %p51 = por %p49, %p50
    %p53 = scmp.ne.s32.totalorder %s36, %s52
    %p54 = scmp.eq.s32.totalorder %s16, 0
    %p55 = por %p53, %p54
    %s57 = sadd.s32 %s56, 1
    %p60 = scmp.eq.s32.totalorder %s10, 1
    %p61 = scmp.ne.s32.totalorder %s56, %s58
    %p62 = scmp.eq.s32.totalorder %s10, 0
    %p63 = por %p61, %p62
    %p64 = scmp.ne.s32.totalorder %s56, %s58
    %p65 = scmp.eq.s32.totalorder %s15, 1
    %p66 = por %p64, %p65
    %p67 = scmp.ne.s32.totalorder %s58, %s59
    %p68 = scmp.eq.s32.totalorder %s15, 0
    %p69 = por %p67, %p68
    %p70 = scmp.ne.s32.totalorder %s58, %s59
    %p71 = scmp.eq.s32.totalorder %s16, 1
    %p72 = por %p70, %p71
    %p74 = scmp.ne.s32.totalorder %s59, %s73
    %p75 = scmp.eq.s32.totalorder %s16, 0
    %p76 = por %p74, %p75
    %s77 = ssub.s32 %s17, %s29
    %s78 = ssub.s32 %s18, %s25
    %s79 = sor.u32 %s77, %s78
    %p80 = scmp.eq.s32.totalorder %s79, 0
    %s82 = sadd.s32 %s81, 1
    %s83 = scalar_select %p80, %s81, %s82
    %p86 = pneg %p80
    %p87 = scmp.eq.s32.totalorder %s10, 1
    %p88 = por %p86, %p87
    %p89 = scmp.ne.s32.totalorder %s81, %s84
    %p90 = scmp.eq.s32.totalorder %s10, 0
    %p91 = por %p89, %p90
    %p92 = scmp.ne.s32.totalorder %s81, %s84
    %p93 = scmp.eq.s32.totalorder %s15, 1
    %p94 = por %p92, %p93
    %p95 = scmp.ne.s32.totalorder %s84, %s85
    %p96 = scmp.eq.s32.totalorder %s15, 0
    %p97 = por %p95, %p96
    %p98 = scmp.ne.s32.totalorder %s84, %s85
    %p99 = scmp.eq.s32.totalorder %s16, 1
    %p100 = por %p98, %p99
    %p102 = scmp.ne.s32.totalorder %s85, %s101
    %p103 = scmp.eq.s32.totalorder %s16, 0
    %p104 = por %p102, %p103
    %s105 = ssub.s32 %s17, %s29
    %s106 = ssub.s32 %s18, %s25
    %s107 = sor.u32 %s105, %s106
    %p108 = scmp.eq.s32.totalorder %s107, 0
    %s110 = sadd.s32 %s109, 1
    %s111 = scalar_select %p108, %s109, %s110
    %p114 = pneg %p108
    %p115 = scmp.eq.s32.totalorder %s10, 1
    %p116 = por %p114, %p115
    %p117 = scmp.ne.s32.totalorder %s109, %s112
    %p118 = scmp.eq.s32.totalorder %s10, 0
    %p119 = por %p117, %p118
    %p120 = scmp.ne.s32.totalorder %s109, %s112
    %p121 = scmp.eq.s32.totalorder %s15, 1
    %p122 = por %p120, %p121
    %p123 = scmp.ne.s32.totalorder %s112, %s113
    %p124 = scmp.eq.s32.totalorder %s15, 0
    %p125 = por %p123, %p124
    %p126 = scmp.ne.s32.totalorder %s112, %s113
    %p127 = scmp.eq.s32.totalorder %s16, 1
    %p128 = por %p126, %p127
    %p130 = scmp.ne.s32.totalorder %s113, %s129
    %p131 = scmp.eq.s32.totalorder %s16, 0
    %p132 = por %p130, %p131
    %p133 = scmp.le.s32.totalorder 1, %s10
    %p134 = scmp.lt.s32.totalorder %s10, 3
    %p135 = pnand %p133, %p134
    %p136 = pneg %p135
    // Predicated region
    $region9: #{_forward.2} parent=5 // pred_check
      _
    $region10: #{_forward.2} parent=5 // pred_check_branch
      %138 = sbr.rel (%p135) target = $region12
    $region11: #{_forward.2} parent=5 // pred_region
      %s139 = ssub.s32 %s10, 1
      // Predicated region
      $region13: #{_forward.2} parent=11 // pred_check
        %p140 = pneg %p69
      $region14: #{_forward.2} parent=11 // pred_check_branch
        %142 = sbr.rel (%p140) target = $region16
      $region15: #{_forward.2} parent=11 // pred_region
        _
      $region16: #{_forward.2} parent=11 // pred_fallthru
        _
    $region12: #{_forward.2} parent=5 // pred_fallthru
      _
    %p143 = scmp.lt.s32.totalorder %s10, 2
    // Predicated region
    $region17: #{_forward.2} parent=5 // pred_check
      %p144 = pneg %p143
    $region18: #{_forward.2} parent=5 // pred_check_branch
      %146 = sbr.rel (%p144) target = $region20
    $region19: #{_forward.2} parent=5 // pred_region
      // Predicated region
      $region21: #{_forward.2} parent=19 // pred_check
        %p147 = pneg %p42
      $region22: #{_forward.2} parent=19 // pred_check_branch
        %149 = sbr.rel (%p147) target = $region24
      $region23: #{_forward.2} parent=19 // pred_region
        %p150 = scmp.lt.s32.totalorder %s17, 1
        %s151 = scalar_select %p150, %s17, 1
        %s152 = smul.addr %s151, 90
        %s153 = smul.addr %s152, 4
        %s154 = scalar_lea.vmem %s0, %s153
      $region24: #{_forward.2} parent=19 // pred_fallthru
        _
    $region20: #{_forward.2} parent=5 // pred_fallthru
      _
    %p155 = scmp.le.s32.totalorder 1, %s10
    %p156 = scmp.lt.s32.totalorder %s10, 3
    %p157 = pnand %p155, %p156
    %p158 = pneg %p157
    // Predicated region
    $region25: #{_forward.2} parent=5 // pred_check
      _
    $region26: #{_forward.2} parent=5 // pred_check_branch
      %160 = sbr.rel (%p157) target = $region28
    $region27: #{_forward.2} parent=5 // pred_region
      %s161 = ssub.s32 %s10, 1
      %p162 = scmp.lt.s32.totalorder %s19, 1
      %s163 = scalar_select %p162, %s19, 1
      %s164 = smul.addr %s163, 90
      %s165 = smul.addr %s164, 4
      %s166 = scalar_lea.vmem %s0, %s165
      %p167 = pneg %p48
      %p168 = pneg %p45
      %p169 = pneg %p69
      %p170 = pneg %p66
      %p171 = pneg %p97
      %p172 = pneg %p94
      %s173 = smul.u32 32, %s20
      %p174 = scmp.lt.s32.totalorder %s19, 1
      %s175 = scalar_select %p174, %s19, 1
      %p176 = scmp.lt.s32.totalorder %s173, 31
      %s177 = scalar_select %p176, %s173, 31
      %s178 = smul.addr %s177, 4
      %s179 = smul.addr %s175, 128
      %s180 = sadd.s32 %s178, %s179
      %s181 = smul.addr %s180, 4
      %s182 = scalar_lea.vmem %s2, %s181
      %p183 = pneg %p125
      %p184 = pneg %p122
      %p185 = scmp.lt.s32.totalorder %s19, 1
      %s186 = scalar_select %p185, %s19, 1
      %p187 = scmp.lt.s32.totalorder %s20, 0
      %s188 = scalar_select %p187, %s20, 0
      %s189 = sadd.s32 %s188, %s186
      %s190 = smul.addr %s189, 2
      %s191 = scalar_lea.vmem %s3, %s190
      %p192 = scmp.lt.s32.totalorder %s19, 1
      %s193 = scalar_select %p192, %s19, 1
      %s194 = smul.addr %s193, 90
      %s195 = smul.addr %s194, 4
      %s196 = scalar_lea.vmem %s0, %s195
      %s197 = smul.u32 32, %s20
      %p198 = scmp.lt.s32.totalorder %s19, 1
      %s199 = scalar_select %p198, %s19, 1
      %p200 = scmp.lt.s32.totalorder %s197, 31
      %s201 = scalar_select %p200, %s197, 31
      %s202 = smul.addr %s201, 4
      %s203 = smul.addr %s199, 128
      %s204 = sadd.s32 %s202, %s203
      %s205 = smul.addr %s204, 4
      %s206 = scalar_lea.vmem %s2, %s205
      %s207 = smul.u32 32, %s20
      %p208 = scmp.lt.s32.totalorder %s19, 1
      %s209 = scalar_select %p208, %s19, 1
      %p210 = scmp.lt.s32.totalorder %s20, 0
      %s211 = scalar_select %p210, %s20, 0
      %s212 = sadd.s32 %s211, %s209
      %s213 = smul.addr %s212, 2
      %s214 = scalar_lea.vmem %s3, %s213
      %s216 = smul.u32 %s20, 16
      %s217 = smul.u32 %s216, 5
      %s218 = smul.addr %s217, 4
      %s219 = scalar_lea.vmem %s196, %s218
      %v220 = vld [vmem:[%s219] sm:$0xf]
      %v221 = vld [vmem:[%s219 + $0x4] sm:$0xf]
      %v222 = vld [vmem:[%s219 + $0x8] sm:$0xf]
      %v223 = vld [vmem:[%s219 + $0xc] sm:$0xf]
      %v224 = vld [vmem:[%s219 + $0x10] sm:$0x1]
      %v225 = vld [vmem:[%s219 + $0x14] sm:$0xf]
      %v226 = vld [vmem:[%s219 + $0x18] sm:$0xf]
      %v227 = vld [vmem:[%s219 + $0x1c] sm:$0xf]
      %v228 = vld [vmem:[%s219 + $0x20] sm:$0xf]
      %v229 = vld [vmem:[%s219 + $0x24] sm:$0x1]
      %v230 = vld [vmem:[%s219 + $0x28] sm:$0xf]
      %v231 = vld [vmem:[%s219 + $0x2c] sm:$0xf]
      %v232 = vld [vmem:[%s219 + $0x30] sm:$0xf]
      %v233 = vld [vmem:[%s219 + $0x34] sm:$0xf]
      %v234 = vld [vmem:[%s219 + $0x38] sm:$0x1]
      %v235 = vld [vmem:[%s219 + $0x3c] sm:$0xf]
      %v236 = vld [vmem:[%s219 + $0x40] sm:$0xf]
      %v237 = vld [vmem:[%s219 + $0x44] sm:$0xf]
      %v238 = vld [vmem:[%s219 + $0x48] sm:$0xf]
      %v239 = vld [vmem:[%s219 + $0x4c] sm:$0x1]
      %v240 = vld [vmem:[%s219 + $0x50] sm:$0xf]
      %v241 = vld [vmem:[%s219 + $0x54] sm:$0xf]
      %v242 = vld [vmem:[%s219 + $0x58] sm:$0xf]
      %v243 = vld [vmem:[%s219 + $0x5c] sm:$0xf]
      %v244 = vld [vmem:[%s219 + $0x60] sm:$0x1]
      %v245 = vld [vmem:[%s219 + $0x64] sm:$0xf]
      %v246 = vld [vmem:[%s219 + $0x68] sm:$0xf]
      %v247 = vld [vmem:[%s219 + $0x6c] sm:$0xf]
      %v248 = vld [vmem:[%s219 + $0x70] sm:$0xf]
      %v249 = vld [vmem:[%s219 + $0x74] sm:$0x1]
      %v250 = vld [vmem:[%s219 + $0x78] sm:$0xf]
      %v251 = vld [vmem:[%s219 + $0x7c] sm:$0xf]
      %v252 = vld [vmem:[%s219 + $0x80] sm:$0xf]
      %v253 = vld [vmem:[%s219 + $0x84] sm:$0xf]
      %v254 = vld [vmem:[%s219 + $0x88] sm:$0x1]
      %v255 = vld [vmem:[%s219 + $0x8c] sm:$0xf]
      %v256 = vld [vmem:[%s219 + $0x90] sm:$0xf]
      %v257 = vld [vmem:[%s219 + $0x94] sm:$0xf]
      %v258 = vld [vmem:[%s219 + $0x98] sm:$0xf]
      %v259 = vld [vmem:[%s219 + $0x9c] sm:$0x1]
      %v260 = vld [vmem:[%s219 + $0xa0] sm:$0xf]
      %v261 = vld [vmem:[%s219 + $0xa4] sm:$0xf]
      %v262 = vld [vmem:[%s219 + $0xa8] sm:$0xf]
      %v263 = vld [vmem:[%s219 + $0xac] sm:$0xf]
      %v264 = vld [vmem:[%s219 + $0xb0] sm:$0x1]
      %v265 = vld [vmem:[%s219 + $0xb4] sm:$0xf]
      %v266 = vld [vmem:[%s219 + $0xb8] sm:$0xf]
      %v267 = vld [vmem:[%s219 + $0xbc] sm:$0xf]
      %v268 = vld [vmem:[%s219 + $0xc0] sm:$0xf]
      %v269 = vld [vmem:[%s219 + $0xc4] sm:$0x1]
      %v270 = vld [vmem:[%s219 + $0xc8] sm:$0xf]
      %v271 = vld [vmem:[%s219 + $0xcc] sm:$0xf]
      %v272 = vld [vmem:[%s219 + $0xd0] sm:$0xf]
      %v273 = vld [vmem:[%s219 + $0xd4] sm:$0xf]
      %v274 = vld [vmem:[%s219 + $0xd8] sm:$0x1]
      %v275 = vld [vmem:[%s219 + $0xdc] sm:$0xf]
      %v276 = vld [vmem:[%s219 + $0xe0] sm:$0xf]
      %v277 = vld [vmem:[%s219 + $0xe4] sm:$0xf]
      %v278 = vld [vmem:[%s219 + $0xe8] sm:$0xf]
      %v279 = vld [vmem:[%s219 + $0xec] sm:$0x1]
      %v280 = vld [vmem:[%s219 + $0xf0] sm:$0xf]
      %v281 = vld [vmem:[%s219 + $0xf4] sm:$0xf]
      %v282 = vld [vmem:[%s219 + $0xf8] sm:$0xf]
      %v283 = vld [vmem:[%s219 + $0xfc] sm:$0xf]
      %v284 = vld [vmem:[%s219 + $0x100] sm:$0x1]
      %v285 = vld [vmem:[%s219 + $0x104] sm:$0xf]
      %v286 = vld [vmem:[%s219 + $0x108] sm:$0xf]
      %v287 = vld [vmem:[%s219 + $0x10c] sm:$0xf]
      %v288 = vld [vmem:[%s219 + $0x110] sm:$0xf]
      %v289 = vld [vmem:[%s219 + $0x114] sm:$0x1]
      %v290 = vld [vmem:[%s219 + $0x118] sm:$0xf]
      %v291 = vld [vmem:[%s219 + $0x11c] sm:$0xf]
      %v292 = vld [vmem:[%s219 + $0x120] sm:$0xf]
      %v293 = vld [vmem:[%s219 + $0x124] sm:$0xf]
      %v294 = vld [vmem:[%s219 + $0x128] sm:$0x1]
      %v295 = vld [vmem:[%s219 + $0x12c] sm:$0xf]
      %v296 = vld [vmem:[%s219 + $0x130] sm:$0xf]
      %v297 = vld [vmem:[%s219 + $0x134] sm:$0xf]
      %v298 = vld [vmem:[%s219 + $0x138] sm:$0xf]
      %v299 = vld [vmem:[%s219 + $0x13c] sm:$0x1]
      %v300 = vld [vmem:[%s219 + $0x140] sm:$0xf]
      %v301 = vld [vmem:[%s219 + $0x144] sm:$0xf]
      %v302 = vld [vmem:[%s219 + $0x148] sm:$0xf]
      %v303 = vld [vmem:[%s219 + $0x14c] sm:$0xf]
      %v304 = vld [vmem:[%s219 + $0x150] sm:$0x1]
      %v305 = vld [vmem:[%s219 + $0x154] sm:$0xf]
      %v306 = vld [vmem:[%s219 + $0x158] sm:$0xf]
      %v307 = vld [vmem:[%s219 + $0x15c] sm:$0xf]
      %v308 = vld [vmem:[%s219 + $0x160] sm:$0xf]
      %v309 = vld [vmem:[%s219 + $0x164] sm:$0x1]
      %v310 = vunpack.c.l.bf16 %v220
      %v311 = vunpack.c.l.bf16 %v221
      %v312 = vunpack.c.l.bf16 %v222
      %v313 = vunpack.c.l.bf16 %v223
      %v314 = vunpack.c.l.bf16 %v224
      %v315 = vunpack.c.l.bf16 %v225
      %v316 = vunpack.c.l.bf16 %v226
      %v317 = vunpack.c.l.bf16 %v227
      %v318 = vunpack.c.l.bf16 %v228
      %v319 = vunpack.c.l.bf16 %v229
      %v320 = vunpack.c.l.bf16 %v230
      %v321 = vunpack.c.l.bf16 %v231
      %v322 = vunpack.c.l.bf16 %v232
      %v323 = vunpack.c.l.bf16 %v233
      %v324 = vunpack.c.l.bf16 %v234
      %v325 = vunpack.c.l.bf16 %v235
      %v326 = vunpack.c.l.bf16 %v236
      %v327 = vunpack.c.l.bf16 %v237
      %v328 = vunpack.c.l.bf16 %v238
      %v329 = vunpack.c.l.bf16 %v239
      %v330 = vunpack.c.l.bf16 %v240
      %v331 = vunpack.c.l.bf16 %v241
      %v332 = vunpack.c.l.bf16 %v242
      %v333 = vunpack.c.l.bf16 %v243
      %v334 = vunpack.c.l.bf16 %v244
      %v335 = vunpack.c.l.bf16 %v245
      %v336 = vunpack.c.l.bf16 %v246
      %v337 = vunpack.c.l.bf16 %v247
      %v338 = vunpack.c.l.bf16 %v248
      %v339 = vunpack.c.l.bf16 %v249
      %v340 = vunpack.c.l.bf16 %v250
      %v341 = vunpack.c.l.bf16 %v251
      %v342 = vunpack.c.l.bf16 %v252
      %v343 = vunpack.c.l.bf16 %v253
      %v344 = vunpack.c.l.bf16 %v254
      %v345 = vunpack.c.l.bf16 %v255
      %v346 = vunpack.c.l.bf16 %v256
      %v347 = vunpack.c.l.bf16 %v257
      %v348 = vunpack.c.l.bf16 %v258
      %v349 = vunpack.c.l.bf16 %v259
      %v350 = vunpack.c.l.bf16 %v260
      %v351 = vunpack.c.l.bf16 %v261
      %v352 = vunpack.c.l.bf16 %v262
      %v353 = vunpack.c.l.bf16 %v263
      %v354 = vunpack.c.l.bf16 %v264
      %v355 = vunpack.c.l.bf16 %v265
      %v356 = vunpack.c.l.bf16 %v266
      %v357 = vunpack.c.l.bf16 %v267
      %v358 = vunpack.c.l.bf16 %v268
      %v359 = vunpack.c.l.bf16 %v269
      %v360 = vunpack.c.l.bf16 %v270
      %v361 = vunpack.c.l.bf16 %v271
      %v362 = vunpack.c.l.bf16 %v272
      %v363 = vunpack.c.l.bf16 %v273
      %v364 = vunpack.c.l.bf16 %v274
      %v365 = vunpack.c.l.bf16 %v275
      %v366 = vunpack.c.l.bf16 %v276
      %v367 = vunpack.c.l.bf16 %v277
      %v368 = vunpack.c.l.bf16 %v278
      %v369 = vunpack.c.l.bf16 %v279
      %v370 = vunpack.c.l.bf16 %v280
      %v371 = vunpack.c.l.bf16 %v281
      %v372 = vunpack.c.l.bf16 %v282
      %v373 = vunpack.c.l.bf16 %v283
      %v374 = vunpack.c.l.bf16 %v284
      %v375 = vunpack.c.l.bf16 %v285
      %v376 = vunpack.c.l.bf16 %v286
      %v377 = vunpack.c.l.bf16 %v287
      %v378 = vunpack.c.l.bf16 %v288
      %v379 = vunpack.c.l.bf16 %v289
      %v380 = vunpack.c.l.bf16 %v290
      %v381 = vunpack.c.l.bf16 %v291
      %v382 = vunpack.c.l.bf16 %v292
      %v383 = vunpack.c.l.bf16 %v293
      %v384 = vunpack.c.l.bf16 %v294
      %v385 = vunpack.c.l.bf16 %v295
      %v386 = vunpack.c.l.bf16 %v296
      %v387 = vunpack.c.l.bf16 %v297
      %v388 = vunpack.c.l.bf16 %v298
      %v389 = vunpack.c.l.bf16 %v299
      %v390 = vunpack.c.l.bf16 %v300
      %v391 = vunpack.c.l.bf16 %v301
      %v392 = vunpack.c.l.bf16 %v302
      %v393 = vunpack.c.l.bf16 %v303
      %v394 = vunpack.c.l.bf16 %v304
      %v395 = vunpack.c.l.bf16 %v305
      %v396 = vunpack.c.l.bf16 %v306
      %v397 = vunpack.c.l.bf16 %v307
      %v398 = vunpack.c.l.bf16 %v308
      %v399 = vunpack.c.l.bf16 %v309
      %v400 = vmul.f32 %v310, 0.75
      %v401 = vmul.f32 %v311, 0.75
      %v402 = vmul.f32 %v312, 0.75
      %v403 = vmul.f32 %v313, 0.75
      %v404 = vmul.f32 %v314, 0.75
      %v405 = vmul.f32 %v315, 0.75
      %v406 = vmul.f32 %v316, 0.75
      %v407 = vmul.f32 %v317, 0.75
      %v408 = vmul.f32 %v318, 0.75
      %v409 = vmul.f32 %v319, 0.75
      %v410 = vmul.f32 %v320, 0.75
      %v411 = vmul.f32 %v321, 0.75
      %v412 = vmul.f32 %v322, 0.75
      %v413 = vmul.f32 %v323, 0.75
      %v414 = vmul.f32 %v324, 0.75
      %v415 = vmul.f32 %v325, 0.75
      %v416 = vmul.f32 %v326, 0.75
      %v417 = vmul.f32 %v327, 0.75
      %v418 = vmul.f32 %v328, 0.75
      %v419 = vmul.f32 %v329, 0.75
      %v420 = vmul.f32 %v330, 0.75
      %v421 = vmul.f32 %v331, 0.75
      %v422 = vmul.f32 %v332, 0.75
      %v423 = vmul.f32 %v333, 0.75
      %v424 = vmul.f32 %v334, 0.75
      %v425 = vmul.f32 %v335, 0.75
      %v426 = vmul.f32 %v336, 0.75
      %v427 = vmul.f32 %v337, 0.75
      %v428 = vmul.f32 %v338, 0.75
      %v429 = vmul.f32 %v339, 0.75
      %v430 = vmul.f32 %v340, 0.75
      %v431 = vmul.f32 %v341, 0.75
      %v432 = vmul.f32 %v342, 0.75
      %v433 = vmul.f32 %v343, 0.75
      %v434 = vmul.f32 %v344, 0.75
      %v435 = vmul.f32 %v345, 0.75
      %v436 = vmul.f32 %v346, 0.75
      %v437 = vmul.f32 %v347, 0.75
      %v438 = vmul.f32 %v348, 0.75
      %v439 = vmul.f32 %v349, 0.75
      %v440 = vmul.f32 %v350, 0.75
      %v441 = vmul.f32 %v351, 0.75
      %v442 = vmul.f32 %v352, 0.75
      %v443 = vmul.f32 %v353, 0.75
      %v444 = vmul.f32 %v354, 0.75
      %v445 = vmul.f32 %v355, 0.75
      %v446 = vmul.f32 %v356, 0.75
      %v447 = vmul.f32 %v357, 0.75
      %v448 = vmul.f32 %v358, 0.75
      %v449 = vmul.f32 %v359, 0.75
      %v450 = vmul.f32 %v360, 0.75
      %v451 = vmul.f32 %v361, 0.75
      %v452 = vmul.f32 %v362, 0.75
      %v453 = vmul.f32 %v363, 0.75
      %v454 = vmul.f32 %v364, 0.75
      %v455 = vmul.f32 %v365, 0.75
      %v456 = vmul.f32 %v366, 0.75
      %v457 = vmul.f32 %v367, 0.75
      %v458 = vmul.f32 %v368, 0.75
      %v459 = vmul.f32 %v369, 0.75
      %v460 = vmul.f32 %v370, 0.75
      %v461 = vmul.f32 %v371, 0.75
      %v462 = vmul.f32 %v372, 0.75
      %v463 = vmul.f32 %v373, 0.75
      %v464 = vmul.f32 %v374, 0.75
      %v465 = vmul.f32 %v375, 0.75
      %v466 = vmul.f32 %v376, 0.75
      %v467 = vmul.f32 %v377, 0.75
      %v468 = vmul.f32 %v378, 0.75
      %v469 = vmul.f32 %v379, 0.75
      %v470 = vmul.f32 %v380, 0.75
      %v471 = vmul.f32 %v381, 0.75
      %v472 = vmul.f32 %v382, 0.75
      %v473 = vmul.f32 %v383, 0.75
      %v474 = vmul.f32 %v384, 0.75
      %v475 = vmul.f32 %v385, 0.75
      %v476 = vmul.f32 %v386, 0.75
      %v477 = vmul.f32 %v387, 0.75
      %v478 = vmul.f32 %v388, 0.75
      %v479 = vmul.f32 %v389, 0.75
      %v480 = vmul.f32 %v390, 0.75
      %v481 = vmul.f32 %v391, 0.75
      %v482 = vmul.f32 %v392, 0.75
      %v483 = vmul.f32 %v393, 0.75
      %v484 = vmul.f32 %v394, 0.75
      %v485 = vmul.f32 %v315, 0.25
      %v486 = vmul.f32 %v316, 0.25
      %v487 = vmul.f32 %v317, 0.25
      %v488 = vmul.f32 %v318, 0.25
      %v489 = vmul.f32 %v319, 0.25
      %v490 = vmul.f32 %v320, 0.25
      %v491 = vmul.f32 %v321, 0.25
      %v492 = vmul.f32 %v322, 0.25
      %v493 = vmul.f32 %v323, 0.25
      %v494 = vmul.f32 %v324, 0.25
      %v495 = vmul.f32 %v325, 0.25
      %v496 = vmul.f32 %v326, 0.25
      %v497 = vmul.f32 %v327, 0.25
      %v498 = vmul.f32 %v328, 0.25
      %v499 = vmul.f32 %v329, 0.25
      %v500 = vmul.f32 %v330, 0.25
      %v501 = vmul.f32 %v331, 0.25
      %v502 = vmul.f32 %v332, 0.25
      %v503 = vmul.f32 %v333, 0.25
      %v504 = vmul.f32 %v334, 0.25
      %v505 = vmul.f32 %v335, 0.25
      %v506 = vmul.f32 %v336, 0.25
      %v507 = vmul.f32 %v337, 0.25
      %v508 = vmul.f32 %v338, 0.25
      %v509 = vmul.f32 %v339, 0.25
      %v510 = vmul.f32 %v340, 0.25
      %v511 = vmul.f32 %v341, 0.25
      %v512 = vmul.f32 %v342, 0.25
      %v513 = vmul.f32 %v343, 0.25
      %v514 = vmul.f32 %v344, 0.25
      %v515 = vmul.f32 %v345, 0.25
      %v516 = vmul.f32 %v346, 0.25
      %v517 = vmul.f32 %v347, 0.25
      %v518 = vmul.f32 %v348, 0.25
      %v519 = vmul.f32 %v349, 0.25
      %v520 = vmul.f32 %v350, 0.25
      %v521 = vmul.f32 %v351, 0.25
      %v522 = vmul.f32 %v352, 0.25
      %v523 = vmul.f32 %v353, 0.25
      %v524 = vmul.f32 %v354, 0.25
      %v525 = vmul.f32 %v355, 0.25
      %v526 = vmul.f32 %v356, 0.25
      %v527 = vmul.f32 %v357, 0.25
      %v528 = vmul.f32 %v358, 0.25
      %v529 = vmul.f32 %v359, 0.25
      %v530 = vmul.f32 %v360, 0.25
      %v531 = vmul.f32 %v361, 0.25
      %v532 = vmul.f32 %v362, 0.25
      %v533 = vmul.f32 %v363, 0.25
      %v534 = vmul.f32 %v364, 0.25
      %v535 = vmul.f32 %v365, 0.25
      %v536 = vmul.f32 %v366, 0.25
      %v537 = vmul.f32 %v367, 0.25
      %v538 = vmul.f32 %v368, 0.25
      %v539 = vmul.f32 %v369, 0.25
      %v540 = vmul.f32 %v370, 0.25
      %v541 = vmul.f32 %v371, 0.25
      %v542 = vmul.f32 %v372, 0.25
      %v543 = vmul.f32 %v373, 0.25
      %v544 = vmul.f32 %v374, 0.25
      %v545 = vmul.f32 %v375, 0.25
      %v546 = vmul.f32 %v376, 0.25
      %v547 = vmul.f32 %v377, 0.25
      %v548 = vmul.f32 %v378, 0.25
      %v549 = vmul.f32 %v379, 0.25
      %v550 = vmul.f32 %v380, 0.25
      %v551 = vmul.f32 %v381, 0.25
      %v552 = vmul.f32 %v382, 0.25
      %v553 = vmul.f32 %v383, 0.25
      %v554 = vmul.f32 %v384, 0.25
      %v555 = vmul.f32 %v385, 0.25
      %v556 = vmul.f32 %v386, 0.25
      %v557 = vmul.f32 %v387, 0.25
      %v558 = vmul.f32 %v388, 0.25
      %v559 = vmul.f32 %v389, 0.25
      %v560 = vmul.f32 %v390, 0.25
      %v561 = vmul.f32 %v391, 0.25
      %v562 = vmul.f32 %v392, 0.25
      %v563 = vmul.f32 %v393, 0.25
      %v564 = vmul.f32 %v394, 0.25
      %v565 = vmul.f32 %v395, 0.25
      %v566 = vmul.f32 %v396, 0.25
      %v567 = vmul.f32 %v397, 0.25
      %v568 = vmul.f32 %v398, 0.25
      %v569 = vmul.f32 %v399, 0.25
      %v570 = vadd.f32 %v400, %v485
      %v571 = vadd.f32 %v401, %v486
      %v572 = vadd.f32 %v402, %v487
      %v573 = vadd.f32 %v403, %v488
      %v574 = vadd.f32 %v404, %v489
      %v575 = vadd.f32 %v405, %v490
      %v576 = vadd.f32 %v406, %v491
      %v577 = vadd.f32 %v407, %v492
      %v578 = vadd.f32 %v408, %v493
      %v579 = vadd.f32 %v409, %v494
      %v580 = vadd.f32 %v410, %v495
      %v581 = vadd.f32 %v411, %v496
      %v582 = vadd.f32 %v412, %v497
      %v583 = vadd.f32 %v413, %v498
      %v584 = vadd.f32 %v414, %v499
      %v585 = vadd.f32 %v415, %v500
      %v586 = vadd.f32 %v416, %v501
      %v587 = vadd.f32 %v417, %v502
      %v588 = vadd.f32 %v418, %v503
      %v589 = vadd.f32 %v419, %v504
      %v590 = vadd.f32 %v420, %v505
      %v591 = vadd.f32 %v421, %v506
      %v592 = vadd.f32 %v422, %v507
      %v593 = vadd.f32 %v423, %v508
      %v594 = vadd.f32 %v424, %v509
      %v595 = vadd.f32 %v425, %v510
      %v596 = vadd.f32 %v426, %v511
      %v597 = vadd.f32 %v427, %v512
      %v598 = vadd.f32 %v428, %v513
      %v599 = vadd.f32 %v429, %v514
      %v600 = vadd.f32 %v430, %v515
      %v601 = vadd.f32 %v431, %v516
      %v602 = vadd.f32 %v432, %v517
      %v603 = vadd.f32 %v433, %v518
      %v604 = vadd.f32 %v434, %v519
      %v605 = vadd.f32 %v435, %v520
      %v606 = vadd.f32 %v436, %v521
      %v607 = vadd.f32 %v437, %v522
      %v608 = vadd.f32 %v438, %v523
      %v609 = vadd.f32 %v439, %v524
      %v610 = vadd.f32 %v440, %v525
      %v611 = vadd.f32 %v441, %v526
      %v612 = vadd.f32 %v442, %v527
      %v613 = vadd.f32 %v443, %v528
      %v614 = vadd.f32 %v444, %v529
      %v615 = vadd.f32 %v445, %v530
      %v616 = vadd.f32 %v446, %v531
      %v617 = vadd.f32 %v447, %v532
      %v618 = vadd.f32 %v448, %v533
      %v619 = vadd.f32 %v449, %v534
      %v620 = vadd.f32 %v450, %v535
      %v621 = vadd.f32 %v451, %v536
      %v622 = vadd.f32 %v452, %v537
      %v623 = vadd.f32 %v453, %v538
      %v624 = vadd.f32 %v454, %v539
      %v625 = vadd.f32 %v455, %v540
      %v626 = vadd.f32 %v456, %v541
      %v627 = vadd.f32 %v457, %v542
      %v628 = vadd.f32 %v458, %v543
      %v629 = vadd.f32 %v459, %v544
      %v630 = vadd.f32 %v460, %v545
      %v631 = vadd.f32 %v461, %v546
      %v632 = vadd.f32 %v462, %v547
      %v633 = vadd.f32 %v463, %v548
      %v634 = vadd.f32 %v464, %v549
      %v635 = vadd.f32 %v465, %v550
      %v636 = vadd.f32 %v466, %v551
      %v637 = vadd.f32 %v467, %v552
      %v638 = vadd.f32 %v468, %v553
      %v639 = vadd.f32 %v469, %v554
      %v640 = vadd.f32 %v470, %v555
      %v641 = vadd.f32 %v471, %v556
      %v642 = vadd.f32 %v472, %v557
      %v643 = vadd.f32 %v473, %v558
      %v644 = vadd.f32 %v474, %v559
      %v645 = vadd.f32 %v475, %v560
      %v646 = vadd.f32 %v476, %v561
      %v647 = vadd.f32 %v477, %v562
      %v648 = vadd.f32 %v478, %v563
      %v649 = vadd.f32 %v479, %v564
      %v650 = vadd.f32 %v480, %v565
      %v651 = vadd.f32 %v481, %v566
      %v652 = vadd.f32 %v482, %v567
      %v653 = vadd.f32 %v483, %v568
      %v654 = vadd.f32 %v484, %v569
      %v655 = vmul.f32 %v310, 0.25
      %v656 = vmul.f32 %v311, 0.25
      %v657 = vmul.f32 %v312, 0.25
      %v658 = vmul.f32 %v313, 0.25
      %v659 = vmul.f32 %v314, 0.25
      %v660 = vmul.f32 %v395, 0.75
      %v661 = vmul.f32 %v396, 0.75
      %v662 = vmul.f32 %v397, 0.75
      %v663 = vmul.f32 %v398, 0.75
      %v664 = vmul.f32 %v399, 0.75
      %v665 = vadd.f32 %v655, %v405
      %v666 = vadd.f32 %v656, %v406
      %v667 = vadd.f32 %v657, %v407
      %v668 = vadd.f32 %v658, %v408
      %v669 = vadd.f32 %v659, %v409
      %v670 = vadd.f32 %v485, %v410
      %v671 = vadd.f32 %v486, %v411
      %v672 = vadd.f32 %v487, %v412
      %v673 = vadd.f32 %v488, %v413
      %v674 = vadd.f32 %v489, %v414
      %v675 = vadd.f32 %v490, %v415
      %v676 = vadd.f32 %v491, %v416
      %v677 = vadd.f32 %v492, %v417
      %v678 = vadd.f32 %v493, %v418
      %v679 = vadd.f32 %v494, %v419
      %v680 = vadd.f32 %v495, %v420
      %v681 = vadd.f32 %v496, %v421
      %v682 = vadd.f32 %v497, %v422
      %v683 = vadd.f32 %v498, %v423
      %v684 = vadd.f32 %v499, %v424
      %v685 = vadd.f32 %v500, %v425
      %v686 = vadd.f32 %v501, %v426
      %v687 = vadd.f32 %v502, %v427
      %v688 = vadd.f32 %v503, %v428
      %v689 = vadd.f32 %v504, %v429
      %v690 = vadd.f32 %v505, %v430
      %v691 = vadd.f32 %v506, %v431
      %v692 = vadd.f32 %v507, %v432
      %v693 = vadd.f32 %v508, %v433
      %v694 = vadd.f32 %v509, %v434
      %v695 = vadd.f32 %v510, %v435
      %v696 = vadd.f32 %v511, %v436
      %v697 = vadd.f32 %v512, %v437
      %v698 = vadd.f32 %v513, %v438
      %v699 = vadd.f32 %v514, %v439
      %v700 = vadd.f32 %v515, %v440
      %v701 = vadd.f32 %v516, %v441
      %v702 = vadd.f32 %v517, %v442
      %v703 = vadd.f32 %v518, %v443
      %v704 = vadd.f32 %v519, %v444
      %v705 = vadd.f32 %v520, %v445
      %v706 = vadd.f32 %v521, %v446
      %v707 = vadd.f32 %v522, %v447
      %v708 = vadd.f32 %v523, %v448
      %v709 = vadd.f32 %v524, %v449
      %v710 = vadd.f32 %v525, %v450
      %v711 = vadd.f32 %v526, %v451
      %v712 = vadd.f32 %v527, %v452
      %v713 = vadd.f32 %v528, %v453
      %v714 = vadd.f32 %v529, %v454
      %v715 = vadd.f32 %v530, %v455
      %v716 = vadd.f32 %v531, %v456
      %v717 = vadd.f32 %v532, %v457
      %v718 = vadd.f32 %v533, %v458
      %v719 = vadd.f32 %v534, %v459
      %v720 = vadd.f32 %v535, %v460
      %v721 = vadd.f32 %v536, %v461
      %v722 = vadd.f32 %v537, %v462
      %v723 = vadd.f32 %v538, %v463
      %v724 = vadd.f32 %v539, %v464
      %v725 = vadd.f32 %v540, %v465
      %v726 = vadd.f32 %v541, %v466
      %v727 = vadd.f32 %v542, %v467
      %v728 = vadd.f32 %v543, %v468
      %v729 = vadd.f32 %v544, %v469
      %v730 = vadd.f32 %v545, %v470
      %v731 = vadd.f32 %v546, %v471
      %v732 = vadd.f32 %v547, %v472
      %v733 = vadd.f32 %v548, %v473
      %v734 = vadd.f32 %v549, %v474
      %v735 = vadd.f32 %v550, %v475
      %v736 = vadd.f32 %v551, %v476
      %v737 = vadd.f32 %v552, %v477
      %v738 = vadd.f32 %v553, %v478
      %v739 = vadd.f32 %v554, %v479
      %v740 = vadd.f32 %v555, %v480
      %v741 = vadd.f32 %v556, %v481
      %v742 = vadd.f32 %v557, %v482
      %v743 = vadd.f32 %v558, %v483
      %v744 = vadd.f32 %v559, %v484
      %v745 = vadd.f32 %v560, %v660
      %v746 = vadd.f32 %v561, %v661
      %v747 = vadd.f32 %v562, %v662
      %v748 = vadd.f32 %v563, %v663
      %v749 = vadd.f32 %v564, %v664
      %p750 = scmp.eq.s32.totalorder %s20, 0
      %s751 = scalar_select %p750, 1, 0
      %v752 = vstv %s751
      %vm753 = vcmp.eq.s32.totalorder %v752, 1
      %v754 = vsel %vm753, 1, 0
      %vm755 = vcmp.eq.s32.totalorder %v754, 1
      %v756 = vsel %vm755, 0.0, %v570
      %v757 = vsel %vm755, 0.0, %v571
      %v758 = vsel %vm755, 0.0, %v572
      %v759 = vsel %vm755, 0.0, %v573
      %v760 = vsel %vm755, 0.0, %v574
      %v761 = vsel 0, 0.0, %v665
      %v762 = vsel 0, 0.0, %v666
      %v763 = vsel 0, 0.0, %v667
      %v764 = vsel 0, 0.0, %v668
      %v765 = vsel 0, 0.0, %v669
      %v766 = vsel 0, 0.0, %v575
      %v767 = vsel 0, 0.0, %v576
      %v768 = vsel 0, 0.0, %v577
      %v769 = vsel 0, 0.0, %v578
      %v770 = vsel 0, 0.0, %v579
      %v771 = vsel 0, 0.0, %v670
      %v772 = vsel 0, 0.0, %v671
      %v773 = vsel 0, 0.0, %v672
      %v774 = vsel 0, 0.0, %v673
      %v775 = vsel 0, 0.0, %v674
      %v776 = vsel 0, 0.0, %v580
      %v777 = vsel 0, 0.0, %v581
      %v778 = vsel 0, 0.0, %v582
      %v779 = vsel 0, 0.0, %v583
      %v780 = vsel 0, 0.0, %v584
      %v781 = vsel 0, 0.0, %v675
      %v782 = vsel 0, 0.0, %v676
      %v783 = vsel 0, 0.0, %v677
      %v784 = vsel 0, 0.0, %v678
      %v785 = vsel 0, 0.0, %v679
      %v786 = vsel 0, 0.0, %v585
      %v787 = vsel 0, 0.0, %v586
      %v788 = vsel 0, 0.0, %v587
      %v789 = vsel 0, 0.0, %v588
      %v790 = vsel 0, 0.0, %v589
      %v791 = vsel 0, 0.0, %v680
      %v792 = vsel 0, 0.0, %v681
      %v793 = vsel 0, 0.0, %v682
      %v794 = vsel 0, 0.0, %v683
      %v795 = vsel 0, 0.0, %v684
      %v796 = vsel 0, 0.0, %v590
      %v797 = vsel 0, 0.0, %v591
      %v798 = vsel 0, 0.0, %v592
      %v799 = vsel 0, 0.0, %v593
      %v800 = vsel 0, 0.0, %v594
      %v801 = vsel 0, 0.0, %v685
      %v802 = vsel 0, 0.0, %v686
      %v803 = vsel 0, 0.0, %v687
      %v804 = vsel 0, 0.0, %v688
      %v805 = vsel 0, 0.0, %v689
      %v806 = vsel 0, 0.0, %v595
      %v807 = vsel 0, 0.0, %v596
      %v808 = vsel 0, 0.0, %v597
      %v809 = vsel 0, 0.0, %v598
      %v810 = vsel 0, 0.0, %v599
      %v811 = vsel 0, 0.0, %v690
      %v812 = vsel 0, 0.0, %v691
      %v813 = vsel 0, 0.0, %v692
      %v814 = vsel 0, 0.0, %v693
      %v815 = vsel 0, 0.0, %v694
      %v816 = vsel 0, 0.0, %v600
      %v817 = vsel 0, 0.0, %v601
      %v818 = vsel 0, 0.0, %v602
      %v819 = vsel 0, 0.0, %v603
      %v820 = vsel 0, 0.0, %v604
      %v821 = vsel 0, 0.0, %v695
      %v822 = vsel 0, 0.0, %v696
      %v823 = vsel 0, 0.0, %v697
      %v824 = vsel 0, 0.0, %v698
      %v825 = vsel 0, 0.0, %v699
      %v826 = vsel 0, 0.0, %v605
      %v827 = vsel 0, 0.0, %v606
      %v828 = vsel 0, 0.0, %v607
      %v829 = vsel 0, 0.0, %v608
      %v830 = vsel 0, 0.0, %v609
      %v831 = vsel 0, 0.0, %v700
      %v832 = vsel 0, 0.0, %v701
      %v833 = vsel 0, 0.0, %v702
      %v834 = vsel 0, 0.0, %v703
      %v835 = vsel 0, 0.0, %v704
      %v836 = vsel 0, 0.0, %v610
      %v837 = vsel 0, 0.0, %v611
      %v838 = vsel 0, 0.0, %v612
      %v839 = vsel 0, 0.0, %v613
      %v840 = vsel 0, 0.0, %v614
      %v841 = vsel 0, 0.0, %v705
      %v842 = vsel 0, 0.0, %v706
      %v843 = vsel 0, 0.0, %v707
      %v844 = vsel 0, 0.0, %v708
      %v845 = vsel 0, 0.0, %v709
      %v846 = vsel 0, 0.0, %v615
      %v847 = vsel 0, 0.0, %v616
      %v848 = vsel 0, 0.0, %v617
      %v849 = vsel 0, 0.0, %v618
      %v850 = vsel 0, 0.0, %v619
      %v851 = vsel 0, 0.0, %v710
      %v852 = vsel 0, 0.0, %v711
      %v853 = vsel 0, 0.0, %v712
      %v854 = vsel 0, 0.0, %v713
      %v855 = vsel 0, 0.0, %v714
      %v856 = vsel 0, 0.0, %v620
      %v857 = vsel 0, 0.0, %v621
      %v858 = vsel 0, 0.0, %v622
      %v859 = vsel 0, 0.0, %v623
      %v860 = vsel 0, 0.0, %v624
      %v861 = vsel 0, 0.0, %v715
      %v862 = vsel 0, 0.0, %v716
      %v863 = vsel 0, 0.0, %v717
      %v864 = vsel 0, 0.0, %v718
      %v865 = vsel 0, 0.0, %v719
      %v866 = vsel 0, 0.0, %v625
      %v867 = vsel 0, 0.0, %v626
      %v868 = vsel 0, 0.0, %v627
      %v869 = vsel 0, 0.0, %v628
      %v870 = vsel 0, 0.0, %v629
      %v871 = vsel 0, 0.0, %v720
      %v872 = vsel 0, 0.0, %v721
      %v873 = vsel 0, 0.0, %v722
      %v874 = vsel 0, 0.0, %v723
      %v875 = vsel 0, 0.0, %v724
      %v876 = vsel 0, 0.0, %v630
      %v877 = vsel 0, 0.0, %v631
      %v878 = vsel 0, 0.0, %v632
      %v879 = vsel 0, 0.0, %v633
      %v880 = vsel 0, 0.0, %v634
      %v881 = vsel 0, 0.0, %v725
      %v882 = vsel 0, 0.0, %v726
      %v883 = vsel 0, 0.0, %v727
      %v884 = vsel 0, 0.0, %v728
      %v885 = vsel 0, 0.0, %v729
      %v886 = vsel 0, 0.0, %v635
      %v887 = vsel 0, 0.0, %v636
      %v888 = vsel 0, 0.0, %v637
      %v889 = vsel 0, 0.0, %v638
      %v890 = vsel 0, 0.0, %v639
      %v891 = vsel 0, 0.0, %v730
      %v892 = vsel 0, 0.0, %v731
      %v893 = vsel 0, 0.0, %v732
      %v894 = vsel 0, 0.0, %v733
      %v895 = vsel 0, 0.0, %v734
      %v896 = vsel 0, 0.0, %v640
      %v897 = vsel 0, 0.0, %v641
      %v898 = vsel 0, 0.0, %v642
      %v899 = vsel 0, 0.0, %v643
      %v900 = vsel 0, 0.0, %v644
      %v901 = vsel 0, 0.0, %v735
      %v902 = vsel 0, 0.0, %v736
      %v903 = vsel 0, 0.0, %v737
      %v904 = vsel 0, 0.0, %v738
      %v905 = vsel 0, 0.0, %v739
      %v906 = vsel 0, 0.0, %v645
      %v907 = vsel 0, 0.0, %v646
      %v908 = vsel 0, 0.0, %v647
      %v909 = vsel 0, 0.0, %v648
      %v910 = vsel 0, 0.0, %v649
      %v911 = vsel 0, 0.0, %v740
      %v912 = vsel 0, 0.0, %v741
      %v913 = vsel 0, 0.0, %v742
      %v914 = vsel 0, 0.0, %v743
      %v915 = vsel 0, 0.0, %v744
      %v916 = vsel 0, 0.0, %v650
      %v917 = vsel 0, 0.0, %v651
      %v918 = vsel 0, 0.0, %v652
      %v919 = vsel 0, 0.0, %v653
      %v920 = vsel 0, 0.0, %v654
      %v921 = vsel %vm755, 0.0, %v745
      %v922 = vsel %vm755, 0.0, %v746
      %v923 = vsel %vm755, 0.0, %v747
      %v924 = vsel %vm755, 0.0, %v748
      %v925 = vsel %vm755, 0.0, %v749
      %v926 = vpack.c.bf16 %v756, %v756
      %v927 = vpack.c.bf16 %v757, %v757
      %v928 = vpack.c.bf16 %v758, %v758
      %v929 = vpack.c.bf16 %v759, %v759
      %v930 = vpack.c.bf16 %v760, %v760
      %v931 = vpack.c.bf16 %v761, %v761
      %v932 = vpack.c.bf16 %v762, %v762
      %v933 = vpack.c.bf16 %v763, %v763
      %v934 = vpack.c.bf16 %v764, %v764
      %v935 = vpack.c.bf16 %v765, %v765
      %v936 = vpack.c.bf16 %v766, %v766
      %v937 = vpack.c.bf16 %v767, %v767
      %v938 = vpack.c.bf16 %v768, %v768
      %v939 = vpack.c.bf16 %v769, %v769
      %v940 = vpack.c.bf16 %v770, %v770
      %v941 = vpack.c.bf16 %v771, %v771
      %v942 = vpack.c.bf16 %v772, %v772
      %v943 = vpack.c.bf16 %v773, %v773
      %v944 = vpack.c.bf16 %v774, %v774
      %v945 = vpack.c.bf16 %v775, %v775
      %v946 = vpack.c.bf16 %v776, %v776
      %v947 = vpack.c.bf16 %v777, %v777
      %v948 = vpack.c.bf16 %v778, %v778
      %v949 = vpack.c.bf16 %v779, %v779
      %v950 = vpack.c.bf16 %v780, %v780
      %v951 = vpack.c.bf16 %v781, %v781
      %v952 = vpack.c.bf16 %v782, %v782
      %v953 = vpack.c.bf16 %v783, %v783
      %v954 = vpack.c.bf16 %v784, %v784
      %v955 = vpack.c.bf16 %v785, %v785
      %v956 = vpack.c.bf16 %v786, %v786
      %v957 = vpack.c.bf16 %v787, %v787
      %v958 = vpack.c.bf16 %v788, %v788
      %v959 = vpack.c.bf16 %v789, %v789
      %v960 = vpack.c.bf16 %v790, %v790
      %v961 = vpack.c.bf16 %v791, %v791
      %v962 = vpack.c.bf16 %v792, %v792
      %v963 = vpack.c.bf16 %v793, %v793
      %v964 = vpack.c.bf16 %v794, %v794
      %v965 = vpack.c.bf16 %v795, %v795
      %v966 = vpack.c.bf16 %v796, %v796
      %v967 = vpack.c.bf16 %v797, %v797
      %v968 = vpack.c.bf16 %v798, %v798
      %v969 = vpack.c.bf16 %v799, %v799
      %v970 = vpack.c.bf16 %v800, %v800
      %v971 = vpack.c.bf16 %v801, %v801
      %v972 = vpack.c.bf16 %v802, %v802
      %v973 = vpack.c.bf16 %v803, %v803
      %v974 = vpack.c.bf16 %v804, %v804
      %v975 = vpack.c.bf16 %v805, %v805
      %v976 = vpack.c.bf16 %v806, %v806
      %v977 = vpack.c.bf16 %v807, %v807
      %v978 = vpack.c.bf16 %v808, %v808
      %v979 = vpack.c.bf16 %v809, %v809
      %v980 = vpack.c.bf16 %v810, %v810
      %v981 = vpack.c.bf16 %v811, %v811
      %v982 = vpack.c.bf16 %v812, %v812
      %v983 = vpack.c.bf16 %v813, %v813
      %v984 = vpack.c.bf16 %v814, %v814
      %v985 = vpack.c.bf16 %v815, %v815
      %v986 = vpack.c.bf16 %v816, %v816
      %v987 = vpack.c.bf16 %v817, %v817
      %v988 = vpack.c.bf16 %v818, %v818
      %v989 = vpack.c.bf16 %v819, %v819
      %v990 = vpack.c.bf16 %v820, %v820
      %v991 = vpack.c.bf16 %v821, %v821
      %v992 = vpack.c.bf16 %v822, %v822
      %v993 = vpack.c.bf16 %v823, %v823
      %v994 = vpack.c.bf16 %v824, %v824
      %v995 = vpack.c.bf16 %v825, %v825
      %v996 = vpack.c.bf16 %v826, %v826
      %v997 = vpack.c.bf16 %v827, %v827
      %v998 = vpack.c.bf16 %v828, %v828
      %v999 = vpack.c.bf16 %v829, %v829
      %v1000 = vpack.c.bf16 %v830, %v830
      %v1001 = vpack.c.bf16 %v831, %v831
      %v1002 = vpack.c.bf16 %v832, %v832
      %v1003 = vpack.c.bf16 %v833, %v833
      %v1004 = vpack.c.bf16 %v834, %v834
      %v1005 = vpack.c.bf16 %v835, %v835
      %v1006 = vpack.c.bf16 %v836, %v836
      %v1007 = vpack.c.bf16 %v837, %v837
      %v1008 = vpack.c.bf16 %v838, %v838
      %v1009 = vpack.c.bf16 %v839, %v839
      %v1010 = vpack.c.bf16 %v840, %v840
      %v1011 = vpack.c.bf16 %v841, %v841
      %v1012 = vpack.c.bf16 %v842, %v842
      %v1013 = vpack.c.bf16 %v843, %v843
      %v1014 = vpack.c.bf16 %v844, %v844
      %v1015 = vpack.c.bf16 %v845, %v845
      %v1016 = vpack.c.bf16 %v846, %v846
      %v1017 = vpack.c.bf16 %v847, %v847
      %v1018 = vpack.c.bf16 %v848, %v848
      %v1019 = vpack.c.bf16 %v849, %v849
      %v1020 = vpack.c.bf16 %v850, %v850
      %v1021 = vpack.c.bf16 %v851, %v851
      %v1022 = vpack.c.bf16 %v852, %v852
      %v1023 = vpack.c.bf16 %v853, %v853
      %v1024 = vpack.c.bf16 %v854, %v854
      %v1025 = vpack.c.bf16 %v855, %v855
      %v1026 = vpack.c.bf16 %v856, %v856
      %v1027 = vpack.c.bf16 %v857, %v857
      %v1028 = vpack.c.bf16 %v858, %v858
      %v1029 = vpack.c.bf16 %v859, %v859
      %v1030 = vpack.c.bf16 %v860, %v860
      %v1031 = vpack.c.bf16 %v861, %v861
      %v1032 = vpack.c.bf16 %v862, %v862
      %v1033 = vpack.c.bf16 %v863, %v863
      %v1034 = vpack.c.bf16 %v864, %v864
      %v1035 = vpack.c.bf16 %v865, %v865
      %v1036 = vpack.c.bf16 %v866, %v866
      %v1037 = vpack.c.bf16 %v867, %v867
      %v1038 = vpack.c.bf16 %v868, %v868
      %v1039 = vpack.c.bf16 %v869, %v869
      %v1040 = vpack.c.bf16 %v870, %v870
      %v1041 = vpack.c.bf16 %v871, %v871
      %v1042 = vpack.c.bf16 %v872, %v872
      %v1043 = vpack.c.bf16 %v873, %v873
      %v1044 = vpack.c.bf16 %v874, %v874
      %v1045 = vpack.c.bf16 %v875, %v875
      %v1046 = vpack.c.bf16 %v876, %v876
      %v1047 = vpack.c.bf16 %v877, %v877
      %v1048 = vpack.c.bf16 %v878, %v878
      %v1049 = vpack.c.bf16 %v879, %v879
      %v1050 = vpack.c.bf16 %v880, %v880
      %v1051 = vpack.c.bf16 %v881, %v881
      %v1052 = vpack.c.bf16 %v882, %v882
      %v1053 = vpack.c.bf16 %v883, %v883
      %v1054 = vpack.c.bf16 %v884, %v884
      %v1055 = vpack.c.bf16 %v885, %v885
      %v1056 = vpack.c.bf16 %v886, %v886
      %v1057 = vpack.c.bf16 %v887, %v887
      %v1058 = vpack.c.bf16 %v888, %v888
      %v1059 = vpack.c.bf16 %v889, %v889
      %v1060 = vpack.c.bf16 %v890, %v890
      %v1061 = vpack.c.bf16 %v891, %v891
      %v1062 = vpack.c.bf16 %v892, %v892
      %v1063 = vpack.c.bf16 %v893, %v893
      %v1064 = vpack.c.bf16 %v894, %v894
      %v1065 = vpack.c.bf16 %v895, %v895
      %v1066 = vpack.c.bf16 %v896, %v896
      %v1067 = vpack.c.bf16 %v897, %v897
      %v1068 = vpack.c.bf16 %v898, %v898
      %v1069 = vpack.c.bf16 %v899, %v899
      %v1070 = vpack.c.bf16 %v900, %v900
      %v1071 = vpack.c.bf16 %v901, %v901
      %v1072 = vpack.c.bf16 %v902, %v902
      %v1073 = vpack.c.bf16 %v903, %v903
      %v1074 = vpack.c.bf16 %v904, %v904
      %v1075 = vpack.c.bf16 %v905, %v905
      %v1076 = vpack.c.bf16 %v906, %v906
      %v1077 = vpack.c.bf16 %v907, %v907
      %v1078 = vpack.c.bf16 %v908, %v908
      %v1079 = vpack.c.bf16 %v909, %v909
      %v1080 = vpack.c.bf16 %v910, %v910
      %v1081 = vpack.c.bf16 %v911, %v911
      %v1082 = vpack.c.bf16 %v912, %v912
      %v1083 = vpack.c.bf16 %v913, %v913
      %v1084 = vpack.c.bf16 %v914, %v914
      %v1085 = vpack.c.bf16 %v915, %v915
      %v1086 = vpack.c.bf16 %v916, %v916
      %v1087 = vpack.c.bf16 %v917, %v917
      %v1088 = vpack.c.bf16 %v918, %v918
      %v1089 = vpack.c.bf16 %v919, %v919
      %v1090 = vpack.c.bf16 %v920, %v920
      %v1091 = vpack.c.bf16 %v921, %v921
      %v1092 = vpack.c.bf16 %v922, %v922
      %v1093 = vpack.c.bf16 %v923, %v923
      %v1094 = vpack.c.bf16 %v924, %v924
      %v1095 = vpack.c.bf16 %v925, %v925
      %vm1096 = vsmask.f32 3328
      %vm1097 = vsmask.f32 7440
      %vm1098 = vmor %vm1096, %vm1097
      %v1100 = vshrl.u32 %v926, 16
      %v1102 = vrot.slane %v1100, 4
      %v1103 = vshll.u32 %v926, 16
      %v1105 = vrot.slane %v1103, 5
      %v1106 = vor.u32 %v1102, %v1105
      %v1107 = vrot.slane %v1106, 4
      %v1109 = vshll.u32 %v927, 16
      %v1111 = vrot.slane %v1109, 5
      %v1112 = vsel %vm1098, %v1107, %v1111
      %v1113 = vshrl.u32 %v927, 16
      %v1115 = vrot.slane %v1113, 4
      %v1116 = vor.u32 %v1115, %v1111
      %v1117 = vrot.slane %v1116, 4
      %v1119 = vshll.u32 %v928, 16
      %v1121 = vrot.slane %v1119, 5
      %v1122 = vsel %vm1098, %v1117, %v1121
      %v1123 = vshrl.u32 %v928, 16
      %v1125 = vrot.slane %v1123, 4
      %v1126 = vor.u32 %v1125, %v1121
      %v1127 = vrot.slane %v1126, 4
      %v1129 = vshll.u32 %v929, 16
      %v1131 = vrot.slane %v1129, 5
      %v1132 = vsel %vm1098, %v1127, %v1131
      %v1133 = vshrl.u32 %v929, 16
      %v1135 = vrot.slane %v1133, 4
      %v1136 = vor.u32 %v1135, %v1131
      %v1137 = vrot.slane %v1136, 4
      %v1139 = vshll.u32 %v930, 16
      %v1141 = vrot.slane %v1139, 5
      %v1142 = vsel %vm1098, %v1137, %v1141
      %v1144 = vshrl.u32 %v931, 16
      %v1146 = vrot.slane %v1144, 4
      %v1147 = vshll.u32 %v931, 16
      %v1149 = vrot.slane %v1147, 5
      %v1150 = vor.u32 %v1146, %v1149
      %v1151 = vrot.slane %v1150, 4
      %v1153 = vshll.u32 %v932, 16
      %v1155 = vrot.slane %v1153, 5
      %v1156 = vsel %vm1098, %v1151, %v1155
      %v1157 = vshrl.u32 %v932, 16
      %v1159 = vrot.slane %v1157, 4
      %v1160 = vor.u32 %v1159, %v1155
      %v1161 = vrot.slane %v1160, 4
      %v1163 = vshll.u32 %v933, 16
      %v1165 = vrot.slane %v1163, 5
      %v1166 = vsel %vm1098, %v1161, %v1165
      %v1167 = vshrl.u32 %v933, 16
      %v1169 = vrot.slane %v1167, 4
      %v1170 = vor.u32 %v1169, %v1165
      %v1171 = vrot.slane %v1170, 4
      %v1173 = vshll.u32 %v934, 16
      %v1175 = vrot.slane %v1173, 5
      %v1176 = vsel %vm1098, %v1171, %v1175
      %v1177 = vshrl.u32 %v934, 16
      %v1179 = vrot.slane %v1177, 4
      %v1180 = vor.u32 %v1179, %v1175
      %v1181 = vrot.slane %v1180, 4
      %v1183 = vshll.u32 %v935, 16
      %v1185 = vrot.slane %v1183, 5
      %v1186 = vsel %vm1098, %v1181, %v1185
      %v1188 = vshrl.u32 %v936, 16
      %v1190 = vrot.slane %v1188, 4
      %v1191 = vshll.u32 %v936, 16
      %v1193 = vrot.slane %v1191, 5
      %v1194 = vor.u32 %v1190, %v1193
      %v1195 = vrot.slane %v1194, 4
      %v1197 = vshll.u32 %v937, 16
      %v1199 = vrot.slane %v1197, 5
      %v1200 = vsel %vm1098, %v1195, %v1199
      %v1201 = vshrl.u32 %v937, 16
      %v1203 = vrot.slane %v1201, 4
      %v1204 = vor.u32 %v1203, %v1199
      %v1205 = vrot.slane %v1204, 4
      %v1207 = vshll.u32 %v938, 16
      %v1209 = vrot.slane %v1207, 5
      %v1210 = vsel %vm1098, %v1205, %v1209
      %v1211 = vshrl.u32 %v938, 16
      %v1213 = vrot.slane %v1211, 4
      %v1214 = vor.u32 %v1213, %v1209
      %v1215 = vrot.slane %v1214, 4
      %v1217 = vshll.u32 %v939, 16
      %v1219 = vrot.slane %v1217, 5
      %v1220 = vsel %vm1098, %v1215, %v1219
      %v1221 = vshrl.u32 %v939, 16
      %v1223 = vrot.slane %v1221, 4
      %v1224 = vor.u32 %v1223, %v1219
      %v1225 = vrot.slane %v1224, 4
      %v1227 = vshll.u32 %v940, 16
      %v1229 = vrot.slane %v1227, 5
      %v1230 = vsel %vm1098, %v1225, %v1229
      %v1232 = vshrl.u32 %v941, 16
      %v1234 = vrot.slane %v1232, 4
      %v1235 = vshll.u32 %v941, 16
      %v1237 = vrot.slane %v1235, 5
      %v1238 = vor.u32 %v1234, %v1237
      %v1239 = vrot.slane %v1238, 4
      %v1241 = vshll.u32 %v942, 16
      %v1243 = vrot.slane %v1241, 5
      %v1244 = vsel %vm1098, %v1239, %v1243
      %v1245 = vshrl.u32 %v942, 16
      %v1247 = vrot.slane %v1245, 4
      %v1248 = vor.u32 %v1247, %v1243
      %v1249 = vrot.slane %v1248, 4
      %v1251 = vshll.u32 %v943, 16
      %v1253 = vrot.slane %v1251, 5
      %v1254 = vsel %vm1098, %v1249, %v1253
      %v1255 = vshrl.u32 %v943, 16
      %v1257 = vrot.slane %v1255, 4
      %v1258 = vor.u32 %v1257, %v1253
      %v1259 = vrot.slane %v1258, 4
      %v1261 = vshll.u32 %v944, 16
      %v1263 = vrot.slane %v1261, 5
      %v1264 = vsel %vm1098, %v1259, %v1263
      %v1265 = vshrl.u32 %v944, 16
      %v1267 = vrot.slane %v1265, 4
      %v1268 = vor.u32 %v1267, %v1263
      %v1269 = vrot.slane %v1268, 4
      %v1271 = vshll.u32 %v945, 16
      %v1273 = vrot.slane %v1271, 5
      %v1274 = vsel %vm1098, %v1269, %v1273
      %v1276 = vshrl.u32 %v946, 16
      %v1278 = vrot.slane %v1276, 4
      %v1279 = vshll.u32 %v946, 16
      %v1281 = vrot.slane %v1279, 5
      %v1282 = vor.u32 %v1278, %v1281
      %v1283 = vrot.slane %v1282, 4
      %v1285 = vshll.u32 %v947, 16
      %v1287 = vrot.slane %v1285, 5
      %v1288 = vsel %vm1098, %v1283, %v1287
      %v1289 = vshrl.u32 %v947, 16
      %v1291 = vrot.slane %v1289, 4
      %v1292 = vor.u32 %v1291, %v1287
      %v1293 = vrot.slane %v1292, 4
      %v1295 = vshll.u32 %v948, 16
      %v1297 = vrot.slane %v1295, 5
      %v1298 = vsel %vm1098, %v1293, %v1297
      %v1299 = vshrl.u32 %v948, 16
      %v1301 = vrot.slane %v1299, 4
      %v1302 = vor.u32 %v1301, %v1297
      %v1303 = vrot.slane %v1302, 4
      %v1305 = vshll.u32 %v949, 16
      %v1307 = vrot.slane %v1305, 5
      %v1308 = vsel %vm1098, %v1303, %v1307
      %v1309 = vshrl.u32 %v949, 16
      %v1311 = vrot.slane %v1309, 4
      %v1312 = vor.u32 %v1311, %v1307
      %v1313 = vrot.slane %v1312, 4
      %v1315 = vshll.u32 %v950, 16
      %v1317 = vrot.slane %v1315, 5
      %v1318 = vsel %vm1098, %v1313, %v1317
      %v1320 = vshrl.u32 %v951, 16
      %v1322 = vrot.slane %v1320, 4
      %v1323 = vshll.u32 %v951, 16
      %v1325 = vrot.slane %v1323, 5
      %v1326 = vor.u32 %v1322, %v1325
      %v1327 = vrot.slane %v1326, 4
      %v1329 = vshll.u32 %v952, 16
      %v1331 = vrot.slane %v1329, 5
      %v1332 = vsel %vm1098, %v1327, %v1331
      %v1333 = vshrl.u32 %v952, 16
      %v1335 = vrot.slane %v1333, 4
      %v1336 = vor.u32 %v1335, %v1331
      %v1337 = vrot.slane %v1336, 4
      %v1339 = vshll.u32 %v953, 16
      %v1341 = vrot.slane %v1339, 5
      %v1342 = vsel %vm1098, %v1337, %v1341
      %v1343 = vshrl.u32 %v953, 16
      %v1345 = vrot.slane %v1343, 4
      %v1346 = vor.u32 %v1345, %v1341
      %v1347 = vrot.slane %v1346, 4
      %v1349 = vshll.u32 %v954, 16
      %v1351 = vrot.slane %v1349, 5
      %v1352 = vsel %vm1098, %v1347, %v1351
      %v1353 = vshrl.u32 %v954, 16
      %v1355 = vrot.slane %v1353, 4
      %v1356 = vor.u32 %v1355, %v1351
      %v1357 = vrot.slane %v1356, 4
      %v1359 = vshll.u32 %v955, 16
      %v1361 = vrot.slane %v1359, 5
      %v1362 = vsel %vm1098, %v1357, %v1361
      %v1364 = vshrl.u32 %v956, 16
      %v1366 = vrot.slane %v1364, 4
      %v1367 = vshll.u32 %v956, 16
      %v1369 = vrot.slane %v1367, 5
      %v1370 = vor.u32 %v1366, %v1369
      %v1371 = vrot.slane %v1370, 4
      %v1373 = vshll.u32 %v957, 16
      %v1375 = vrot.slane %v1373, 5
      %v1376 = vsel %vm1098, %v1371, %v1375
      %v1377 = vshrl.u32 %v957, 16
      %v1379 = vrot.slane %v1377, 4
      %v1380 = vor.u32 %v1379, %v1375
      %v1381 = vrot.slane %v1380, 4
      %v1383 = vshll.u32 %v958, 16
      %v1385 = vrot.slane %v1383, 5
      %v1386 = vsel %vm1098, %v1381, %v1385
      %v1387 = vshrl.u32 %v958, 16
      %v1389 = vrot.slane %v1387, 4
      %v1390 = vor.u32 %v1389, %v1385
      %v1391 = vrot.slane %v1390, 4
      %v1393 = vshll.u32 %v959, 16
      %v1395 = vrot.slane %v1393, 5
      %v1396 = vsel %vm1098, %v1391, %v1395
      %v1397 = vshrl.u32 %v959, 16
      %v1399 = vrot.slane %v1397, 4
      %v1400 = vor.u32 %v1399, %v1395
      %v1401 = vrot.slane %v1400, 4
      %v1403 = vshll.u32 %v960, 16
      %v1405 = vrot.slane %v1403, 5
      %v1406 = vsel %vm1098, %v1401, %v1405
      %v1408 = vshrl.u32 %v961, 16
      %v1410 = vrot.slane %v1408, 4
      %v1411 = vshll.u32 %v961, 16
      %v1413 = vrot.slane %v1411, 5
      %v1414 = vor.u32 %v1410, %v1413
      %v1415 = vrot.slane %v1414, 4
      %v1417 = vshll.u32 %v962, 16
      %v1419 = vrot.slane %v1417, 5
      %v1420 = vsel %vm1098, %v1415, %v1419
      %v1421 = vshrl.u32 %v962, 16
      %v1423 = vrot.slane %v1421, 4
      %v1424 = vor.u32 %v1423, %v1419
      %v1425 = vrot.slane %v1424, 4
      %v1427 = vshll.u32 %v963, 16
      %v1429 = vrot.slane %v1427, 5
      %v1430 = vsel %vm1098, %v1425, %v1429
      %v1431 = vshrl.u32 %v963, 16
      %v1433 = vrot.slane %v1431, 4
      %v1434 = vor.u32 %v1433, %v1429
      %v1435 = vrot.slane %v1434, 4
      %v1437 = vshll.u32 %v964, 16
      %v1439 = vrot.slane %v1437, 5
      %v1440 = vsel %vm1098, %v1435, %v1439
      %v1441 = vshrl.u32 %v964, 16
      %v1443 = vrot.slane %v1441, 4
      %v1444 = vor.u32 %v1443, %v1439
      %v1445 = vrot.slane %v1444, 4
      %v1447 = vshll.u32 %v965, 16
      %v1449 = vrot.slane %v1447, 5
      %v1450 = vsel %vm1098, %v1445, %v1449
      %v1452 = vshrl.u32 %v966, 16
      %v1454 = vrot.slane %v1452, 4
      %v1455 = vshll.u32 %v966, 16
      %v1457 = vrot.slane %v1455, 5
      %v1458 = vor.u32 %v1454, %v1457
      %v1459 = vrot.slane %v1458, 4
      %v1461 = vshll.u32 %v967, 16
      %v1463 = vrot.slane %v1461, 5
      %v1464 = vsel %vm1098, %v1459, %v1463
      %v1465 = vshrl.u32 %v967, 16
      %v1467 = vrot.slane %v1465, 4
      %v1468 = vor.u32 %v1467, %v1463
      %v1469 = vrot.slane %v1468, 4
      %v1471 = vshll.u32 %v968, 16
      %v1473 = vrot.slane %v1471, 5
      %v1474 = vsel %vm1098, %v1469, %v1473
      %v1475 = vshrl.u32 %v968, 16
      %v1477 = vrot.slane %v1475, 4
      %v1478 = vor.u32 %v1477, %v1473
      %v1479 = vrot.slane %v1478, 4
      %v1481 = vshll.u32 %v969, 16
      %v1483 = vrot.slane %v1481, 5
      %v1484 = vsel %vm1098, %v1479, %v1483
      %v1485 = vshrl.u32 %v969, 16
      %v1487 = vrot.slane %v1485, 4
      %v1488 = vor.u32 %v1487, %v1483
      %v1489 = vrot.slane %v1488, 4
      %v1491 = vshll.u32 %v970, 16
      %v1493 = vrot.slane %v1491, 5
      %v1494 = vsel %vm1098, %v1489, %v1493
      %v1496 = vshrl.u32 %v971, 16
      %v1498 = vrot.slane %v1496, 4
      %v1499 = vshll.u32 %v971, 16
      %v1501 = vrot.slane %v1499, 5
      %v1502 = vor.u32 %v1498, %v1501
      %v1503 = vrot.slane %v1502, 4
      %v1505 = vshll.u32 %v972, 16
      %v1507 = vrot.slane %v1505, 5
      %v1508 = vsel %vm1098, %v1503, %v1507
      %v1509 = vshrl.u32 %v972, 16
      %v1511 = vrot.slane %v1509, 4
      %v1512 = vor.u32 %v1511, %v1507
      %v1513 = vrot.slane %v1512, 4
      %v1515 = vshll.u32 %v973, 16
      %v1517 = vrot.slane %v1515, 5
      %v1518 = vsel %vm1098, %v1513, %v1517
      %v1519 = vshrl.u32 %v973, 16
      %v1521 = vrot.slane %v1519, 4
      %v1522 = vor.u32 %v1521, %v1517
      %v1523 = vrot.slane %v1522, 4
      %v1525 = vshll.u32 %v974, 16
      %v1527 = vrot.slane %v1525, 5
      %v1528 = vsel %vm1098, %v1523, %v1527
      %v1529 = vshrl.u32 %v974, 16
      %v1531 = vrot.slane %v1529, 4
      %v1532 = vor.u32 %v1531, %v1527
      %v1533 = vrot.slane %v1532, 4
      %v1535 = vshll.u32 %v975, 16
      %v1537 = vrot.slane %v1535, 5
      %v1538 = vsel %vm1098, %v1533, %v1537
      %v1540 = vshrl.u32 %v976, 16
      %v1542 = vrot.slane %v1540, 4
      %v1543 = vshll.u32 %v976, 16
      %v1545 = vrot.slane %v1543, 5
      %v1546 = vor.u32 %v1542, %v1545
      %v1547 = vrot.slane %v1546, 4
      %v1549 = vshll.u32 %v977, 16
      %v1551 = vrot.slane %v1549, 5
      %v1552 = vsel %vm1098, %v1547, %v1551
      %v1553 = vshrl.u32 %v977, 16
      %v1555 = vrot.slane %v1553, 4
      %v1556 = vor.u32 %v1555, %v1551
      %v1557 = vrot.slane %v1556, 4
      %v1559 = vshll.u32 %v978, 16
      %v1561 = vrot.slane %v1559, 5
      %v1562 = vsel %vm1098, %v1557, %v1561
      %v1563 = vshrl.u32 %v978, 16
      %v1565 = vrot.slane %v1563, 4
      %v1566 = vor.u32 %v1565, %v1561
      %v1567 = vrot.slane %v1566, 4
      %v1569 = vshll.u32 %v979, 16
      %v1571 = vrot.slane %v1569, 5
      %v1572 = vsel %vm1098, %v1567, %v1571
      %v1573 = vshrl.u32 %v979, 16
      %v1575 = vrot.slane %v1573, 4
      %v1576 = vor.u32 %v1575, %v1571
      %v1577 = vrot.slane %v1576, 4
      %v1579 = vshll.u32 %v980, 16
      %v1581 = vrot.slane %v1579, 5
      %v1582 = vsel %vm1098, %v1577, %v1581
      %v1584 = vshrl.u32 %v981, 16
      %v1586 = vrot.slane %v1584, 4
      %v1587 = vshll.u32 %v981, 16
      %v1589 = vrot.slane %v1587, 5
      %v1590 = vor.u32 %v1586, %v1589
      %v1591 = vrot.slane %v1590, 4
      %v1593 = vshll.u32 %v982, 16
      %v1595 = vrot.slane %v1593, 5
      %v1596 = vsel %vm1098, %v1591, %v1595
      %v1597 = vshrl.u32 %v982, 16
      %v1599 = vrot.slane %v1597, 4
      %v1600 = vor.u32 %v1599, %v1595
      %v1601 = vrot.slane %v1600, 4
      %v1603 = vshll.u32 %v983, 16
      %v1605 = vrot.slane %v1603, 5
      %v1606 = vsel %vm1098, %v1601, %v1605
      %v1607 = vshrl.u32 %v983, 16
      %v1609 = vrot.slane %v1607, 4
      %v1610 = vor.u32 %v1609, %v1605
      %v1611 = vrot.slane %v1610, 4
      %v1613 = vshll.u32 %v984, 16
      %v1615 = vrot.slane %v1613, 5
      %v1616 = vsel %vm1098, %v1611, %v1615
      %v1617 = vshrl.u32 %v984, 16
      %v1619 = vrot.slane %v1617, 4
      %v1620 = vor.u32 %v1619, %v1615
      %v1621 = vrot.slane %v1620, 4
      %v1623 = vshll.u32 %v985, 16
      %v1625 = vrot.slane %v1623, 5
      %v1626 = vsel %vm1098, %v1621, %v1625
      %v1628 = vshrl.u32 %v986, 16
      %v1630 = vrot.slane %v1628, 4
      %v1631 = vshll.u32 %v986, 16
      %v1633 = vrot.slane %v1631, 5
      %v1634 = vor.u32 %v1630, %v1633
      %v1635 = vrot.slane %v1634, 4
      %v1637 = vshll.u32 %v987, 16
      %v1639 = vrot.slane %v1637, 5
      %v1640 = vsel %vm1098, %v1635, %v1639
      %v1641 = vshrl.u32 %v987, 16
      %v1643 = vrot.slane %v1641, 4
      %v1644 = vor.u32 %v1643, %v1639
      %v1645 = vrot.slane %v1644, 4
      %v1647 = vshll.u32 %v988, 16
      %v1649 = vrot.slane %v1647, 5
      %v1650 = vsel %vm1098, %v1645, %v1649
      %v1651 = vshrl.u32 %v988, 16
      %v1653 = vrot.slane %v1651, 4
      %v1654 = vor.u32 %v1653, %v1649
      %v1655 = vrot.slane %v1654, 4
      %v1657 = vshll.u32 %v989, 16
      %v1659 = vrot.slane %v1657, 5
      %v1660 = vsel %vm1098, %v1655, %v1659
      %v1661 = vshrl.u32 %v989, 16
      %v1663 = vrot.slane %v1661, 4
      %v1664 = vor.u32 %v1663, %v1659
      %v1665 = vrot.slane %v1664, 4
      %v1667 = vshll.u32 %v990, 16
      %v1669 = vrot.slane %v1667, 5
      %v1670 = vsel %vm1098, %v1665, %v1669
      %v1672 = vshrl.u32 %v991, 16
      %v1674 = vrot.slane %v1672, 4
      %v1675 = vshll.u32 %v991, 16
      %v1677 = vrot.slane %v1675, 5
      %v1678 = vor.u32 %v1674, %v1677
      %v1679 = vrot.slane %v1678, 4
      %v1681 = vshll.u32 %v992, 16
      %v1683 = vrot.slane %v1681, 5
      %v1684 = vsel %vm1098, %v1679, %v1683
      %v1685 = vshrl.u32 %v992, 16
      %v1687 = vrot.slane %v1685, 4
      %v1688 = vor.u32 %v1687, %v1683
      %v1689 = vrot.slane %v1688, 4
      %v1691 = vshll.u32 %v993, 16
      %v1693 = vrot.slane %v1691, 5
      %v1694 = vsel %vm1098, %v1689, %v1693
      %v1695 = vshrl.u32 %v993, 16
      %v1697 = vrot.slane %v1695, 4
      %v1698 = vor.u32 %v1697, %v1693
      %v1699 = vrot.slane %v1698, 4
      %v1701 = vshll.u32 %v994, 16
      %v1703 = vrot.slane %v1701, 5
      %v1704 = vsel %vm1098, %v1699, %v1703
      %v1705 = vshrl.u32 %v994, 16
      %v1707 = vrot.slane %v1705, 4
      %v1708 = vor.u32 %v1707, %v1703
      %v1709 = vrot.slane %v1708, 4
      %v1711 = vshll.u32 %v995, 16
      %v1713 = vrot.slane %v1711, 5
      %v1714 = vsel %vm1098, %v1709, %v1713
      %v1716 = vshrl.u32 %v996, 16
      %v1718 = vrot.slane %v1716, 4
      %v1719 = vshll.u32 %v996, 16
      %v1721 = vrot.slane %v1719, 5
      %v1722 = vor.u32 %v1718, %v1721
      %v1723 = vrot.slane %v1722, 4
      %v1725 = vshll.u32 %v997, 16
      %v1727 = vrot.slane %v1725, 5
      %v1728 = vsel %vm1098, %v1723, %v1727
      %v1729 = vshrl.u32 %v997, 16
      %v1731 = vrot.slane %v1729, 4
      %v1732 = vor.u32 %v1731, %v1727
      %v1733 = vrot.slane %v1732, 4
      %v1735 = vshll.u32 %v998, 16
      %v1737 = vrot.slane %v1735, 5
      %v1738 = vsel %vm1098, %v1733, %v1737
      %v1739 = vshrl.u32 %v998, 16
      %v1741 = vrot.slane %v1739, 4
      %v1742 = vor.u32 %v1741, %v1737
      %v1743 = vrot.slane %v1742, 4
      %v1745 = vshll.u32 %v999, 16
      %v1747 = vrot.slane %v1745, 5
      %v1748 = vsel %vm1098, %v1743, %v1747
      %v1749 = vshrl.u32 %v999, 16
      %v1751 = vrot.slane %v1749, 4
      %v1752 = vor.u32 %v1751, %v1747
      %v1753 = vrot.slane %v1752, 4
      %v1755 = vshll.u32 %v1000, 16
      %v1757 = vrot.slane %v1755, 5
      %v1758 = vsel %vm1098, %v1753, %v1757
      %v1760 = vshrl.u32 %v1001, 16
      %v1762 = vrot.slane %v1760, 4
      %v1763 = vshll.u32 %v1001, 16
      %v1765 = vrot.slane %v1763, 5
      %v1766 = vor.u32 %v1762, %v1765
      %v1767 = vrot.slane %v1766, 4
      %v1769 = vshll.u32 %v1002, 16
      %v1771 = vrot.slane %v1769, 5
      %v1772 = vsel %vm1098, %v1767, %v1771
      %v1773 = vshrl.u32 %v1002, 16
      %v1775 = vrot.slane %v1773, 4
      %v1776 = vor.u32 %v1775, %v1771
      %v1777 = vrot.slane %v1776, 4
      %v1779 = vshll.u32 %v1003, 16
      %v1781 = vrot.slane %v1779, 5
      %v1782 = vsel %vm1098, %v1777, %v1781
      %v1783 = vshrl.u32 %v1003, 16
      %v1785 = vrot.slane %v1783, 4
      %v1786 = vor.u32 %v1785, %v1781
      %v1787 = vrot.slane %v1786, 4
      %v1789 = vshll.u32 %v1004, 16
      %v1791 = vrot.slane %v1789, 5
      %v1792 = vsel %vm1098, %v1787, %v1791
      %v1793 = vshrl.u32 %v1004, 16
      %v1795 = vrot.slane %v1793, 4
      %v1796 = vor.u32 %v1795, %v1791
      %v1797 = vrot.slane %v1796, 4
      %v1799 = vshll.u32 %v1005, 16
      %v1801 = vrot.slane %v1799, 5
      %v1802 = vsel %vm1098, %v1797, %v1801
      %v1804 = vshrl.u32 %v1006, 16
      %v1806 = vrot.slane %v1804, 4
      %v1807 = vshll.u32 %v1006, 16
      %v1809 = vrot.slane %v1807, 5
      %v1810 = vor.u32 %v1806, %v1809
      %v1811 = vrot.slane %v1810, 4
      %v1813 = vshll.u32 %v1007, 16
      %v1815 = vrot.slane %v1813, 5
      %v1816 = vsel %vm1098, %v1811, %v1815
      %v1817 = vshrl.u32 %v1007, 16
      %v1819 = vrot.slane %v1817, 4
      %v1820 = vor.u32 %v1819, %v1815
      %v1821 = vrot.slane %v1820, 4
      %v1823 = vshll.u32 %v1008, 16
      %v1825 = vrot.slane %v1823, 5
      %v1826 = vsel %vm1098, %v1821, %v1825
      %v1827 = vshrl.u32 %v1008, 16
      %v1829 = vrot.slane %v1827, 4
      %v1830 = vor.u32 %v1829, %v1825
      %v1831 = vrot.slane %v1830, 4
      %v1833 = vshll.u32 %v1009, 16
      %v1835 = vrot.slane %v1833, 5
      %v1836 = vsel %vm1098, %v1831, %v1835
      %v1837 = vshrl.u32 %v1009, 16
      %v1839 = vrot.slane %v1837, 4
      %v1840 = vor.u32 %v1839, %v1835
      %v1841 = vrot.slane %v1840, 4
      %v1843 = vshll.u32 %v1010, 16
      %v1845 = vrot.slane %v1843, 5
      %v1846 = vsel %vm1098, %v1841, %v1845
      %v1848 = vshrl.u32 %v1011, 16
      %v1850 = vrot.slane %v1848, 4
      %v1851 = vshll.u32 %v1011, 16
      %v1853 = vrot.slane %v1851, 5
      %v1854 = vor.u32 %v1850, %v1853
      %v1855 = vrot.slane %v1854, 4
      %v1857 = vshll.u32 %v1012, 16
      %v1859 = vrot.slane %v1857, 5
      %v1860 = vsel %vm1098, %v1855, %v1859
      %v1861 = vshrl.u32 %v1012, 16
      %v1863 = vrot.slane %v1861, 4
      %v1864 = vor.u32 %v1863, %v1859
      %v1865 = vrot.slane %v1864, 4
      %v1867 = vshll.u32 %v1013, 16
      %v1869 = vrot.slane %v1867, 5
      %v1870 = vsel %vm1098, %v1865, %v1869
      %v1871 = vshrl.u32 %v1013, 16
      %v1873 = vrot.slane %v1871, 4
      %v1874 = vor.u32 %v1873, %v1869
      %v1875 = vrot.slane %v1874, 4
      %v1877 = vshll.u32 %v1014, 16
      %v1879 = vrot.slane %v1877, 5
      %v1880 = vsel %vm1098, %v1875, %v1879
      %v1881 = vshrl.u32 %v1014, 16
      %v1883 = vrot.slane %v1881, 4
      %v1884 = vor.u32 %v1883, %v1879
      %v1885 = vrot.slane %v1884, 4
      %v1887 = vshll.u32 %v1015, 16
      %v1889 = vrot.slane %v1887, 5
      %v1890 = vsel %vm1098, %v1885, %v1889
      %v1892 = vshrl.u32 %v1016, 16
      %v1894 = vrot.slane %v1892, 4
      %v1895 = vshll.u32 %v1016, 16
      %v1897 = vrot.slane %v1895, 5
      %v1898 = vor.u32 %v1894, %v1897
      %v1899 = vrot.slane %v1898, 4
      %v1901 = vshll.u32 %v1017, 16
      %v1903 = vrot.slane %v1901, 5
      %v1904 = vsel %vm1098, %v1899, %v1903
      %v1905 = vshrl.u32 %v1017, 16
      %v1907 = vrot.slane %v1905, 4
      %v1908 = vor.u32 %v1907, %v1903
      %v1909 = vrot.slane %v1908, 4
      %v1911 = vshll.u32 %v1018, 16
      %v1913 = vrot.slane %v1911, 5
      %v1914 = vsel %vm1098, %v1909, %v1913
      %v1915 = vshrl.u32 %v1018, 16
      %v1917 = vrot.slane %v1915, 4
      %v1918 = vor.u32 %v1917, %v1913
      %v1919 = vrot.slane %v1918, 4
      %v1921 = vshll.u32 %v1019, 16
      %v1923 = vrot.slane %v1921, 5
      %v1924 = vsel %vm1098, %v1919, %v1923
      %v1925 = vshrl.u32 %v1019, 16
      %v1927 = vrot.slane %v1925, 4
      %v1928 = vor.u32 %v1927, %v1923
      %v1929 = vrot.slane %v1928, 4
      %v1931 = vshll.u32 %v1020, 16
      %v1933 = vrot.slane %v1931, 5
      %v1934 = vsel %vm1098, %v1929, %v1933
      %v1936 = vshrl.u32 %v1021, 16
      %v1938 = vrot.slane %v1936, 4
      %v1939 = vshll.u32 %v1021, 16
      %v1941 = vrot.slane %v1939, 5
      %v1942 = vor.u32 %v1938, %v1941
      %v1943 = vrot.slane %v1942, 4
      %v1945 = vshll.u32 %v1022, 16
      %v1947 = vrot.slane %v1945, 5
      %v1948 = vsel %vm1098, %v1943, %v1947
      %v1949 = vshrl.u32 %v1022, 16
      %v1951 = vrot.slane %v1949, 4
      %v1952 = vor.u32 %v1951, %v1947
      %v1953 = vrot.slane %v1952, 4
      %v1955 = vshll.u32 %v1023, 16
      %v1957 = vrot.slane %v1955, 5
      %v1958 = vsel %vm1098, %v1953, %v1957
      %v1959 = vshrl.u32 %v1023, 16
      %v1961 = vrot.slane %v1959, 4
      %v1962 = vor.u32 %v1961, %v1957
      %v1963 = vrot.slane %v1962, 4
      %v1965 = vshll.u32 %v1024, 16
      %v1967 = vrot.slane %v1965, 5
      %v1968 = vsel %vm1098, %v1963, %v1967
      %v1969 = vshrl.u32 %v1024, 16
      %v1971 = vrot.slane %v1969, 4
      %v1972 = vor.u32 %v1971, %v1967
      %v1973 = vrot.slane %v1972, 4
      %v1975 = vshll.u32 %v1025, 16
      %v1977 = vrot.slane %v1975, 5
      %v1978 = vsel %vm1098, %v1973, %v1977
      %v1980 = vshrl.u32 %v1026, 16
      %v1982 = vrot.slane %v1980, 4
      %v1983 = vshll.u32 %v1026, 16
      %v1985 = vrot.slane %v1983, 5
      %v1986 = vor.u32 %v1982, %v1985
      %v1987 = vrot.slane %v1986, 4
      %v1989 = vshll.u32 %v1027, 16
      %v1991 = vrot.slane %v1989, 5
      %v1992 = vsel %vm1098, %v1987, %v1991
      %v1993 = vshrl.u32 %v1027, 16
      %v1995 = vrot.slane %v1993, 4
      %v1996 = vor.u32 %v1995, %v1991
      %v1997 = vrot.slane %v1996, 4
      %v1999 = vshll.u32 %v1028, 16
      %v2001 = vrot.slane %v1999, 5
      %v2002 = vsel %vm1098, %v1997, %v2001
      %v2003 = vshrl.u32 %v1028, 16
      %v2005 = vrot.slane %v2003, 4
      %v2006 = vor.u32 %v2005, %v2001
      %v2007 = vrot.slane %v2006, 4
      %v2009 = vshll.u32 %v1029, 16
      %v2011 = vrot.slane %v2009, 5
      %v2012 = vsel %vm1098, %v2007, %v2011
      %v2013 = vshrl.u32 %v1029, 16
      %v2015 = vrot.slane %v2013, 4
      %v2016 = vor.u32 %v2015, %v2011
      %v2017 = vrot.slane %v2016, 4
      %v2019 = vshll.u32 %v1030, 16
      %v2021 = vrot.slane %v2019, 5
      %v2022 = vsel %vm1098, %v2017, %v2021
      %v2024 = vshrl.u32 %v1031, 16
      %v2026 = vrot.slane %v2024, 4
      %v2027 = vshll.u32 %v1031, 16
      %v2029 = vrot.slane %v2027, 5
      %v2030 = vor.u32 %v2026, %v2029
      %v2031 = vrot.slane %v2030, 4
      %v2033 = vshll.u32 %v1032, 16
      %v2035 = vrot.slane %v2033, 5
      %v2036 = vsel %vm1098, %v2031, %v2035
      %v2037 = vshrl.u32 %v1032, 16
      %v2039 = vrot.slane %v2037, 4
      %v2040 = vor.u32 %v2039, %v2035
      %v2041 = vrot.slane %v2040, 4
      %v2043 = vshll.u32 %v1033, 16
      %v2045 = vrot.slane %v2043, 5
      %v2046 = vsel %vm1098, %v2041, %v2045
      %v2047 = vshrl.u32 %v1033, 16
      %v2049 = vrot.slane %v2047, 4
      %v2050 = vor.u32 %v2049, %v2045
      %v2051 = vrot.slane %v2050, 4
      %v2053 = vshll.u32 %v1034, 16
      %v2055 = vrot.slane %v2053, 5
      %v2056 = vsel %vm1098, %v2051, %v2055
      %v2057 = vshrl.u32 %v1034, 16
      %v2059 = vrot.slane %v2057, 4
      %v2060 = vor.u32 %v2059, %v2055
      %v2061 = vrot.slane %v2060, 4
      %v2063 = vshll.u32 %v1035, 16
      %v2065 = vrot.slane %v2063, 5
      %v2066 = vsel %vm1098, %v2061, %v2065
      %v2068 = vshrl.u32 %v1036, 16
      %v2070 = vrot.slane %v2068, 4
      %v2071 = vshll.u32 %v1036, 16
      %v2073 = vrot.slane %v2071, 5
      %v2074 = vor.u32 %v2070, %v2073
      %v2075 = vrot.slane %v2074, 4
      %v2077 = vshll.u32 %v1037, 16
      %v2079 = vrot.slane %v2077, 5
      %v2080 = vsel %vm1098, %v2075, %v2079
      %v2081 = vshrl.u32 %v1037, 16
      %v2083 = vrot.slane %v2081, 4
      %v2084 = vor.u32 %v2083, %v2079
      %v2085 = vrot.slane %v2084, 4
      %v2087 = vshll.u32 %v1038, 16
      %v2089 = vrot.slane %v2087, 5
      %v2090 = vsel %vm1098, %v2085, %v2089
      %v2091 = vshrl.u32 %v1038, 16
      %v2093 = vrot.slane %v2091, 4
      %v2094 = vor.u32 %v2093, %v2089
      %v2095 = vrot.slane %v2094, 4
      %v2097 = vshll.u32 %v1039, 16
      %v2099 = vrot.slane %v2097, 5
      %v2100 = vsel %vm1098, %v2095, %v2099
      %v2101 = vshrl.u32 %v1039, 16
      %v2103 = vrot.slane %v2101, 4
      %v2104 = vor.u32 %v2103, %v2099
      %v2105 = vrot.slane %v2104, 4
      %v2107 = vshll.u32 %v1040, 16
      %v2109 = vrot.slane %v2107, 5
      %v2110 = vsel %vm1098, %v2105, %v2109
      %v2112 = vshrl.u32 %v1041, 16
      %v2114 = vrot.slane %v2112, 4
      %v2115 = vshll.u32 %v1041, 16
      %v2117 = vrot.slane %v2115, 5
      %v2118 = vor.u32 %v2114, %v2117
      %v2119 = vrot.slane %v2118, 4
      %v2121 = vshll.u32 %v1042, 16
      %v2123 = vrot.slane %v2121, 5
      %v2124 = vsel %vm1098, %v2119, %v2123
      %v2125 = vshrl.u32 %v1042, 16
      %v2127 = vrot.slane %v2125, 4
      %v2128 = vor.u32 %v2127, %v2123
      %v2129 = vrot.slane %v2128, 4
      %v2131 = vshll.u32 %v1043, 16
      %v2133 = vrot.slane %v2131, 5
      %v2134 = vsel %vm1098, %v2129, %v2133
      %v2135 = vshrl.u32 %v1043, 16
      %v2137 = vrot.slane %v2135, 4
      %v2138 = vor.u32 %v2137, %v2133
      %v2139 = vrot.slane %v2138, 4
      %v2141 = vshll.u32 %v1044, 16
      %v2143 = vrot.slane %v2141, 5
      %v2144 = vsel %vm1098, %v2139, %v2143
      %v2145 = vshrl.u32 %v1044, 16
      %v2147 = vrot.slane %v2145, 4
      %v2148 = vor.u32 %v2147, %v2143
      %v2149 = vrot.slane %v2148, 4
      %v2151 = vshll.u32 %v1045, 16
      %v2153 = vrot.slane %v2151, 5
      %v2154 = vsel %vm1098, %v2149, %v2153
      %v2156 = vshrl.u32 %v1046, 16
      %v2158 = vrot.slane %v2156, 4
      %v2159 = vshll.u32 %v1046, 16
      %v2161 = vrot.slane %v2159, 5
      %v2162 = vor.u32 %v2158, %v2161
      %v2163 = vrot.slane %v2162, 4
      %v2165 = vshll.u32 %v1047, 16
      %v2167 = vrot.slane %v2165, 5
      %v2168 = vsel %vm1098, %v2163, %v2167
      %v2169 = vshrl.u32 %v1047, 16
      %v2171 = vrot.slane %v2169, 4
      %v2172 = vor.u32 %v2171, %v2167
      %v2173 = vrot.slane %v2172, 4
      %v2175 = vshll.u32 %v1048, 16
      %v2177 = vrot.slane %v2175, 5
      %v2178 = vsel %vm1098, %v2173, %v2177
      %v2179 = vshrl.u32 %v1048, 16
      %v2181 = vrot.slane %v2179, 4
      %v2182 = vor.u32 %v2181, %v2177
      %v2183 = vrot.slane %v2182, 4
      %v2185 = vshll.u32 %v1049, 16
      %v2187 = vrot.slane %v2185, 5
      %v2188 = vsel %vm1098, %v2183, %v2187
      %v2189 = vshrl.u32 %v1049, 16
      %v2191 = vrot.slane %v2189, 4
      %v2192 = vor.u32 %v2191, %v2187
      %v2193 = vrot.slane %v2192, 4
      %v2195 = vshll.u32 %v1050, 16
      %v2197 = vrot.slane %v2195, 5
      %v2198 = vsel %vm1098, %v2193, %v2197
      %v2200 = vshrl.u32 %v1051, 16
      %v2202 = vrot.slane %v2200, 4
      %v2203 = vshll.u32 %v1051, 16
      %v2205 = vrot.slane %v2203, 5
      %v2206 = vor.u32 %v2202, %v2205
      %v2207 = vrot.slane %v2206, 4
      %v2209 = vshll.u32 %v1052, 16
      %v2211 = vrot.slane %v2209, 5
      %v2212 = vsel %vm1098, %v2207, %v2211
      %v2213 = vshrl.u32 %v1052, 16
      %v2215 = vrot.slane %v2213, 4
      %v2216 = vor.u32 %v2215, %v2211
      %v2217 = vrot.slane %v2216, 4
      %v2219 = vshll.u32 %v1053, 16
      %v2221 = vrot.slane %v2219, 5
      %v2222 = vsel %vm1098, %v2217, %v2221
      %v2223 = vshrl.u32 %v1053, 16
      %v2225 = vrot.slane %v2223, 4
      %v2226 = vor.u32 %v2225, %v2221
      %v2227 = vrot.slane %v2226, 4
      %v2229 = vshll.u32 %v1054, 16
      %v2231 = vrot.slane %v2229, 5
      %v2232 = vsel %vm1098, %v2227, %v2231
      %v2233 = vshrl.u32 %v1054, 16
      %v2235 = vrot.slane %v2233, 4
      %v2236 = vor.u32 %v2235, %v2231
      %v2237 = vrot.slane %v2236, 4
      %v2239 = vshll.u32 %v1055, 16
      %v2241 = vrot.slane %v2239, 5
      %v2242 = vsel %vm1098, %v2237, %v2241
      %v2244 = vshrl.u32 %v1056, 16
      %v2246 = vrot.slane %v2244, 4
      %v2247 = vshll.u32 %v1056, 16
      %v2249 = vrot.slane %v2247, 5
      %v2250 = vor.u32 %v2246, %v2249
      %v2251 = vrot.slane %v2250, 4
      %v2253 = vshll.u32 %v1057, 16
      %v2255 = vrot.slane %v2253, 5
      %v2256 = vsel %vm1098, %v2251, %v2255
      %v2257 = vshrl.u32 %v1057, 16
      %v2259 = vrot.slane %v2257, 4
      %v2260 = vor.u32 %v2259, %v2255
      %v2261 = vrot.slane %v2260, 4
      %v2263 = vshll.u32 %v1058, 16
      %v2265 = vrot.slane %v2263, 5
      %v2266 = vsel %vm1098, %v2261, %v2265
      %v2267 = vshrl.u32 %v1058, 16
      %v2269 = vrot.slane %v2267, 4
      %v2270 = vor.u32 %v2269, %v2265
      %v2271 = vrot.slane %v2270, 4
      %v2273 = vshll.u32 %v1059, 16
      %v2275 = vrot.slane %v2273, 5
      %v2276 = vsel %vm1098, %v2271, %v2275
      %v2277 = vshrl.u32 %v1059, 16
      %v2279 = vrot.slane %v2277, 4
      %v2280 = vor.u32 %v2279, %v2275
      %v2281 = vrot.slane %v2280, 4
      %v2283 = vshll.u32 %v1060, 16
      %v2285 = vrot.slane %v2283, 5
      %v2286 = vsel %vm1098, %v2281, %v2285
      %v2288 = vshrl.u32 %v1061, 16
      %v2290 = vrot.slane %v2288, 4
      %v2291 = vshll.u32 %v1061, 16
      %v2293 = vrot.slane %v2291, 5
      %v2294 = vor.u32 %v2290, %v2293
      %v2295 = vrot.slane %v2294, 4
      %v2297 = vshll.u32 %v1062, 16
      %v2299 = vrot.slane %v2297, 5
      %v2300 = vsel %vm1098, %v2295, %v2299
      %v2301 = vshrl.u32 %v1062, 16
      %v2303 = vrot.slane %v2301, 4
      %v2304 = vor.u32 %v2303, %v2299
      %v2305 = vrot.slane %v2304, 4
      %v2307 = vshll.u32 %v1063, 16
      %v2309 = vrot.slane %v2307, 5
      %v2310 = vsel %vm1098, %v2305, %v2309
      %v2311 = vshrl.u32 %v1063, 16
      %v2313 = vrot.slane %v2311, 4
      %v2314 = vor.u32 %v2313, %v2309
      %v2315 = vrot.slane %v2314, 4
      %v2317 = vshll.u32 %v1064, 16
      %v2319 = vrot.slane %v2317, 5
      %v2320 = vsel %vm1098, %v2315, %v2319
      %v2321 = vshrl.u32 %v1064, 16
      %v2323 = vrot.slane %v2321, 4
      %v2324 = vor.u32 %v2323, %v2319
      %v2325 = vrot.slane %v2324, 4
      %v2327 = vshll.u32 %v1065, 16
      %v2329 = vrot.slane %v2327, 5
      %v2330 = vsel %vm1098, %v2325, %v2329
      %v2332 = vshrl.u32 %v1066, 16
      %v2334 = vrot.slane %v2332, 4
      %v2335 = vshll.u32 %v1066, 16
      %v2337 = vrot.slane %v2335, 5
      %v2338 = vor.u32 %v2334, %v2337
      %v2339 = vrot.slane %v2338, 4
      %v2341 = vshll.u32 %v1067, 16
      %v2343 = vrot.slane %v2341, 5
      %v2344 = vsel %vm1098, %v2339, %v2343
      %v2345 = vshrl.u32 %v1067, 16
      %v2347 = vrot.slane %v2345, 4
      %v2348 = vor.u32 %v2347, %v2343
      %v2349 = vrot.slane %v2348, 4
      %v2351 = vshll.u32 %v1068, 16
      %v2353 = vrot.slane %v2351, 5
      %v2354 = vsel %vm1098, %v2349, %v2353
      %v2355 = vshrl.u32 %v1068, 16
      %v2357 = vrot.slane %v2355, 4
      %v2358 = vor.u32 %v2357, %v2353
      %v2359 = vrot.slane %v2358, 4
      %v2361 = vshll.u32 %v1069, 16
      %v2363 = vrot.slane %v2361, 5
      %v2364 = vsel %vm1098, %v2359, %v2363
      %v2365 = vshrl.u32 %v1069, 16
      %v2367 = vrot.slane %v2365, 4
      %v2368 = vor.u32 %v2367, %v2363
      %v2369 = vrot.slane %v2368, 4
      %v2371 = vshll.u32 %v1070, 16
      %v2373 = vrot.slane %v2371, 5
      %v2374 = vsel %vm1098, %v2369, %v2373
      %v2376 = vshrl.u32 %v1071, 16
      %v2378 = vrot.slane %v2376, 4
      %v2379 = vshll.u32 %v1071, 16
      %v2381 = vrot.slane %v2379, 5
      %v2382 = vor.u32 %v2378, %v2381
      %v2383 = vrot.slane %v2382, 4
      %v2385 = vshll.u32 %v1072, 16
      %v2387 = vrot.slane %v2385, 5
      %v2388 = vsel %vm1098, %v2383, %v2387
      %v2389 = vshrl.u32 %v1072, 16
      %v2391 = vrot.slane %v2389, 4
      %v2392 = vor.u32 %v2391, %v2387
      %v2393 = vrot.slane %v2392, 4
      %v2395 = vshll.u32 %v1073, 16
      %v2397 = vrot.slane %v2395, 5
      %v2398 = vsel %vm1098, %v2393, %v2397
      %v2399 = vshrl.u32 %v1073, 16
      %v2401 = vrot.slane %v2399, 4
      %v2402 = vor.u32 %v2401, %v2397
      %v2403 = vrot.slane %v2402, 4
      %v2405 = vshll.u32 %v1074, 16
      %v2407 = vrot.slane %v2405, 5
      %v2408 = vsel %vm1098, %v2403, %v2407
      %v2409 = vshrl.u32 %v1074, 16
      %v2411 = vrot.slane %v2409, 4
      %v2412 = vor.u32 %v2411, %v2407
      %v2413 = vrot.slane %v2412, 4
      %v2415 = vshll.u32 %v1075, 16
      %v2417 = vrot.slane %v2415, 5
      %v2418 = vsel %vm1098, %v2413, %v2417
      %v2420 = vshrl.u32 %v1076, 16
      %v2422 = vrot.slane %v2420, 4
      %v2423 = vshll.u32 %v1076, 16
      %v2425 = vrot.slane %v2423, 5
      %v2426 = vor.u32 %v2422, %v2425
      %v2427 = vrot.slane %v2426, 4
      %v2429 = vshll.u32 %v1077, 16
      %v2431 = vrot.slane %v2429, 5
      %v2432 = vsel %vm1098, %v2427, %v2431
      %v2433 = vshrl.u32 %v1077, 16
      %v2435 = vrot.slane %v2433, 4
      %v2436 = vor.u32 %v2435, %v2431
      %v2437 = vrot.slane %v2436, 4
      %v2439 = vshll.u32 %v1078, 16
      %v2441 = vrot.slane %v2439, 5
      %v2442 = vsel %vm1098, %v2437, %v2441
      %v2443 = vshrl.u32 %v1078, 16
      %v2445 = vrot.slane %v2443, 4
      %v2446 = vor.u32 %v2445, %v2441
      %v2447 = vrot.slane %v2446, 4
      %v2449 = vshll.u32 %v1079, 16
      %v2451 = vrot.slane %v2449, 5
      %v2452 = vsel %vm1098, %v2447, %v2451
      %v2453 = vshrl.u32 %v1079, 16
      %v2455 = vrot.slane %v2453, 4
      %v2456 = vor.u32 %v2455, %v2451
      %v2457 = vrot.slane %v2456, 4
      %v2459 = vshll.u32 %v1080, 16
      %v2461 = vrot.slane %v2459, 5
      %v2462 = vsel %vm1098, %v2457, %v2461
      %v2464 = vshrl.u32 %v1081, 16
      %v2466 = vrot.slane %v2464, 4
      %v2467 = vshll.u32 %v1081, 16
      %v2469 = vrot.slane %v2467, 5
      %v2470 = vor.u32 %v2466, %v2469
      %v2471 = vrot.slane %v2470, 4
      %v2473 = vshll.u32 %v1082, 16
      %v2475 = vrot.slane %v2473, 5
      %v2476 = vsel %vm1098, %v2471, %v2475
      %v2477 = vshrl.u32 %v1082, 16
      %v2479 = vrot.slane %v2477, 4
      %v2480 = vor.u32 %v2479, %v2475
      %v2481 = vrot.slane %v2480, 4
      %v2483 = vshll.u32 %v1083, 16
      %v2485 = vrot.slane %v2483, 5
      %v2486 = vsel %vm1098, %v2481, %v2485
      %v2487 = vshrl.u32 %v1083, 16
      %v2489 = vrot.slane %v2487, 4
      %v2490 = vor.u32 %v2489, %v2485
      %v2491 = vrot.slane %v2490, 4
      %v2493 = vshll.u32 %v1084, 16
      %v2495 = vrot.slane %v2493, 5
      %v2496 = vsel %vm1098, %v2491, %v2495
      %v2497 = vshrl.u32 %v1084, 16
      %v2499 = vrot.slane %v2497, 4
      %v2500 = vor.u32 %v2499, %v2495
      %v2501 = vrot.slane %v2500, 4
      %v2503 = vshll.u32 %v1085, 16
      %v2505 = vrot.slane %v2503, 5
      %v2506 = vsel %vm1098, %v2501, %v2505
      %v2508 = vshrl.u32 %v1086, 16
      %v2510 = vrot.slane %v2508, 4
      %v2511 = vshll.u32 %v1086, 16
      %v2513 = vrot.slane %v2511, 5
      %v2514 = vor.u32 %v2510, %v2513
      %v2515 = vrot.slane %v2514, 4
      %v2517 = vshll.u32 %v1087, 16
      %v2519 = vrot.slane %v2517, 5
      %v2520 = vsel %vm1098, %v2515, %v2519
      %v2521 = vshrl.u32 %v1087, 16
      %v2523 = vrot.slane %v2521, 4
      %v2524 = vor.u32 %v2523, %v2519
      %v2525 = vrot.slane %v2524, 4
      %v2527 = vshll.u32 %v1088, 16
      %v2529 = vrot.slane %v2527, 5
      %v2530 = vsel %vm1098, %v2525, %v2529
      %v2531 = vshrl.u32 %v1088, 16
      %v2533 = vrot.slane %v2531, 4
      %v2534 = vor.u32 %v2533, %v2529
      %v2535 = vrot.slane %v2534, 4
      %v2537 = vshll.u32 %v1089, 16
      %v2539 = vrot.slane %v2537, 5
      %v2540 = vsel %vm1098, %v2535, %v2539
      %v2541 = vshrl.u32 %v1089, 16
      %v2543 = vrot.slane %v2541, 4
      %v2544 = vor.u32 %v2543, %v2539
      %v2545 = vrot.slane %v2544, 4
      %v2547 = vshll.u32 %v1090, 16
      %v2549 = vrot.slane %v2547, 5
      %v2550 = vsel %vm1098, %v2545, %v2549
      %v2552 = vshrl.u32 %v1091, 16
      %v2554 = vrot.slane %v2552, 4
      %v2555 = vshll.u32 %v1091, 16
      %v2557 = vrot.slane %v2555, 5
      %v2558 = vor.u32 %v2554, %v2557
      %v2559 = vrot.slane %v2558, 4
      %v2561 = vshll.u32 %v1092, 16
      %v2563 = vrot.slane %v2561, 5
      %v2564 = vsel %vm1098, %v2559, %v2563
      %v2565 = vshrl.u32 %v1092, 16
      %v2567 = vrot.slane %v2565, 4
      %v2568 = vor.u32 %v2567, %v2563
      %v2569 = vrot.slane %v2568, 4
      %v2571 = vshll.u32 %v1093, 16
      %v2573 = vrot.slane %v2571, 5
      %v2574 = vsel %vm1098, %v2569, %v2573
      %v2575 = vshrl.u32 %v1093, 16
      %v2577 = vrot.slane %v2575, 4
      %v2578 = vor.u32 %v2577, %v2573
      %v2579 = vrot.slane %v2578, 4
      %v2581 = vshll.u32 %v1094, 16
      %v2583 = vrot.slane %v2581, 5
      %v2584 = vsel %vm1098, %v2579, %v2583
      %v2585 = vshrl.u32 %v1094, 16
      %v2587 = vrot.slane %v2585, 4
      %v2588 = vor.u32 %v2587, %v2583
      %v2589 = vrot.slane %v2588, 4
      %v2591 = vshll.u32 %v1095, 16
      %v2593 = vrot.slane %v2591, 5
      %v2594 = vsel %vm1098, %v2589, %v2593
      %vm2765 = vcmask 1042432
      %vm2766 = vcmask 1046532
      %vm2767 = vmor %vm2765, %vm2766
      %v2768 = vrot.slane %v926, 5
      %v2769 = vrot.slane %v2768, 4
      %v2770 = vrot.slane %v927, 5
      %v2771 = vsel %vm2767, %v2769, %v2770
      %v2772 = vrot.slane %v2770, 4
      %v2773 = vrot.slane %v928, 5
      %v2774 = vsel %vm2767, %v2772, %v2773
      %v2775 = vrot.slane %v2773, 4
      %v2776 = vrot.slane %v929, 5
      %v2777 = vsel %vm2767, %v2775, %v2776
      %v2778 = vrot.slane %v2776, 4
      %v2779 = vrot.slane %v930, 5
      %v2780 = vsel %vm2767, %v2778, %v2779
      %v2781 = vrot.slane %v931, 5
      %v2782 = vrot.slane %v2781, 4
      %v2783 = vrot.slane %v932, 5
      %v2784 = vsel %vm2767, %v2782, %v2783
      %v2785 = vrot.slane %v2783, 4
      %v2786 = vrot.slane %v933, 5
      %v2787 = vsel %vm2767, %v2785, %v2786
      %v2788 = vrot.slane %v2786, 4
      %v2789 = vrot.slane %v934, 5
      %v2790 = vsel %vm2767, %v2788, %v2789
      %v2791 = vrot.slane %v2789, 4
      %v2792 = vrot.slane %v935, 5
      %v2793 = vsel %vm2767, %v2791, %v2792
      %v2794 = vrot.slane %v936, 5
      %v2795 = vrot.slane %v2794, 4
      %v2796 = vrot.slane %v937, 5
      %v2797 = vsel %vm2767, %v2795, %v2796
      %v2798 = vrot.slane %v2796, 4
      %v2799 = vrot.slane %v938, 5
      %v2800 = vsel %vm2767, %v2798, %v2799
      %v2801 = vrot.slane %v2799, 4
      %v2802 = vrot.slane %v939, 5
      %v2803 = vsel %vm2767, %v2801, %v2802
      %v2804 = vrot.slane %v2802, 4
      %v2805 = vrot.slane %v940, 5
      %v2806 = vsel %vm2767, %v2804, %v2805
      %v2807 = vrot.slane %v941, 5
      %v2808 = vrot.slane %v2807, 4
      %v2809 = vrot.slane %v942, 5
      %v2810 = vsel %vm2767, %v2808, %v2809
      %v2811 = vrot.slane %v2809, 4
      %v2812 = vrot.slane %v943, 5
      %v2813 = vsel %vm2767, %v2811, %v2812
      %v2814 = vrot.slane %v2812, 4
      %v2815 = vrot.slane %v944, 5
      %v2816 = vsel %vm2767, %v2814, %v2815
      %v2817 = vrot.slane %v2815, 4
      %v2818 = vrot.slane %v945, 5
      %v2819 = vsel %vm2767, %v2817, %v2818
      %v2820 = vrot.slane %v946, 5
      %v2821 = vrot.slane %v2820, 4
      %v2822 = vrot.slane %v947, 5
      %v2823 = vsel %vm2767, %v2821, %v2822
      %v2824 = vrot.slane %v2822, 4
      %v2825 = vrot.slane %v948, 5
      %v2826 = vsel %vm2767, %v2824, %v2825
      %v2827 = vrot.slane %v2825, 4
      %v2828 = vrot.slane %v949, 5
      %v2829 = vsel %vm2767, %v2827, %v2828
      %v2830 = vrot.slane %v2828, 4
      %v2831 = vrot.slane %v950, 5
      %v2832 = vsel %vm2767, %v2830, %v2831
      %v2833 = vrot.slane %v951, 5
      %v2834 = vrot.slane %v2833, 4
      %v2835 = vrot.slane %v952, 5
      %v2836 = vsel %vm2767, %v2834, %v2835
      %v2837 = vrot.slane %v2835, 4
      %v2838 = vrot.slane %v953, 5
      %v2839 = vsel %vm2767, %v2837, %v2838
      %v2840 = vrot.slane %v2838, 4
      %v2841 = vrot.slane %v954, 5
      %v2842 = vsel %vm2767, %v2840, %v2841
      %v2843 = vrot.slane %v2841, 4
      %v2844 = vrot.slane %v955, 5
      %v2845 = vsel %vm2767, %v2843, %v2844
      %v2846 = vrot.slane %v956, 5
      %v2847 = vrot.slane %v2846, 4
      %v2848 = vrot.slane %v957, 5
      %v2849 = vsel %vm2767, %v2847, %v2848
      %v2850 = vrot.slane %v2848, 4
      %v2851 = vrot.slane %v958, 5
      %v2852 = vsel %vm2767, %v2850, %v2851
      %v2853 = vrot.slane %v2851, 4
      %v2854 = vrot.slane %v959, 5
      %v2855 = vsel %vm2767, %v2853, %v2854
      %v2856 = vrot.slane %v2854, 4
      %v2857 = vrot.slane %v960, 5
      %v2858 = vsel %vm2767, %v2856, %v2857
      %v2859 = vrot.slane %v961, 5
      %v2860 = vrot.slane %v2859, 4
      %v2861 = vrot.slane %v962, 5
      %v2862 = vsel %vm2767, %v2860, %v2861
      %v2863 = vrot.slane %v2861, 4
      %v2864 = vrot.slane %v963, 5
      %v2865 = vsel %vm2767, %v2863, %v2864
      %v2866 = vrot.slane %v2864, 4
      %v2867 = vrot.slane %v964, 5
      %v2868 = vsel %vm2767, %v2866, %v2867
      %v2869 = vrot.slane %v2867, 4
      %v2870 = vrot.slane %v965, 5
      %v2871 = vsel %vm2767, %v2869, %v2870
      %v2872 = vrot.slane %v966, 5
      %v2873 = vrot.slane %v2872, 4
      %v2874 = vrot.slane %v967, 5
      %v2875 = vsel %vm2767, %v2873, %v2874
      %v2876 = vrot.slane %v2874, 4
      %v2877 = vrot.slane %v968, 5
      %v2878 = vsel %vm2767, %v2876, %v2877
      %v2879 = vrot.slane %v2877, 4
      %v2880 = vrot.slane %v969, 5
      %v2881 = vsel %vm2767, %v2879, %v2880
      %v2882 = vrot.slane %v2880, 4
      %v2883 = vrot.slane %v970, 5
      %v2884 = vsel %vm2767, %v2882, %v2883
      %v2885 = vrot.slane %v971, 5
      %v2886 = vrot.slane %v2885, 4
      %v2887 = vrot.slane %v972, 5
      %v2888 = vsel %vm2767, %v2886, %v2887
      %v2889 = vrot.slane %v2887, 4
      %v2890 = vrot.slane %v973, 5
      %v2891 = vsel %vm2767, %v2889, %v2890
      %v2892 = vrot.slane %v2890, 4
      %v2893 = vrot.slane %v974, 5
      %v2894 = vsel %vm2767, %v2892, %v2893
      %v2895 = vrot.slane %v2893, 4
      %v2896 = vrot.slane %v975, 5
      %v2897 = vsel %vm2767, %v2895, %v2896
      %v2898 = vrot.slane %v976, 5
      %v2899 = vrot.slane %v2898, 4
      %v2900 = vrot.slane %v977, 5
      %v2901 = vsel %vm2767, %v2899, %v2900
      %v2902 = vrot.slane %v2900, 4
      %v2903 = vrot.slane %v978, 5
      %v2904 = vsel %vm2767, %v2902, %v2903
      %v2905 = vrot.slane %v2903, 4
      %v2906 = vrot.slane %v979, 5
      %v2907 = vsel %vm2767, %v2905, %v2906
      %v2908 = vrot.slane %v2906, 4
      %v2909 = vrot.slane %v980, 5
      %v2910 = vsel %vm2767, %v2908, %v2909
      %v2911 = vrot.slane %v981, 5
      %v2912 = vrot.slane %v2911, 4
      %v2913 = vrot.slane %v982, 5
      %v2914 = vsel %vm2767, %v2912, %v2913
      %v2915 = vrot.slane %v2913, 4
      %v2916 = vrot.slane %v983, 5
      %v2917 = vsel %vm2767, %v2915, %v2916
      %v2918 = vrot.slane %v2916, 4
      %v2919 = vrot.slane %v984, 5
      %v2920 = vsel %vm2767, %v2918, %v2919
      %v2921 = vrot.slane %v2919, 4
      %v2922 = vrot.slane %v985, 5
      %v2923 = vsel %vm2767, %v2921, %v2922
      %v2924 = vrot.slane %v986, 5
      %v2925 = vrot.slane %v2924, 4
      %v2926 = vrot.slane %v987, 5
      %v2927 = vsel %vm2767, %v2925, %v2926
      %v2928 = vrot.slane %v2926, 4
      %v2929 = vrot.slane %v988, 5
      %v2930 = vsel %vm2767, %v2928, %v2929
      %v2931 = vrot.slane %v2929, 4
      %v2932 = vrot.slane %v989, 5
      %v2933 = vsel %vm2767, %v2931, %v2932
      %v2934 = vrot.slane %v2932, 4
      %v2935 = vrot.slane %v990, 5
      %v2936 = vsel %vm2767, %v2934, %v2935
      %v2937 = vrot.slane %v991, 5
      %v2938 = vrot.slane %v2937, 4
      %v2939 = vrot.slane %v992, 5
      %v2940 = vsel %vm2767, %v2938, %v2939
      %v2941 = vrot.slane %v2939, 4
      %v2942 = vrot.slane %v993, 5
      %v2943 = vsel %vm2767, %v2941, %v2942
      %v2944 = vrot.slane %v2942, 4
      %v2945 = vrot.slane %v994, 5
      %v2946 = vsel %vm2767, %v2944, %v2945
      %v2947 = vrot.slane %v2945, 4
      %v2948 = vrot.slane %v995, 5
      %v2949 = vsel %vm2767, %v2947, %v2948
      %v2950 = vrot.slane %v996, 5
      %v2951 = vrot.slane %v2950, 4
      %v2952 = vrot.slane %v997, 5
      %v2953 = vsel %vm2767, %v2951, %v2952
      %v2954 = vrot.slane %v2952, 4
      %v2955 = vrot.slane %v998, 5
      %v2956 = vsel %vm2767, %v2954, %v2955
      %v2957 = vrot.slane %v2955, 4
      %v2958 = vrot.slane %v999, 5
      %v2959 = vsel %vm2767, %v2957, %v2958
      %v2960 = vrot.slane %v2958, 4
      %v2961 = vrot.slane %v1000, 5
      %v2962 = vsel %vm2767, %v2960, %v2961
      %v2963 = vrot.slane %v1001, 5
      %v2964 = vrot.slane %v2963, 4
      %v2965 = vrot.slane %v1002, 5
      %v2966 = vsel %vm2767, %v2964, %v2965
      %v2967 = vrot.slane %v2965, 4
      %v2968 = vrot.slane %v1003, 5
      %v2969 = vsel %vm2767, %v2967, %v2968
      %v2970 = vrot.slane %v2968, 4
      %v2971 = vrot.slane %v1004, 5
      %v2972 = vsel %vm2767, %v2970, %v2971
      %v2973 = vrot.slane %v2971, 4
      %v2974 = vrot.slane %v1005, 5
      %v2975 = vsel %vm2767, %v2973, %v2974
      %v2976 = vrot.slane %v1006, 5
      %v2977 = vrot.slane %v2976, 4
      %v2978 = vrot.slane %v1007, 5
      %v2979 = vsel %vm2767, %v2977, %v2978
      %v2980 = vrot.slane %v2978, 4
      %v2981 = vrot.slane %v1008, 5
      %v2982 = vsel %vm2767, %v2980, %v2981
      %v2983 = vrot.slane %v2981, 4
      %v2984 = vrot.slane %v1009, 5
      %v2985 = vsel %vm2767, %v2983, %v2984
      %v2986 = vrot.slane %v2984, 4
      %v2987 = vrot.slane %v1010, 5
      %v2988 = vsel %vm2767, %v2986, %v2987
      %v2989 = vrot.slane %v1011, 5
      %v2990 = vrot.slane %v2989, 4
      %v2991 = vrot.slane %v1012, 5
      %v2992 = vsel %vm2767, %v2990, %v2991
      %v2993 = vrot.slane %v2991, 4
      %v2994 = vrot.slane %v1013, 5
      %v2995 = vsel %vm2767, %v2993, %v2994
      %v2996 = vrot.slane %v2994, 4
      %v2997 = vrot.slane %v1014, 5
      %v2998 = vsel %vm2767, %v2996, %v2997
      %v2999 = vrot.slane %v2997, 4
      %v3000 = vrot.slane %v1015, 5
      %v3001 = vsel %vm2767, %v2999, %v3000
      %v3002 = vrot.slane %v1016, 5
      %v3003 = vrot.slane %v3002, 4
      %v3004 = vrot.slane %v1017, 5
      %v3005 = vsel %vm2767, %v3003, %v3004
      %v3006 = vrot.slane %v3004, 4
      %v3007 = vrot.slane %v1018, 5
      %v3008 = vsel %vm2767, %v3006, %v3007
      %v3009 = vrot.slane %v3007, 4
      %v3010 = vrot.slane %v1019, 5
      %v3011 = vsel %vm2767, %v3009, %v3010
      %v3012 = vrot.slane %v3010, 4
      %v3013 = vrot.slane %v1020, 5
      %v3014 = vsel %vm2767, %v3012, %v3013
      %v3015 = vrot.slane %v1021, 5
      %v3016 = vrot.slane %v3015, 4
      %v3017 = vrot.slane %v1022, 5
      %v3018 = vsel %vm2767, %v3016, %v3017
      %v3019 = vrot.slane %v3017, 4
      %v3020 = vrot.slane %v1023, 5
      %v3021 = vsel %vm2767, %v3019, %v3020
      %v3022 = vrot.slane %v3020, 4
      %v3023 = vrot.slane %v1024, 5
      %v3024 = vsel %vm2767, %v3022, %v3023
      %v3025 = vrot.slane %v3023, 4
      %v3026 = vrot.slane %v1025, 5
      %v3027 = vsel %vm2767, %v3025, %v3026
      %v3028 = vrot.slane %v1026, 5
      %v3029 = vrot.slane %v3028, 4
      %v3030 = vrot.slane %v1027, 5
      %v3031 = vsel %vm2767, %v3029, %v3030
      %v3032 = vrot.slane %v3030, 4
      %v3033 = vrot.slane %v1028, 5
      %v3034 = vsel %vm2767, %v3032, %v3033
      %v3035 = vrot.slane %v3033, 4
      %v3036 = vrot.slane %v1029, 5
      %v3037 = vsel %vm2767, %v3035, %v3036
      %v3038 = vrot.slane %v3036, 4
      %v3039 = vrot.slane %v1030, 5
      %v3040 = vsel %vm2767, %v3038, %v3039
      %v3041 = vrot.slane %v1031, 5
      %v3042 = vrot.slane %v3041, 4
      %v3043 = vrot.slane %v1032, 5
      %v3044 = vsel %vm2767, %v3042, %v3043
      %v3045 = vrot.slane %v3043, 4
      %v3046 = vrot.slane %v1033, 5
      %v3047 = vsel %vm2767, %v3045, %v3046
      %v3048 = vrot.slane %v3046, 4
      %v3049 = vrot.slane %v1034, 5
      %v3050 = vsel %vm2767, %v3048, %v3049
      %v3051 = vrot.slane %v3049, 4
      %v3052 = vrot.slane %v1035, 5
      %v3053 = vsel %vm2767, %v3051, %v3052
      %v3054 = vrot.slane %v1036, 5
      %v3055 = vrot.slane %v3054, 4
      %v3056 = vrot.slane %v1037, 5
      %v3057 = vsel %vm2767, %v3055, %v3056
      %v3058 = vrot.slane %v3056, 4
      %v3059 = vrot.slane %v1038, 5
      %v3060 = vsel %vm2767, %v3058, %v3059
      %v3061 = vrot.slane %v3059, 4
      %v3062 = vrot.slane %v1039, 5
      %v3063 = vsel %vm2767, %v3061, %v3062
      %v3064 = vrot.slane %v3062, 4
      %v3065 = vrot.slane %v1040, 5
      %v3066 = vsel %vm2767, %v3064, %v3065
      %v3067 = vrot.slane %v1041, 5
      %v3068 = vrot.slane %v3067, 4
      %v3069 = vrot.slane %v1042, 5
      %v3070 = vsel %vm2767, %v3068, %v3069
      %v3071 = vrot.slane %v3069, 4
      %v3072 = vrot.slane %v1043, 5
      %v3073 = vsel %vm2767, %v3071, %v3072
      %v3074 = vrot.slane %v3072, 4
      %v3075 = vrot.slane %v1044, 5
      %v3076 = vsel %vm2767, %v3074, %v3075
      %v3077 = vrot.slane %v3075, 4
      %v3078 = vrot.slane %v1045, 5
      %v3079 = vsel %vm2767, %v3077, %v3078
      %v3080 = vrot.slane %v1046, 5
      %v3081 = vrot.slane %v3080, 4
      %v3082 = vrot.slane %v1047, 5
      %v3083 = vsel %vm2767, %v3081, %v3082
      %v3084 = vrot.slane %v3082, 4
      %v3085 = vrot.slane %v1048, 5
      %v3086 = vsel %vm2767, %v3084, %v3085
      %v3087 = vrot.slane %v3085, 4
      %v3088 = vrot.slane %v1049, 5
      %v3089 = vsel %vm2767, %v3087, %v3088
      %v3090 = vrot.slane %v3088, 4
      %v3091 = vrot.slane %v1050, 5
      %v3092 = vsel %vm2767, %v3090, %v3091
      %v3093 = vrot.slane %v1051, 5
      %v3094 = vrot.slane %v3093, 4
      %v3095 = vrot.slane %v1052, 5
      %v3096 = vsel %vm2767, %v3094, %v3095
      %v3097 = vrot.slane %v3095, 4
      %v3098 = vrot.slane %v1053, 5
      %v3099 = vsel %vm2767, %v3097, %v3098
      %v3100 = vrot.slane %v3098, 4
      %v3101 = vrot.slane %v1054, 5
      %v3102 = vsel %vm2767, %v3100, %v3101
      %v3103 = vrot.slane %v3101, 4
      %v3104 = vrot.slane %v1055, 5
      %v3105 = vsel %vm2767, %v3103, %v3104
      %v3106 = vrot.slane %v1056, 5
      %v3107 = vrot.slane %v3106, 4
      %v3108 = vrot.slane %v1057, 5
      %v3109 = vsel %vm2767, %v3107, %v3108
      %v3110 = vrot.slane %v3108, 4
      %v3111 = vrot.slane %v1058, 5
      %v3112 = vsel %vm2767, %v3110, %v3111
      %v3113 = vrot.slane %v3111, 4
      %v3114 = vrot.slane %v1059, 5
      %v3115 = vsel %vm2767, %v3113, %v3114
      %v3116 = vrot.slane %v3114, 4
      %v3117 = vrot.slane %v1060, 5
      %v3118 = vsel %vm2767, %v3116, %v3117
      %v3119 = vrot.slane %v1061, 5
      %v3120 = vrot.slane %v3119, 4
      %v3121 = vrot.slane %v1062, 5
      %v3122 = vsel %vm2767, %v3120, %v3121
      %v3123 = vrot.slane %v3121, 4
      %v3124 = vrot.slane %v1063, 5
      %v3125 = vsel %vm2767, %v3123, %v3124
      %v3126 = vrot.slane %v3124, 4
      %v3127 = vrot.slane %v1064, 5
      %v3128 = vsel %vm2767, %v3126, %v3127
      %v3129 = vrot.slane %v3127, 4
      %v3130 = vrot.slane %v1065, 5
      %v3131 = vsel %vm2767, %v3129, %v3130
      %v3132 = vrot.slane %v1066, 5
      %v3133 = vrot.slane %v3132, 4
      %v3134 = vrot.slane %v1067, 5
      %v3135 = vsel %vm2767, %v3133, %v3134
      %v3136 = vrot.slane %v3134, 4
      %v3137 = vrot.slane %v1068, 5
      %v3138 = vsel %vm2767, %v3136, %v3137
      %v3139 = vrot.slane %v3137, 4
      %v3140 = vrot.slane %v1069, 5
      %v3141 = vsel %vm2767, %v3139, %v3140
      %v3142 = vrot.slane %v3140, 4
      %v3143 = vrot.slane %v1070, 5
      %v3144 = vsel %vm2767, %v3142, %v3143
      %v3145 = vrot.slane %v1071, 5
      %v3146 = vrot.slane %v3145, 4
      %v3147 = vrot.slane %v1072, 5
      %v3148 = vsel %vm2767, %v3146, %v3147
      %v3149 = vrot.slane %v3147, 4
      %v3150 = vrot.slane %v1073, 5
      %v3151 = vsel %vm2767, %v3149, %v3150
      %v3152 = vrot.slane %v3150, 4
      %v3153 = vrot.slane %v1074, 5
      %v3154 = vsel %vm2767, %v3152, %v3153
      %v3155 = vrot.slane %v3153, 4
      %v3156 = vrot.slane %v1075, 5
      %v3157 = vsel %vm2767, %v3155, %v3156
      %v3158 = vrot.slane %v1076, 5
      %v3159 = vrot.slane %v3158, 4
      %v3160 = vrot.slane %v1077, 5
      %v3161 = vsel %vm2767, %v3159, %v3160
      %v3162 = vrot.slane %v3160, 4
      %v3163 = vrot.slane %v1078, 5
      %v3164 = vsel %vm2767, %v3162, %v3163
      %v3165 = vrot.slane %v3163, 4
      %v3166 = vrot.slane %v1079, 5
      %v3167 = vsel %vm2767, %v3165, %v3166
      %v3168 = vrot.slane %v3166, 4
      %v3169 = vrot.slane %v1080, 5
      %v3170 = vsel %vm2767, %v3168, %v3169
      %v3171 = vrot.slane %v1081, 5
      %v3172 = vrot.slane %v3171, 4
      %v3173 = vrot.slane %v1082, 5
      %v3174 = vsel %vm2767, %v3172, %v3173
      %v3175 = vrot.slane %v3173, 4
      %v3176 = vrot.slane %v1083, 5
      %v3177 = vsel %vm2767, %v3175, %v3176
      %v3178 = vrot.slane %v3176, 4
      %v3179 = vrot.slane %v1084, 5
      %v3180 = vsel %vm2767, %v3178, %v3179
      %v3181 = vrot.slane %v3179, 4
      %v3182 = vrot.slane %v1085, 5
      %v3183 = vsel %vm2767, %v3181, %v3182
      %v3184 = vrot.slane %v1086, 5
      %v3185 = vrot.slane %v3184, 4
      %v3186 = vrot.slane %v1087, 5
      %v3187 = vsel %vm2767, %v3185, %v3186
      %v3188 = vrot.slane %v3186, 4
      %v3189 = vrot.slane %v1088, 5
      %v3190 = vsel %vm2767, %v3188, %v3189
      %v3191 = vrot.slane %v3189, 4
      %v3192 = vrot.slane %v1089, 5
      %v3193 = vsel %vm2767, %v3191, %v3192
      %v3194 = vrot.slane %v3192, 4
      %v3195 = vrot.slane %v1090, 5
      %v3196 = vsel %vm2767, %v3194, %v3195
      %v3197 = vrot.slane %v1091, 5
      %v3198 = vrot.slane %v3197, 4
      %v3199 = vrot.slane %v1092, 5
      %v3200 = vsel %vm2767, %v3198, %v3199
      %v3201 = vrot.slane %v3199, 4
      %v3202 = vrot.slane %v1093, 5
      %v3203 = vsel %vm2767, %v3201, %v3202
      %v3204 = vrot.slane %v3202, 4
      %v3205 = vrot.slane %v1094, 5
      %v3206 = vsel %vm2767, %v3204, %v3205
      %v3207 = vrot.slane %v3205, 4
      %v3208 = vrot.slane %v1095, 5
      %v3209 = vsel %vm2767, %v3207, %v3208
      %v3210 = vld [vmem:[%s1] sm:$0x3]
      %v3211 = vld [vmem:[%s1] sm:$0xc]
      %v3212 = vunpack.c.l.b16 %v1112
      %v3213 = vunpack.c.l.b16 %v1122
      %v3214 = vunpack.c.l.b16 %v1132
      %v3215 = vunpack.c.l.b16 %v1142
      %v3216 = vunpack.c.l.b16 %v1156
      %v3217 = vunpack.c.l.b16 %v1166
      %v3218 = vunpack.c.l.b16 %v1176
      %v3219 = vunpack.c.l.b16 %v1186
      %v3220 = vunpack.c.l.b16 %v1200
      %v3221 = vunpack.c.l.b16 %v1210
      %v3222 = vunpack.c.l.b16 %v1220
      %v3223 = vunpack.c.l.b16 %v1230
      %v3224 = vunpack.c.l.b16 %v1244
      %v3225 = vunpack.c.l.b16 %v1254
      %v3226 = vunpack.c.l.b16 %v1264
      %v3227 = vunpack.c.l.b16 %v1274
      %v3228 = vunpack.c.l.b16 %v1288
      %v3229 = vunpack.c.l.b16 %v1298
      %v3230 = vunpack.c.l.b16 %v1308
      %v3231 = vunpack.c.l.b16 %v1318
      %v3232 = vunpack.c.l.b16 %v1332
      %v3233 = vunpack.c.l.b16 %v1342
      %v3234 = vunpack.c.l.b16 %v1352
      %v3235 = vunpack.c.l.b16 %v1362
      %v3236 = vunpack.c.l.b16 %v1376
      %v3237 = vunpack.c.l.b16 %v1386
      %v3238 = vunpack.c.l.b16 %v1396
      %v3239 = vunpack.c.l.b16 %v1406
      %v3240 = vunpack.c.l.b16 %v1420
      %v3241 = vunpack.c.l.b16 %v1430
      %v3242 = vunpack.c.l.b16 %v1440
      %v3243 = vunpack.c.l.b16 %v1450
      %v3244 = vunpack.c.l.b16 %v1464
      %v3245 = vunpack.c.l.b16 %v1474
      %v3246 = vunpack.c.l.b16 %v1484
      %v3247 = vunpack.c.l.b16 %v1494
      %v3248 = vunpack.c.l.b16 %v1508
      %v3249 = vunpack.c.l.b16 %v1518
      %v3250 = vunpack.c.l.b16 %v1528
      %v3251 = vunpack.c.l.b16 %v1538
      %v3252 = vunpack.c.l.b16 %v1552
      %v3253 = vunpack.c.l.b16 %v1562
      %v3254 = vunpack.c.l.b16 %v1572
      %v3255 = vunpack.c.l.b16 %v1582
      %v3256 = vunpack.c.l.b16 %v1596
      %v3257 = vunpack.c.l.b16 %v1606
      %v3258 = vunpack.c.l.b16 %v1616
      %v3259 = vunpack.c.l.b16 %v1626
      %v3260 = vunpack.c.l.b16 %v1640
      %v3261 = vunpack.c.l.b16 %v1650
      %v3262 = vunpack.c.l.b16 %v1660
      %v3263 = vunpack.c.l.b16 %v1670
      %v3264 = vunpack.c.l.b16 %v1684
      %v3265 = vunpack.c.l.b16 %v1694
      %v3266 = vunpack.c.l.b16 %v1704
      %v3267 = vunpack.c.l.b16 %v1714
      %v3268 = vunpack.c.l.b16 %v1728
      %v3269 = vunpack.c.l.b16 %v1738
      %v3270 = vunpack.c.l.b16 %v1748
      %v3271 = vunpack.c.l.b16 %v1758
      %v3272 = vunpack.c.l.b16 %v1772
      %v3273 = vunpack.c.l.b16 %v1782
      %v3274 = vunpack.c.l.b16 %v1792
      %v3275 = vunpack.c.l.b16 %v1802
      %v3276 = vunpack.c.l.b16 %v1816
      %v3277 = vunpack.c.l.b16 %v1826
      %v3278 = vunpack.c.l.b16 %v1836
      %v3279 = vunpack.c.l.b16 %v1846
      %v3280 = vunpack.c.l.b16 %v1860
      %v3281 = vunpack.c.l.b16 %v1870
      %v3282 = vunpack.c.l.b16 %v1880
      %v3283 = vunpack.c.l.b16 %v1890
      %v3284 = vunpack.c.l.b16 %v1904
      %v3285 = vunpack.c.l.b16 %v1914
      %v3286 = vunpack.c.l.b16 %v1924
      %v3287 = vunpack.c.l.b16 %v1934
      %v3288 = vunpack.c.l.b16 %v1948
      %v3289 = vunpack.c.l.b16 %v1958
      %v3290 = vunpack.c.l.b16 %v1968
      %v3291 = vunpack.c.l.b16 %v1978
      %v3292 = vunpack.c.l.b16 %v1992
      %v3293 = vunpack.c.l.b16 %v2002
      %v3294 = vunpack.c.l.b16 %v2012
      %v3295 = vunpack.c.l.b16 %v2022
      %v3296 = vunpack.c.l.b16 %v2036
      %v3297 = vunpack.c.l.b16 %v2046
      %v3298 = vunpack.c.l.b16 %v2056
      %v3299 = vunpack.c.l.b16 %v2066
      %v3300 = vunpack.c.l.b16 %v2080
      %v3301 = vunpack.c.l.b16 %v2090
      %v3302 = vunpack.c.l.b16 %v2100
      %v3303 = vunpack.c.l.b16 %v2110
      %v3304 = vunpack.c.l.b16 %v2124
      %v3305 = vunpack.c.l.b16 %v2134
      %v3306 = vunpack.c.l.b16 %v2144
      %v3307 = vunpack.c.l.b16 %v2154
      %v3308 = vunpack.c.l.b16 %v2168
      %v3309 = vunpack.c.l.b16 %v2178
      %v3310 = vunpack.c.l.b16 %v2188
      %v3311 = vunpack.c.l.b16 %v2198
      %v3312 = vunpack.c.l.b16 %v2212
      %v3313 = vunpack.c.l.b16 %v2222
      %v3314 = vunpack.c.l.b16 %v2232
      %v3315 = vunpack.c.l.b16 %v2242
      %v3316 = vunpack.c.l.b16 %v2256
      %v3317 = vunpack.c.l.b16 %v2266
      %v3318 = vunpack.c.l.b16 %v2276
      %v3319 = vunpack.c.l.b16 %v2286
      %v3320 = vunpack.c.l.b16 %v2300
      %v3321 = vunpack.c.l.b16 %v2310
      %v3322 = vunpack.c.l.b16 %v2320
      %v3323 = vunpack.c.l.b16 %v2330
      %v3324 = vunpack.c.l.b16 %v2344
      %v3325 = vunpack.c.l.b16 %v2354
      %v3326 = vunpack.c.l.b16 %v2364
      %v3327 = vunpack.c.l.b16 %v2374
      %v3328 = vunpack.c.l.b16 %v2388
      %v3329 = vunpack.c.l.b16 %v2398
      %v3330 = vunpack.c.l.b16 %v2408
      %v3331 = vunpack.c.l.b16 %v2418
      %v3332 = vunpack.c.l.b16 %v2432
      %v3333 = vunpack.c.l.b16 %v2442
      %v3334 = vunpack.c.l.b16 %v2452
      %v3335 = vunpack.c.l.b16 %v2462
      %v3336 = vunpack.c.l.b16 %v2476
      %v3337 = vunpack.c.l.b16 %v2486
      %v3338 = vunpack.c.l.b16 %v2496
      %v3339 = vunpack.c.l.b16 %v2506
      %v3340 = vpack.c.b16 %v3213, %v3212
      %v3341 = vpack.c.b16 %v3215, %v3214
      %v3342 = vpack.c.b16 %v3217, %v3216
      %v3343 = vpack.c.b16 %v3219, %v3218
      %v3344 = vpack.c.b16 %v3221, %v3220
      %v3345 = vpack.c.b16 %v3223, %v3222
      %v3346 = vpack.c.b16 %v3225, %v3224
      %v3347 = vpack.c.b16 %v3227, %v3226
      %v3348 = vpack.c.b16 %v3229, %v3228
      %v3349 = vpack.c.b16 %v3231, %v3230
      %v3350 = vpack.c.b16 %v3233, %v3232
      %v3351 = vpack.c.b16 %v3235, %v3234
      %v3352 = vpack.c.b16 %v3237, %v3236
      %v3353 = vpack.c.b16 %v3239, %v3238
      %v3354 = vpack.c.b16 %v3241, %v3240
      %v3355 = vpack.c.b16 %v3243, %v3242
      %v3356 = vpack.c.b16 %v3245, %v3244
      %v3357 = vpack.c.b16 %v3247, %v3246
      %v3358 = vpack.c.b16 %v3249, %v3248
      %v3359 = vpack.c.b16 %v3251, %v3250
      %v3360 = vpack.c.b16 %v3253, %v3252
      %v3361 = vpack.c.b16 %v3255, %v3254
      %v3362 = vpack.c.b16 %v3257, %v3256
      %v3363 = vpack.c.b16 %v3259, %v3258
      %v3364 = vpack.c.b16 %v3261, %v3260
      %v3365 = vpack.c.b16 %v3263, %v3262
      %v3366 = vpack.c.b16 %v3265, %v3264
      %v3367 = vpack.c.b16 %v3267, %v3266
      %v3368 = vpack.c.b16 %v3269, %v3268
      %v3369 = vpack.c.b16 %v3271, %v3270
      %v3370 = vpack.c.b16 %v3273, %v3272
      %v3371 = vpack.c.b16 %v3275, %v3274
      %v3372 = vpack.c.b16 %v3277, %v3276
      %v3373 = vpack.c.b16 %v3279, %v3278
      %v3374 = vpack.c.b16 %v3281, %v3280
      %v3375 = vpack.c.b16 %v3283, %v3282
      %v3376 = vpack.c.b16 %v3285, %v3284
      %v3377 = vpack.c.b16 %v3287, %v3286
      %v3378 = vpack.c.b16 %v3289, %v3288
      %v3379 = vpack.c.b16 %v3291, %v3290
      %v3380 = vpack.c.b16 %v3293, %v3292
      %v3381 = vpack.c.b16 %v3295, %v3294
      %v3382 = vpack.c.b16 %v3297, %v3296
      %v3383 = vpack.c.b16 %v3299, %v3298
      %v3384 = vpack.c.b16 %v3301, %v3300
      %v3385 = vpack.c.b16 %v3303, %v3302
      %v3386 = vpack.c.b16 %v3305, %v3304
      %v3387 = vpack.c.b16 %v3307, %v3306
      %v3388 = vpack.c.b16 %v3309, %v3308
      %v3389 = vpack.c.b16 %v3311, %v3310
      %v3390 = vpack.c.b16 %v3313, %v3312
      %v3391 = vpack.c.b16 %v3315, %v3314
      %v3392 = vpack.c.b16 %v3317, %v3316
      %v3393 = vpack.c.b16 %v3319, %v3318
      %v3394 = vpack.c.b16 %v3321, %v3320
      %v3395 = vpack.c.b16 %v3323, %v3322
      %v3396 = vpack.c.b16 %v3325, %v3324
      %v3397 = vpack.c.b16 %v3327, %v3326
      %v3398 = vpack.c.b16 %v3329, %v3328
      %v3399 = vpack.c.b16 %v3331, %v3330
      %v3400 = vpack.c.b16 %v3333, %v3332
      %v3401 = vpack.c.b16 %v3335, %v3334
      %v3402 = vpack.c.b16 %v3337, %v3336
      %v3403 = vpack.c.b16 %v3339, %v3338
      %v3405 = vunpack.c.l.b16 %v3211
      %v3406 = vpack.c.b16 %v3405, %v3405
      %v3407 = vrot.slane %v3406, 2
      %vm3408 = vcmask 31744
      %v3410 = vsel %vm3408, %v3340, 0
      %v3413 = vsel %vm3408, %v3341, 0
      %v3416 = vsel %vm3408, %v3342, 0
      %v3419 = vsel %vm3408, %v3343, 0
      %v3422 = vsel %vm3408, %v3344, 0
      %v3425 = vsel %vm3408, %v3345, 0
      %v3428 = vsel %vm3408, %v3346, 0
      %v3431 = vsel %vm3408, %v3347, 0
      %v3434 = vsel %vm3408, %v3348, 0
      %v3437 = vsel %vm3408, %v3349, 0
      %v3440 = vsel %vm3408, %v3350, 0
      %v3443 = vsel %vm3408, %v3351, 0
      %v3446 = vsel %vm3408, %v3352, 0
      %v3449 = vsel %vm3408, %v3353, 0
      %v3452 = vsel %vm3408, %v3354, 0
      %v3455 = vsel %vm3408, %v3355, 0
      %v3458 = vsel %vm3408, %v3356, 0
      %v3461 = vsel %vm3408, %v3357, 0
      %v3464 = vsel %vm3408, %v3358, 0
      %v3467 = vsel %vm3408, %v3359, 0
      %v3470 = vsel %vm3408, %v3360, 0
      %v3473 = vsel %vm3408, %v3361, 0
      %v3476 = vsel %vm3408, %v3362, 0
      %v3479 = vsel %vm3408, %v3363, 0
      %v3482 = vsel %vm3408, %v3364, 0
      %v3485 = vsel %vm3408, %v3365, 0
      %v3488 = vsel %vm3408, %v3366, 0
      %v3491 = vsel %vm3408, %v3367, 0
      %v3494 = vsel %vm3408, %v3368, 0
      %v3497 = vsel %vm3408, %v3369, 0
      %v3500 = vsel %vm3408, %v3370, 0
      %v3503 = vsel %vm3408, %v3371, 0
      %v3506 = vsel %vm3408, %v3372, 0
      %v3509 = vsel %vm3408, %v3373, 0
      %v3512 = vsel %vm3408, %v3374, 0
      %v3515 = vsel %vm3408, %v3375, 0
      %v3518 = vsel %vm3408, %v3376, 0
      %v3521 = vsel %vm3408, %v3377, 0
      %v3524 = vsel %vm3408, %v3378, 0
      %v3527 = vsel %vm3408, %v3379, 0
      %v3530 = vsel %vm3408, %v3380, 0
      %v3533 = vsel %vm3408, %v3381, 0
      %v3536 = vsel %vm3408, %v3382, 0
      %v3539 = vsel %vm3408, %v3383, 0
      %v3542 = vsel %vm3408, %v3384, 0
      %v3545 = vsel %vm3408, %v3385, 0
      %v3548 = vsel %vm3408, %v3386, 0
      %v3551 = vsel %vm3408, %v3387, 0
      %v3554 = vsel %vm3408, %v3388, 0
      %v3557 = vsel %vm3408, %v3389, 0
      %v3560 = vsel %vm3408, %v3390, 0
      %v3563 = vsel %vm3408, %v3391, 0
      %v3566 = vsel %vm3408, %v3392, 0
      %v3569 = vsel %vm3408, %v3393, 0
      %v3572 = vsel %vm3408, %v3394, 0
      %v3575 = vsel %vm3408, %v3395, 0
      %v3578 = vsel %vm3408, %v3396, 0
      %v3581 = vsel %vm3408, %v3397, 0
      %v3584 = vsel %vm3408, %v3398, 0
      %v3587 = vsel %vm3408, %v3399, 0
      %v3590 = vsel %vm3408, %v3400, 0
      %v3593 = vsel %vm3408, %v3401, 0
      %v3596 = vsel %vm3408, %v3402, 0
      %v3599 = vsel %vm3408, %v3403, 0
      %vm3601 = vcmask 1041408
      %v3603 = vsel %vm3601, %v3407, 0
      %3605 = vmatpush.bf16.msra.mxu0 0
      %3606 = vmatpush.bf16.msra.mxu0 0
      %3607 = vmatpush.bf16.msra.mxu0 0
      %3608 = vmatpush.bf16.msra.mxu0 0
      %3609 = vmatpush.bf16.msra.mxu0 0
      %3610 = vmatpush.bf16.msra.mxu0 0
      %3611 = vmatpush.bf16.msra.mxu0 0
      %3612 = vmatpush.bf16.msra.mxu0 %v3603
      %3613 = vmatmul.bf16.gmra.mxu0 %v3410
      %v3614 = vpop.f32.mrf.mxu0
      %v3615 = vadd.f32 0.0, %v3614
      %v3616 = vpop.f32.mrf.mxu0
      %v3617 = vadd.f32 0.0, %v3616
      %3618 = vmatmul.bf16.gmra.mxu0 %v3413
      %v3619 = vpop.f32.mrf.mxu0
      %v3620 = vadd.f32 0.0, %v3619
      %v3621 = vpop.f32.mrf.mxu0
      %v3622 = vadd.f32 0.0, %v3621
      %3623 = vmatmul.bf16.gmra.mxu0 %v3416
      %v3624 = vpop.f32.mrf.mxu0
      %v3625 = vadd.f32 0.0, %v3624
      %v3626 = vpop.f32.mrf.mxu0
      %v3627 = vadd.f32 0.0, %v3626
      %3628 = vmatmul.bf16.gmra.mxu0 %v3419
      %v3629 = vpop.f32.mrf.mxu0
      %v3630 = vadd.f32 0.0, %v3629
      %v3631 = vpop.f32.mrf.mxu0
      %v3632 = vadd.f32 0.0, %v3631
      %3633 = vmatmul.bf16.gmra.mxu0 %v3422
      %v3634 = vpop.f32.mrf.mxu0
      %v3635 = vadd.f32 0.0, %v3634
      %v3636 = vpop.f32.mrf.mxu0
      %v3637 = vadd.f32 0.0, %v3636
      %3638 = vmatmul.bf16.gmra.mxu0 %v3425
      %v3639 = vpop.f32.mrf.mxu0
      %v3640 = vadd.f32 0.0, %v3639
      %v3641 = vpop.f32.mrf.mxu0
      %v3642 = vadd.f32 0.0, %v3641
      %3643 = vmatmul.bf16.gmra.mxu0 %v3428
      %v3644 = vpop.f32.mrf.mxu0
      %v3645 = vadd.f32 0.0, %v3644
      %v3646 = vpop.f32.mrf.mxu0
      %v3647 = vadd.f32 0.0, %v3646
      %3648 = vmatmul.bf16.gmra.mxu0 %v3431
      %v3649 = vpop.f32.mrf.mxu0
      %v3650 = vadd.f32 0.0, %v3649
      %v3651 = vpop.f32.mrf.mxu0
      %v3652 = vadd.f32 0.0, %v3651
      %3653 = vmatmul.bf16.gmra.mxu0 %v3434
      %v3654 = vpop.f32.mrf.mxu0
      %v3655 = vadd.f32 0.0, %v3654
      %v3656 = vpop.f32.mrf.mxu0
      %v3657 = vadd.f32 0.0, %v3656
      %3658 = vmatmul.bf16.gmra.mxu0 %v3437
      %v3659 = vpop.f32.mrf.mxu0
      %v3660 = vadd.f32 0.0, %v3659
      %v3661 = vpop.f32.mrf.mxu0
      %v3662 = vadd.f32 0.0, %v3661
      %3663 = vmatmul.bf16.gmra.mxu0 %v3440
      %v3664 = vpop.f32.mrf.mxu0
      %v3665 = vadd.f32 0.0, %v3664
      %v3666 = vpop.f32.mrf.mxu0
      %v3667 = vadd.f32 0.0, %v3666
      %3668 = vmatmul.bf16.gmra.mxu0 %v3443
      %v3669 = vpop.f32.mrf.mxu0
      %v3670 = vadd.f32 0.0, %v3669
      %v3671 = vpop.f32.mrf.mxu0
      %v3672 = vadd.f32 0.0, %v3671
      %3673 = vmatmul.bf16.gmra.mxu0 %v3446
      %v3674 = vpop.f32.mrf.mxu0
      %v3675 = vadd.f32 0.0, %v3674
      %v3676 = vpop.f32.mrf.mxu0
      %v3677 = vadd.f32 0.0, %v3676
      %3678 = vmatmul.bf16.gmra.mxu0 %v3449
      %v3679 = vpop.f32.mrf.mxu0
      %v3680 = vadd.f32 0.0, %v3679
      %v3681 = vpop.f32.mrf.mxu0
      %v3682 = vadd.f32 0.0, %v3681
      %3683 = vmatmul.bf16.gmra.mxu0 %v3452
      %v3684 = vpop.f32.mrf.mxu0
      %v3685 = vadd.f32 0.0, %v3684
      %v3686 = vpop.f32.mrf.mxu0
      %v3687 = vadd.f32 0.0, %v3686
      %3688 = vmatmul.bf16.gmra.mxu0 %v3455
      %v3689 = vpop.f32.mrf.mxu0
      %v3690 = vadd.f32 0.0, %v3689
      %v3691 = vpop.f32.mrf.mxu0
      %v3692 = vadd.f32 0.0, %v3691
      %3693 = vmatmul.bf16.gmra.mxu0 %v3458
      %v3694 = vpop.f32.mrf.mxu0
      %v3695 = vadd.f32 0.0, %v3694
      %v3696 = vpop.f32.mrf.mxu0
      %v3697 = vadd.f32 0.0, %v3696
      %3698 = vmatmul.bf16.gmra.mxu0 %v3461
      %v3699 = vpop.f32.mrf.mxu0
      %v3700 = vadd.f32 0.0, %v3699
      %v3701 = vpop.f32.mrf.mxu0
      %v3702 = vadd.f32 0.0, %v3701
      %3703 = vmatmul.bf16.gmra.mxu0 %v3464
      %v3704 = vpop.f32.mrf.mxu0
      %v3705 = vadd.f32 0.0, %v3704
      %v3706 = vpop.f32.mrf.mxu0
      %v3707 = vadd.f32 0.0, %v3706
      %3708 = vmatmul.bf16.gmra.mxu0 %v3467
      %v3709 = vpop.f32.mrf.mxu0
      %v3710 = vadd.f32 0.0, %v3709
      %v3711 = vpop.f32.mrf.mxu0
      %v3712 = vadd.f32 0.0, %v3711
      %3713 = vmatmul.bf16.gmra.mxu0 %v3470
      %v3714 = vpop.f32.mrf.mxu0
      %v3715 = vadd.f32 0.0, %v3714
      %v3716 = vpop.f32.mrf.mxu0
      %v3717 = vadd.f32 0.0, %v3716
      %3718 = vmatmul.bf16.gmra.mxu0 %v3473
      %v3719 = vpop.f32.mrf.mxu0
      %v3720 = vadd.f32 0.0, %v3719
      %v3721 = vpop.f32.mrf.mxu0
      %v3722 = vadd.f32 0.0, %v3721
      %3723 = vmatmul.bf16.gmra.mxu0 %v3476
      %v3724 = vpop.f32.mrf.mxu0
      %v3725 = vadd.f32 0.0, %v3724
      %v3726 = vpop.f32.mrf.mxu0
      %v3727 = vadd.f32 0.0, %v3726
      %3728 = vmatmul.bf16.gmra.mxu0 %v3479
      %v3729 = vpop.f32.mrf.mxu0
      %v3730 = vadd.f32 0.0, %v3729
      %v3731 = vpop.f32.mrf.mxu0
      %v3732 = vadd.f32 0.0, %v3731
      %3733 = vmatmul.bf16.gmra.mxu0 %v3482
      %v3734 = vpop.f32.mrf.mxu0
      %v3735 = vadd.f32 0.0, %v3734
      %v3736 = vpop.f32.mrf.mxu0
      %v3737 = vadd.f32 0.0, %v3736
      %3738 = vmatmul.bf16.gmra.mxu0 %v3485
      %v3739 = vpop.f32.mrf.mxu0
      %v3740 = vadd.f32 0.0, %v3739
      %v3741 = vpop.f32.mrf.mxu0
      %v3742 = vadd.f32 0.0, %v3741
      %3743 = vmatmul.bf16.gmra.mxu0 %v3488
      %v3744 = vpop.f32.mrf.mxu0
      %v3745 = vadd.f32 0.0, %v3744
      %v3746 = vpop.f32.mrf.mxu0
      %v3747 = vadd.f32 0.0, %v3746
      %3748 = vmatmul.bf16.gmra.mxu0 %v3491
      %v3749 = vpop.f32.mrf.mxu0
      %v3750 = vadd.f32 0.0, %v3749
      %v3751 = vpop.f32.mrf.mxu0
      %v3752 = vadd.f32 0.0, %v3751
      %3753 = vmatmul.bf16.gmra.mxu0 %v3494
      %v3754 = vpop.f32.mrf.mxu0
      %v3755 = vadd.f32 0.0, %v3754
      %v3756 = vpop.f32.mrf.mxu0
      %v3757 = vadd.f32 0.0, %v3756
      %3758 = vmatmul.bf16.gmra.mxu0 %v3497
      %v3759 = vpop.f32.mrf.mxu0
      %v3760 = vadd.f32 0.0, %v3759
      %v3761 = vpop.f32.mrf.mxu0
      %v3762 = vadd.f32 0.0, %v3761
      %3763 = vmatmul.bf16.gmra.mxu0 %v3500
      %v3764 = vpop.f32.mrf.mxu0
      %v3765 = vadd.f32 0.0, %v3764
      %v3766 = vpop.f32.mrf.mxu0
      %v3767 = vadd.f32 0.0, %v3766
      %3768 = vmatmul.bf16.gmra.mxu0 %v3503
      %v3769 = vpop.f32.mrf.mxu0
      %v3770 = vadd.f32 0.0, %v3769
      %v3771 = vpop.f32.mrf.mxu0
      %v3772 = vadd.f32 0.0, %v3771
      %3773 = vmatmul.bf16.gmra.mxu0 %v3506
      %v3774 = vpop.f32.mrf.mxu0
      %v3775 = vadd.f32 0.0, %v3774
      %v3776 = vpop.f32.mrf.mxu0
      %v3777 = vadd.f32 0.0, %v3776
      %3778 = vmatmul.bf16.gmra.mxu0 %v3509
      %v3779 = vpop.f32.mrf.mxu0
      %v3780 = vadd.f32 0.0, %v3779
      %v3781 = vpop.f32.mrf.mxu0
      %v3782 = vadd.f32 0.0, %v3781
      %3783 = vmatmul.bf16.gmra.mxu0 %v3512
      %v3784 = vpop.f32.mrf.mxu0
      %v3785 = vadd.f32 0.0, %v3784
      %v3786 = vpop.f32.mrf.mxu0
      %v3787 = vadd.f32 0.0, %v3786
      %3788 = vmatmul.bf16.gmra.mxu0 %v3515
      %v3789 = vpop.f32.mrf.mxu0
      %v3790 = vadd.f32 0.0, %v3789
      %v3791 = vpop.f32.mrf.mxu0
      %v3792 = vadd.f32 0.0, %v3791
      %3793 = vmatmul.bf16.gmra.mxu0 %v3518
      %v3794 = vpop.f32.mrf.mxu0
      %v3795 = vadd.f32 0.0, %v3794
      %v3796 = vpop.f32.mrf.mxu0
      %v3797 = vadd.f32 0.0, %v3796
      %3798 = vmatmul.bf16.gmra.mxu0 %v3521
      %v3799 = vpop.f32.mrf.mxu0
      %v3800 = vadd.f32 0.0, %v3799
      %v3801 = vpop.f32.mrf.mxu0
      %v3802 = vadd.f32 0.0, %v3801
      %3803 = vmatmul.bf16.gmra.mxu0 %v3524
      %v3804 = vpop.f32.mrf.mxu0
      %v3805 = vadd.f32 0.0, %v3804
      %v3806 = vpop.f32.mrf.mxu0
      %v3807 = vadd.f32 0.0, %v3806
      %3808 = vmatmul.bf16.gmra.mxu0 %v3527
      %v3809 = vpop.f32.mrf.mxu0
      %v3810 = vadd.f32 0.0, %v3809
      %v3811 = vpop.f32.mrf.mxu0
      %v3812 = vadd.f32 0.0, %v3811
      %3813 = vmatmul.bf16.gmra.mxu0 %v3530
      %v3814 = vpop.f32.mrf.mxu0
      %v3815 = vadd.f32 0.0, %v3814
      %v3816 = vpop.f32.mrf.mxu0
      %v3817 = vadd.f32 0.0, %v3816
      %3818 = vmatmul.bf16.gmra.mxu0 %v3533
      %v3819 = vpop.f32.mrf.mxu0
      %v3820 = vadd.f32 0.0, %v3819
      %v3821 = vpop.f32.mrf.mxu0
      %v3822 = vadd.f32 0.0, %v3821
      %3823 = vmatmul.bf16.gmra.mxu0 %v3536
      %v3824 = vpop.f32.mrf.mxu0
      %v3825 = vadd.f32 0.0, %v3824
      %v3826 = vpop.f32.mrf.mxu0
      %v3827 = vadd.f32 0.0, %v3826
      %3828 = vmatmul.bf16.gmra.mxu0 %v3539
      %v3829 = vpop.f32.mrf.mxu0
      %v3830 = vadd.f32 0.0, %v3829
      %v3831 = vpop.f32.mrf.mxu0
      %v3832 = vadd.f32 0.0, %v3831
      %3833 = vmatmul.bf16.gmra.mxu0 %v3542
      %v3834 = vpop.f32.mrf.mxu0
      %v3835 = vadd.f32 0.0, %v3834
      %v3836 = vpop.f32.mrf.mxu0
      %v3837 = vadd.f32 0.0, %v3836
      %3838 = vmatmul.bf16.gmra.mxu0 %v3545
      %v3839 = vpop.f32.mrf.mxu0
      %v3840 = vadd.f32 0.0, %v3839
      %v3841 = vpop.f32.mrf.mxu0
      %v3842 = vadd.f32 0.0, %v3841
      %3843 = vmatmul.bf16.gmra.mxu0 %v3548
      %v3844 = vpop.f32.mrf.mxu0
      %v3845 = vadd.f32 0.0, %v3844
      %v3846 = vpop.f32.mrf.mxu0
      %v3847 = vadd.f32 0.0, %v3846
      %3848 = vmatmul.bf16.gmra.mxu0 %v3551
      %v3849 = vpop.f32.mrf.mxu0
      %v3850 = vadd.f32 0.0, %v3849
      %v3851 = vpop.f32.mrf.mxu0
      %v3852 = vadd.f32 0.0, %v3851
      %3853 = vmatmul.bf16.gmra.mxu0 %v3554
      %v3854 = vpop.f32.mrf.mxu0
      %v3855 = vadd.f32 0.0, %v3854
      %v3856 = vpop.f32.mrf.mxu0
      %v3857 = vadd.f32 0.0, %v3856
      %3858 = vmatmul.bf16.gmra.mxu0 %v3557
      %v3859 = vpop.f32.mrf.mxu0
      %v3860 = vadd.f32 0.0, %v3859
      %v3861 = vpop.f32.mrf.mxu0
      %v3862 = vadd.f32 0.0, %v3861
      %3863 = vmatmul.bf16.gmra.mxu0 %v3560
      %v3864 = vpop.f32.mrf.mxu0
      %v3865 = vadd.f32 0.0, %v3864
      %v3866 = vpop.f32.mrf.mxu0
      %v3867 = vadd.f32 0.0, %v3866
      %3868 = vmatmul.bf16.gmra.mxu0 %v3563
      %v3869 = vpop.f32.mrf.mxu0
      %v3870 = vadd.f32 0.0, %v3869
      %v3871 = vpop.f32.mrf.mxu0
      %v3872 = vadd.f32 0.0, %v3871
      %3873 = vmatmul.bf16.gmra.mxu0 %v3566
      %v3874 = vpop.f32.mrf.mxu0
      %v3875 = vadd.f32 0.0, %v3874
      %v3876 = vpop.f32.mrf.mxu0
      %v3877 = vadd.f32 0.0, %v3876
      %3878 = vmatmul.bf16.gmra.mxu0 %v3569
      %v3879 = vpop.f32.mrf.mxu0
      %v3880 = vadd.f32 0.0, %v3879
      %v3881 = vpop.f32.mrf.mxu0
      %v3882 = vadd.f32 0.0, %v3881
      %3883 = vmatmul.bf16.gmra.mxu0 %v3572
      %v3884 = vpop.f32.mrf.mxu0
      %v3885 = vadd.f32 0.0, %v3884
      %v3886 = vpop.f32.mrf.mxu0
      %v3887 = vadd.f32 0.0, %v3886
      %3888 = vmatmul.bf16.gmra.mxu0 %v3575
      %v3889 = vpop.f32.mrf.mxu0
      %v3890 = vadd.f32 0.0, %v3889
      %v3891 = vpop.f32.mrf.mxu0
      %v3892 = vadd.f32 0.0, %v3891
      %3893 = vmatmul.bf16.gmra.mxu0 %v3578
      %v3894 = vpop.f32.mrf.mxu0
      %v3895 = vadd.f32 0.0, %v3894
      %v3896 = vpop.f32.mrf.mxu0
      %v3897 = vadd.f32 0.0, %v3896
      %3898 = vmatmul.bf16.gmra.mxu0 %v3581
      %v3899 = vpop.f32.mrf.mxu0
      %v3900 = vadd.f32 0.0, %v3899
      %v3901 = vpop.f32.mrf.mxu0
      %v3902 = vadd.f32 0.0, %v3901
      %3903 = vmatmul.bf16.gmra.mxu0 %v3584
      %v3904 = vpop.f32.mrf.mxu0
      %v3905 = vadd.f32 0.0, %v3904
      %v3906 = vpop.f32.mrf.mxu0
      %v3907 = vadd.f32 0.0, %v3906
      %3908 = vmatmul.bf16.gmra.mxu0 %v3587
      %v3909 = vpop.f32.mrf.mxu0
      %v3910 = vadd.f32 0.0, %v3909
      %v3911 = vpop.f32.mrf.mxu0
      %v3912 = vadd.f32 0.0, %v3911
      %3913 = vmatmul.bf16.gmra.mxu0 %v3590
      %v3914 = vpop.f32.mrf.mxu0
      %v3915 = vadd.f32 0.0, %v3914
      %v3916 = vpop.f32.mrf.mxu0
      %v3917 = vadd.f32 0.0, %v3916
      %3918 = vmatmul.bf16.gmra.mxu0 %v3593
      %v3919 = vpop.f32.mrf.mxu0
      %v3920 = vadd.f32 0.0, %v3919
      %v3921 = vpop.f32.mrf.mxu0
      %v3922 = vadd.f32 0.0, %v3921
      %3923 = vmatmul.bf16.gmra.mxu0 %v3596
      %v3924 = vpop.f32.mrf.mxu0
      %v3925 = vadd.f32 0.0, %v3924
      %v3926 = vpop.f32.mrf.mxu0
      %v3927 = vadd.f32 0.0, %v3926
      %3928 = vmatmul.bf16.gmra.mxu0 %v3599
      %v3929 = vpop.f32.mrf.mxu0
      %v3930 = vadd.f32 0.0, %v3929
      %v3931 = vpop.f32.mrf.mxu0
      %v3932 = vadd.f32 0.0, %v3931
      %3933 = vdwg.mxu0
      %v3934 = vunpack.c.l.b16 %v926
      %v3935 = vunpack.c.l.b16 %v927
      %v3936 = vunpack.c.l.b16 %v928
      %v3937 = vunpack.c.l.b16 %v929
      %v3938 = vunpack.c.l.b16 %v931
      %v3939 = vunpack.c.l.b16 %v932
      %v3940 = vunpack.c.l.b16 %v933
      %v3941 = vunpack.c.l.b16 %v934
      %v3942 = vunpack.c.l.b16 %v936
      %v3943 = vunpack.c.l.b16 %v937
      %v3944 = vunpack.c.l.b16 %v938
      %v3945 = vunpack.c.l.b16 %v939
      %v3946 = vunpack.c.l.b16 %v941
      %v3947 = vunpack.c.l.b16 %v942
      %v3948 = vunpack.c.l.b16 %v943
      %v3949 = vunpack.c.l.b16 %v944
      %v3950 = vunpack.c.l.b16 %v946
      %v3951 = vunpack.c.l.b16 %v947
      %v3952 = vunpack.c.l.b16 %v948
      %v3953 = vunpack.c.l.b16 %v949
      %v3954 = vunpack.c.l.b16 %v951
      %v3955 = vunpack.c.l.b16 %v952
      %v3956 = vunpack.c.l.b16 %v953
      %v3957 = vunpack.c.l.b16 %v954
      %v3958 = vunpack.c.l.b16 %v956
      %v3959 = vunpack.c.l.b16 %v957
      %v3960 = vunpack.c.l.b16 %v958
      %v3961 = vunpack.c.l.b16 %v959
      %v3962 = vunpack.c.l.b16 %v961
      %v3963 = vunpack.c.l.b16 %v962
      %v3964 = vunpack.c.l.b16 %v963
      %v3965 = vunpack.c.l.b16 %v964
      %v3966 = vunpack.c.l.b16 %v966
      %v3967 = vunpack.c.l.b16 %v967
      %v3968 = vunpack.c.l.b16 %v968
      %v3969 = vunpack.c.l.b16 %v969
      %v3970 = vunpack.c.l.b16 %v971
      %v3971 = vunpack.c.l.b16 %v972
      %v3972 = vunpack.c.l.b16 %v973
      %v3973 = vunpack.c.l.b16 %v974
      %v3974 = vunpack.c.l.b16 %v976
      %v3975 = vunpack.c.l.b16 %v977
      %v3976 = vunpack.c.l.b16 %v978
      %v3977 = vunpack.c.l.b16 %v979
      %v3978 = vunpack.c.l.b16 %v981
      %v3979 = vunpack.c.l.b16 %v982
      %v3980 = vunpack.c.l.b16 %v983
      %v3981 = vunpack.c.l.b16 %v984
      %v3982 = vunpack.c.l.b16 %v986
      %v3983 = vunpack.c.l.b16 %v987
      %v3984 = vunpack.c.l.b16 %v988
      %v3985 = vunpack.c.l.b16 %v989
      %v3986 = vunpack.c.l.b16 %v991
      %v3987 = vunpack.c.l.b16 %v992
      %v3988 = vunpack.c.l.b16 %v993
      %v3989 = vunpack.c.l.b16 %v994
      %v3990 = vunpack.c.l.b16 %v996
      %v3991 = vunpack.c.l.b16 %v997
      %v3992 = vunpack.c.l.b16 %v998
      %v3993 = vunpack.c.l.b16 %v999
      %v3994 = vunpack.c.l.b16 %v1001
      %v3995 = vunpack.c.l.b16 %v1002
      %v3996 = vunpack.c.l.b16 %v1003
      %v3997 = vunpack.c.l.b16 %v1004
      %v3998 = vunpack.c.l.b16 %v1006
      %v3999 = vunpack.c.l.b16 %v1007
      %v4000 = vunpack.c.l.b16 %v1008
      %v4001 = vunpack.c.l.b16 %v1009
      %v4002 = vunpack.c.l.b16 %v1011
      %v4003 = vunpack.c.l.b16 %v1012
      %v4004 = vunpack.c.l.b16 %v1013
      %v4005 = vunpack.c.l.b16 %v1014
      %v4006 = vunpack.c.l.b16 %v1016
      %v4007 = vunpack.c.l.b16 %v1017
      %v4008 = vunpack.c.l.b16 %v1018
      %v4009 = vunpack.c.l.b16 %v1019
      %v4010 = vunpack.c.l.b16 %v1021
      %v4011 = vunpack.c.l.b16 %v1022
      %v4012 = vunpack.c.l.b16 %v1023
      %v4013 = vunpack.c.l.b16 %v1024
      %v4014 = vunpack.c.l.b16 %v1026
      %v4015 = vunpack.c.l.b16 %v1027
      %v4016 = vunpack.c.l.b16 %v1028
      %v4017 = vunpack.c.l.b16 %v1029
      %v4018 = vunpack.c.l.b16 %v1031
      %v4019 = vunpack.c.l.b16 %v1032
      %v4020 = vunpack.c.l.b16 %v1033
      %v4021 = vunpack.c.l.b16 %v1034
      %v4022 = vunpack.c.l.b16 %v1036
      %v4023 = vunpack.c.l.b16 %v1037
      %v4024 = vunpack.c.l.b16 %v1038
      %v4025 = vunpack.c.l.b16 %v1039
      %v4026 = vunpack.c.l.b16 %v1041
      %v4027 = vunpack.c.l.b16 %v1042
      %v4028 = vunpack.c.l.b16 %v1043
      %v4029 = vunpack.c.l.b16 %v1044
      %v4030 = vunpack.c.l.b16 %v1046
      %v4031 = vunpack.c.l.b16 %v1047
      %v4032 = vunpack.c.l.b16 %v1048
      %v4033 = vunpack.c.l.b16 %v1049
      %v4034 = vunpack.c.l.b16 %v1051
      %v4035 = vunpack.c.l.b16 %v1052
      %v4036 = vunpack.c.l.b16 %v1053
      %v4037 = vunpack.c.l.b16 %v1054
      %v4038 = vunpack.c.l.b16 %v1056
      %v4039 = vunpack.c.l.b16 %v1057
      %v4040 = vunpack.c.l.b16 %v1058
      %v4041 = vunpack.c.l.b16 %v1059
      %v4042 = vunpack.c.l.b16 %v1061
      %v4043 = vunpack.c.l.b16 %v1062
      %v4044 = vunpack.c.l.b16 %v1063
      %v4045 = vunpack.c.l.b16 %v1064
      %v4046 = vunpack.c.l.b16 %v1066
      %v4047 = vunpack.c.l.b16 %v1067
      %v4048 = vunpack.c.l.b16 %v1068
      %v4049 = vunpack.c.l.b16 %v1069
      %v4050 = vunpack.c.l.b16 %v1071
      %v4051 = vunpack.c.l.b16 %v1072
      %v4052 = vunpack.c.l.b16 %v1073
      %v4053 = vunpack.c.l.b16 %v1074
      %v4054 = vunpack.c.l.b16 %v1076
      %v4055 = vunpack.c.l.b16 %v1077
      %v4056 = vunpack.c.l.b16 %v1078
      %v4057 = vunpack.c.l.b16 %v1079
      %v4058 = vunpack.c.l.b16 %v1081
      %v4059 = vunpack.c.l.b16 %v1082
      %v4060 = vunpack.c.l.b16 %v1083
      %v4061 = vunpack.c.l.b16 %v1084
      %v4062 = vpack.c.b16 %v3935, %v3934
      %v4063 = vpack.c.b16 %v3937, %v3936
      %v4064 = vpack.c.b16 %v3939, %v3938
      %v4065 = vpack.c.b16 %v3941, %v3940
      %v4066 = vpack.c.b16 %v3943, %v3942
      %v4067 = vpack.c.b16 %v3945, %v3944
      %v4068 = vpack.c.b16 %v3947, %v3946
      %v4069 = vpack.c.b16 %v3949, %v3948
      %v4070 = vpack.c.b16 %v3951, %v3950
      %v4071 = vpack.c.b16 %v3953, %v3952
      %v4072 = vpack.c.b16 %v3955, %v3954
      %v4073 = vpack.c.b16 %v3957, %v3956
      %v4074 = vpack.c.b16 %v3959, %v3958
      %v4075 = vpack.c.b16 %v3961, %v3960
      %v4076 = vpack.c.b16 %v3963, %v3962
      %v4077 = vpack.c.b16 %v3965, %v3964
      %v4078 = vpack.c.b16 %v3967, %v3966
      %v4079 = vpack.c.b16 %v3969, %v3968
      %v4080 = vpack.c.b16 %v3971, %v3970
      %v4081 = vpack.c.b16 %v3973, %v3972
      %v4082 = vpack.c.b16 %v3975, %v3974
      %v4083 = vpack.c.b16 %v3977, %v3976
      %v4084 = vpack.c.b16 %v3979, %v3978
      %v4085 = vpack.c.b16 %v3981, %v3980
      %v4086 = vpack.c.b16 %v3983, %v3982
      %v4087 = vpack.c.b16 %v3985, %v3984
      %v4088 = vpack.c.b16 %v3987, %v3986
      %v4089 = vpack.c.b16 %v3989, %v3988
      %v4090 = vpack.c.b16 %v3991, %v3990
      %v4091 = vpack.c.b16 %v3993, %v3992
      %v4092 = vpack.c.b16 %v3995, %v3994
      %v4093 = vpack.c.b16 %v3997, %v3996
      %v4094 = vpack.c.b16 %v3999, %v3998
      %v4095 = vpack.c.b16 %v4001, %v4000
      %v4096 = vpack.c.b16 %v4003, %v4002
      %v4097 = vpack.c.b16 %v4005, %v4004
      %v4098 = vpack.c.b16 %v4007, %v4006
      %v4099 = vpack.c.b16 %v4009, %v4008
      %v4100 = vpack.c.b16 %v4011, %v4010
      %v4101 = vpack.c.b16 %v4013, %v4012
      %v4102 = vpack.c.b16 %v4015, %v4014
      %v4103 = vpack.c.b16 %v4017, %v4016
      %v4104 = vpack.c.b16 %v4019, %v4018
      %v4105 = vpack.c.b16 %v4021, %v4020
      %v4106 = vpack.c.b16 %v4023, %v4022
      %v4107 = vpack.c.b16 %v4025, %v4024
      %v4108 = vpack.c.b16 %v4027, %v4026
      %v4109 = vpack.c.b16 %v4029, %v4028
      %v4110 = vpack.c.b16 %v4031, %v4030
      %v4111 = vpack.c.b16 %v4033, %v4032
      %v4112 = vpack.c.b16 %v4035, %v4034
      %v4113 = vpack.c.b16 %v4037, %v4036
      %v4114 = vpack.c.b16 %v4039, %v4038
      %v4115 = vpack.c.b16 %v4041, %v4040
      %v4116 = vpack.c.b16 %v4043, %v4042
      %v4117 = vpack.c.b16 %v4045, %v4044
      %v4118 = vpack.c.b16 %v4047, %v4046
      %v4119 = vpack.c.b16 %v4049, %v4048
      %v4120 = vpack.c.b16 %v4051, %v4050
      %v4121 = vpack.c.b16 %v4053, %v4052
      %v4122 = vpack.c.b16 %v4055, %v4054
      %v4123 = vpack.c.b16 %v4057, %v4056
      %v4124 = vpack.c.b16 %v4059, %v4058
      %v4125 = vpack.c.b16 %v4061, %v4060
      %v4127 = vsel %vm3408, %v4062, 0
      %v4130 = vsel %vm3408, %v4063, 0
      %v4133 = vsel %vm3408, %v4064, 0
      %v4136 = vsel %vm3408, %v4065, 0
      %v4139 = vsel %vm3408, %v4066, 0
      %v4142 = vsel %vm3408, %v4067, 0
      %v4145 = vsel %vm3408, %v4068, 0
      %v4148 = vsel %vm3408, %v4069, 0
      %v4151 = vsel %vm3408, %v4070, 0
      %v4154 = vsel %vm3408, %v4071, 0
      %v4157 = vsel %vm3408, %v4072, 0
      %v4160 = vsel %vm3408, %v4073, 0
      %v4163 = vsel %vm3408, %v4074, 0
      %v4166 = vsel %vm3408, %v4075, 0
      %v4169 = vsel %vm3408, %v4076, 0
      %v4172 = vsel %vm3408, %v4077, 0
      %v4175 = vsel %vm3408, %v4078, 0
      %v4178 = vsel %vm3408, %v4079, 0
      %v4181 = vsel %vm3408, %v4080, 0
      %v4184 = vsel %vm3408, %v4081, 0
      %v4187 = vsel %vm3408, %v4082, 0
      %v4190 = vsel %vm3408, %v4083, 0
      %v4193 = vsel %vm3408, %v4084, 0
      %v4196 = vsel %vm3408, %v4085, 0
      %v4199 = vsel %vm3408, %v4086, 0
      %v4202 = vsel %vm3408, %v4087, 0
      %v4205 = vsel %vm3408, %v4088, 0
      %v4208 = vsel %vm3408, %v4089, 0
      %v4211 = vsel %vm3408, %v4090, 0
      %v4214 = vsel %vm3408, %v4091, 0
      %v4217 = vsel %vm3408, %v4092, 0
      %v4220 = vsel %vm3408, %v4093, 0
      %v4223 = vsel %vm3408, %v4094, 0
      %v4226 = vsel %vm3408, %v4095, 0
      %v4229 = vsel %vm3408, %v4096, 0
      %v4232 = vsel %vm3408, %v4097, 0
      %v4235 = vsel %vm3408, %v4098, 0
      %v4238 = vsel %vm3408, %v4099, 0
      %v4241 = vsel %vm3408, %v4100, 0
      %v4244 = vsel %vm3408, %v4101, 0
      %v4247 = vsel %vm3408, %v4102, 0
      %v4250 = vsel %vm3408, %v4103, 0
      %v4253 = vsel %vm3408, %v4104, 0
      %v4256 = vsel %vm3408, %v4105, 0
      %v4259 = vsel %vm3408, %v4106, 0
      %v4262 = vsel %vm3408, %v4107, 0
      %v4265 = vsel %vm3408, %v4108, 0
      %v4268 = vsel %vm3408, %v4109, 0
      %v4271 = vsel %vm3408, %v4110, 0
      %v4274 = vsel %vm3408, %v4111, 0
      %v4277 = vsel %vm3408, %v4112, 0
      %v4280 = vsel %vm3408, %v4113, 0
      %v4283 = vsel %vm3408, %v4114, 0
      %v4286 = vsel %vm3408, %v4115, 0
      %v4289 = vsel %vm3408, %v4116, 0
      %v4292 = vsel %vm3408, %v4117, 0
      %v4295 = vsel %vm3408, %v4118, 0
      %v4298 = vsel %vm3408, %v4119, 0
      %v4301 = vsel %vm3408, %v4120, 0
      %v4304 = vsel %vm3408, %v4121, 0
      %v4307 = vsel %vm3408, %v4122, 0
      %v4310 = vsel %vm3408, %v4123, 0
      %v4313 = vsel %vm3408, %v4124, 0
      %v4316 = vsel %vm3408, %v4125, 0
      %v4319 = vsel %vm3601, %v3210, 0
      %4321 = vmatpush.bf16.msra.mxu0 0
      %4322 = vmatpush.bf16.msra.mxu0 0
      %4323 = vmatpush.bf16.msra.mxu0 0
      %4324 = vmatpush.bf16.msra.mxu0 0
      %4325 = vmatpush.bf16.msra.mxu0 0
      %4326 = vmatpush.bf16.msra.mxu0 0
      %4327 = vmatpush.bf16.msra.mxu0 0
      %4328 = vmatpush.bf16.msra.mxu0 %v4319
      %4329 = vmatmul.bf16.gmra.mxu0 %v4127
      %v4330 = vpop.f32.mrf.mxu0
      %v4331 = vadd.f32 %v3615, %v4330
      %v4332 = vpop.f32.mrf.mxu0
      %v4333 = vadd.f32 %v3617, %v4332
      %4334 = vmatmul.bf16.gmra.mxu0 %v4130
      %v4335 = vpop.f32.mrf.mxu0
      %v4336 = vadd.f32 %v3620, %v4335
      %v4337 = vpop.f32.mrf.mxu0
      %v4338 = vadd.f32 %v3622, %v4337
      %4339 = vmatmul.bf16.gmra.mxu0 %v4133
      %v4340 = vpop.f32.mrf.mxu0
      %v4341 = vadd.f32 %v3625, %v4340
      %v4342 = vpop.f32.mrf.mxu0
      %v4343 = vadd.f32 %v3627, %v4342
      %4344 = vmatmul.bf16.gmra.mxu0 %v4136
      %v4345 = vpop.f32.mrf.mxu0
      %v4346 = vadd.f32 %v3630, %v4345
      %v4347 = vpop.f32.mrf.mxu0
      %v4348 = vadd.f32 %v3632, %v4347
      %4349 = vmatmul.bf16.gmra.mxu0 %v4139
      %v4350 = vpop.f32.mrf.mxu0
      %v4351 = vadd.f32 %v3635, %v4350
      %v4352 = vpop.f32.mrf.mxu0
      %v4353 = vadd.f32 %v3637, %v4352
      %4354 = vmatmul.bf16.gmra.mxu0 %v4142
      %v4355 = vpop.f32.mrf.mxu0
      %v4356 = vadd.f32 %v3640, %v4355
      %v4357 = vpop.f32.mrf.mxu0
      %v4358 = vadd.f32 %v3642, %v4357
      %4359 = vmatmul.bf16.gmra.mxu0 %v4145
      %v4360 = vpop.f32.mrf.mxu0
      %v4361 = vadd.f32 %v3645, %v4360
      %v4362 = vpop.f32.mrf.mxu0
      %v4363 = vadd.f32 %v3647, %v4362
      %4364 = vmatmul.bf16.gmra.mxu0 %v4148
      %v4365 = vpop.f32.mrf.mxu0
      %v4366 = vadd.f32 %v3650, %v4365
      %v4367 = vpop.f32.mrf.mxu0
      %v4368 = vadd.f32 %v3652, %v4367
      %4369 = vmatmul.bf16.gmra.mxu0 %v4151
      %v4370 = vpop.f32.mrf.mxu0
      %v4371 = vadd.f32 %v3655, %v4370
      %v4372 = vpop.f32.mrf.mxu0
      %v4373 = vadd.f32 %v3657, %v4372
      %4374 = vmatmul.bf16.gmra.mxu0 %v4154
      %v4375 = vpop.f32.mrf.mxu0
      %v4376 = vadd.f32 %v3660, %v4375
      %v4377 = vpop.f32.mrf.mxu0
      %v4378 = vadd.f32 %v3662, %v4377
      %4379 = vmatmul.bf16.gmra.mxu0 %v4157
      %v4380 = vpop.f32.mrf.mxu0
      %v4381 = vadd.f32 %v3665, %v4380
      %v4382 = vpop.f32.mrf.mxu0
      %v4383 = vadd.f32 %v3667, %v4382
      %4384 = vmatmul.bf16.gmra.mxu0 %v4160
      %v4385 = vpop.f32.mrf.mxu0
      %v4386 = vadd.f32 %v3670, %v4385
      %v4387 = vpop.f32.mrf.mxu0
      %v4388 = vadd.f32 %v3672, %v4387
      %4389 = vmatmul.bf16.gmra.mxu0 %v4163
      %v4390 = vpop.f32.mrf.mxu0
      %v4391 = vadd.f32 %v3675, %v4390
      %v4392 = vpop.f32.mrf.mxu0
      %v4393 = vadd.f32 %v3677, %v4392
      %4394 = vmatmul.bf16.gmra.mxu0 %v4166
      %v4395 = vpop.f32.mrf.mxu0
      %v4396 = vadd.f32 %v3680, %v4395
      %v4397 = vpop.f32.mrf.mxu0
      %v4398 = vadd.f32 %v3682, %v4397
      %4399 = vmatmul.bf16.gmra.mxu0 %v4169
      %v4400 = vpop.f32.mrf.mxu0
      %v4401 = vadd.f32 %v3685, %v4400
      %v4402 = vpop.f32.mrf.mxu0
      %v4403 = vadd.f32 %v3687, %v4402
      %4404 = vmatmul.bf16.gmra.mxu0 %v4172
      %v4405 = vpop.f32.mrf.mxu0
      %v4406 = vadd.f32 %v3690, %v4405
      %v4407 = vpop.f32.mrf.mxu0
      %v4408 = vadd.f32 %v3692, %v4407
      %4409 = vmatmul.bf16.gmra.mxu0 %v4175
      %v4410 = vpop.f32.mrf.mxu0
      %v4411 = vadd.f32 %v3695, %v4410
      %v4412 = vpop.f32.mrf.mxu0
      %v4413 = vadd.f32 %v3697, %v4412
      %4414 = vmatmul.bf16.gmra.mxu0 %v4178
      %v4415 = vpop.f32.mrf.mxu0
      %v4416 = vadd.f32 %v3700, %v4415
      %v4417 = vpop.f32.mrf.mxu0
      %v4418 = vadd.f32 %v3702, %v4417
      %4419 = vmatmul.bf16.gmra.mxu0 %v4181
      %v4420 = vpop.f32.mrf.mxu0
      %v4421 = vadd.f32 %v3705, %v4420
      %v4422 = vpop.f32.mrf.mxu0
      %v4423 = vadd.f32 %v3707, %v4422
      %4424 = vmatmul.bf16.gmra.mxu0 %v4184
      %v4425 = vpop.f32.mrf.mxu0
      %v4426 = vadd.f32 %v3710, %v4425
      %v4427 = vpop.f32.mrf.mxu0
      %v4428 = vadd.f32 %v3712, %v4427
      %4429 = vmatmul.bf16.gmra.mxu0 %v4187
      %v4430 = vpop.f32.mrf.mxu0
      %v4431 = vadd.f32 %v3715, %v4430
      %v4432 = vpop.f32.mrf.mxu0
      %v4433 = vadd.f32 %v3717, %v4432
      %4434 = vmatmul.bf16.gmra.mxu0 %v4190
      %v4435 = vpop.f32.mrf.mxu0
      %v4436 = vadd.f32 %v3720, %v4435
      %v4437 = vpop.f32.mrf.mxu0
      %v4438 = vadd.f32 %v3722, %v4437
      %4439 = vmatmul.bf16.gmra.mxu0 %v4193
      %v4440 = vpop.f32.mrf.mxu0
      %v4441 = vadd.f32 %v3725, %v4440
      %v4442 = vpop.f32.mrf.mxu0
      %v4443 = vadd.f32 %v3727, %v4442
      %4444 = vmatmul.bf16.gmra.mxu0 %v4196
      %v4445 = vpop.f32.mrf.mxu0
      %v4446 = vadd.f32 %v3730, %v4445
      %v4447 = vpop.f32.mrf.mxu0
      %v4448 = vadd.f32 %v3732, %v4447
      %4449 = vmatmul.bf16.gmra.mxu0 %v4199
      %v4450 = vpop.f32.mrf.mxu0
      %v4451 = vadd.f32 %v3735, %v4450
      %v4452 = vpop.f32.mrf.mxu0
      %v4453 = vadd.f32 %v3737, %v4452
      %4454 = vmatmul.bf16.gmra.mxu0 %v4202
      %v4455 = vpop.f32.mrf.mxu0
      %v4456 = vadd.f32 %v3740, %v4455
      %v4457 = vpop.f32.mrf.mxu0
      %v4458 = vadd.f32 %v3742, %v4457
      %4459 = vmatmul.bf16.gmra.mxu0 %v4205
      %v4460 = vpop.f32.mrf.mxu0
      %v4461 = vadd.f32 %v3745, %v4460
      %v4462 = vpop.f32.mrf.mxu0
      %v4463 = vadd.f32 %v3747, %v4462
      %4464 = vmatmul.bf16.gmra.mxu0 %v4208
      %v4465 = vpop.f32.mrf.mxu0
      %v4466 = vadd.f32 %v3750, %v4465
      %v4467 = vpop.f32.mrf.mxu0
      %v4468 = vadd.f32 %v3752, %v4467
      %4469 = vmatmul.bf16.gmra.mxu0 %v4211
      %v4470 = vpop.f32.mrf.mxu0
      %v4471 = vadd.f32 %v3755, %v4470
      %v4472 = vpop.f32.mrf.mxu0
      %v4473 = vadd.f32 %v3757, %v4472
      %4474 = vmatmul.bf16.gmra.mxu0 %v4214
      %v4475 = vpop.f32.mrf.mxu0
      %v4476 = vadd.f32 %v3760, %v4475
      %v4477 = vpop.f32.mrf.mxu0
      %v4478 = vadd.f32 %v3762, %v4477
      %4479 = vmatmul.bf16.gmra.mxu0 %v4217
      %v4480 = vpop.f32.mrf.mxu0
      %v4481 = vadd.f32 %v3765, %v4480
      %v4482 = vpop.f32.mrf.mxu0
      %v4483 = vadd.f32 %v3767, %v4482
      %4484 = vmatmul.bf16.gmra.mxu0 %v4220
      %v4485 = vpop.f32.mrf.mxu0
      %v4486 = vadd.f32 %v3770, %v4485
      %v4487 = vpop.f32.mrf.mxu0
      %v4488 = vadd.f32 %v3772, %v4487
      %4489 = vmatmul.bf16.gmra.mxu0 %v4223
      %v4490 = vpop.f32.mrf.mxu0
      %v4491 = vadd.f32 %v3775, %v4490
      %v4492 = vpop.f32.mrf.mxu0
      %v4493 = vadd.f32 %v3777, %v4492
      %4494 = vmatmul.bf16.gmra.mxu0 %v4226
      %v4495 = vpop.f32.mrf.mxu0
      %v4496 = vadd.f32 %v3780, %v4495
      %v4497 = vpop.f32.mrf.mxu0
      %v4498 = vadd.f32 %v3782, %v4497
      %4499 = vmatmul.bf16.gmra.mxu0 %v4229
      %v4500 = vpop.f32.mrf.mxu0
      %v4501 = vadd.f32 %v3785, %v4500
      %v4502 = vpop.f32.mrf.mxu0
      %v4503 = vadd.f32 %v3787, %v4502
      %4504 = vmatmul.bf16.gmra.mxu0 %v4232
      %v4505 = vpop.f32.mrf.mxu0
      %v4506 = vadd.f32 %v3790, %v4505
      %v4507 = vpop.f32.mrf.mxu0
      %v4508 = vadd.f32 %v3792, %v4507
      %4509 = vmatmul.bf16.gmra.mxu0 %v4235
      %v4510 = vpop.f32.mrf.mxu0
      %v4511 = vadd.f32 %v3795, %v4510
      %v4512 = vpop.f32.mrf.mxu0
      %v4513 = vadd.f32 %v3797, %v4512
      %4514 = vmatmul.bf16.gmra.mxu0 %v4238
      %v4515 = vpop.f32.mrf.mxu0
      %v4516 = vadd.f32 %v3800, %v4515
      %v4517 = vpop.f32.mrf.mxu0
      %v4518 = vadd.f32 %v3802, %v4517
      %4519 = vmatmul.bf16.gmra.mxu0 %v4241
      %v4520 = vpop.f32.mrf.mxu0
      %v4521 = vadd.f32 %v3805, %v4520
      %v4522 = vpop.f32.mrf.mxu0
      %v4523 = vadd.f32 %v3807, %v4522
      %4524 = vmatmul.bf16.gmra.mxu0 %v4244
      %v4525 = vpop.f32.mrf.mxu0
      %v4526 = vadd.f32 %v3810, %v4525
      %v4527 = vpop.f32.mrf.mxu0
      %v4528 = vadd.f32 %v3812, %v4527
      %4529 = vmatmul.bf16.gmra.mxu0 %v4247
      %v4530 = vpop.f32.mrf.mxu0
      %v4531 = vadd.f32 %v3815, %v4530
      %v4532 = vpop.f32.mrf.mxu0
      %v4533 = vadd.f32 %v3817, %v4532
      %4534 = vmatmul.bf16.gmra.mxu0 %v4250
      %v4535 = vpop.f32.mrf.mxu0
      %v4536 = vadd.f32 %v3820, %v4535
      %v4537 = vpop.f32.mrf.mxu0
      %v4538 = vadd.f32 %v3822, %v4537
      %4539 = vmatmul.bf16.gmra.mxu0 %v4253
      %v4540 = vpop.f32.mrf.mxu0
      %v4541 = vadd.f32 %v3825, %v4540
      %v4542 = vpop.f32.mrf.mxu0
      %v4543 = vadd.f32 %v3827, %v4542
      %4544 = vmatmul.bf16.gmra.mxu0 %v4256
      %v4545 = vpop.f32.mrf.mxu0
      %v4546 = vadd.f32 %v3830, %v4545
      %v4547 = vpop.f32.mrf.mxu0
      %v4548 = vadd.f32 %v3832, %v4547
      %4549 = vmatmul.bf16.gmra.mxu0 %v4259
      %v4550 = vpop.f32.mrf.mxu0
      %v4551 = vadd.f32 %v3835, %v4550
      %v4552 = vpop.f32.mrf.mxu0
      %v4553 = vadd.f32 %v3837, %v4552
      %4554 = vmatmul.bf16.gmra.mxu0 %v4262
      %v4555 = vpop.f32.mrf.mxu0
      %v4556 = vadd.f32 %v3840, %v4555
      %v4557 = vpop.f32.mrf.mxu0
      %v4558 = vadd.f32 %v3842, %v4557
      %4559 = vmatmul.bf16.gmra.mxu0 %v4265
      %v4560 = vpop.f32.mrf.mxu0
      %v4561 = vadd.f32 %v3845, %v4560
      %v4562 = vpop.f32.mrf.mxu0
      %v4563 = vadd.f32 %v3847, %v4562
      %4564 = vmatmul.bf16.gmra.mxu0 %v4268
      %v4565 = vpop.f32.mrf.mxu0
      %v4566 = vadd.f32 %v3850, %v4565
      %v4567 = vpop.f32.mrf.mxu0
      %v4568 = vadd.f32 %v3852, %v4567
      %4569 = vmatmul.bf16.gmra.mxu0 %v4271
      %v4570 = vpop.f32.mrf.mxu0
      %v4571 = vadd.f32 %v3855, %v4570
      %v4572 = vpop.f32.mrf.mxu0
      %v4573 = vadd.f32 %v3857, %v4572
      %4574 = vmatmul.bf16.gmra.mxu0 %v4274
      %v4575 = vpop.f32.mrf.mxu0
      %v4576 = vadd.f32 %v3860, %v4575
      %v4577 = vpop.f32.mrf.mxu0
      %v4578 = vadd.f32 %v3862, %v4577
      %4579 = vmatmul.bf16.gmra.mxu0 %v4277
      %v4580 = vpop.f32.mrf.mxu0
      %v4581 = vadd.f32 %v3865, %v4580
      %v4582 = vpop.f32.mrf.mxu0
      %v4583 = vadd.f32 %v3867, %v4582
      %4584 = vmatmul.bf16.gmra.mxu0 %v4280
      %v4585 = vpop.f32.mrf.mxu0
      %v4586 = vadd.f32 %v3870, %v4585
      %v4587 = vpop.f32.mrf.mxu0
      %v4588 = vadd.f32 %v3872, %v4587
      %4589 = vmatmul.bf16.gmra.mxu0 %v4283
      %v4590 = vpop.f32.mrf.mxu0
      %v4591 = vadd.f32 %v3875, %v4590
      %v4592 = vpop.f32.mrf.mxu0
      %v4593 = vadd.f32 %v3877, %v4592
      %4594 = vmatmul.bf16.gmra.mxu0 %v4286
      %v4595 = vpop.f32.mrf.mxu0
      %v4596 = vadd.f32 %v3880, %v4595
      %v4597 = vpop.f32.mrf.mxu0
      %v4598 = vadd.f32 %v3882, %v4597
      %4599 = vmatmul.bf16.gmra.mxu0 %v4289
      %v4600 = vpop.f32.mrf.mxu0
      %v4601 = vadd.f32 %v3885, %v4600
      %v4602 = vpop.f32.mrf.mxu0
      %v4603 = vadd.f32 %v3887, %v4602
      %4604 = vmatmul.bf16.gmra.mxu0 %v4292
      %v4605 = vpop.f32.mrf.mxu0
      %v4606 = vadd.f32 %v3890, %v4605
      %v4607 = vpop.f32.mrf.mxu0
      %v4608 = vadd.f32 %v3892, %v4607
      %4609 = vmatmul.bf16.gmra.mxu0 %v4295
      %v4610 = vpop.f32.mrf.mxu0
      %v4611 = vadd.f32 %v3895, %v4610
      %v4612 = vpop.f32.mrf.mxu0
      %v4613 = vadd.f32 %v3897, %v4612
      %4614 = vmatmul.bf16.gmra.mxu0 %v4298
      %v4615 = vpop.f32.mrf.mxu0
      %v4616 = vadd.f32 %v3900, %v4615
      %v4617 = vpop.f32.mrf.mxu0
      %v4618 = vadd.f32 %v3902, %v4617
      %4619 = vmatmul.bf16.gmra.mxu0 %v4301
      %v4620 = vpop.f32.mrf.mxu0
      %v4621 = vadd.f32 %v3905, %v4620
      %v4622 = vpop.f32.mrf.mxu0
      %v4623 = vadd.f32 %v3907, %v4622
      %4624 = vmatmul.bf16.gmra.mxu0 %v4304
      %v4625 = vpop.f32.mrf.mxu0
      %v4626 = vadd.f32 %v3910, %v4625
      %v4627 = vpop.f32.mrf.mxu0
      %v4628 = vadd.f32 %v3912, %v4627
      %4629 = vmatmul.bf16.gmra.mxu0 %v4307
      %v4630 = vpop.f32.mrf.mxu0
      %v4631 = vadd.f32 %v3915, %v4630
      %v4632 = vpop.f32.mrf.mxu0
      %v4633 = vadd.f32 %v3917, %v4632
      %4634 = vmatmul.bf16.gmra.mxu0 %v4310
      %v4635 = vpop.f32.mrf.mxu0
      %v4636 = vadd.f32 %v3920, %v4635
      %v4637 = vpop.f32.mrf.mxu0
      %v4638 = vadd.f32 %v3922, %v4637
      %4639 = vmatmul.bf16.gmra.mxu0 %v4313
      %v4640 = vpop.f32.mrf.mxu0
      %v4641 = vadd.f32 %v3925, %v4640
      %v4642 = vpop.f32.mrf.mxu0
      %v4643 = vadd.f32 %v3927, %v4642
      %4644 = vmatmul.bf16.gmra.mxu0 %v4316
      %v4645 = vpop.f32.mrf.mxu0
      %v4646 = vadd.f32 %v3930, %v4645
      %v4647 = vpop.f32.mrf.mxu0
      %v4648 = vadd.f32 %v3932, %v4647
      %4649 = vdwg.mxu0
      %v4650 = vld [vmem:[%s1 + $0x4] sm:$0x3]
      %v4651 = vunpack.c.l.b16 %v2771
      %v4652 = vunpack.c.l.b16 %v2774
      %v4653 = vunpack.c.l.b16 %v2777
      %v4654 = vunpack.c.l.b16 %v2780
      %v4655 = vunpack.c.l.b16 %v2784
      %v4656 = vunpack.c.l.b16 %v2787
      %v4657 = vunpack.c.l.b16 %v2790
      %v4658 = vunpack.c.l.b16 %v2793
      %v4659 = vunpack.c.l.b16 %v2797
      %v4660 = vunpack.c.l.b16 %v2800
      %v4661 = vunpack.c.l.b16 %v2803
      %v4662 = vunpack.c.l.b16 %v2806
      %v4663 = vunpack.c.l.b16 %v2810
      %v4664 = vunpack.c.l.b16 %v2813
      %v4665 = vunpack.c.l.b16 %v2816
      %v4666 = vunpack.c.l.b16 %v2819
      %v4667 = vunpack.c.l.b16 %v2823
      %v4668 = vunpack.c.l.b16 %v2826
      %v4669 = vunpack.c.l.b16 %v2829
      %v4670 = vunpack.c.l.b16 %v2832
      %v4671 = vunpack.c.l.b16 %v2836
      %v4672 = vunpack.c.l.b16 %v2839
      %v4673 = vunpack.c.l.b16 %v2842
      %v4674 = vunpack.c.l.b16 %v2845
      %v4675 = vunpack.c.l.b16 %v2849
      %v4676 = vunpack.c.l.b16 %v2852
      %v4677 = vunpack.c.l.b16 %v2855
      %v4678 = vunpack.c.l.b16 %v2858
      %v4679 = vunpack.c.l.b16 %v2862
      %v4680 = vunpack.c.l.b16 %v2865
      %v4681 = vunpack.c.l.b16 %v2868
      %v4682 = vunpack.c.l.b16 %v2871
      %v4683 = vunpack.c.l.b16 %v2875
      %v4684 = vunpack.c.l.b16 %v2878
      %v4685 = vunpack.c.l.b16 %v2881
      %v4686 = vunpack.c.l.b16 %v2884
      %v4687 = vunpack.c.l.b16 %v2888
      %v4688 = vunpack.c.l.b16 %v2891
      %v4689 = vunpack.c.l.b16 %v2894
      %v4690 = vunpack.c.l.b16 %v2897
      %v4691 = vunpack.c.l.b16 %v2901
      %v4692 = vunpack.c.l.b16 %v2904
      %v4693 = vunpack.c.l.b16 %v2907
      %v4694 = vunpack.c.l.b16 %v2910
      %v4695 = vunpack.c.l.b16 %v2914
      %v4696 = vunpack.c.l.b16 %v2917
      %v4697 = vunpack.c.l.b16 %v2920
      %v4698 = vunpack.c.l.b16 %v2923
      %v4699 = vunpack.c.l.b16 %v2927
      %v4700 = vunpack.c.l.b16 %v2930
      %v4701 = vunpack.c.l.b16 %v2933
      %v4702 = vunpack.c.l.b16 %v2936
      %v4703 = vunpack.c.l.b16 %v2940
      %v4704 = vunpack.c.l.b16 %v2943
      %v4705 = vunpack.c.l.b16 %v2946
      %v4706 = vunpack.c.l.b16 %v2949
      %v4707 = vunpack.c.l.b16 %v2953
      %v4708 = vunpack.c.l.b16 %v2956
      %v4709 = vunpack.c.l.b16 %v2959
      %v4710 = vunpack.c.l.b16 %v2962
      %v4711 = vunpack.c.l.b16 %v2966
      %v4712 = vunpack.c.l.b16 %v2969
      %v4713 = vunpack.c.l.b16 %v2972
      %v4714 = vunpack.c.l.b16 %v2975
      %v4715 = vunpack.c.l.b16 %v2979
      %v4716 = vunpack.c.l.b16 %v2982
      %v4717 = vunpack.c.l.b16 %v2985
      %v4718 = vunpack.c.l.b16 %v2988
      %v4719 = vunpack.c.l.b16 %v2992
      %v4720 = vunpack.c.l.b16 %v2995
      %v4721 = vunpack.c.l.b16 %v2998
      %v4722 = vunpack.c.l.b16 %v3001
      %v4723 = vunpack.c.l.b16 %v3005
      %v4724 = vunpack.c.l.b16 %v3008
      %v4725 = vunpack.c.l.b16 %v3011
      %v4726 = vunpack.c.l.b16 %v3014
      %v4727 = vunpack.c.l.b16 %v3018
      %v4728 = vunpack.c.l.b16 %v3021
      %v4729 = vunpack.c.l.b16 %v3024
      %v4730 = vunpack.c.l.b16 %v3027
      %v4731 = vunpack.c.l.b16 %v3031
      %v4732 = vunpack.c.l.b16 %v3034
      %v4733 = vunpack.c.l.b16 %v3037
      %v4734 = vunpack.c.l.b16 %v3040
      %v4735 = vunpack.c.l.b16 %v3044
      %v4736 = vunpack.c.l.b16 %v3047
      %v4737 = vunpack.c.l.b16 %v3050
      %v4738 = vunpack.c.l.b16 %v3053
      %v4739 = vunpack.c.l.b16 %v3057
      %v4740 = vunpack.c.l.b16 %v3060
      %v4741 = vunpack.c.l.b16 %v3063
      %v4742 = vunpack.c.l.b16 %v3066
      %v4743 = vunpack.c.l.b16 %v3070
      %v4744 = vunpack.c.l.b16 %v3073
      %v4745 = vunpack.c.l.b16 %v3076
      %v4746 = vunpack.c.l.b16 %v3079
      %v4747 = vunpack.c.l.b16 %v3083
      %v4748 = vunpack.c.l.b16 %v3086
      %v4749 = vunpack.c.l.b16 %v3089
      %v4750 = vunpack.c.l.b16 %v3092
      %v4751 = vunpack.c.l.b16 %v3096
      %v4752 = vunpack.c.l.b16 %v3099
      %v4753 = vunpack.c.l.b16 %v3102
      %v4754 = vunpack.c.l.b16 %v3105
      %v4755 = vunpack.c.l.b16 %v3109
      %v4756 = vunpack.c.l.b16 %v3112
      %v4757 = vunpack.c.l.b16 %v3115
      %v4758 = vunpack.c.l.b16 %v3118
      %v4759 = vunpack.c.l.b16 %v3122
      %v4760 = vunpack.c.l.b16 %v3125
      %v4761 = vunpack.c.l.b16 %v3128
      %v4762 = vunpack.c.l.b16 %v3131
      %v4763 = vunpack.c.l.b16 %v3135
      %v4764 = vunpack.c.l.b16 %v3138
      %v4765 = vunpack.c.l.b16 %v3141
      %v4766 = vunpack.c.l.b16 %v3144
      %v4767 = vunpack.c.l.b16 %v3148
      %v4768 = vunpack.c.l.b16 %v3151
      %v4769 = vunpack.c.l.b16 %v3154
      %v4770 = vunpack.c.l.b16 %v3157
      %v4771 = vunpack.c.l.b16 %v3161
      %v4772 = vunpack.c.l.b16 %v3164
      %v4773 = vunpack.c.l.b16 %v3167
      %v4774 = vunpack.c.l.b16 %v3170
      %v4775 = vunpack.c.l.b16 %v3174
      %v4776 = vunpack.c.l.b16 %v3177
      %v4777 = vunpack.c.l.b16 %v3180
      %v4778 = vunpack.c.l.b16 %v3183
      %v4779 = vpack.c.b16 %v4652, %v4651
      %v4780 = vpack.c.b16 %v4654, %v4653
      %v4781 = vpack.c.b16 %v4656, %v4655
      %v4782 = vpack.c.b16 %v4658, %v4657
      %v4783 = vpack.c.b16 %v4660, %v4659
      %v4784 = vpack.c.b16 %v4662, %v4661
      %v4785 = vpack.c.b16 %v4664, %v4663
      %v4786 = vpack.c.b16 %v4666, %v4665
      %v4787 = vpack.c.b16 %v4668, %v4667
      %v4788 = vpack.c.b16 %v4670, %v4669
      %v4789 = vpack.c.b16 %v4672, %v4671
      %v4790 = vpack.c.b16 %v4674, %v4673
      %v4791 = vpack.c.b16 %v4676, %v4675
      %v4792 = vpack.c.b16 %v4678, %v4677
      %v4793 = vpack.c.b16 %v4680, %v4679
      %v4794 = vpack.c.b16 %v4682, %v4681
      %v4795 = vpack.c.b16 %v4684, %v4683
      %v4796 = vpack.c.b16 %v4686, %v4685
      %v4797 = vpack.c.b16 %v4688, %v4687
      %v4798 = vpack.c.b16 %v4690, %v4689
      %v4799 = vpack.c.b16 %v4692, %v4691
      %v4800 = vpack.c.b16 %v4694, %v4693
      %v4801 = vpack.c.b16 %v4696, %v4695
      %v4802 = vpack.c.b16 %v4698, %v4697
      %v4803 = vpack.c.b16 %v4700, %v4699
      %v4804 = vpack.c.b16 %v4702, %v4701
      %v4805 = vpack.c.b16 %v4704, %v4703
      %v4806 = vpack.c.b16 %v4706, %v4705
      %v4807 = vpack.c.b16 %v4708, %v4707
      %v4808 = vpack.c.b16 %v4710, %v4709
      %v4809 = vpack.c.b16 %v4712, %v4711
      %v4810 = vpack.c.b16 %v4714, %v4713
      %v4811 = vpack.c.b16 %v4716, %v4715
      %v4812 = vpack.c.b16 %v4718, %v4717
      %v4813 = vpack.c.b16 %v4720, %v4719
      %v4814 = vpack.c.b16 %v4722, %v4721
      %v4815 = vpack.c.b16 %v4724, %v4723
      %v4816 = vpack.c.b16 %v4726, %v4725
      %v4817 = vpack.c.b16 %v4728, %v4727
      %v4818 = vpack.c.b16 %v4730, %v4729
      %v4819 = vpack.c.b16 %v4732, %v4731
      %v4820 = vpack.c.b16 %v4734, %v4733
      %v4821 = vpack.c.b16 %v4736, %v4735
      %v4822 = vpack.c.b16 %v4738, %v4737
      %v4823 = vpack.c.b16 %v4740, %v4739
      %v4824 = vpack.c.b16 %v4742, %v4741
      %v4825 = vpack.c.b16 %v4744, %v4743
      %v4826 = vpack.c.b16 %v4746, %v4745
      %v4827 = vpack.c.b16 %v4748, %v4747
      %v4828 = vpack.c.b16 %v4750, %v4749
      %v4829 = vpack.c.b16 %v4752, %v4751
      %v4830 = vpack.c.b16 %v4754, %v4753
      %v4831 = vpack.c.b16 %v4756, %v4755
      %v4832 = vpack.c.b16 %v4758, %v4757
      %v4833 = vpack.c.b16 %v4760, %v4759
      %v4834 = vpack.c.b16 %v4762, %v4761
      %v4835 = vpack.c.b16 %v4764, %v4763
      %v4836 = vpack.c.b16 %v4766, %v4765
      %v4837 = vpack.c.b16 %v4768, %v4767
      %v4838 = vpack.c.b16 %v4770, %v4769
      %v4839 = vpack.c.b16 %v4772, %v4771
      %v4840 = vpack.c.b16 %v4774, %v4773
      %v4841 = vpack.c.b16 %v4776, %v4775
      %v4842 = vpack.c.b16 %v4778, %v4777
      %v4844 = vsel %vm3408, %v4779, 0
      %v4847 = vsel %vm3408, %v4780, 0
      %v4850 = vsel %vm3408, %v4781, 0
      %v4853 = vsel %vm3408, %v4782, 0
      %v4856 = vsel %vm3408, %v4783, 0
      %v4859 = vsel %vm3408, %v4784, 0
      %v4862 = vsel %vm3408, %v4785, 0
      %v4865 = vsel %vm3408, %v4786, 0
      %v4868 = vsel %vm3408, %v4787, 0
      %v4871 = vsel %vm3408, %v4788, 0
      %v4874 = vsel %vm3408, %v4789, 0
      %v4877 = vsel %vm3408, %v4790, 0
      %v4880 = vsel %vm3408, %v4791, 0
      %v4883 = vsel %vm3408, %v4792, 0
      %v4886 = vsel %vm3408, %v4793, 0
      %v4889 = vsel %vm3408, %v4794, 0
      %v4892 = vsel %vm3408, %v4795, 0
      %v4895 = vsel %vm3408, %v4796, 0
      %v4898 = vsel %vm3408, %v4797, 0
      %v4901 = vsel %vm3408, %v4798, 0
      %v4904 = vsel %vm3408, %v4799, 0
      %v4907 = vsel %vm3408, %v4800, 0
      %v4910 = vsel %vm3408, %v4801, 0
      %v4913 = vsel %vm3408, %v4802, 0
      %v4916 = vsel %vm3408, %v4803, 0
      %v4919 = vsel %vm3408, %v4804, 0
      %v4922 = vsel %vm3408, %v4805, 0
      %v4925 = vsel %vm3408, %v4806, 0
      %v4928 = vsel %vm3408, %v4807, 0
      %v4931 = vsel %vm3408, %v4808, 0
      %v4934 = vsel %vm3408, %v4809, 0
      %v4937 = vsel %vm3408, %v4810, 0
      %v4940 = vsel %vm3408, %v4811, 0
      %v4943 = vsel %vm3408, %v4812, 0
      %v4946 = vsel %vm3408, %v4813, 0
      %v4949 = vsel %vm3408, %v4814, 0
      %v4952 = vsel %vm3408, %v4815, 0
      %v4955 = vsel %vm3408, %v4816, 0
      %v4958 = vsel %vm3408, %v4817, 0
      %v4961 = vsel %vm3408, %v4818, 0
      %v4964 = vsel %vm3408, %v4819, 0
      %v4967 = vsel %vm3408, %v4820, 0
      %v4970 = vsel %vm3408, %v4821, 0
      %v4973 = vsel %vm3408, %v4822, 0
      %v4976 = vsel %vm3408, %v4823, 0
      %v4979 = vsel %vm3408, %v4824, 0
      %v4982 = vsel %vm3408, %v4825, 0
      %v4985 = vsel %vm3408, %v4826, 0
      %v4988 = vsel %vm3408, %v4827, 0
      %v4991 = vsel %vm3408, %v4828, 0
      %v4994 = vsel %vm3408, %v4829, 0
      %v4997 = vsel %vm3408, %v4830, 0
      %v5000 = vsel %vm3408, %v4831, 0
      %v5003 = vsel %vm3408, %v4832, 0
      %v5006 = vsel %vm3408, %v4833, 0
      %v5009 = vsel %vm3408, %v4834, 0
      %v5012 = vsel %vm3408, %v4835, 0
      %v5015 = vsel %vm3408, %v4836, 0
      %v5018 = vsel %vm3408, %v4837, 0
      %v5021 = vsel %vm3408, %v4838, 0
      %v5024 = vsel %vm3408, %v4839, 0
      %v5027 = vsel %vm3408, %v4840, 0
      %v5030 = vsel %vm3408, %v4841, 0
      %v5033 = vsel %vm3408, %v4842, 0
      %v5036 = vsel %vm3601, %v4650, 0
      %5038 = vmatpush.bf16.msra.mxu0 0
      %5039 = vmatpush.bf16.msra.mxu0 0
      %5040 = vmatpush.bf16.msra.mxu0 0
      %5041 = vmatpush.bf16.msra.mxu0 0
      %5042 = vmatpush.bf16.msra.mxu0 0
      %5043 = vmatpush.bf16.msra.mxu0 0
      %5044 = vmatpush.bf16.msra.mxu0 0
      %5045 = vmatpush.bf16.msra.mxu0 %v5036
      %5046 = vmatmul.bf16.gmra.mxu0 %v4844
      %v5047 = vpop.f32.mrf.mxu0
      %v5048 = vadd.f32 0.0, %v5047
      %v5049 = vpop.f32.mrf.mxu0
      %v5050 = vadd.f32 0.0, %v5049
      %5051 = vmatmul.bf16.gmra.mxu0 %v4847
      %v5052 = vpop.f32.mrf.mxu0
      %v5053 = vadd.f32 0.0, %v5052
      %v5054 = vpop.f32.mrf.mxu0
      %v5055 = vadd.f32 0.0, %v5054
      %5056 = vmatmul.bf16.gmra.mxu0 %v4850
      %v5057 = vpop.f32.mrf.mxu0
      %v5058 = vadd.f32 0.0, %v5057
      %v5059 = vpop.f32.mrf.mxu0
      %v5060 = vadd.f32 0.0, %v5059
      %5061 = vmatmul.bf16.gmra.mxu0 %v4853
      %v5062 = vpop.f32.mrf.mxu0
      %v5063 = vadd.f32 0.0, %v5062
      %v5064 = vpop.f32.mrf.mxu0
      %v5065 = vadd.f32 0.0, %v5064
      %5066 = vmatmul.bf16.gmra.mxu0 %v4856
      %v5067 = vpop.f32.mrf.mxu0
      %v5068 = vadd.f32 0.0, %v5067
      %v5069 = vpop.f32.mrf.mxu0
      %v5070 = vadd.f32 0.0, %v5069
      %5071 = vmatmul.bf16.gmra.mxu0 %v4859
      %v5072 = vpop.f32.mrf.mxu0
      %v5073 = vadd.f32 0.0, %v5072
      %v5074 = vpop.f32.mrf.mxu0
      %v5075 = vadd.f32 0.0, %v5074
      %5076 = vmatmul.bf16.gmra.mxu0 %v4862
      %v5077 = vpop.f32.mrf.mxu0
      %v5078 = vadd.f32 0.0, %v5077
      %v5079 = vpop.f32.mrf.mxu0
      %v5080 = vadd.f32 0.0, %v5079
      %5081 = vmatmul.bf16.gmra.mxu0 %v4865
      %v5082 = vpop.f32.mrf.mxu0
      %v5083 = vadd.f32 0.0, %v5082
      %v5084 = vpop.f32.mrf.mxu0
      %v5085 = vadd.f32 0.0, %v5084
      %5086 = vmatmul.bf16.gmra.mxu0 %v4868
      %v5087 = vpop.f32.mrf.mxu0
      %v5088 = vadd.f32 0.0, %v5087
      %v5089 = vpop.f32.mrf.mxu0
      %v5090 = vadd.f32 0.0, %v5089
      %5091 = vmatmul.bf16.gmra.mxu0 %v4871
      %v5092 = vpop.f32.mrf.mxu0
      %v5093 = vadd.f32 0.0, %v5092
      %v5094 = vpop.f32.mrf.mxu0
      %v5095 = vadd.f32 0.0, %v5094
      %5096 = vmatmul.bf16.gmra.mxu0 %v4874
      %v5097 = vpop.f32.mrf.mxu0
      %v5098 = vadd.f32 0.0, %v5097
      %v5099 = vpop.f32.mrf.mxu0
      %v5100 = vadd.f32 0.0, %v5099
      %5101 = vmatmul.bf16.gmra.mxu0 %v4877
      %v5102 = vpop.f32.mrf.mxu0
      %v5103 = vadd.f32 0.0, %v5102
      %v5104 = vpop.f32.mrf.mxu0
      %v5105 = vadd.f32 0.0, %v5104
      %5106 = vmatmul.bf16.gmra.mxu0 %v4880
      %v5107 = vpop.f32.mrf.mxu0
      %v5108 = vadd.f32 0.0, %v5107
      %v5109 = vpop.f32.mrf.mxu0
      %v5110 = vadd.f32 0.0, %v5109
      %5111 = vmatmul.bf16.gmra.mxu0 %v4883
      %v5112 = vpop.f32.mrf.mxu0
      %v5113 = vadd.f32 0.0, %v5112
      %v5114 = vpop.f32.mrf.mxu0
      %v5115 = vadd.f32 0.0, %v5114
      %5116 = vmatmul.bf16.gmra.mxu0 %v4886
      %v5117 = vpop.f32.mrf.mxu0
      %v5118 = vadd.f32 0.0, %v5117
      %v5119 = vpop.f32.mrf.mxu0
      %v5120 = vadd.f32 0.0, %v5119
      %5121 = vmatmul.bf16.gmra.mxu0 %v4889
      %v5122 = vpop.f32.mrf.mxu0
      %v5123 = vadd.f32 0.0, %v5122
      %v5124 = vpop.f32.mrf.mxu0
      %v5125 = vadd.f32 0.0, %v5124
      %5126 = vmatmul.bf16.gmra.mxu0 %v4892
      %v5127 = vpop.f32.mrf.mxu0
      %v5128 = vadd.f32 0.0, %v5127
      %v5129 = vpop.f32.mrf.mxu0
      %v5130 = vadd.f32 0.0, %v5129
      %5131 = vmatmul.bf16.gmra.mxu0 %v4895
      %v5132 = vpop.f32.mrf.mxu0
      %v5133 = vadd.f32 0.0, %v5132
      %v5134 = vpop.f32.mrf.mxu0
      %v5135 = vadd.f32 0.0, %v5134
      %5136 = vmatmul.bf16.gmra.mxu0 %v4898
      %v5137 = vpop.f32.mrf.mxu0
      %v5138 = vadd.f32 0.0, %v5137
      %v5139 = vpop.f32.mrf.mxu0
      %v5140 = vadd.f32 0.0, %v5139
      %5141 = vmatmul.bf16.gmra.mxu0 %v4901
      %v5142 = vpop.f32.mrf.mxu0
      %v5143 = vadd.f32 0.0, %v5142
      %v5144 = vpop.f32.mrf.mxu0
      %v5145 = vadd.f32 0.0, %v5144
      %5146 = vmatmul.bf16.gmra.mxu0 %v4904
      %v5147 = vpop.f32.mrf.mxu0
      %v5148 = vadd.f32 0.0, %v5147
      %v5149 = vpop.f32.mrf.mxu0
      %v5150 = vadd.f32 0.0, %v5149
      %5151 = vmatmul.bf16.gmra.mxu0 %v4907
      %v5152 = vpop.f32.mrf.mxu0
      %v5153 = vadd.f32 0.0, %v5152
      %v5154 = vpop.f32.mrf.mxu0
      %v5155 = vadd.f32 0.0, %v5154
      %5156 = vmatmul.bf16.gmra.mxu0 %v4910
      %v5157 = vpop.f32.mrf.mxu0
      %v5158 = vadd.f32 0.0, %v5157
      %v5159 = vpop.f32.mrf.mxu0
      %v5160 = vadd.f32 0.0, %v5159
      %5161 = vmatmul.bf16.gmra.mxu0 %v4913
      %v5162 = vpop.f32.mrf.mxu0
      %v5163 = vadd.f32 0.0, %v5162
      %v5164 = vpop.f32.mrf.mxu0
      %v5165 = vadd.f32 0.0, %v5164
      %5166 = vmatmul.bf16.gmra.mxu0 %v4916
      %v5167 = vpop.f32.mrf.mxu0
      %v5168 = vadd.f32 0.0, %v5167
      %v5169 = vpop.f32.mrf.mxu0
      %v5170 = vadd.f32 0.0, %v5169
      %5171 = vmatmul.bf16.gmra.mxu0 %v4919
      %v5172 = vpop.f32.mrf.mxu0
      %v5173 = vadd.f32 0.0, %v5172
      %v5174 = vpop.f32.mrf.mxu0
      %v5175 = vadd.f32 0.0, %v5174
      %5176 = vmatmul.bf16.gmra.mxu0 %v4922
      %v5177 = vpop.f32.mrf.mxu0
      %v5178 = vadd.f32 0.0, %v5177
      %v5179 = vpop.f32.mrf.mxu0
      %v5180 = vadd.f32 0.0, %v5179
      %5181 = vmatmul.bf16.gmra.mxu0 %v4925
      %v5182 = vpop.f32.mrf.mxu0
      %v5183 = vadd.f32 0.0, %v5182
      %v5184 = vpop.f32.mrf.mxu0
      %v5185 = vadd.f32 0.0, %v5184
      %5186 = vmatmul.bf16.gmra.mxu0 %v4928
      %v5187 = vpop.f32.mrf.mxu0
      %v5188 = vadd.f32 0.0, %v5187
      %v5189 = vpop.f32.mrf.mxu0
      %v5190 = vadd.f32 0.0, %v5189
      %5191 = vmatmul.bf16.gmra.mxu0 %v4931
      %v5192 = vpop.f32.mrf.mxu0
      %v5193 = vadd.f32 0.0, %v5192
      %v5194 = vpop.f32.mrf.mxu0
      %v5195 = vadd.f32 0.0, %v5194
      %5196 = vmatmul.bf16.gmra.mxu0 %v4934
      %v5197 = vpop.f32.mrf.mxu0
      %v5198 = vadd.f32 0.0, %v5197
      %v5199 = vpop.f32.mrf.mxu0
      %v5200 = vadd.f32 0.0, %v5199
      %5201 = vmatmul.bf16.gmra.mxu0 %v4937
      %v5202 = vpop.f32.mrf.mxu0
      %v5203 = vadd.f32 0.0, %v5202
      %v5204 = vpop.f32.mrf.mxu0
      %v5205 = vadd.f32 0.0, %v5204
      %5206 = vmatmul.bf16.gmra.mxu0 %v4940
      %v5207 = vpop.f32.mrf.mxu0
      %v5208 = vadd.f32 0.0, %v5207
      %v5209 = vpop.f32.mrf.mxu0
      %v5210 = vadd.f32 0.0, %v5209
      %5211 = vmatmul.bf16.gmra.mxu0 %v4943
      %v5212 = vpop.f32.mrf.mxu0
      %v5213 = vadd.f32 0.0, %v5212
      %v5214 = vpop.f32.mrf.mxu0
      %v5215 = vadd.f32 0.0, %v5214
      %5216 = vmatmul.bf16.gmra.mxu0 %v4946
      %v5217 = vpop.f32.mrf.mxu0
      %v5218 = vadd.f32 0.0, %v5217
      %v5219 = vpop.f32.mrf.mxu0
      %v5220 = vadd.f32 0.0, %v5219
      %5221 = vmatmul.bf16.gmra.mxu0 %v4949
      %v5222 = vpop.f32.mrf.mxu0
      %v5223 = vadd.f32 0.0, %v5222
      %v5224 = vpop.f32.mrf.mxu0
      %v5225 = vadd.f32 0.0, %v5224
      %5226 = vmatmul.bf16.gmra.mxu0 %v4952
      %v5227 = vpop.f32.mrf.mxu0
      %v5228 = vadd.f32 0.0, %v5227
      %v5229 = vpop.f32.mrf.mxu0
      %v5230 = vadd.f32 0.0, %v5229
      %5231 = vmatmul.bf16.gmra.mxu0 %v4955
      %v5232 = vpop.f32.mrf.mxu0
      %v5233 = vadd.f32 0.0, %v5232
      %v5234 = vpop.f32.mrf.mxu0
      %v5235 = vadd.f32 0.0, %v5234
      %5236 = vmatmul.bf16.gmra.mxu0 %v4958
      %v5237 = vpop.f32.mrf.mxu0
      %v5238 = vadd.f32 0.0, %v5237
      %v5239 = vpop.f32.mrf.mxu0
      %v5240 = vadd.f32 0.0, %v5239
      %5241 = vmatmul.bf16.gmra.mxu0 %v4961
      %v5242 = vpop.f32.mrf.mxu0
      %v5243 = vadd.f32 0.0, %v5242
      %v5244 = vpop.f32.mrf.mxu0
      %v5245 = vadd.f32 0.0, %v5244
      %5246 = vmatmul.bf16.gmra.mxu0 %v4964
      %v5247 = vpop.f32.mrf.mxu0
      %v5248 = vadd.f32 0.0, %v5247
      %v5249 = vpop.f32.mrf.mxu0
      %v5250 = vadd.f32 0.0, %v5249
      %5251 = vmatmul.bf16.gmra.mxu0 %v4967
      %v5252 = vpop.f32.mrf.mxu0
      %v5253 = vadd.f32 0.0, %v5252
      %v5254 = vpop.f32.mrf.mxu0
      %v5255 = vadd.f32 0.0, %v5254
      %5256 = vmatmul.bf16.gmra.mxu0 %v4970
      %v5257 = vpop.f32.mrf.mxu0
      %v5258 = vadd.f32 0.0, %v5257
      %v5259 = vpop.f32.mrf.mxu0
      %v5260 = vadd.f32 0.0, %v5259
      %5261 = vmatmul.bf16.gmra.mxu0 %v4973
      %v5262 = vpop.f32.mrf.mxu0
      %v5263 = vadd.f32 0.0, %v5262
      %v5264 = vpop.f32.mrf.mxu0
      %v5265 = vadd.f32 0.0, %v5264
      %5266 = vmatmul.bf16.gmra.mxu0 %v4976
      %v5267 = vpop.f32.mrf.mxu0
      %v5268 = vadd.f32 0.0, %v5267
      %v5269 = vpop.f32.mrf.mxu0
      %v5270 = vadd.f32 0.0, %v5269
      %5271 = vmatmul.bf16.gmra.mxu0 %v4979
      %v5272 = vpop.f32.mrf.mxu0
      %v5273 = vadd.f32 0.0, %v5272
      %v5274 = vpop.f32.mrf.mxu0
      %v5275 = vadd.f32 0.0, %v5274
      %5276 = vmatmul.bf16.gmra.mxu0 %v4982
      %v5277 = vpop.f32.mrf.mxu0
      %v5278 = vadd.f32 0.0, %v5277
      %v5279 = vpop.f32.mrf.mxu0
      %v5280 = vadd.f32 0.0, %v5279
      %5281 = vmatmul.bf16.gmra.mxu0 %v4985
      %v5282 = vpop.f32.mrf.mxu0
      %v5283 = vadd.f32 0.0, %v5282
      %v5284 = vpop.f32.mrf.mxu0
      %v5285 = vadd.f32 0.0, %v5284
      %5286 = vmatmul.bf16.gmra.mxu0 %v4988
      %v5287 = vpop.f32.mrf.mxu0
      %v5288 = vadd.f32 0.0, %v5287
      %v5289 = vpop.f32.mrf.mxu0
      %v5290 = vadd.f32 0.0, %v5289
      %5291 = vmatmul.bf16.gmra.mxu0 %v4991
      %v5292 = vpop.f32.mrf.mxu0
      %v5293 = vadd.f32 0.0, %v5292
      %v5294 = vpop.f32.mrf.mxu0
      %v5295 = vadd.f32 0.0, %v5294
      %5296 = vmatmul.bf16.gmra.mxu0 %v4994
      %v5297 = vpop.f32.mrf.mxu0
      %v5298 = vadd.f32 0.0, %v5297
      %v5299 = vpop.f32.mrf.mxu0
      %v5300 = vadd.f32 0.0, %v5299
      %5301 = vmatmul.bf16.gmra.mxu0 %v4997
      %v5302 = vpop.f32.mrf.mxu0
      %v5303 = vadd.f32 0.0, %v5302
      %v5304 = vpop.f32.mrf.mxu0
      %v5305 = vadd.f32 0.0, %v5304
      %5306 = vmatmul.bf16.gmra.mxu0 %v5000
      %v5307 = vpop.f32.mrf.mxu0
      %v5308 = vadd.f32 0.0, %v5307
      %v5309 = vpop.f32.mrf.mxu0
      %v5310 = vadd.f32 0.0, %v5309
      %5311 = vmatmul.bf16.gmra.mxu0 %v5003
      %v5312 = vpop.f32.mrf.mxu0
      %v5313 = vadd.f32 0.0, %v5312
      %v5314 = vpop.f32.mrf.mxu0
      %v5315 = vadd.f32 0.0, %v5314
      %5316 = vmatmul.bf16.gmra.mxu0 %v5006
      %v5317 = vpop.f32.mrf.mxu0
      %v5318 = vadd.f32 0.0, %v5317
      %v5319 = vpop.f32.mrf.mxu0
      %v5320 = vadd.f32 0.0, %v5319
      %5321 = vmatmul.bf16.gmra.mxu0 %v5009
      %v5322 = vpop.f32.mrf.mxu0
      %v5323 = vadd.f32 0.0, %v5322
      %v5324 = vpop.f32.mrf.mxu0
      %v5325 = vadd.f32 0.0, %v5324
      %5326 = vmatmul.bf16.gmra.mxu0 %v5012
      %v5327 = vpop.f32.mrf.mxu0
      %v5328 = vadd.f32 0.0, %v5327
      %v5329 = vpop.f32.mrf.mxu0
      %v5330 = vadd.f32 0.0, %v5329
      %5331 = vmatmul.bf16.gmra.mxu0 %v5015
      %v5332 = vpop.f32.mrf.mxu0
      %v5333 = vadd.f32 0.0, %v5332
      %v5334 = vpop.f32.mrf.mxu0
      %v5335 = vadd.f32 0.0, %v5334
      %5336 = vmatmul.bf16.gmra.mxu0 %v5018
      %v5337 = vpop.f32.mrf.mxu0
      %v5338 = vadd.f32 0.0, %v5337
      %v5339 = vpop.f32.mrf.mxu0
      %v5340 = vadd.f32 0.0, %v5339
      %5341 = vmatmul.bf16.gmra.mxu0 %v5021
      %v5342 = vpop.f32.mrf.mxu0
      %v5343 = vadd.f32 0.0, %v5342
      %v5344 = vpop.f32.mrf.mxu0
      %v5345 = vadd.f32 0.0, %v5344
      %5346 = vmatmul.bf16.gmra.mxu0 %v5024
      %v5347 = vpop.f32.mrf.mxu0
      %v5348 = vadd.f32 0.0, %v5347
      %v5349 = vpop.f32.mrf.mxu0
      %v5350 = vadd.f32 0.0, %v5349
      %5351 = vmatmul.bf16.gmra.mxu0 %v5027
      %v5352 = vpop.f32.mrf.mxu0
      %v5353 = vadd.f32 0.0, %v5352
      %v5354 = vpop.f32.mrf.mxu0
      %v5355 = vadd.f32 0.0, %v5354
      %5356 = vmatmul.bf16.gmra.mxu0 %v5030
      %v5357 = vpop.f32.mrf.mxu0
      %v5358 = vadd.f32 0.0, %v5357
      %v5359 = vpop.f32.mrf.mxu0
      %v5360 = vadd.f32 0.0, %v5359
      %5361 = vmatmul.bf16.gmra.mxu0 %v5033
      %v5362 = vpop.f32.mrf.mxu0
      %v5363 = vadd.f32 0.0, %v5362
      %v5364 = vpop.f32.mrf.mxu0
      %v5365 = vadd.f32 0.0, %v5364
      %5366 = vdwg.mxu0
      %v5367 = vadd.f32 %v4331, %v5048
      %v5368 = vadd.f32 %v4333, %v5050
      %v5369 = vadd.f32 %v4336, %v5053
      %v5370 = vadd.f32 %v4338, %v5055
      %v5371 = vadd.f32 %v4341, %v5058
      %v5372 = vadd.f32 %v4343, %v5060
      %v5373 = vadd.f32 %v4346, %v5063
      %v5374 = vadd.f32 %v4348, %v5065
      %v5375 = vadd.f32 %v4351, %v5068
      %v5376 = vadd.f32 %v4353, %v5070
      %v5377 = vadd.f32 %v4356, %v5073
      %v5378 = vadd.f32 %v4358, %v5075
      %v5379 = vadd.f32 %v4361, %v5078
      %v5380 = vadd.f32 %v4363, %v5080
      %v5381 = vadd.f32 %v4366, %v5083
      %v5382 = vadd.f32 %v4368, %v5085
      %v5383 = vadd.f32 %v4371, %v5088
      %v5384 = vadd.f32 %v4373, %v5090
      %v5385 = vadd.f32 %v4376, %v5093
      %v5386 = vadd.f32 %v4378, %v5095
      %v5387 = vadd.f32 %v4381, %v5098
      %v5388 = vadd.f32 %v4383, %v5100
      %v5389 = vadd.f32 %v4386, %v5103
      %v5390 = vadd.f32 %v4388, %v5105
      %v5391 = vadd.f32 %v4391, %v5108
      %v5392 = vadd.f32 %v4393, %v5110
      %v5393 = vadd.f32 %v4396, %v5113
      %v5394 = vadd.f32 %v4398, %v5115
      %v5395 = vadd.f32 %v4401, %v5118
      %v5396 = vadd.f32 %v4403, %v5120
      %v5397 = vadd.f32 %v4406, %v5123
      %v5398 = vadd.f32 %v4408, %v5125
      %v5399 = vadd.f32 %v4411, %v5128
      %v5400 = vadd.f32 %v4413, %v5130
      %v5401 = vadd.f32 %v4416, %v5133
      %v5402 = vadd.f32 %v4418, %v5135
      %v5403 = vadd.f32 %v4421, %v5138
      %v5404 = vadd.f32 %v4423, %v5140
      %v5405 = vadd.f32 %v4426, %v5143
      %v5406 = vadd.f32 %v4428, %v5145
      %v5407 = vadd.f32 %v4431, %v5148
      %v5408 = vadd.f32 %v4433, %v5150
      %v5409 = vadd.f32 %v4436, %v5153
      %v5410 = vadd.f32 %v4438, %v5155
      %v5411 = vadd.f32 %v4441, %v5158
      %v5412 = vadd.f32 %v4443, %v5160
      %v5413 = vadd.f32 %v4446, %v5163
      %v5414 = vadd.f32 %v4448, %v5165
      %v5415 = vadd.f32 %v4451, %v5168
      %v5416 = vadd.f32 %v4453, %v5170
      %v5417 = vadd.f32 %v4456, %v5173
      %v5418 = vadd.f32 %v4458, %v5175
      %v5419 = vadd.f32 %v4461, %v5178
      %v5420 = vadd.f32 %v4463, %v5180
      %v5421 = vadd.f32 %v4466, %v5183
      %v5422 = vadd.f32 %v4468, %v5185
      %v5423 = vadd.f32 %v4471, %v5188
      %v5424 = vadd.f32 %v4473, %v5190
      %v5425 = vadd.f32 %v4476, %v5193
      %v5426 = vadd.f32 %v4478, %v5195
      %v5427 = vadd.f32 %v4481, %v5198
      %v5428 = vadd.f32 %v4483, %v5200
      %v5429 = vadd.f32 %v4486, %v5203
      %v5430 = vadd.f32 %v4488, %v5205
      %v5431 = vadd.f32 %v4491, %v5208
      %v5432 = vadd.f32 %v4493, %v5210
      %v5433 = vadd.f32 %v4496, %v5213
      %v5434 = vadd.f32 %v4498, %v5215
      %v5435 = vadd.f32 %v4501, %v5218
      %v5436 = vadd.f32 %v4503, %v5220
      %v5437 = vadd.f32 %v4506, %v5223
      %v5438 = vadd.f32 %v4508, %v5225
      %v5439 = vadd.f32 %v4511, %v5228
      %v5440 = vadd.f32 %v4513, %v5230
      %v5441 = vadd.f32 %v4516, %v5233
      %v5442 = vadd.f32 %v4518, %v5235
      %v5443 = vadd.f32 %v4521, %v5238
      %v5444 = vadd.f32 %v4523, %v5240
      %v5445 = vadd.f32 %v4526, %v5243
      %v5446 = vadd.f32 %v4528, %v5245
      %v5447 = vadd.f32 %v4531, %v5248
      %v5448 = vadd.f32 %v4533, %v5250
      %v5449 = vadd.f32 %v4536, %v5253
      %v5450 = vadd.f32 %v4538, %v5255
      %v5451 = vadd.f32 %v4541, %v5258
      %v5452 = vadd.f32 %v4543, %v5260
      %v5453 = vadd.f32 %v4546, %v5263
      %v5454 = vadd.f32 %v4548, %v5265
      %v5455 = vadd.f32 %v4551, %v5268
      %v5456 = vadd.f32 %v4553, %v5270
      %v5457 = vadd.f32 %v4556, %v5273
      %v5458 = vadd.f32 %v4558, %v5275
      %v5459 = vadd.f32 %v4561, %v5278
      %v5460 = vadd.f32 %v4563, %v5280
      %v5461 = vadd.f32 %v4566, %v5283
      %v5462 = vadd.f32 %v4568, %v5285
      %v5463 = vadd.f32 %v4571, %v5288
      %v5464 = vadd.f32 %v4573, %v5290
      %v5465 = vadd.f32 %v4576, %v5293
      %v5466 = vadd.f32 %v4578, %v5295
      %v5467 = vadd.f32 %v4581, %v5298
      %v5468 = vadd.f32 %v4583, %v5300
      %v5469 = vadd.f32 %v4586, %v5303
      %v5470 = vadd.f32 %v4588, %v5305
      %v5471 = vadd.f32 %v4591, %v5308
      %v5472 = vadd.f32 %v4593, %v5310
      %v5473 = vadd.f32 %v4596, %v5313
      %v5474 = vadd.f32 %v4598, %v5315
      %v5475 = vadd.f32 %v4601, %v5318
      %v5476 = vadd.f32 %v4603, %v5320
      %v5477 = vadd.f32 %v4606, %v5323
      %v5478 = vadd.f32 %v4608, %v5325
      %v5479 = vadd.f32 %v4611, %v5328
      %v5480 = vadd.f32 %v4613, %v5330
      %v5481 = vadd.f32 %v4616, %v5333
      %v5482 = vadd.f32 %v4618, %v5335
      %v5483 = vadd.f32 %v4621, %v5338
      %v5484 = vadd.f32 %v4623, %v5340
      %v5485 = vadd.f32 %v4626, %v5343
      %v5486 = vadd.f32 %v4628, %v5345
      %v5487 = vadd.f32 %v4631, %v5348
      %v5488 = vadd.f32 %v4633, %v5350
      %v5489 = vadd.f32 %v4636, %v5353
      %v5490 = vadd.f32 %v4638, %v5355
      %v5491 = vadd.f32 %v4641, %v5358
      %v5492 = vadd.f32 %v4643, %v5360
      %v5493 = vadd.f32 %v4646, %v5363
      %v5494 = vadd.f32 %v4648, %v5365
      %v5495 = vld [vmem:[%s1 + $0x4] sm:$0xc]
      %v5496 = vunpack.c.l.b16 %v1086
      %v5497 = vunpack.c.l.b16 %v1087
      %v5498 = vunpack.c.l.b16 %v1088
      %v5499 = vunpack.c.l.b16 %v1089
      %v5500 = vpack.c.b16 %v5497, %v5496
      %v5501 = vpack.c.b16 %v5499, %v5498
      %v5503 = vunpack.c.l.b16 %v5495
      %v5504 = vpack.c.b16 %v5503, %v5503
      %v5505 = vrot.slane %v5504, 2
      %v5507 = vsel %vm3408, %v5500, 0
      %v5510 = vsel %vm3408, %v5501, 0
      %v5513 = vsel %vm3601, %v5505, 0
      %5515 = vmatpush.bf16.msra.mxu0 0
      %5516 = vmatpush.bf16.msra.mxu0 0
      %5517 = vmatpush.bf16.msra.mxu0 0
      %5518 = vmatpush.bf16.msra.mxu0 0
      %5519 = vmatpush.bf16.msra.mxu0 0
      %5520 = vmatpush.bf16.msra.mxu0 0
      %5521 = vmatpush.bf16.msra.mxu0 0
      %5522 = vmatpush.bf16.msra.mxu0 %v5513
      %5523 = vmatmul.bf16.gmra.mxu0 %v4133
      %v5524 = vpop.f32.mrf.mxu0
      %v5525 = vadd.f32 0.0, %v5524
      %v5526 = vpop.f32.mrf.mxu0
      %v5527 = vadd.f32 0.0, %v5526
      %5528 = vmatmul.bf16.gmra.mxu0 %v4136
      %v5529 = vpop.f32.mrf.mxu0
      %v5530 = vadd.f32 0.0, %v5529
      %v5531 = vpop.f32.mrf.mxu0
      %v5532 = vadd.f32 0.0, %v5531
      %5533 = vmatmul.bf16.gmra.mxu0 %v4139
      %v5534 = vpop.f32.mrf.mxu0
      %v5535 = vadd.f32 0.0, %v5534
      %v5536 = vpop.f32.mrf.mxu0
      %v5537 = vadd.f32 0.0, %v5536
      %5538 = vmatmul.bf16.gmra.mxu0 %v4142
      %v5539 = vpop.f32.mrf.mxu0
      %v5540 = vadd.f32 0.0, %v5539
      %v5541 = vpop.f32.mrf.mxu0
      %v5542 = vadd.f32 0.0, %v5541
      %5543 = vmatmul.bf16.gmra.mxu0 %v4145
      %v5544 = vpop.f32.mrf.mxu0
      %v5545 = vadd.f32 0.0, %v5544
      %v5546 = vpop.f32.mrf.mxu0
      %v5547 = vadd.f32 0.0, %v5546
      %5548 = vmatmul.bf16.gmra.mxu0 %v4148
      %v5549 = vpop.f32.mrf.mxu0
      %v5550 = vadd.f32 0.0, %v5549
      %v5551 = vpop.f32.mrf.mxu0
      %v5552 = vadd.f32 0.0, %v5551
      %5553 = vmatmul.bf16.gmra.mxu0 %v4151
      %v5554 = vpop.f32.mrf.mxu0
      %v5555 = vadd.f32 0.0, %v5554
      %v5556 = vpop.f32.mrf.mxu0
      %v5557 = vadd.f32 0.0, %v5556
      %5558 = vmatmul.bf16.gmra.mxu0 %v4154
      %v5559 = vpop.f32.mrf.mxu0
      %v5560 = vadd.f32 0.0, %v5559
      %v5561 = vpop.f32.mrf.mxu0
      %v5562 = vadd.f32 0.0, %v5561
      %5563 = vmatmul.bf16.gmra.mxu0 %v4157
      %v5564 = vpop.f32.mrf.mxu0
      %v5565 = vadd.f32 0.0, %v5564
      %v5566 = vpop.f32.mrf.mxu0
      %v5567 = vadd.f32 0.0, %v5566
      %5568 = vmatmul.bf16.gmra.mxu0 %v4160
      %v5569 = vpop.f32.mrf.mxu0
      %v5570 = vadd.f32 0.0, %v5569
      %v5571 = vpop.f32.mrf.mxu0
      %v5572 = vadd.f32 0.0, %v5571
      %5573 = vmatmul.bf16.gmra.mxu0 %v4163
      %v5574 = vpop.f32.mrf.mxu0
      %v5575 = vadd.f32 0.0, %v5574
      %v5576 = vpop.f32.mrf.mxu0
      %v5577 = vadd.f32 0.0, %v5576
      %5578 = vmatmul.bf16.gmra.mxu0 %v4166
      %v5579 = vpop.f32.mrf.mxu0
      %v5580 = vadd.f32 0.0, %v5579
      %v5581 = vpop.f32.mrf.mxu0
      %v5582 = vadd.f32 0.0, %v5581
      %5583 = vmatmul.bf16.gmra.mxu0 %v4169
      %v5584 = vpop.f32.mrf.mxu0
      %v5585 = vadd.f32 0.0, %v5584
      %v5586 = vpop.f32.mrf.mxu0
      %v5587 = vadd.f32 0.0, %v5586
      %5588 = vmatmul.bf16.gmra.mxu0 %v4172
      %v5589 = vpop.f32.mrf.mxu0
      %v5590 = vadd.f32 0.0, %v5589
      %v5591 = vpop.f32.mrf.mxu0
      %v5592 = vadd.f32 0.0, %v5591
      %5593 = vmatmul.bf16.gmra.mxu0 %v4175
      %v5594 = vpop.f32.mrf.mxu0
      %v5595 = vadd.f32 0.0, %v5594
      %v5596 = vpop.f32.mrf.mxu0
      %v5597 = vadd.f32 0.0, %v5596
      %5598 = vmatmul.bf16.gmra.mxu0 %v4178
      %v5599 = vpop.f32.mrf.mxu0
      %v5600 = vadd.f32 0.0, %v5599
      %v5601 = vpop.f32.mrf.mxu0
      %v5602 = vadd.f32 0.0, %v5601
      %5603 = vmatmul.bf16.gmra.mxu0 %v4181
      %v5604 = vpop.f32.mrf.mxu0
      %v5605 = vadd.f32 0.0, %v5604
      %v5606 = vpop.f32.mrf.mxu0
      %v5607 = vadd.f32 0.0, %v5606
      %5608 = vmatmul.bf16.gmra.mxu0 %v4184
      %v5609 = vpop.f32.mrf.mxu0
      %v5610 = vadd.f32 0.0, %v5609
      %v5611 = vpop.f32.mrf.mxu0
      %v5612 = vadd.f32 0.0, %v5611
      %5613 = vmatmul.bf16.gmra.mxu0 %v4187
      %v5614 = vpop.f32.mrf.mxu0
      %v5615 = vadd.f32 0.0, %v5614
      %v5616 = vpop.f32.mrf.mxu0
      %v5617 = vadd.f32 0.0, %v5616
      %5618 = vmatmul.bf16.gmra.mxu0 %v4190
      %v5619 = vpop.f32.mrf.mxu0
      %v5620 = vadd.f32 0.0, %v5619
      %v5621 = vpop.f32.mrf.mxu0
      %v5622 = vadd.f32 0.0, %v5621
      %5623 = vmatmul.bf16.gmra.mxu0 %v4193
      %v5624 = vpop.f32.mrf.mxu0
      %v5625 = vadd.f32 0.0, %v5624
      %v5626 = vpop.f32.mrf.mxu0
      %v5627 = vadd.f32 0.0, %v5626
      %5628 = vmatmul.bf16.gmra.mxu0 %v4196
      %v5629 = vpop.f32.mrf.mxu0
      %v5630 = vadd.f32 0.0, %v5629
      %v5631 = vpop.f32.mrf.mxu0
      %v5632 = vadd.f32 0.0, %v5631
      %5633 = vmatmul.bf16.gmra.mxu0 %v4199
      %v5634 = vpop.f32.mrf.mxu0
      %v5635 = vadd.f32 0.0, %v5634
      %v5636 = vpop.f32.mrf.mxu0
      %v5637 = vadd.f32 0.0, %v5636
      %5638 = vmatmul.bf16.gmra.mxu0 %v4202
      %v5639 = vpop.f32.mrf.mxu0
      %v5640 = vadd.f32 0.0, %v5639
      %v5641 = vpop.f32.mrf.mxu0
      %v5642 = vadd.f32 0.0, %v5641
      %5643 = vmatmul.bf16.gmra.mxu0 %v4205
      %v5644 = vpop.f32.mrf.mxu0
      %v5645 = vadd.f32 0.0, %v5644
      %v5646 = vpop.f32.mrf.mxu0
      %v5647 = vadd.f32 0.0, %v5646
      %5648 = vmatmul.bf16.gmra.mxu0 %v4208
      %v5649 = vpop.f32.mrf.mxu0
      %v5650 = vadd.f32 0.0, %v5649
      %v5651 = vpop.f32.mrf.mxu0
      %v5652 = vadd.f32 0.0, %v5651
      %5653 = vmatmul.bf16.gmra.mxu0 %v4211
      %v5654 = vpop.f32.mrf.mxu0
      %v5655 = vadd.f32 0.0, %v5654
      %v5656 = vpop.f32.mrf.mxu0
      %v5657 = vadd.f32 0.0, %v5656
      %5658 = vmatmul.bf16.gmra.mxu0 %v4214
      %v5659 = vpop.f32.mrf.mxu0
      %v5660 = vadd.f32 0.0, %v5659
      %v5661 = vpop.f32.mrf.mxu0
      %v5662 = vadd.f32 0.0, %v5661
      %5663 = vmatmul.bf16.gmra.mxu0 %v4217
      %v5664 = vpop.f32.mrf.mxu0
      %v5665 = vadd.f32 0.0, %v5664
      %v5666 = vpop.f32.mrf.mxu0
      %v5667 = vadd.f32 0.0, %v5666
      %5668 = vmatmul.bf16.gmra.mxu0 %v4220
      %v5669 = vpop.f32.mrf.mxu0
      %v5670 = vadd.f32 0.0, %v5669
      %v5671 = vpop.f32.mrf.mxu0
      %v5672 = vadd.f32 0.0, %v5671
      %5673 = vmatmul.bf16.gmra.mxu0 %v4223
      %v5674 = vpop.f32.mrf.mxu0
      %v5675 = vadd.f32 0.0, %v5674
      %v5676 = vpop.f32.mrf.mxu0
      %v5677 = vadd.f32 0.0, %v5676
      %5678 = vmatmul.bf16.gmra.mxu0 %v4226
      %v5679 = vpop.f32.mrf.mxu0
      %v5680 = vadd.f32 0.0, %v5679
      %v5681 = vpop.f32.mrf.mxu0
      %v5682 = vadd.f32 0.0, %v5681
      %5683 = vmatmul.bf16.gmra.mxu0 %v4229
      %v5684 = vpop.f32.mrf.mxu0
      %v5685 = vadd.f32 0.0, %v5684
      %v5686 = vpop.f32.mrf.mxu0
      %v5687 = vadd.f32 0.0, %v5686
      %5688 = vmatmul.bf16.gmra.mxu0 %v4232
      %v5689 = vpop.f32.mrf.mxu0
      %v5690 = vadd.f32 0.0, %v5689
      %v5691 = vpop.f32.mrf.mxu0
      %v5692 = vadd.f32 0.0, %v5691
      %5693 = vmatmul.bf16.gmra.mxu0 %v4235
      %v5694 = vpop.f32.mrf.mxu0
      %v5695 = vadd.f32 0.0, %v5694
      %v5696 = vpop.f32.mrf.mxu0
      %v5697 = vadd.f32 0.0, %v5696
      %5698 = vmatmul.bf16.gmra.mxu0 %v4238
      %v5699 = vpop.f32.mrf.mxu0
      %v5700 = vadd.f32 0.0, %v5699
      %v5701 = vpop.f32.mrf.mxu0
      %v5702 = vadd.f32 0.0, %v5701
      %5703 = vmatmul.bf16.gmra.mxu0 %v4241
      %v5704 = vpop.f32.mrf.mxu0
      %v5705 = vadd.f32 0.0, %v5704
      %v5706 = vpop.f32.mrf.mxu0
      %v5707 = vadd.f32 0.0, %v5706
      %5708 = vmatmul.bf16.gmra.mxu0 %v4244
      %v5709 = vpop.f32.mrf.mxu0
      %v5710 = vadd.f32 0.0, %v5709
      %v5711 = vpop.f32.mrf.mxu0
      %v5712 = vadd.f32 0.0, %v5711
      %5713 = vmatmul.bf16.gmra.mxu0 %v4247
      %v5714 = vpop.f32.mrf.mxu0
      %v5715 = vadd.f32 0.0, %v5714
      %v5716 = vpop.f32.mrf.mxu0
      %v5717 = vadd.f32 0.0, %v5716
      %5718 = vmatmul.bf16.gmra.mxu0 %v4250
      %v5719 = vpop.f32.mrf.mxu0
      %v5720 = vadd.f32 0.0, %v5719
      %v5721 = vpop.f32.mrf.mxu0
      %v5722 = vadd.f32 0.0, %v5721
      %5723 = vmatmul.bf16.gmra.mxu0 %v4253
      %v5724 = vpop.f32.mrf.mxu0
      %v5725 = vadd.f32 0.0, %v5724
      %v5726 = vpop.f32.mrf.mxu0
      %v5727 = vadd.f32 0.0, %v5726
      %5728 = vmatmul.bf16.gmra.mxu0 %v4256
      %v5729 = vpop.f32.mrf.mxu0
      %v5730 = vadd.f32 0.0, %v5729
      %v5731 = vpop.f32.mrf.mxu0
      %v5732 = vadd.f32 0.0, %v5731
      %5733 = vmatmul.bf16.gmra.mxu0 %v4259
      %v5734 = vpop.f32.mrf.mxu0
      %v5735 = vadd.f32 0.0, %v5734
      %v5736 = vpop.f32.mrf.mxu0
      %v5737 = vadd.f32 0.0, %v5736
      %5738 = vmatmul.bf16.gmra.mxu0 %v4262
      %v5739 = vpop.f32.mrf.mxu0
      %v5740 = vadd.f32 0.0, %v5739
      %v5741 = vpop.f32.mrf.mxu0
      %v5742 = vadd.f32 0.0, %v5741
      %5743 = vmatmul.bf16.gmra.mxu0 %v4265
      %v5744 = vpop.f32.mrf.mxu0
      %v5745 = vadd.f32 0.0, %v5744
      %v5746 = vpop.f32.mrf.mxu0
      %v5747 = vadd.f32 0.0, %v5746
      %5748 = vmatmul.bf16.gmra.mxu0 %v4268
      %v5749 = vpop.f32.mrf.mxu0
      %v5750 = vadd.f32 0.0, %v5749
      %v5751 = vpop.f32.mrf.mxu0
      %v5752 = vadd.f32 0.0, %v5751
      %5753 = vmatmul.bf16.gmra.mxu0 %v4271
      %v5754 = vpop.f32.mrf.mxu0
      %v5755 = vadd.f32 0.0, %v5754
      %v5756 = vpop.f32.mrf.mxu0
      %v5757 = vadd.f32 0.0, %v5756
      %5758 = vmatmul.bf16.gmra.mxu0 %v4274
      %v5759 = vpop.f32.mrf.mxu0
      %v5760 = vadd.f32 0.0, %v5759
      %v5761 = vpop.f32.mrf.mxu0
      %v5762 = vadd.f32 0.0, %v5761
      %5763 = vmatmul.bf16.gmra.mxu0 %v4277
      %v5764 = vpop.f32.mrf.mxu0
      %v5765 = vadd.f32 0.0, %v5764
      %v5766 = vpop.f32.mrf.mxu0
      %v5767 = vadd.f32 0.0, %v5766
      %5768 = vmatmul.bf16.gmra.mxu0 %v4280
      %v5769 = vpop.f32.mrf.mxu0
      %v5770 = vadd.f32 0.0, %v5769
      %v5771 = vpop.f32.mrf.mxu0
      %v5772 = vadd.f32 0.0, %v5771
      %5773 = vmatmul.bf16.gmra.mxu0 %v4283
      %v5774 = vpop.f32.mrf.mxu0
      %v5775 = vadd.f32 0.0, %v5774
      %v5776 = vpop.f32.mrf.mxu0
      %v5777 = vadd.f32 0.0, %v5776
      %5778 = vmatmul.bf16.gmra.mxu0 %v4286
      %v5779 = vpop.f32.mrf.mxu0
      %v5780 = vadd.f32 0.0, %v5779
      %v5781 = vpop.f32.mrf.mxu0
      %v5782 = vadd.f32 0.0, %v5781
      %5783 = vmatmul.bf16.gmra.mxu0 %v4289
      %v5784 = vpop.f32.mrf.mxu0
      %v5785 = vadd.f32 0.0, %v5784
      %v5786 = vpop.f32.mrf.mxu0
      %v5787 = vadd.f32 0.0, %v5786
      %5788 = vmatmul.bf16.gmra.mxu0 %v4292
      %v5789 = vpop.f32.mrf.mxu0
      %v5790 = vadd.f32 0.0, %v5789
      %v5791 = vpop.f32.mrf.mxu0
      %v5792 = vadd.f32 0.0, %v5791
      %5793 = vmatmul.bf16.gmra.mxu0 %v4295
      %v5794 = vpop.f32.mrf.mxu0
      %v5795 = vadd.f32 0.0, %v5794
      %v5796 = vpop.f32.mrf.mxu0
      %v5797 = vadd.f32 0.0, %v5796
      %5798 = vmatmul.bf16.gmra.mxu0 %v4298
      %v5799 = vpop.f32.mrf.mxu0
      %v5800 = vadd.f32 0.0, %v5799
      %v5801 = vpop.f32.mrf.mxu0
      %v5802 = vadd.f32 0.0, %v5801
      %5803 = vmatmul.bf16.gmra.mxu0 %v4301
      %v5804 = vpop.f32.mrf.mxu0
      %v5805 = vadd.f32 0.0, %v5804
      %v5806 = vpop.f32.mrf.mxu0
      %v5807 = vadd.f32 0.0, %v5806
      %5808 = vmatmul.bf16.gmra.mxu0 %v4304
      %v5809 = vpop.f32.mrf.mxu0
      %v5810 = vadd.f32 0.0, %v5809
      %v5811 = vpop.f32.mrf.mxu0
      %v5812 = vadd.f32 0.0, %v5811
      %5813 = vmatmul.bf16.gmra.mxu0 %v4307
      %v5814 = vpop.f32.mrf.mxu0
      %v5815 = vadd.f32 0.0, %v5814
      %v5816 = vpop.f32.mrf.mxu0
      %v5817 = vadd.f32 0.0, %v5816
      %5818 = vmatmul.bf16.gmra.mxu0 %v4310
      %v5819 = vpop.f32.mrf.mxu0
      %v5820 = vadd.f32 0.0, %v5819
      %v5821 = vpop.f32.mrf.mxu0
      %v5822 = vadd.f32 0.0, %v5821
      %5823 = vmatmul.bf16.gmra.mxu0 %v4313
      %v5824 = vpop.f32.mrf.mxu0
      %v5825 = vadd.f32 0.0, %v5824
      %v5826 = vpop.f32.mrf.mxu0
      %v5827 = vadd.f32 0.0, %v5826
      %5828 = vmatmul.bf16.gmra.mxu0 %v4316
      %v5829 = vpop.f32.mrf.mxu0
      %v5830 = vadd.f32 0.0, %v5829
      %v5831 = vpop.f32.mrf.mxu0
      %v5832 = vadd.f32 0.0, %v5831
      %5833 = vmatmul.bf16.gmra.mxu0 %v5507
      %v5834 = vpop.f32.mrf.mxu0
      %v5835 = vadd.f32 0.0, %v5834
      %v5836 = vpop.f32.mrf.mxu0
      %v5837 = vadd.f32 0.0, %v5836
      %5838 = vmatmul.bf16.gmra.mxu0 %v5510
      %v5839 = vpop.f32.mrf.mxu0
      %v5840 = vadd.f32 0.0, %v5839
      %v5841 = vpop.f32.mrf.mxu0
      %v5842 = vadd.f32 0.0, %v5841
      %5843 = vdwg.mxu0
      %v5844 = vadd.f32 %v5367, %v5525
      %v5845 = vadd.f32 %v5368, %v5527
      %v5846 = vadd.f32 %v5369, %v5530
      %v5847 = vadd.f32 %v5370, %v5532
      %v5848 = vadd.f32 %v5371, %v5535
      %v5849 = vadd.f32 %v5372, %v5537
      %v5850 = vadd.f32 %v5373, %v5540
      %v5851 = vadd.f32 %v5374, %v5542
      %v5852 = vadd.f32 %v5375, %v5545
      %v5853 = vadd.f32 %v5376, %v5547
      %v5854 = vadd.f32 %v5377, %v5550
      %v5855 = vadd.f32 %v5378, %v5552
      %v5856 = vadd.f32 %v5379, %v5555
      %v5857 = vadd.f32 %v5380, %v5557
      %v5858 = vadd.f32 %v5381, %v5560
      %v5859 = vadd.f32 %v5382, %v5562
      %v5860 = vadd.f32 %v5383, %v5565
      %v5861 = vadd.f32 %v5384, %v5567
      %v5862 = vadd.f32 %v5385, %v5570
      %v5863 = vadd.f32 %v5386, %v5572
      %v5864 = vadd.f32 %v5387, %v5575
      %v5865 = vadd.f32 %v5388, %v5577
      %v5866 = vadd.f32 %v5389, %v5580
      %v5867 = vadd.f32 %v5390, %v5582
      %v5868 = vadd.f32 %v5391, %v5585
      %v5869 = vadd.f32 %v5392, %v5587
      %v5870 = vadd.f32 %v5393, %v5590
      %v5871 = vadd.f32 %v5394, %v5592
      %v5872 = vadd.f32 %v5395, %v5595
      %v5873 = vadd.f32 %v5396, %v5597
      %v5874 = vadd.f32 %v5397, %v5600
      %v5875 = vadd.f32 %v5398, %v5602
      %v5876 = vadd.f32 %v5399, %v5605
      %v5877 = vadd.f32 %v5400, %v5607
      %v5878 = vadd.f32 %v5401, %v5610
      %v5879 = vadd.f32 %v5402, %v5612
      %v5880 = vadd.f32 %v5403, %v5615
      %v5881 = vadd.f32 %v5404, %v5617
      %v5882 = vadd.f32 %v5405, %v5620
      %v5883 = vadd.f32 %v5406, %v5622
      %v5884 = vadd.f32 %v5407, %v5625
      %v5885 = vadd.f32 %v5408, %v5627
      %v5886 = vadd.f32 %v5409, %v5630
      %v5887 = vadd.f32 %v5410, %v5632
      %v5888 = vadd.f32 %v5411, %v5635
      %v5889 = vadd.f32 %v5412, %v5637
      %v5890 = vadd.f32 %v5413, %v5640
      %v5891 = vadd.f32 %v5414, %v5642
      %v5892 = vadd.f32 %v5415, %v5645
      %v5893 = vadd.f32 %v5416, %v5647
      %v5894 = vadd.f32 %v5417, %v5650
      %v5895 = vadd.f32 %v5418, %v5652
      %v5896 = vadd.f32 %v5419, %v5655
      %v5897 = vadd.f32 %v5420, %v5657
      %v5898 = vadd.f32 %v5421, %v5660
      %v5899 = vadd.f32 %v5422, %v5662
      %v5900 = vadd.f32 %v5423, %v5665
      %v5901 = vadd.f32 %v5424, %v5667
      %v5902 = vadd.f32 %v5425, %v5670
      %v5903 = vadd.f32 %v5426, %v5672
      %v5904 = vadd.f32 %v5427, %v5675
      %v5905 = vadd.f32 %v5428, %v5677
      %v5906 = vadd.f32 %v5429, %v5680
      %v5907 = vadd.f32 %v5430, %v5682
      %v5908 = vadd.f32 %v5431, %v5685
      %v5909 = vadd.f32 %v5432, %v5687
      %v5910 = vadd.f32 %v5433, %v5690
      %v5911 = vadd.f32 %v5434, %v5692
      %v5912 = vadd.f32 %v5435, %v5695
      %v5913 = vadd.f32 %v5436, %v5697
      %v5914 = vadd.f32 %v5437, %v5700
      %v5915 = vadd.f32 %v5438, %v5702
      %v5916 = vadd.f32 %v5439, %v5705
      %v5917 = vadd.f32 %v5440, %v5707
      %v5918 = vadd.f32 %v5441, %v5710
      %v5919 = vadd.f32 %v5442, %v5712
      %v5920 = vadd.f32 %v5443, %v5715
      %v5921 = vadd.f32 %v5444, %v5717
      %v5922 = vadd.f32 %v5445, %v5720
      %v5923 = vadd.f32 %v5446, %v5722
      %v5924 = vadd.f32 %v5447, %v5725
      %v5925 = vadd.f32 %v5448, %v5727
      %v5926 = vadd.f32 %v5449, %v5730
      %v5927 = vadd.f32 %v5450, %v5732
      %v5928 = vadd.f32 %v5451, %v5735
      %v5929 = vadd.f32 %v5452, %v5737
      %v5930 = vadd.f32 %v5453, %v5740
      %v5931 = vadd.f32 %v5454, %v5742
      %v5932 = vadd.f32 %v5455, %v5745
      %v5933 = vadd.f32 %v5456, %v5747
      %v5934 = vadd.f32 %v5457, %v5750
      %v5935 = vadd.f32 %v5458, %v5752
      %v5936 = vadd.f32 %v5459, %v5755
      %v5937 = vadd.f32 %v5460, %v5757
      %v5938 = vadd.f32 %v5461, %v5760
      %v5939 = vadd.f32 %v5462, %v5762
      %v5940 = vadd.f32 %v5463, %v5765
      %v5941 = vadd.f32 %v5464, %v5767
      %v5942 = vadd.f32 %v5465, %v5770
      %v5943 = vadd.f32 %v5466, %v5772
      %v5944 = vadd.f32 %v5467, %v5775
      %v5945 = vadd.f32 %v5468, %v5777
      %v5946 = vadd.f32 %v5469, %v5780
      %v5947 = vadd.f32 %v5470, %v5782
      %v5948 = vadd.f32 %v5471, %v5785
      %v5949 = vadd.f32 %v5472, %v5787
      %v5950 = vadd.f32 %v5473, %v5790
      %v5951 = vadd.f32 %v5474, %v5792
      %v5952 = vadd.f32 %v5475, %v5795
      %v5953 = vadd.f32 %v5476, %v5797
      %v5954 = vadd.f32 %v5477, %v5800
      %v5955 = vadd.f32 %v5478, %v5802
      %v5956 = vadd.f32 %v5479, %v5805
      %v5957 = vadd.f32 %v5480, %v5807
      %v5958 = vadd.f32 %v5481, %v5810
      %v5959 = vadd.f32 %v5482, %v5812
      %v5960 = vadd.f32 %v5483, %v5815
      %v5961 = vadd.f32 %v5484, %v5817
      %v5962 = vadd.f32 %v5485, %v5820
      %v5963 = vadd.f32 %v5486, %v5822
      %v5964 = vadd.f32 %v5487, %v5825
      %v5965 = vadd.f32 %v5488, %v5827
      %v5966 = vadd.f32 %v5489, %v5830
      %v5967 = vadd.f32 %v5490, %v5832
      %v5968 = vadd.f32 %v5491, %v5835
      %v5969 = vadd.f32 %v5492, %v5837
      %v5970 = vadd.f32 %v5493, %v5840
      %v5971 = vadd.f32 %v5494, %v5842
      %v5972 = vld [vmem:[%s1 + $0x8] sm:$0x3]
      %v5973 = vunpack.c.l.b16 %v2520
      %v5974 = vunpack.c.l.b16 %v2530
      %v5975 = vunpack.c.l.b16 %v2540
      %v5976 = vunpack.c.l.b16 %v2550
      %v5977 = vpack.c.b16 %v5974, %v5973
      %v5978 = vpack.c.b16 %v5976, %v5975
      %v5980 = vsel %vm3408, %v5977, 0
      %v5983 = vsel %vm3408, %v5978, 0
      %v5986 = vsel %vm3601, %v5972, 0
      %5988 = vmatpush.bf16.msra.mxu0 0
      %5989 = vmatpush.bf16.msra.mxu0 0
      %5990 = vmatpush.bf16.msra.mxu0 0
      %5991 = vmatpush.bf16.msra.mxu0 0
      %5992 = vmatpush.bf16.msra.mxu0 0
      %5993 = vmatpush.bf16.msra.mxu0 0
      %5994 = vmatpush.bf16.msra.mxu0 0
      %5995 = vmatpush.bf16.msra.mxu0 %v5986
      %5996 = vmatmul.bf16.gmra.mxu0 %v3416
      %v5997 = vpop.f32.mrf.mxu0
      %v5998 = vadd.f32 0.0, %v5997
      %v5999 = vpop.f32.mrf.mxu0
      %v6000 = vadd.f32 0.0, %v5999
      %6001 = vmatmul.bf16.gmra.mxu0 %v3419
      %v6002 = vpop.f32.mrf.mxu0
      %v6003 = vadd.f32 0.0, %v6002
      %v6004 = vpop.f32.mrf.mxu0
      %v6005 = vadd.f32 0.0, %v6004
      %6006 = vmatmul.bf16.gmra.mxu0 %v3422
      %v6007 = vpop.f32.mrf.mxu0
      %v6008 = vadd.f32 0.0, %v6007
      %v6009 = vpop.f32.mrf.mxu0
      %v6010 = vadd.f32 0.0, %v6009
      %6011 = vmatmul.bf16.gmra.mxu0 %v3425
      %v6012 = vpop.f32.mrf.mxu0
      %v6013 = vadd.f32 0.0, %v6012
      %v6014 = vpop.f32.mrf.mxu0
      %v6015 = vadd.f32 0.0, %v6014
      %6016 = vmatmul.bf16.gmra.mxu0 %v3428
      %v6017 = vpop.f32.mrf.mxu0
      %v6018 = vadd.f32 0.0, %v6017
      %v6019 = vpop.f32.mrf.mxu0
      %v6020 = vadd.f32 0.0, %v6019
      %6021 = vmatmul.bf16.gmra.mxu0 %v3431
      %v6022 = vpop.f32.mrf.mxu0
      %v6023 = vadd.f32 0.0, %v6022
      %v6024 = vpop.f32.mrf.mxu0
      %v6025 = vadd.f32 0.0, %v6024
      %6026 = vmatmul.bf16.gmra.mxu0 %v3434
      %v6027 = vpop.f32.mrf.mxu0
      %v6028 = vadd.f32 0.0, %v6027
      %v6029 = vpop.f32.mrf.mxu0
      %v6030 = vadd.f32 0.0, %v6029
      %6031 = vmatmul.bf16.gmra.mxu0 %v3437
      %v6032 = vpop.f32.mrf.mxu0
      %v6033 = vadd.f32 0.0, %v6032
      %v6034 = vpop.f32.mrf.mxu0
      %v6035 = vadd.f32 0.0, %v6034
      %6036 = vmatmul.bf16.gmra.mxu0 %v3440
      %v6037 = vpop.f32.mrf.mxu0
      %v6038 = vadd.f32 0.0, %v6037
      %v6039 = vpop.f32.mrf.mxu0
      %v6040 = vadd.f32 0.0, %v6039
      %6041 = vmatmul.bf16.gmra.mxu0 %v3443
      %v6042 = vpop.f32.mrf.mxu0
      %v6043 = vadd.f32 0.0, %v6042
      %v6044 = vpop.f32.mrf.mxu0
      %v6045 = vadd.f32 0.0, %v6044
      %6046 = vmatmul.bf16.gmra.mxu0 %v3446
      %v6047 = vpop.f32.mrf.mxu0
      %v6048 = vadd.f32 0.0, %v6047
      %v6049 = vpop.f32.mrf.mxu0
      %v6050 = vadd.f32 0.0, %v6049
      %6051 = vmatmul.bf16.gmra.mxu0 %v3449
      %v6052 = vpop.f32.mrf.mxu0
      %v6053 = vadd.f32 0.0, %v6052
      %v6054 = vpop.f32.mrf.mxu0
      %v6055 = vadd.f32 0.0, %v6054
      %6056 = vmatmul.bf16.gmra.mxu0 %v3452
      %v6057 = vpop.f32.mrf.mxu0
      %v6058 = vadd.f32 0.0, %v6057
      %v6059 = vpop.f32.mrf.mxu0
      %v6060 = vadd.f32 0.0, %v6059
      %6061 = vmatmul.bf16.gmra.mxu0 %v3455
      %v6062 = vpop.f32.mrf.mxu0
      %v6063 = vadd.f32 0.0, %v6062
      %v6064 = vpop.f32.mrf.mxu0
      %v6065 = vadd.f32 0.0, %v6064
      %6066 = vmatmul.bf16.gmra.mxu0 %v3458
      %v6067 = vpop.f32.mrf.mxu0
      %v6068 = vadd.f32 0.0, %v6067
      %v6069 = vpop.f32.mrf.mxu0
      %v6070 = vadd.f32 0.0, %v6069
      %6071 = vmatmul.bf16.gmra.mxu0 %v3461
      %v6072 = vpop.f32.mrf.mxu0
      %v6073 = vadd.f32 0.0, %v6072
      %v6074 = vpop.f32.mrf.mxu0
      %v6075 = vadd.f32 0.0, %v6074
      %6076 = vmatmul.bf16.gmra.mxu0 %v3464
      %v6077 = vpop.f32.mrf.mxu0
      %v6078 = vadd.f32 0.0, %v6077
      %v6079 = vpop.f32.mrf.mxu0
      %v6080 = vadd.f32 0.0, %v6079
      %6081 = vmatmul.bf16.gmra.mxu0 %v3467
      %v6082 = vpop.f32.mrf.mxu0
      %v6083 = vadd.f32 0.0, %v6082
      %v6084 = vpop.f32.mrf.mxu0
      %v6085 = vadd.f32 0.0, %v6084
      %6086 = vmatmul.bf16.gmra.mxu0 %v3470
      %v6087 = vpop.f32.mrf.mxu0
      %v6088 = vadd.f32 0.0, %v6087
      %v6089 = vpop.f32.mrf.mxu0
      %v6090 = vadd.f32 0.0, %v6089
      %6091 = vmatmul.bf16.gmra.mxu0 %v3473
      %v6092 = vpop.f32.mrf.mxu0
      %v6093 = vadd.f32 0.0, %v6092
      %v6094 = vpop.f32.mrf.mxu0
      %v6095 = vadd.f32 0.0, %v6094
      %6096 = vmatmul.bf16.gmra.mxu0 %v3476
      %v6097 = vpop.f32.mrf.mxu0
      %v6098 = vadd.f32 0.0, %v6097
      %v6099 = vpop.f32.mrf.mxu0
      %v6100 = vadd.f32 0.0, %v6099
      %6101 = vmatmul.bf16.gmra.mxu0 %v3479
      %v6102 = vpop.f32.mrf.mxu0
      %v6103 = vadd.f32 0.0, %v6102
      %v6104 = vpop.f32.mrf.mxu0
      %v6105 = vadd.f32 0.0, %v6104
      %6106 = vmatmul.bf16.gmra.mxu0 %v3482
      %v6107 = vpop.f32.mrf.mxu0
      %v6108 = vadd.f32 0.0, %v6107
      %v6109 = vpop.f32.mrf.mxu0
      %v6110 = vadd.f32 0.0, %v6109
      %6111 = vmatmul.bf16.gmra.mxu0 %v3485
      %v6112 = vpop.f32.mrf.mxu0
      %v6113 = vadd.f32 0.0, %v6112
      %v6114 = vpop.f32.mrf.mxu0
      %v6115 = vadd.f32 0.0, %v6114
      %6116 = vmatmul.bf16.gmra.mxu0 %v3488
      %v6117 = vpop.f32.mrf.mxu0
      %v6118 = vadd.f32 0.0, %v6117
      %v6119 = vpop.f32.mrf.mxu0
      %v6120 = vadd.f32 0.0, %v6119
      %6121 = vmatmul.bf16.gmra.mxu0 %v3491
      %v6122 = vpop.f32.mrf.mxu0
      %v6123 = vadd.f32 0.0, %v6122
      %v6124 = vpop.f32.mrf.mxu0
      %v6125 = vadd.f32 0.0, %v6124
      %6126 = vmatmul.bf16.gmra.mxu0 %v3494
      %v6127 = vpop.f32.mrf.mxu0
      %v6128 = vadd.f32 0.0, %v6127
      %v6129 = vpop.f32.mrf.mxu0
      %v6130 = vadd.f32 0.0, %v6129
      %6131 = vmatmul.bf16.gmra.mxu0 %v3497
      %v6132 = vpop.f32.mrf.mxu0
      %v6133 = vadd.f32 0.0, %v6132
      %v6134 = vpop.f32.mrf.mxu0
      %v6135 = vadd.f32 0.0, %v6134
      %6136 = vmatmul.bf16.gmra.mxu0 %v3500
      %v6137 = vpop.f32.mrf.mxu0
      %v6138 = vadd.f32 0.0, %v6137
      %v6139 = vpop.f32.mrf.mxu0
      %v6140 = vadd.f32 0.0, %v6139
      %6141 = vmatmul.bf16.gmra.mxu0 %v3503
      %v6142 = vpop.f32.mrf.mxu0
      %v6143 = vadd.f32 0.0, %v6142
      %v6144 = vpop.f32.mrf.mxu0
      %v6145 = vadd.f32 0.0, %v6144
      %6146 = vmatmul.bf16.gmra.mxu0 %v3506
      %v6147 = vpop.f32.mrf.mxu0
      %v6148 = vadd.f32 0.0, %v6147
      %v6149 = vpop.f32.mrf.mxu0
      %v6150 = vadd.f32 0.0, %v6149
      %6151 = vmatmul.bf16.gmra.mxu0 %v3509
      %v6152 = vpop.f32.mrf.mxu0
      %v6153 = vadd.f32 0.0, %v6152
      %v6154 = vpop.f32.mrf.mxu0
      %v6155 = vadd.f32 0.0, %v6154
      %6156 = vmatmul.bf16.gmra.mxu0 %v3512
      %v6157 = vpop.f32.mrf.mxu0
      %v6158 = vadd.f32 0.0, %v6157
      %v6159 = vpop.f32.mrf.mxu0
      %v6160 = vadd.f32 0.0, %v6159
      %6161 = vmatmul.bf16.gmra.mxu0 %v3515
      %v6162 = vpop.f32.mrf.mxu0
      %v6163 = vadd.f32 0.0, %v6162
      %v6164 = vpop.f32.mrf.mxu0
      %v6165 = vadd.f32 0.0, %v6164
      %6166 = vmatmul.bf16.gmra.mxu0 %v3518
      %v6167 = vpop.f32.mrf.mxu0
      %v6168 = vadd.f32 0.0, %v6167
      %v6169 = vpop.f32.mrf.mxu0
      %v6170 = vadd.f32 0.0, %v6169
      %6171 = vmatmul.bf16.gmra.mxu0 %v3521
      %v6172 = vpop.f32.mrf.mxu0
      %v6173 = vadd.f32 0.0, %v6172
      %v6174 = vpop.f32.mrf.mxu0
      %v6175 = vadd.f32 0.0, %v6174
      %6176 = vmatmul.bf16.gmra.mxu0 %v3524
      %v6177 = vpop.f32.mrf.mxu0
      %v6178 = vadd.f32 0.0, %v6177
      %v6179 = vpop.f32.mrf.mxu0
      %v6180 = vadd.f32 0.0, %v6179
      %6181 = vmatmul.bf16.gmra.mxu0 %v3527
      %v6182 = vpop.f32.mrf.mxu0
      %v6183 = vadd.f32 0.0, %v6182
      %v6184 = vpop.f32.mrf.mxu0
      %v6185 = vadd.f32 0.0, %v6184
      %6186 = vmatmul.bf16.gmra.mxu0 %v3530
      %v6187 = vpop.f32.mrf.mxu0
      %v6188 = vadd.f32 0.0, %v6187
      %v6189 = vpop.f32.mrf.mxu0
      %v6190 = vadd.f32 0.0, %v6189
      %6191 = vmatmul.bf16.gmra.mxu0 %v3533
      %v6192 = vpop.f32.mrf.mxu0
      %v6193 = vadd.f32 0.0, %v6192
      %v6194 = vpop.f32.mrf.mxu0
      %v6195 = vadd.f32 0.0, %v6194
      %6196 = vmatmul.bf16.gmra.mxu0 %v3536
      %v6197 = vpop.f32.mrf.mxu0
      %v6198 = vadd.f32 0.0, %v6197
      %v6199 = vpop.f32.mrf.mxu0
      %v6200 = vadd.f32 0.0, %v6199
      %6201 = vmatmul.bf16.gmra.mxu0 %v3539
      %v6202 = vpop.f32.mrf.mxu0
      %v6203 = vadd.f32 0.0, %v6202
      %v6204 = vpop.f32.mrf.mxu0
      %v6205 = vadd.f32 0.0, %v6204
      %6206 = vmatmul.bf16.gmra.mxu0 %v3542
      %v6207 = vpop.f32.mrf.mxu0
      %v6208 = vadd.f32 0.0, %v6207
      %v6209 = vpop.f32.mrf.mxu0
      %v6210 = vadd.f32 0.0, %v6209
      %6211 = vmatmul.bf16.gmra.mxu0 %v3545
      %v6212 = vpop.f32.mrf.mxu0
      %v6213 = vadd.f32 0.0, %v6212
      %v6214 = vpop.f32.mrf.mxu0
      %v6215 = vadd.f32 0.0, %v6214
      %6216 = vmatmul.bf16.gmra.mxu0 %v3548
      %v6217 = vpop.f32.mrf.mxu0
      %v6218 = vadd.f32 0.0, %v6217
      %v6219 = vpop.f32.mrf.mxu0
      %v6220 = vadd.f32 0.0, %v6219
      %6221 = vmatmul.bf16.gmra.mxu0 %v3551
      %v6222 = vpop.f32.mrf.mxu0
      %v6223 = vadd.f32 0.0, %v6222
      %v6224 = vpop.f32.mrf.mxu0
      %v6225 = vadd.f32 0.0, %v6224
      %6226 = vmatmul.bf16.gmra.mxu0 %v3554
      %v6227 = vpop.f32.mrf.mxu0
      %v6228 = vadd.f32 0.0, %v6227
      %v6229 = vpop.f32.mrf.mxu0
      %v6230 = vadd.f32 0.0, %v6229
      %6231 = vmatmul.bf16.gmra.mxu0 %v3557
      %v6232 = vpop.f32.mrf.mxu0
      %v6233 = vadd.f32 0.0, %v6232
      %v6234 = vpop.f32.mrf.mxu0
      %v6235 = vadd.f32 0.0, %v6234
      %6236 = vmatmul.bf16.gmra.mxu0 %v3560
      %v6237 = vpop.f32.mrf.mxu0
      %v6238 = vadd.f32 0.0, %v6237
      %v6239 = vpop.f32.mrf.mxu0
      %v6240 = vadd.f32 0.0, %v6239
      %6241 = vmatmul.bf16.gmra.mxu0 %v3563
      %v6242 = vpop.f32.mrf.mxu0
      %v6243 = vadd.f32 0.0, %v6242
      %v6244 = vpop.f32.mrf.mxu0
      %v6245 = vadd.f32 0.0, %v6244
      %6246 = vmatmul.bf16.gmra.mxu0 %v3566
      %v6247 = vpop.f32.mrf.mxu0
      %v6248 = vadd.f32 0.0, %v6247
      %v6249 = vpop.f32.mrf.mxu0
      %v6250 = vadd.f32 0.0, %v6249
      %6251 = vmatmul.bf16.gmra.mxu0 %v3569
      %v6252 = vpop.f32.mrf.mxu0
      %v6253 = vadd.f32 0.0, %v6252
      %v6254 = vpop.f32.mrf.mxu0
      %v6255 = vadd.f32 0.0, %v6254
      %6256 = vmatmul.bf16.gmra.mxu0 %v3572
      %v6257 = vpop.f32.mrf.mxu0
      %v6258 = vadd.f32 0.0, %v6257
      %v6259 = vpop.f32.mrf.mxu0
      %v6260 = vadd.f32 0.0, %v6259
      %6261 = vmatmul.bf16.gmra.mxu0 %v3575
      %v6262 = vpop.f32.mrf.mxu0
      %v6263 = vadd.f32 0.0, %v6262
      %v6264 = vpop.f32.mrf.mxu0
      %v6265 = vadd.f32 0.0, %v6264
      %6266 = vmatmul.bf16.gmra.mxu0 %v3578
      %v6267 = vpop.f32.mrf.mxu0
      %v6268 = vadd.f32 0.0, %v6267
      %v6269 = vpop.f32.mrf.mxu0
      %v6270 = vadd.f32 0.0, %v6269
      %6271 = vmatmul.bf16.gmra.mxu0 %v3581
      %v6272 = vpop.f32.mrf.mxu0
      %v6273 = vadd.f32 0.0, %v6272
      %v6274 = vpop.f32.mrf.mxu0
      %v6275 = vadd.f32 0.0, %v6274
      %6276 = vmatmul.bf16.gmra.mxu0 %v3584
      %v6277 = vpop.f32.mrf.mxu0
      %v6278 = vadd.f32 0.0, %v6277
      %v6279 = vpop.f32.mrf.mxu0
      %v6280 = vadd.f32 0.0, %v6279
      %6281 = vmatmul.bf16.gmra.mxu0 %v3587
      %v6282 = vpop.f32.mrf.mxu0
      %v6283 = vadd.f32 0.0, %v6282
      %v6284 = vpop.f32.mrf.mxu0
      %v6285 = vadd.f32 0.0, %v6284
      %6286 = vmatmul.bf16.gmra.mxu0 %v3590
      %v6287 = vpop.f32.mrf.mxu0
      %v6288 = vadd.f32 0.0, %v6287
      %v6289 = vpop.f32.mrf.mxu0
      %v6290 = vadd.f32 0.0, %v6289
      %6291 = vmatmul.bf16.gmra.mxu0 %v3593
      %v6292 = vpop.f32.mrf.mxu0
      %v6293 = vadd.f32 0.0, %v6292
      %v6294 = vpop.f32.mrf.mxu0
      %v6295 = vadd.f32 0.0, %v6294
      %6296 = vmatmul.bf16.gmra.mxu0 %v3596
      %v6297 = vpop.f32.mrf.mxu0
      %v6298 = vadd.f32 0.0, %v6297
      %v6299 = vpop.f32.mrf.mxu0
      %v6300 = vadd.f32 0.0, %v6299
      %6301 = vmatmul.bf16.gmra.mxu0 %v3599
      %v6302 = vpop.f32.mrf.mxu0
      %v6303 = vadd.f32 0.0, %v6302
      %v6304 = vpop.f32.mrf.mxu0
      %v6305 = vadd.f32 0.0, %v6304
      %6306 = vmatmul.bf16.gmra.mxu0 %v5980
      %v6307 = vpop.f32.mrf.mxu0
      %v6308 = vadd.f32 0.0, %v6307
      %v6309 = vpop.f32.mrf.mxu0
      %v6310 = vadd.f32 0.0, %v6309
      %6311 = vmatmul.bf16.gmra.mxu0 %v5983
      %v6312 = vpop.f32.mrf.mxu0
      %v6313 = vadd.f32 0.0, %v6312
      %v6314 = vpop.f32.mrf.mxu0
      %v6315 = vadd.f32 0.0, %v6314
      %6316 = vdwg.mxu0
      %v6317 = vadd.f32 %v5844, %v5998
      %v6318 = vadd.f32 %v5845, %v6000
      %v6319 = vadd.f32 %v5846, %v6003
      %v6320 = vadd.f32 %v5847, %v6005
      %v6321 = vadd.f32 %v5848, %v6008
      %v6322 = vadd.f32 %v5849, %v6010
      %v6323 = vadd.f32 %v5850, %v6013
      %v6324 = vadd.f32 %v5851, %v6015
      %v6325 = vadd.f32 %v5852, %v6018
      %v6326 = vadd.f32 %v5853, %v6020
      %v6327 = vadd.f32 %v5854, %v6023
      %v6328 = vadd.f32 %v5855, %v6025
      %v6329 = vadd.f32 %v5856, %v6028
      %v6330 = vadd.f32 %v5857, %v6030
      %v6331 = vadd.f32 %v5858, %v6033
      %v6332 = vadd.f32 %v5859, %v6035
      %v6333 = vadd.f32 %v5860, %v6038
      %v6334 = vadd.f32 %v5861, %v6040
      %v6335 = vadd.f32 %v5862, %v6043
      %v6336 = vadd.f32 %v5863, %v6045
      %v6337 = vadd.f32 %v5864, %v6048
      %v6338 = vadd.f32 %v5865, %v6050
      %v6339 = vadd.f32 %v5866, %v6053
      %v6340 = vadd.f32 %v5867, %v6055
      %v6341 = vadd.f32 %v5868, %v6058
      %v6342 = vadd.f32 %v5869, %v6060
      %v6343 = vadd.f32 %v5870, %v6063
      %v6344 = vadd.f32 %v5871, %v6065
      %v6345 = vadd.f32 %v5872, %v6068
      %v6346 = vadd.f32 %v5873, %v6070
      %v6347 = vadd.f32 %v5874, %v6073
      %v6348 = vadd.f32 %v5875, %v6075
      %v6349 = vadd.f32 %v5876, %v6078
      %v6350 = vadd.f32 %v5877, %v6080
      %v6351 = vadd.f32 %v5878, %v6083
      %v6352 = vadd.f32 %v5879, %v6085
      %v6353 = vadd.f32 %v5880, %v6088
      %v6354 = vadd.f32 %v5881, %v6090
      %v6355 = vadd.f32 %v5882, %v6093
      %v6356 = vadd.f32 %v5883, %v6095
      %v6357 = vadd.f32 %v5884, %v6098
      %v6358 = vadd.f32 %v5885, %v6100
      %v6359 = vadd.f32 %v5886, %v6103
      %v6360 = vadd.f32 %v5887, %v6105
      %v6361 = vadd.f32 %v5888, %v6108
      %v6362 = vadd.f32 %v5889, %v6110
      %v6363 = vadd.f32 %v5890, %v6113
      %v6364 = vadd.f32 %v5891, %v6115
      %v6365 = vadd.f32 %v5892, %v6118
      %v6366 = vadd.f32 %v5893, %v6120
      %v6367 = vadd.f32 %v5894, %v6123
      %v6368 = vadd.f32 %v5895, %v6125
      %v6369 = vadd.f32 %v5896, %v6128
      %v6370 = vadd.f32 %v5897, %v6130
      %v6371 = vadd.f32 %v5898, %v6133
      %v6372 = vadd.f32 %v5899, %v6135
      %v6373 = vadd.f32 %v5900, %v6138
      %v6374 = vadd.f32 %v5901, %v6140
      %v6375 = vadd.f32 %v5902, %v6143
      %v6376 = vadd.f32 %v5903, %v6145
      %v6377 = vadd.f32 %v5904, %v6148
      %v6378 = vadd.f32 %v5905, %v6150
      %v6379 = vadd.f32 %v5906, %v6153
      %v6380 = vadd.f32 %v5907, %v6155
      %v6381 = vadd.f32 %v5908, %v6158
      %v6382 = vadd.f32 %v5909, %v6160
      %v6383 = vadd.f32 %v5910, %v6163
      %v6384 = vadd.f32 %v5911, %v6165
      %v6385 = vadd.f32 %v5912, %v6168
      %v6386 = vadd.f32 %v5913, %v6170
      %v6387 = vadd.f32 %v5914, %v6173
      %v6388 = vadd.f32 %v5915, %v6175
      %v6389 = vadd.f32 %v5916, %v6178
      %v6390 = vadd.f32 %v5917, %v6180
      %v6391 = vadd.f32 %v5918, %v6183
      %v6392 = vadd.f32 %v5919, %v6185
      %v6393 = vadd.f32 %v5920, %v6188
      %v6394 = vadd.f32 %v5921, %v6190
      %v6395 = vadd.f32 %v5922, %v6193
      %v6396 = vadd.f32 %v5923, %v6195
      %v6397 = vadd.f32 %v5924, %v6198
      %v6398 = vadd.f32 %v5925, %v6200
      %v6399 = vadd.f32 %v5926, %v6203
      %v6400 = vadd.f32 %v5927, %v6205
      %v6401 = vadd.f32 %v5928, %v6208
      %v6402 = vadd.f32 %v5929, %v6210
      %v6403 = vadd.f32 %v5930, %v6213
      %v6404 = vadd.f32 %v5931, %v6215
      %v6405 = vadd.f32 %v5932, %v6218
      %v6406 = vadd.f32 %v5933, %v6220
      %v6407 = vadd.f32 %v5934, %v6223
      %v6408 = vadd.f32 %v5935, %v6225
      %v6409 = vadd.f32 %v5936, %v6228
      %v6410 = vadd.f32 %v5937, %v6230
      %v6411 = vadd.f32 %v5938, %v6233
      %v6412 = vadd.f32 %v5939, %v6235
      %v6413 = vadd.f32 %v5940, %v6238
      %v6414 = vadd.f32 %v5941, %v6240
      %v6415 = vadd.f32 %v5942, %v6243
      %v6416 = vadd.f32 %v5943, %v6245
      %v6417 = vadd.f32 %v5944, %v6248
      %v6418 = vadd.f32 %v5945, %v6250
      %v6419 = vadd.f32 %v5946, %v6253
      %v6420 = vadd.f32 %v5947, %v6255
      %v6421 = vadd.f32 %v5948, %v6258
      %v6422 = vadd.f32 %v5949, %v6260
      %v6423 = vadd.f32 %v5950, %v6263
      %v6424 = vadd.f32 %v5951, %v6265
      %v6425 = vadd.f32 %v5952, %v6268
      %v6426 = vadd.f32 %v5953, %v6270
      %v6427 = vadd.f32 %v5954, %v6273
      %v6428 = vadd.f32 %v5955, %v6275
      %v6429 = vadd.f32 %v5956, %v6278
      %v6430 = vadd.f32 %v5957, %v6280
      %v6431 = vadd.f32 %v5958, %v6283
      %v6432 = vadd.f32 %v5959, %v6285
      %v6433 = vadd.f32 %v5960, %v6288
      %v6434 = vadd.f32 %v5961, %v6290
      %v6435 = vadd.f32 %v5962, %v6293
      %v6436 = vadd.f32 %v5963, %v6295
      %v6437 = vadd.f32 %v5964, %v6298
      %v6438 = vadd.f32 %v5965, %v6300
      %v6439 = vadd.f32 %v5966, %v6303
      %v6440 = vadd.f32 %v5967, %v6305
      %v6441 = vadd.f32 %v5968, %v6308
      %v6442 = vadd.f32 %v5969, %v6310
      %v6443 = vadd.f32 %v5970, %v6313
      %v6444 = vadd.f32 %v5971, %v6315
      %v6445 = vld [vmem:[%s1 + $0x8] sm:$0xc]
      %v6446 = vunpack.c.l.b16 %v3187
      %v6447 = vunpack.c.l.b16 %v3190
      %v6448 = vunpack.c.l.b16 %v3193
      %v6449 = vunpack.c.l.b16 %v3196
      %v6450 = vpack.c.b16 %v6447, %v6446
      %v6451 = vpack.c.b16 %v6449, %v6448
      %v6453 = vunpack.c.l.b16 %v6445
      %v6454 = vpack.c.b16 %v6453, %v6453
      %v6455 = vrot.slane %v6454, 2
      %v6457 = vsel %vm3408, %v6450, 0
      %v6460 = vsel %vm3408, %v6451, 0
      %v6463 = vsel %vm3601, %v6455, 0
      %6465 = vmatpush.bf16.msra.mxu0 0
      %6466 = vmatpush.bf16.msra.mxu0 0
      %6467 = vmatpush.bf16.msra.mxu0 0
      %6468 = vmatpush.bf16.msra.mxu0 0
      %6469 = vmatpush.bf16.msra.mxu0 0
      %6470 = vmatpush.bf16.msra.mxu0 0
      %6471 = vmatpush.bf16.msra.mxu0 0
      %6472 = vmatpush.bf16.msra.mxu0 %v6463
      %6473 = vmatmul.bf16.gmra.mxu0 %v4850
      %v6474 = vpop.f32.mrf.mxu0
      %v6475 = vadd.f32 0.0, %v6474
      %v6476 = vpop.f32.mrf.mxu0
      %v6477 = vadd.f32 0.0, %v6476
      %6478 = vmatmul.bf16.gmra.mxu0 %v4853
      %v6479 = vpop.f32.mrf.mxu0
      %v6480 = vadd.f32 0.0, %v6479
      %v6481 = vpop.f32.mrf.mxu0
      %v6482 = vadd.f32 0.0, %v6481
      %6483 = vmatmul.bf16.gmra.mxu0 %v4856
      %v6484 = vpop.f32.mrf.mxu0
      %v6485 = vadd.f32 0.0, %v6484
      %v6486 = vpop.f32.mrf.mxu0
      %v6487 = vadd.f32 0.0, %v6486
      %6488 = vmatmul.bf16.gmra.mxu0 %v4859
      %v6489 = vpop.f32.mrf.mxu0
      %v6490 = vadd.f32 0.0, %v6489
      %v6491 = vpop.f32.mrf.mxu0
      %v6492 = vadd.f32 0.0, %v6491
      %6493 = vmatmul.bf16.gmra.mxu0 %v4862
      %v6494 = vpop.f32.mrf.mxu0
      %v6495 = vadd.f32 0.0, %v6494
      %v6496 = vpop.f32.mrf.mxu0
      %v6497 = vadd.f32 0.0, %v6496
      %6498 = vmatmul.bf16.gmra.mxu0 %v4865
      %v6499 = vpop.f32.mrf.mxu0
      %v6500 = vadd.f32 0.0, %v6499
      %v6501 = vpop.f32.mrf.mxu0
      %v6502 = vadd.f32 0.0, %v6501
      %6503 = vmatmul.bf16.gmra.mxu0 %v4868
      %v6504 = vpop.f32.mrf.mxu0
      %v6505 = vadd.f32 0.0, %v6504
      %v6506 = vpop.f32.mrf.mxu0
      %v6507 = vadd.f32 0.0, %v6506
      %6508 = vmatmul.bf16.gmra.mxu0 %v4871
      %v6509 = vpop.f32.mrf.mxu0
      %v6510 = vadd.f32 0.0, %v6509
      %v6511 = vpop.f32.mrf.mxu0
      %v6512 = vadd.f32 0.0, %v6511
      %6513 = vmatmul.bf16.gmra.mxu0 %v4874
      %v6514 = vpop.f32.mrf.mxu0
      %v6515 = vadd.f32 0.0, %v6514
      %v6516 = vpop.f32.mrf.mxu0
      %v6517 = vadd.f32 0.0, %v6516
      %6518 = vmatmul.bf16.gmra.mxu0 %v4877
      %v6519 = vpop.f32.mrf.mxu0
      %v6520 = vadd.f32 0.0, %v6519
      %v6521 = vpop.f32.mrf.mxu0
      %v6522 = vadd.f32 0.0, %v6521
      %6523 = vmatmul.bf16.gmra.mxu0 %v4880
      %v6524 = vpop.f32.mrf.mxu0
      %v6525 = vadd.f32 0.0, %v6524
      %v6526 = vpop.f32.mrf.mxu0
      %v6527 = vadd.f32 0.0, %v6526
      %6528 = vmatmul.bf16.gmra.mxu0 %v4883
      %v6529 = vpop.f32.mrf.mxu0
      %v6530 = vadd.f32 0.0, %v6529
      %v6531 = vpop.f32.mrf.mxu0
      %v6532 = vadd.f32 0.0, %v6531
      %6533 = vmatmul.bf16.gmra.mxu0 %v4886
      %v6534 = vpop.f32.mrf.mxu0
      %v6535 = vadd.f32 0.0, %v6534
      %v6536 = vpop.f32.mrf.mxu0
      %v6537 = vadd.f32 0.0, %v6536
      %6538 = vmatmul.bf16.gmra.mxu0 %v4889
      %v6539 = vpop.f32.mrf.mxu0
      %v6540 = vadd.f32 0.0, %v6539
      %v6541 = vpop.f32.mrf.mxu0
      %v6542 = vadd.f32 0.0, %v6541
      %6543 = vmatmul.bf16.gmra.mxu0 %v4892
      %v6544 = vpop.f32.mrf.mxu0
      %v6545 = vadd.f32 0.0, %v6544
      %v6546 = vpop.f32.mrf.mxu0
      %v6547 = vadd.f32 0.0, %v6546
      %6548 = vmatmul.bf16.gmra.mxu0 %v4895
      %v6549 = vpop.f32.mrf.mxu0
      %v6550 = vadd.f32 0.0, %v6549
      %v6551 = vpop.f32.mrf.mxu0
      %v6552 = vadd.f32 0.0, %v6551
      %6553 = vmatmul.bf16.gmra.mxu0 %v4898
      %v6554 = vpop.f32.mrf.mxu0
      %v6555 = vadd.f32 0.0, %v6554
      %v6556 = vpop.f32.mrf.mxu0
      %v6557 = vadd.f32 0.0, %v6556
      %6558 = vmatmul.bf16.gmra.mxu0 %v4901
      %v6559 = vpop.f32.mrf.mxu0
      %v6560 = vadd.f32 0.0, %v6559
      %v6561 = vpop.f32.mrf.mxu0
      %v6562 = vadd.f32 0.0, %v6561
      %6563 = vmatmul.bf16.gmra.mxu0 %v4904
      %v6564 = vpop.f32.mrf.mxu0
      %v6565 = vadd.f32 0.0, %v6564
      %v6566 = vpop.f32.mrf.mxu0
      %v6567 = vadd.f32 0.0, %v6566
      %6568 = vmatmul.bf16.gmra.mxu0 %v4907
      %v6569 = vpop.f32.mrf.mxu0
      %v6570 = vadd.f32 0.0, %v6569
      %v6571 = vpop.f32.mrf.mxu0
      %v6572 = vadd.f32 0.0, %v6571
      %6573 = vmatmul.bf16.gmra.mxu0 %v4910
      %v6574 = vpop.f32.mrf.mxu0
      %v6575 = vadd.f32 0.0, %v6574
      %v6576 = vpop.f32.mrf.mxu0
      %v6577 = vadd.f32 0.0, %v6576
      %6578 = vmatmul.bf16.gmra.mxu0 %v4913
      %v6579 = vpop.f32.mrf.mxu0
      %v6580 = vadd.f32 0.0, %v6579
      %v6581 = vpop.f32.mrf.mxu0
      %v6582 = vadd.f32 0.0, %v6581
      %6583 = vmatmul.bf16.gmra.mxu0 %v4916
      %v6584 = vpop.f32.mrf.mxu0
      %v6585 = vadd.f32 0.0, %v6584
      %v6586 = vpop.f32.mrf.mxu0
      %v6587 = vadd.f32 0.0, %v6586
      %6588 = vmatmul.bf16.gmra.mxu0 %v4919
      %v6589 = vpop.f32.mrf.mxu0
      %v6590 = vadd.f32 0.0, %v6589
      %v6591 = vpop.f32.mrf.mxu0
      %v6592 = vadd.f32 0.0, %v6591
      %6593 = vmatmul.bf16.gmra.mxu0 %v4922
      %v6594 = vpop.f32.mrf.mxu0
      %v6595 = vadd.f32 0.0, %v6594
      %v6596 = vpop.f32.mrf.mxu0
      %v6597 = vadd.f32 0.0, %v6596
      %6598 = vmatmul.bf16.gmra.mxu0 %v4925
      %v6599 = vpop.f32.mrf.mxu0
      %v6600 = vadd.f32 0.0, %v6599
      %v6601 = vpop.f32.mrf.mxu0
      %v6602 = vadd.f32 0.0, %v6601
      %6603 = vmatmul.bf16.gmra.mxu0 %v4928
      %v6604 = vpop.f32.mrf.mxu0
      %v6605 = vadd.f32 0.0, %v6604
      %v6606 = vpop.f32.mrf.mxu0
      %v6607 = vadd.f32 0.0, %v6606
      %6608 = vmatmul.bf16.gmra.mxu0 %v4931
      %v6609 = vpop.f32.mrf.mxu0
      %v6610 = vadd.f32 0.0, %v6609
      %v6611 = vpop.f32.mrf.mxu0
      %v6612 = vadd.f32 0.0, %v6611
      %6613 = vmatmul.bf16.gmra.mxu0 %v4934
      %v6614 = vpop.f32.mrf.mxu0
      %v6615 = vadd.f32 0.0, %v6614
      %v6616 = vpop.f32.mrf.mxu0
      %v6617 = vadd.f32 0.0, %v6616
      %6618 = vmatmul.bf16.gmra.mxu0 %v4937
      %v6619 = vpop.f32.mrf.mxu0
      %v6620 = vadd.f32 0.0, %v6619
      %v6621 = vpop.f32.mrf.mxu0
      %v6622 = vadd.f32 0.0, %v6621
      %6623 = vmatmul.bf16.gmra.mxu0 %v4940
      %v6624 = vpop.f32.mrf.mxu0
      %v6625 = vadd.f32 0.0, %v6624
      %v6626 = vpop.f32.mrf.mxu0
      %v6627 = vadd.f32 0.0, %v6626
      %6628 = vmatmul.bf16.gmra.mxu0 %v4943
      %v6629 = vpop.f32.mrf.mxu0
      %v6630 = vadd.f32 0.0, %v6629
      %v6631 = vpop.f32.mrf.mxu0
      %v6632 = vadd.f32 0.0, %v6631
      %6633 = vmatmul.bf16.gmra.mxu0 %v4946
      %v6634 = vpop.f32.mrf.mxu0
      %v6635 = vadd.f32 0.0, %v6634
      %v6636 = vpop.f32.mrf.mxu0
      %v6637 = vadd.f32 0.0, %v6636
      %6638 = vmatmul.bf16.gmra.mxu0 %v4949
      %v6639 = vpop.f32.mrf.mxu0
      %v6640 = vadd.f32 0.0, %v6639
      %v6641 = vpop.f32.mrf.mxu0
      %v6642 = vadd.f32 0.0, %v6641
      %6643 = vmatmul.bf16.gmra.mxu0 %v4952
      %v6644 = vpop.f32.mrf.mxu0
      %v6645 = vadd.f32 0.0, %v6644
      %v6646 = vpop.f32.mrf.mxu0
      %v6647 = vadd.f32 0.0, %v6646
      %6648 = vmatmul.bf16.gmra.mxu0 %v4955
      %v6649 = vpop.f32.mrf.mxu0
      %v6650 = vadd.f32 0.0, %v6649
      %v6651 = vpop.f32.mrf.mxu0
      %v6652 = vadd.f32 0.0, %v6651
      %6653 = vmatmul.bf16.gmra.mxu0 %v4958
      %v6654 = vpop.f32.mrf.mxu0
      %v6655 = vadd.f32 0.0, %v6654
      %v6656 = vpop.f32.mrf.mxu0
      %v6657 = vadd.f32 0.0, %v6656
      %6658 = vmatmul.bf16.gmra.mxu0 %v4961
      %v6659 = vpop.f32.mrf.mxu0
      %v6660 = vadd.f32 0.0, %v6659
      %v6661 = vpop.f32.mrf.mxu0
      %v6662 = vadd.f32 0.0, %v6661
      %6663 = vmatmul.bf16.gmra.mxu0 %v4964
      %v6664 = vpop.f32.mrf.mxu0
      %v6665 = vadd.f32 0.0, %v6664
      %v6666 = vpop.f32.mrf.mxu0
      %v6667 = vadd.f32 0.0, %v6666
      %6668 = vmatmul.bf16.gmra.mxu0 %v4967
      %v6669 = vpop.f32.mrf.mxu0
      %v6670 = vadd.f32 0.0, %v6669
      %v6671 = vpop.f32.mrf.mxu0
      %v6672 = vadd.f32 0.0, %v6671
      %6673 = vmatmul.bf16.gmra.mxu0 %v4970
      %v6674 = vpop.f32.mrf.mxu0
      %v6675 = vadd.f32 0.0, %v6674
      %v6676 = vpop.f32.mrf.mxu0
      %v6677 = vadd.f32 0.0, %v6676
      %6678 = vmatmul.bf16.gmra.mxu0 %v4973
      %v6679 = vpop.f32.mrf.mxu0
      %v6680 = vadd.f32 0.0, %v6679
      %v6681 = vpop.f32.mrf.mxu0
      %v6682 = vadd.f32 0.0, %v6681
      %6683 = vmatmul.bf16.gmra.mxu0 %v4976
      %v6684 = vpop.f32.mrf.mxu0
      %v6685 = vadd.f32 0.0, %v6684
      %v6686 = vpop.f32.mrf.mxu0
      %v6687 = vadd.f32 0.0, %v6686
      %6688 = vmatmul.bf16.gmra.mxu0 %v4979
      %v6689 = vpop.f32.mrf.mxu0
      %v6690 = vadd.f32 0.0, %v6689
      %v6691 = vpop.f32.mrf.mxu0
      %v6692 = vadd.f32 0.0, %v6691
      %6693 = vmatmul.bf16.gmra.mxu0 %v4982
      %v6694 = vpop.f32.mrf.mxu0
      %v6695 = vadd.f32 0.0, %v6694
      %v6696 = vpop.f32.mrf.mxu0
      %v6697 = vadd.f32 0.0, %v6696
      %6698 = vmatmul.bf16.gmra.mxu0 %v4985
      %v6699 = vpop.f32.mrf.mxu0
      %v6700 = vadd.f32 0.0, %v6699
      %v6701 = vpop.f32.mrf.mxu0
      %v6702 = vadd.f32 0.0, %v6701
      %6703 = vmatmul.bf16.gmra.mxu0 %v4988
      %v6704 = vpop.f32.mrf.mxu0
      %v6705 = vadd.f32 0.0, %v6704
      %v6706 = vpop.f32.mrf.mxu0
      %v6707 = vadd.f32 0.0, %v6706
      %6708 = vmatmul.bf16.gmra.mxu0 %v4991
      %v6709 = vpop.f32.mrf.mxu0
      %v6710 = vadd.f32 0.0, %v6709
      %v6711 = vpop.f32.mrf.mxu0
      %v6712 = vadd.f32 0.0, %v6711
      %6713 = vmatmul.bf16.gmra.mxu0 %v4994
      %v6714 = vpop.f32.mrf.mxu0
      %v6715 = vadd.f32 0.0, %v6714
      %v6716 = vpop.f32.mrf.mxu0
      %v6717 = vadd.f32 0.0, %v6716
      %6718 = vmatmul.bf16.gmra.mxu0 %v4997
      %v6719 = vpop.f32.mrf.mxu0
      %v6720 = vadd.f32 0.0, %v6719
      %v6721 = vpop.f32.mrf.mxu0
      %v6722 = vadd.f32 0.0, %v6721
      %6723 = vmatmul.bf16.gmra.mxu0 %v5000
      %v6724 = vpop.f32.mrf.mxu0
      %v6725 = vadd.f32 0.0, %v6724
      %v6726 = vpop.f32.mrf.mxu0
      %v6727 = vadd.f32 0.0, %v6726
      %6728 = vmatmul.bf16.gmra.mxu0 %v5003
      %v6729 = vpop.f32.mrf.mxu0
      %v6730 = vadd.f32 0.0, %v6729
      %v6731 = vpop.f32.mrf.mxu0
      %v6732 = vadd.f32 0.0, %v6731
      %6733 = vmatmul.bf16.gmra.mxu0 %v5006
      %v6734 = vpop.f32.mrf.mxu0
      %v6735 = vadd.f32 0.0, %v6734
      %v6736 = vpop.f32.mrf.mxu0
      %v6737 = vadd.f32 0.0, %v6736
      %6738 = vmatmul.bf16.gmra.mxu0 %v5009
      %v6739 = vpop.f32.mrf.mxu0
      %v6740 = vadd.f32 0.0, %v6739
      %v6741 = vpop.f32.mrf.mxu0
      %v6742 = vadd.f32 0.0, %v6741
      %6743 = vmatmul.bf16.gmra.mxu0 %v5012
      %v6744 = vpop.f32.mrf.mxu0
      %v6745 = vadd.f32 0.0, %v6744
      %v6746 = vpop.f32.mrf.mxu0
      %v6747 = vadd.f32 0.0, %v6746
      %6748 = vmatmul.bf16.gmra.mxu0 %v5015
      %v6749 = vpop.f32.mrf.mxu0
      %v6750 = vadd.f32 0.0, %v6749
      %v6751 = vpop.f32.mrf.mxu0
      %v6752 = vadd.f32 0.0, %v6751
      %6753 = vmatmul.bf16.gmra.mxu0 %v5018
      %v6754 = vpop.f32.mrf.mxu0
      %v6755 = vadd.f32 0.0, %v6754
      %v6756 = vpop.f32.mrf.mxu0
      %v6757 = vadd.f32 0.0, %v6756
      %6758 = vmatmul.bf16.gmra.mxu0 %v5021
      %v6759 = vpop.f32.mrf.mxu0
      %v6760 = vadd.f32 0.0, %v6759
      %v6761 = vpop.f32.mrf.mxu0
      %v6762 = vadd.f32 0.0, %v6761
      %6763 = vmatmul.bf16.gmra.mxu0 %v5024
      %v6764 = vpop.f32.mrf.mxu0
      %v6765 = vadd.f32 0.0, %v6764
      %v6766 = vpop.f32.mrf.mxu0
      %v6767 = vadd.f32 0.0, %v6766
      %6768 = vmatmul.bf16.gmra.mxu0 %v5027
      %v6769 = vpop.f32.mrf.mxu0
      %v6770 = vadd.f32 0.0, %v6769
      %v6771 = vpop.f32.mrf.mxu0
      %v6772 = vadd.f32 0.0, %v6771
      %6773 = vmatmul.bf16.gmra.mxu0 %v5030
      %v6774 = vpop.f32.mrf.mxu0
      %v6775 = vadd.f32 0.0, %v6774
      %v6776 = vpop.f32.mrf.mxu0
      %v6777 = vadd.f32 0.0, %v6776
      %6778 = vmatmul.bf16.gmra.mxu0 %v5033
      %v6779 = vpop.f32.mrf.mxu0
      %v6780 = vadd.f32 0.0, %v6779
      %v6781 = vpop.f32.mrf.mxu0
      %v6782 = vadd.f32 0.0, %v6781
      %6783 = vmatmul.bf16.gmra.mxu0 %v6457
      %v6784 = vpop.f32.mrf.mxu0
      %v6785 = vadd.f32 0.0, %v6784
      %v6786 = vpop.f32.mrf.mxu0
      %v6787 = vadd.f32 0.0, %v6786
      %6788 = vmatmul.bf16.gmra.mxu0 %v6460
      %v6789 = vpop.f32.mrf.mxu0
      %v6790 = vadd.f32 0.0, %v6789
      %v6791 = vpop.f32.mrf.mxu0
      %v6792 = vadd.f32 0.0, %v6791
      %6793 = vdwg.mxu0
      %v6794 = vadd.f32 %v6317, %v6475
      %v6795 = vadd.f32 %v6318, %v6477
      %v6796 = vadd.f32 %v6319, %v6480
      %v6797 = vadd.f32 %v6320, %v6482
      %v6798 = vadd.f32 %v6321, %v6485
      %v6799 = vadd.f32 %v6322, %v6487
      %v6800 = vadd.f32 %v6323, %v6490
      %v6801 = vadd.f32 %v6324, %v6492
      %v6802 = vadd.f32 %v6325, %v6495
      %v6803 = vadd.f32 %v6326, %v6497
      %v6804 = vadd.f32 %v6327, %v6500
      %v6805 = vadd.f32 %v6328, %v6502
      %v6806 = vadd.f32 %v6329, %v6505
      %v6807 = vadd.f32 %v6330, %v6507
      %v6808 = vadd.f32 %v6331, %v6510
      %v6809 = vadd.f32 %v6332, %v6512
      %v6810 = vadd.f32 %v6333, %v6515
      %v6811 = vadd.f32 %v6334, %v6517
      %v6812 = vadd.f32 %v6335, %v6520
      %v6813 = vadd.f32 %v6336, %v6522
      %v6814 = vadd.f32 %v6337, %v6525
      %v6815 = vadd.f32 %v6338, %v6527
      %v6816 = vadd.f32 %v6339, %v6530
      %v6817 = vadd.f32 %v6340, %v6532
      %v6818 = vadd.f32 %v6341, %v6535
      %v6819 = vadd.f32 %v6342, %v6537
      %v6820 = vadd.f32 %v6343, %v6540
      %v6821 = vadd.f32 %v6344, %v6542
      %v6822 = vadd.f32 %v6345, %v6545
      %v6823 = vadd.f32 %v6346, %v6547
      %v6824 = vadd.f32 %v6347, %v6550
      %v6825 = vadd.f32 %v6348, %v6552
      %v6826 = vadd.f32 %v6349, %v6555
      %v6827 = vadd.f32 %v6350, %v6557
      %v6828 = vadd.f32 %v6351, %v6560
      %v6829 = vadd.f32 %v6352, %v6562
      %v6830 = vadd.f32 %v6353, %v6565
      %v6831 = vadd.f32 %v6354, %v6567
      %v6832 = vadd.f32 %v6355, %v6570
      %v6833 = vadd.f32 %v6356, %v6572
      %v6834 = vadd.f32 %v6357, %v6575
      %v6835 = vadd.f32 %v6358, %v6577
      %v6836 = vadd.f32 %v6359, %v6580
      %v6837 = vadd.f32 %v6360, %v6582
      %v6838 = vadd.f32 %v6361, %v6585
      %v6839 = vadd.f32 %v6362, %v6587
      %v6840 = vadd.f32 %v6363, %v6590
      %v6841 = vadd.f32 %v6364, %v6592
      %v6842 = vadd.f32 %v6365, %v6595
      %v6843 = vadd.f32 %v6366, %v6597
      %v6844 = vadd.f32 %v6367, %v6600
      %v6845 = vadd.f32 %v6368, %v6602
      %v6846 = vadd.f32 %v6369, %v6605
      %v6847 = vadd.f32 %v6370, %v6607
      %v6848 = vadd.f32 %v6371, %v6610
      %v6849 = vadd.f32 %v6372, %v6612
      %v6850 = vadd.f32 %v6373, %v6615
      %v6851 = vadd.f32 %v6374, %v6617
      %v6852 = vadd.f32 %v6375, %v6620
      %v6853 = vadd.f32 %v6376, %v6622
      %v6854 = vadd.f32 %v6377, %v6625
      %v6855 = vadd.f32 %v6378, %v6627
      %v6856 = vadd.f32 %v6379, %v6630
      %v6857 = vadd.f32 %v6380, %v6632
      %v6858 = vadd.f32 %v6381, %v6635
      %v6859 = vadd.f32 %v6382, %v6637
      %v6860 = vadd.f32 %v6383, %v6640
      %v6861 = vadd.f32 %v6384, %v6642
      %v6862 = vadd.f32 %v6385, %v6645
      %v6863 = vadd.f32 %v6386, %v6647
      %v6864 = vadd.f32 %v6387, %v6650
      %v6865 = vadd.f32 %v6388, %v6652
      %v6866 = vadd.f32 %v6389, %v6655
      %v6867 = vadd.f32 %v6390, %v6657
      %v6868 = vadd.f32 %v6391, %v6660
      %v6869 = vadd.f32 %v6392, %v6662
      %v6870 = vadd.f32 %v6393, %v6665
      %v6871 = vadd.f32 %v6394, %v6667
      %v6872 = vadd.f32 %v6395, %v6670
      %v6873 = vadd.f32 %v6396, %v6672
      %v6874 = vadd.f32 %v6397, %v6675
      %v6875 = vadd.f32 %v6398, %v6677
      %v6876 = vadd.f32 %v6399, %v6680
      %v6877 = vadd.f32 %v6400, %v6682
      %v6878 = vadd.f32 %v6401, %v6685
      %v6879 = vadd.f32 %v6402, %v6687
      %v6880 = vadd.f32 %v6403, %v6690
      %v6881 = vadd.f32 %v6404, %v6692
      %v6882 = vadd.f32 %v6405, %v6695
      %v6883 = vadd.f32 %v6406, %v6697
      %v6884 = vadd.f32 %v6407, %v6700
      %v6885 = vadd.f32 %v6408, %v6702
      %v6886 = vadd.f32 %v6409, %v6705
      %v6887 = vadd.f32 %v6410, %v6707
      %v6888 = vadd.f32 %v6411, %v6710
      %v6889 = vadd.f32 %v6412, %v6712
      %v6890 = vadd.f32 %v6413, %v6715
      %v6891 = vadd.f32 %v6414, %v6717
      %v6892 = vadd.f32 %v6415, %v6720
      %v6893 = vadd.f32 %v6416, %v6722
      %v6894 = vadd.f32 %v6417, %v6725
      %v6895 = vadd.f32 %v6418, %v6727
      %v6896 = vadd.f32 %v6419, %v6730
      %v6897 = vadd.f32 %v6420, %v6732
      %v6898 = vadd.f32 %v6421, %v6735
      %v6899 = vadd.f32 %v6422, %v6737
      %v6900 = vadd.f32 %v6423, %v6740
      %v6901 = vadd.f32 %v6424, %v6742
      %v6902 = vadd.f32 %v6425, %v6745
      %v6903 = vadd.f32 %v6426, %v6747
      %v6904 = vadd.f32 %v6427, %v6750
      %v6905 = vadd.f32 %v6428, %v6752
      %v6906 = vadd.f32 %v6429, %v6755
      %v6907 = vadd.f32 %v6430, %v6757
      %v6908 = vadd.f32 %v6431, %v6760
      %v6909 = vadd.f32 %v6432, %v6762
      %v6910 = vadd.f32 %v6433, %v6765
      %v6911 = vadd.f32 %v6434, %v6767
      %v6912 = vadd.f32 %v6435, %v6770
      %v6913 = vadd.f32 %v6436, %v6772
      %v6914 = vadd.f32 %v6437, %v6775
      %v6915 = vadd.f32 %v6438, %v6777
      %v6916 = vadd.f32 %v6439, %v6780
      %v6917 = vadd.f32 %v6440, %v6782
      %v6918 = vadd.f32 %v6441, %v6785
      %v6919 = vadd.f32 %v6442, %v6787
      %v6920 = vadd.f32 %v6443, %v6790
      %v6921 = vadd.f32 %v6444, %v6792
      %v6922 = vld [vmem:[%s1 + $0xc] sm:$0x3]
      %v6923 = vunpack.c.l.b16 %v1091
      %v6924 = vunpack.c.l.b16 %v1092
      %v6925 = vunpack.c.l.b16 %v1093
      %v6926 = vunpack.c.l.b16 %v1094
      %v6927 = vpack.c.b16 %v6924, %v6923
      %v6928 = vpack.c.b16 %v6926, %v6925
      %v6930 = vsel %vm3408, %v6927, 0
      %v6933 = vsel %vm3408, %v6928, 0
      %v6936 = vsel %vm3601, %v6922, 0
      %6938 = vmatpush.bf16.msra.mxu0 0
      %6939 = vmatpush.bf16.msra.mxu0 0
      %6940 = vmatpush.bf16.msra.mxu0 0
      %6941 = vmatpush.bf16.msra.mxu0 0
      %6942 = vmatpush.bf16.msra.mxu0 0
      %6943 = vmatpush.bf16.msra.mxu0 0
      %6944 = vmatpush.bf16.msra.mxu0 0
      %6945 = vmatpush.bf16.msra.mxu0 %v6936
      %6946 = vmatmul.bf16.gmra.mxu0 %v4139
      %v6947 = vpop.f32.mrf.mxu0
      %v6948 = vadd.f32 0.0, %v6947
      %v6949 = vpop.f32.mrf.mxu0
      %v6950 = vadd.f32 0.0, %v6949
      %6951 = vmatmul.bf16.gmra.mxu0 %v4142
      %v6952 = vpop.f32.mrf.mxu0
      %v6953 = vadd.f32 0.0, %v6952
      %v6954 = vpop.f32.mrf.mxu0
      %v6955 = vadd.f32 0.0, %v6954
      %6956 = vmatmul.bf16.gmra.mxu0 %v4145
      %v6957 = vpop.f32.mrf.mxu0
      %v6958 = vadd.f32 0.0, %v6957
      %v6959 = vpop.f32.mrf.mxu0
      %v6960 = vadd.f32 0.0, %v6959
      %6961 = vmatmul.bf16.gmra.mxu0 %v4148
      %v6962 = vpop.f32.mrf.mxu0
      %v6963 = vadd.f32 0.0, %v6962
      %v6964 = vpop.f32.mrf.mxu0
      %v6965 = vadd.f32 0.0, %v6964
      %6966 = vmatmul.bf16.gmra.mxu0 %v4151
      %v6967 = vpop.f32.mrf.mxu0
      %v6968 = vadd.f32 0.0, %v6967
      %v6969 = vpop.f32.mrf.mxu0
      %v6970 = vadd.f32 0.0, %v6969
      %6971 = vmatmul.bf16.gmra.mxu0 %v4154
      %v6972 = vpop.f32.mrf.mxu0
      %v6973 = vadd.f32 0.0, %v6972
      %v6974 = vpop.f32.mrf.mxu0
      %v6975 = vadd.f32 0.0, %v6974
      %6976 = vmatmul.bf16.gmra.mxu0 %v4157
      %v6977 = vpop.f32.mrf.mxu0
      %v6978 = vadd.f32 0.0, %v6977
      %v6979 = vpop.f32.mrf.mxu0
      %v6980 = vadd.f32 0.0, %v6979
      %6981 = vmatmul.bf16.gmra.mxu0 %v4160
      %v6982 = vpop.f32.mrf.mxu0
      %v6983 = vadd.f32 0.0, %v6982
      %v6984 = vpop.f32.mrf.mxu0
      %v6985 = vadd.f32 0.0, %v6984
      %6986 = vmatmul.bf16.gmra.mxu0 %v4163
      %v6987 = vpop.f32.mrf.mxu0
      %v6988 = vadd.f32 0.0, %v6987
      %v6989 = vpop.f32.mrf.mxu0
      %v6990 = vadd.f32 0.0, %v6989
      %6991 = vmatmul.bf16.gmra.mxu0 %v4166
      %v6992 = vpop.f32.mrf.mxu0
      %v6993 = vadd.f32 0.0, %v6992
      %v6994 = vpop.f32.mrf.mxu0
      %v6995 = vadd.f32 0.0, %v6994
      %6996 = vmatmul.bf16.gmra.mxu0 %v4169
      %v6997 = vpop.f32.mrf.mxu0
      %v6998 = vadd.f32 0.0, %v6997
      %v6999 = vpop.f32.mrf.mxu0
      %v7000 = vadd.f32 0.0, %v6999
      %7001 = vmatmul.bf16.gmra.mxu0 %v4172
      %v7002 = vpop.f32.mrf.mxu0
      %v7003 = vadd.f32 0.0, %v7002
      %v7004 = vpop.f32.mrf.mxu0
      %v7005 = vadd.f32 0.0, %v7004
      %7006 = vmatmul.bf16.gmra.mxu0 %v4175
      %v7007 = vpop.f32.mrf.mxu0
      %v7008 = vadd.f32 0.0, %v7007
      %v7009 = vpop.f32.mrf.mxu0
      %v7010 = vadd.f32 0.0, %v7009
      %7011 = vmatmul.bf16.gmra.mxu0 %v4178
      %v7012 = vpop.f32.mrf.mxu0
      %v7013 = vadd.f32 0.0, %v7012
      %v7014 = vpop.f32.mrf.mxu0
      %v7015 = vadd.f32 0.0, %v7014
      %7016 = vmatmul.bf16.gmra.mxu0 %v4181
      %v7017 = vpop.f32.mrf.mxu0
      %v7018 = vadd.f32 0.0, %v7017
      %v7019 = vpop.f32.mrf.mxu0
      %v7020 = vadd.f32 0.0, %v7019
      %7021 = vmatmul.bf16.gmra.mxu0 %v4184
      %v7022 = vpop.f32.mrf.mxu0
      %v7023 = vadd.f32 0.0, %v7022
      %v7024 = vpop.f32.mrf.mxu0
      %v7025 = vadd.f32 0.0, %v7024
      %7026 = vmatmul.bf16.gmra.mxu0 %v4187
      %v7027 = vpop.f32.mrf.mxu0
      %v7028 = vadd.f32 0.0, %v7027
      %v7029 = vpop.f32.mrf.mxu0
      %v7030 = vadd.f32 0.0, %v7029
      %7031 = vmatmul.bf16.gmra.mxu0 %v4190
      %v7032 = vpop.f32.mrf.mxu0
      %v7033 = vadd.f32 0.0, %v7032
      %v7034 = vpop.f32.mrf.mxu0
      %v7035 = vadd.f32 0.0, %v7034
      %7036 = vmatmul.bf16.gmra.mxu0 %v4193
      %v7037 = vpop.f32.mrf.mxu0
      %v7038 = vadd.f32 0.0, %v7037
      %v7039 = vpop.f32.mrf.mxu0
      %v7040 = vadd.f32 0.0, %v7039
      %7041 = vmatmul.bf16.gmra.mxu0 %v4196
      %v7042 = vpop.f32.mrf.mxu0
      %v7043 = vadd.f32 0.0, %v7042
      %v7044 = vpop.f32.mrf.mxu0
      %v7045 = vadd.f32 0.0, %v7044
      %7046 = vmatmul.bf16.gmra.mxu0 %v4199
      %v7047 = vpop.f32.mrf.mxu0
      %v7048 = vadd.f32 0.0, %v7047
      %v7049 = vpop.f32.mrf.mxu0
      %v7050 = vadd.f32 0.0, %v7049
      %7051 = vmatmul.bf16.gmra.mxu0 %v4202
      %v7052 = vpop.f32.mrf.mxu0
      %v7053 = vadd.f32 0.0, %v7052
      %v7054 = vpop.f32.mrf.mxu0
      %v7055 = vadd.f32 0.0, %v7054
      %7056 = vmatmul.bf16.gmra.mxu0 %v4205
      %v7057 = vpop.f32.mrf.mxu0
      %v7058 = vadd.f32 0.0, %v7057
      %v7059 = vpop.f32.mrf.mxu0
      %v7060 = vadd.f32 0.0, %v7059
      %7061 = vmatmul.bf16.gmra.mxu0 %v4208
      %v7062 = vpop.f32.mrf.mxu0
      %v7063 = vadd.f32 0.0, %v7062
      %v7064 = vpop.f32.mrf.mxu0
      %v7065 = vadd.f32 0.0, %v7064
      %7066 = vmatmul.bf16.gmra.mxu0 %v4211
      %v7067 = vpop.f32.mrf.mxu0
      %v7068 = vadd.f32 0.0, %v7067
      %v7069 = vpop.f32.mrf.mxu0
      %v7070 = vadd.f32 0.0, %v7069
      %7071 = vmatmul.bf16.gmra.mxu0 %v4214
      %v7072 = vpop.f32.mrf.mxu0
      %v7073 = vadd.f32 0.0, %v7072
      %v7074 = vpop.f32.mrf.mxu0
      %v7075 = vadd.f32 0.0, %v7074
      %7076 = vmatmul.bf16.gmra.mxu0 %v4217
      %v7077 = vpop.f32.mrf.mxu0
      %v7078 = vadd.f32 0.0, %v7077
      %v7079 = vpop.f32.mrf.mxu0
      %v7080 = vadd.f32 0.0, %v7079
      %7081 = vmatmul.bf16.gmra.mxu0 %v4220
      %v7082 = vpop.f32.mrf.mxu0
      %v7083 = vadd.f32 0.0, %v7082
      %v7084 = vpop.f32.mrf.mxu0
      %v7085 = vadd.f32 0.0, %v7084
      %7086 = vmatmul.bf16.gmra.mxu0 %v4223
      %v7087 = vpop.f32.mrf.mxu0
      %v7088 = vadd.f32 0.0, %v7087
      %v7089 = vpop.f32.mrf.mxu0
      %v7090 = vadd.f32 0.0, %v7089
      %7091 = vmatmul.bf16.gmra.mxu0 %v4226
      %v7092 = vpop.f32.mrf.mxu0
      %v7093 = vadd.f32 0.0, %v7092
      %v7094 = vpop.f32.mrf.mxu0
      %v7095 = vadd.f32 0.0, %v7094
      %7096 = vmatmul.bf16.gmra.mxu0 %v4229
      %v7097 = vpop.f32.mrf.mxu0
      %v7098 = vadd.f32 0.0, %v7097
      %v7099 = vpop.f32.mrf.mxu0
      %v7100 = vadd.f32 0.0, %v7099
      %7101 = vmatmul.bf16.gmra.mxu0 %v4232
      %v7102 = vpop.f32.mrf.mxu0
      %v7103 = vadd.f32 0.0, %v7102
      %v7104 = vpop.f32.mrf.mxu0
      %v7105 = vadd.f32 0.0, %v7104
      %7106 = vmatmul.bf16.gmra.mxu0 %v4235
      %v7107 = vpop.f32.mrf.mxu0
      %v7108 = vadd.f32 0.0, %v7107
      %v7109 = vpop.f32.mrf.mxu0
      %v7110 = vadd.f32 0.0, %v7109
      %7111 = vmatmul.bf16.gmra.mxu0 %v4238
      %v7112 = vpop.f32.mrf.mxu0
      %v7113 = vadd.f32 0.0, %v7112
      %v7114 = vpop.f32.mrf.mxu0
      %v7115 = vadd.f32 0.0, %v7114
      %7116 = vmatmul.bf16.gmra.mxu0 %v4241
      %v7117 = vpop.f32.mrf.mxu0
      %v7118 = vadd.f32 0.0, %v7117
      %v7119 = vpop.f32.mrf.mxu0
      %v7120 = vadd.f32 0.0, %v7119
      %7121 = vmatmul.bf16.gmra.mxu0 %v4244
      %v7122 = vpop.f32.mrf.mxu0
      %v7123 = vadd.f32 0.0, %v7122
      %v7124 = vpop.f32.mrf.mxu0
      %v7125 = vadd.f32 0.0, %v7124
      %7126 = vmatmul.bf16.gmra.mxu0 %v4247
      %v7127 = vpop.f32.mrf.mxu0
      %v7128 = vadd.f32 0.0, %v7127
      %v7129 = vpop.f32.mrf.mxu0
      %v7130 = vadd.f32 0.0, %v7129
      %7131 = vmatmul.bf16.gmra.mxu0 %v4250
      %v7132 = vpop.f32.mrf.mxu0
      %v7133 = vadd.f32 0.0, %v7132
      %v7134 = vpop.f32.mrf.mxu0
      %v7135 = vadd.f32 0.0, %v7134
      %7136 = vmatmul.bf16.gmra.mxu0 %v4253
      %v7137 = vpop.f32.mrf.mxu0
      %v7138 = vadd.f32 0.0, %v7137
      %v7139 = vpop.f32.mrf.mxu0
      %v7140 = vadd.f32 0.0, %v7139
      %7141 = vmatmul.bf16.gmra.mxu0 %v4256
      %v7142 = vpop.f32.mrf.mxu0
      %v7143 = vadd.f32 0.0, %v7142
      %v7144 = vpop.f32.mrf.mxu0
      %v7145 = vadd.f32 0.0, %v7144
      %7146 = vmatmul.bf16.gmra.mxu0 %v4259
      %v7147 = vpop.f32.mrf.mxu0
      %v7148 = vadd.f32 0.0, %v7147
      %v7149 = vpop.f32.mrf.mxu0
      %v7150 = vadd.f32 0.0, %v7149
      %7151 = vmatmul.bf16.gmra.mxu0 %v4262
      %v7152 = vpop.f32.mrf.mxu0
      %v7153 = vadd.f32 0.0, %v7152
      %v7154 = vpop.f32.mrf.mxu0
      %v7155 = vadd.f32 0.0, %v7154
      %7156 = vmatmul.bf16.gmra.mxu0 %v4265
      %v7157 = vpop.f32.mrf.mxu0
      %v7158 = vadd.f32 0.0, %v7157
      %v7159 = vpop.f32.mrf.mxu0
      %v7160 = vadd.f32 0.0, %v7159
      %7161 = vmatmul.bf16.gmra.mxu0 %v4268
      %v7162 = vpop.f32.mrf.mxu0
      %v7163 = vadd.f32 0.0, %v7162
      %v7164 = vpop.f32.mrf.mxu0
      %v7165 = vadd.f32 0.0, %v7164
      %7166 = vmatmul.bf16.gmra.mxu0 %v4271
      %v7167 = vpop.f32.mrf.mxu0
      %v7168 = vadd.f32 0.0, %v7167
      %v7169 = vpop.f32.mrf.mxu0
      %v7170 = vadd.f32 0.0, %v7169
      %7171 = vmatmul.bf16.gmra.mxu0 %v4274
      %v7172 = vpop.f32.mrf.mxu0
      %v7173 = vadd.f32 0.0, %v7172
      %v7174 = vpop.f32.mrf.mxu0
      %v7175 = vadd.f32 0.0, %v7174
      %7176 = vmatmul.bf16.gmra.mxu0 %v4277
      %v7177 = vpop.f32.mrf.mxu0
      %v7178 = vadd.f32 0.0, %v7177
      %v7179 = vpop.f32.mrf.mxu0
      %v7180 = vadd.f32 0.0, %v7179
      %7181 = vmatmul.bf16.gmra.mxu0 %v4280
      %v7182 = vpop.f32.mrf.mxu0
      %v7183 = vadd.f32 0.0, %v7182
      %v7184 = vpop.f32.mrf.mxu0
      %v7185 = vadd.f32 0.0, %v7184
      %7186 = vmatmul.bf16.gmra.mxu0 %v4283
      %v7187 = vpop.f32.mrf.mxu0
      %v7188 = vadd.f32 0.0, %v7187
      %v7189 = vpop.f32.mrf.mxu0
      %v7190 = vadd.f32 0.0, %v7189
      %7191 = vmatmul.bf16.gmra.mxu0 %v4286
      %v7192 = vpop.f32.mrf.mxu0
      %v7193 = vadd.f32 0.0, %v7192
      %v7194 = vpop.f32.mrf.mxu0
      %v7195 = vadd.f32 0.0, %v7194
      %7196 = vmatmul.bf16.gmra.mxu0 %v4289
      %v7197 = vpop.f32.mrf.mxu0
      %v7198 = vadd.f32 0.0, %v7197
      %v7199 = vpop.f32.mrf.mxu0
      %v7200 = vadd.f32 0.0, %v7199
      %7201 = vmatmul.bf16.gmra.mxu0 %v4292
      %v7202 = vpop.f32.mrf.mxu0
      %v7203 = vadd.f32 0.0, %v7202
      %v7204 = vpop.f32.mrf.mxu0
      %v7205 = vadd.f32 0.0, %v7204
      %7206 = vmatmul.bf16.gmra.mxu0 %v4295
      %v7207 = vpop.f32.mrf.mxu0
      %v7208 = vadd.f32 0.0, %v7207
      %v7209 = vpop.f32.mrf.mxu0
      %v7210 = vadd.f32 0.0, %v7209
      %7211 = vmatmul.bf16.gmra.mxu0 %v4298
      %v7212 = vpop.f32.mrf.mxu0
      %v7213 = vadd.f32 0.0, %v7212
      %v7214 = vpop.f32.mrf.mxu0
      %v7215 = vadd.f32 0.0, %v7214
      %7216 = vmatmul.bf16.gmra.mxu0 %v4301
      %v7217 = vpop.f32.mrf.mxu0
      %v7218 = vadd.f32 0.0, %v7217
      %v7219 = vpop.f32.mrf.mxu0
      %v7220 = vadd.f32 0.0, %v7219
      %7221 = vmatmul.bf16.gmra.mxu0 %v4304
      %v7222 = vpop.f32.mrf.mxu0
      %v7223 = vadd.f32 0.0, %v7222
      %v7224 = vpop.f32.mrf.mxu0
      %v7225 = vadd.f32 0.0, %v7224
      %7226 = vmatmul.bf16.gmra.mxu0 %v4307
      %v7227 = vpop.f32.mrf.mxu0
      %v7228 = vadd.f32 0.0, %v7227
      %v7229 = vpop.f32.mrf.mxu0
      %v7230 = vadd.f32 0.0, %v7229
      %7231 = vmatmul.bf16.gmra.mxu0 %v4310
      %v7232 = vpop.f32.mrf.mxu0
      %v7233 = vadd.f32 0.0, %v7232
      %v7234 = vpop.f32.mrf.mxu0
      %v7235 = vadd.f32 0.0, %v7234
      %7236 = vmatmul.bf16.gmra.mxu0 %v4313
      %v7237 = vpop.f32.mrf.mxu0
      %v7238 = vadd.f32 0.0, %v7237
      %v7239 = vpop.f32.mrf.mxu0
      %v7240 = vadd.f32 0.0, %v7239
      %7241 = vmatmul.bf16.gmra.mxu0 %v4316
      %v7242 = vpop.f32.mrf.mxu0
      %v7243 = vadd.f32 0.0, %v7242
      %v7244 = vpop.f32.mrf.mxu0
      %v7245 = vadd.f32 0.0, %v7244
      %7246 = vmatmul.bf16.gmra.mxu0 %v5507
      %v7247 = vpop.f32.mrf.mxu0
      %v7248 = vadd.f32 0.0, %v7247
      %v7249 = vpop.f32.mrf.mxu0
      %v7250 = vadd.f32 0.0, %v7249
      %7251 = vmatmul.bf16.gmra.mxu0 %v5510
      %v7252 = vpop.f32.mrf.mxu0
      %v7253 = vadd.f32 0.0, %v7252
      %v7254 = vpop.f32.mrf.mxu0
      %v7255 = vadd.f32 0.0, %v7254
      %7256 = vmatmul.bf16.gmra.mxu0 %v6930
      %v7257 = vpop.f32.mrf.mxu0
      %v7258 = vadd.f32 0.0, %v7257
      %v7259 = vpop.f32.mrf.mxu0
      %v7260 = vadd.f32 0.0, %v7259
      %7261 = vmatmul.bf16.gmra.mxu0 %v6933
      %v7262 = vpop.f32.mrf.mxu0
      %v7263 = vadd.f32 0.0, %v7262
      %v7264 = vpop.f32.mrf.mxu0
      %v7265 = vadd.f32 0.0, %v7264
      %7266 = vdwg.mxu0
      %v7267 = vadd.f32 %v6794, %v6948
      %v7268 = vadd.f32 %v6795, %v6950
      %v7269 = vadd.f32 %v6796, %v6953
      %v7270 = vadd.f32 %v6797, %v6955
      %v7271 = vadd.f32 %v6798, %v6958
      %v7272 = vadd.f32 %v6799, %v6960
      %v7273 = vadd.f32 %v6800, %v6963
      %v7274 = vadd.f32 %v6801, %v6965
      %v7275 = vadd.f32 %v6802, %v6968
      %v7276 = vadd.f32 %v6803, %v6970
      %v7277 = vadd.f32 %v6804, %v6973
      %v7278 = vadd.f32 %v6805, %v6975
      %v7279 = vadd.f32 %v6806, %v6978
      %v7280 = vadd.f32 %v6807, %v6980
      %v7281 = vadd.f32 %v6808, %v6983
      %v7282 = vadd.f32 %v6809, %v6985
      %v7283 = vadd.f32 %v6810, %v6988
      %v7284 = vadd.f32 %v6811, %v6990
      %v7285 = vadd.f32 %v6812, %v6993
      %v7286 = vadd.f32 %v6813, %v6995
      %v7287 = vadd.f32 %v6814, %v6998
      %v7288 = vadd.f32 %v6815, %v7000
      %v7289 = vadd.f32 %v6816, %v7003
      %v7290 = vadd.f32 %v6817, %v7005
      %v7291 = vadd.f32 %v6818, %v7008
      %v7292 = vadd.f32 %v6819, %v7010
      %v7293 = vadd.f32 %v6820, %v7013
      %v7294 = vadd.f32 %v6821, %v7015
      %v7295 = vadd.f32 %v6822, %v7018
      %v7296 = vadd.f32 %v6823, %v7020
      %v7297 = vadd.f32 %v6824, %v7023
      %v7298 = vadd.f32 %v6825, %v7025
      %v7299 = vadd.f32 %v6826, %v7028
      %v7300 = vadd.f32 %v6827, %v7030
      %v7301 = vadd.f32 %v6828, %v7033
      %v7302 = vadd.f32 %v6829, %v7035
      %v7303 = vadd.f32 %v6830, %v7038
      %v7304 = vadd.f32 %v6831, %v7040
      %v7305 = vadd.f32 %v6832, %v7043
      %v7306 = vadd.f32 %v6833, %v7045
      %v7307 = vadd.f32 %v6834, %v7048
      %v7308 = vadd.f32 %v6835, %v7050
      %v7309 = vadd.f32 %v6836, %v7053
      %v7310 = vadd.f32 %v6837, %v7055
      %v7311 = vadd.f32 %v6838, %v7058
      %v7312 = vadd.f32 %v6839, %v7060
      %v7313 = vadd.f32 %v6840, %v7063
      %v7314 = vadd.f32 %v6841, %v7065
      %v7315 = vadd.f32 %v6842, %v7068
      %v7316 = vadd.f32 %v6843, %v7070
      %v7317 = vadd.f32 %v6844, %v7073
      %v7318 = vadd.f32 %v6845, %v7075
      %v7319 = vadd.f32 %v6846, %v7078
      %v7320 = vadd.f32 %v6847, %v7080
      %v7321 = vadd.f32 %v6848, %v7083
      %v7322 = vadd.f32 %v6849, %v7085
      %v7323 = vadd.f32 %v6850, %v7088
      %v7324 = vadd.f32 %v6851, %v7090
      %v7325 = vadd.f32 %v6852, %v7093
      %v7326 = vadd.f32 %v6853, %v7095
      %v7327 = vadd.f32 %v6854, %v7098
      %v7328 = vadd.f32 %v6855, %v7100
      %v7329 = vadd.f32 %v6856, %v7103
      %v7330 = vadd.f32 %v6857, %v7105
      %v7331 = vadd.f32 %v6858, %v7108
      %v7332 = vadd.f32 %v6859, %v7110
      %v7333 = vadd.f32 %v6860, %v7113
      %v7334 = vadd.f32 %v6861, %v7115
      %v7335 = vadd.f32 %v6862, %v7118
      %v7336 = vadd.f32 %v6863, %v7120
      %v7337 = vadd.f32 %v6864, %v7123
      %v7338 = vadd.f32 %v6865, %v7125
      %v7339 = vadd.f32 %v6866, %v7128
      %v7340 = vadd.f32 %v6867, %v7130
      %v7341 = vadd.f32 %v6868, %v7133
      %v7342 = vadd.f32 %v6869, %v7135
      %v7343 = vadd.f32 %v6870, %v7138
      %v7344 = vadd.f32 %v6871, %v7140
      %v7345 = vadd.f32 %v6872, %v7143
      %v7346 = vadd.f32 %v6873, %v7145
      %v7347 = vadd.f32 %v6874, %v7148
      %v7348 = vadd.f32 %v6875, %v7150
      %v7349 = vadd.f32 %v6876, %v7153
      %v7350 = vadd.f32 %v6877, %v7155
      %v7351 = vadd.f32 %v6878, %v7158
      %v7352 = vadd.f32 %v6879, %v7160
      %v7353 = vadd.f32 %v6880, %v7163
      %v7354 = vadd.f32 %v6881, %v7165
      %v7355 = vadd.f32 %v6882, %v7168
      %v7356 = vadd.f32 %v6883, %v7170
      %v7357 = vadd.f32 %v6884, %v7173
      %v7358 = vadd.f32 %v6885, %v7175
      %v7359 = vadd.f32 %v6886, %v7178
      %v7360 = vadd.f32 %v6887, %v7180
      %v7361 = vadd.f32 %v6888, %v7183
      %v7362 = vadd.f32 %v6889, %v7185
      %v7363 = vadd.f32 %v6890, %v7188
      %v7364 = vadd.f32 %v6891, %v7190
      %v7365 = vadd.f32 %v6892, %v7193
      %v7366 = vadd.f32 %v6893, %v7195
      %v7367 = vadd.f32 %v6894, %v7198
      %v7368 = vadd.f32 %v6895, %v7200
      %v7369 = vadd.f32 %v6896, %v7203
      %v7370 = vadd.f32 %v6897, %v7205
      %v7371 = vadd.f32 %v6898, %v7208
      %v7372 = vadd.f32 %v6899, %v7210
      %v7373 = vadd.f32 %v6900, %v7213
      %v7374 = vadd.f32 %v6901, %v7215
      %v7375 = vadd.f32 %v6902, %v7218
      %v7376 = vadd.f32 %v6903, %v7220
      %v7377 = vadd.f32 %v6904, %v7223
      %v7378 = vadd.f32 %v6905, %v7225
      %v7379 = vadd.f32 %v6906, %v7228
      %v7380 = vadd.f32 %v6907, %v7230
      %v7381 = vadd.f32 %v6908, %v7233
      %v7382 = vadd.f32 %v6909, %v7235
      %v7383 = vadd.f32 %v6910, %v7238
      %v7384 = vadd.f32 %v6911, %v7240
      %v7385 = vadd.f32 %v6912, %v7243
      %v7386 = vadd.f32 %v6913, %v7245
      %v7387 = vadd.f32 %v6914, %v7248
      %v7388 = vadd.f32 %v6915, %v7250
      %v7389 = vadd.f32 %v6916, %v7253
      %v7390 = vadd.f32 %v6917, %v7255
      %v7391 = vadd.f32 %v6918, %v7258
      %v7392 = vadd.f32 %v6919, %v7260
      %v7393 = vadd.f32 %v6920, %v7263
      %v7394 = vadd.f32 %v6921, %v7265
      %v7395 = vld [vmem:[%s1 + $0xc] sm:$0xc]
      %v7396 = vunpack.c.l.b16 %v2564
      %v7397 = vunpack.c.l.b16 %v2574
      %v7398 = vunpack.c.l.b16 %v2584
      %v7399 = vunpack.c.l.b16 %v2594
      %v7400 = vpack.c.b16 %v7397, %v7396
      %v7401 = vpack.c.b16 %v7399, %v7398
      %v7403 = vunpack.c.l.b16 %v7395
      %v7404 = vpack.c.b16 %v7403, %v7403
      %v7405 = vrot.slane %v7404, 2
      %v7407 = vsel %vm3408, %v7400, 0
      %v7410 = vsel %vm3408, %v7401, 0
      %v7413 = vsel %vm3601, %v7405, 0
      %7415 = vmatpush.bf16.msra.mxu0 0
      %7416 = vmatpush.bf16.msra.mxu0 0
      %7417 = vmatpush.bf16.msra.mxu0 0
      %7418 = vmatpush.bf16.msra.mxu0 0
      %7419 = vmatpush.bf16.msra.mxu0 0
      %7420 = vmatpush.bf16.msra.mxu0 0
      %7421 = vmatpush.bf16.msra.mxu0 0
      %7422 = vmatpush.bf16.msra.mxu0 %v7413
      %7423 = vmatmul.bf16.gmra.mxu0 %v3422
      %v7424 = vpop.f32.mrf.mxu0
      %v7425 = vadd.f32 0.0, %v7424
      %v7426 = vpop.f32.mrf.mxu0
      %v7427 = vadd.f32 0.0, %v7426
      %7428 = vmatmul.bf16.gmra.mxu0 %v3425
      %v7429 = vpop.f32.mrf.mxu0
      %v7430 = vadd.f32 0.0, %v7429
      %v7431 = vpop.f32.mrf.mxu0
      %v7432 = vadd.f32 0.0, %v7431
      %7433 = vmatmul.bf16.gmra.mxu0 %v3428
      %v7434 = vpop.f32.mrf.mxu0
      %v7435 = vadd.f32 0.0, %v7434
      %v7436 = vpop.f32.mrf.mxu0
      %v7437 = vadd.f32 0.0, %v7436
      %7438 = vmatmul.bf16.gmra.mxu0 %v3431
      %v7439 = vpop.f32.mrf.mxu0
      %v7440 = vadd.f32 0.0, %v7439
      %v7441 = vpop.f32.mrf.mxu0
      %v7442 = vadd.f32 0.0, %v7441
      %7443 = vmatmul.bf16.gmra.mxu0 %v3434
      %v7444 = vpop.f32.mrf.mxu0
      %v7445 = vadd.f32 0.0, %v7444
      %v7446 = vpop.f32.mrf.mxu0
      %v7447 = vadd.f32 0.0, %v7446
      %7448 = vmatmul.bf16.gmra.mxu0 %v3437
      %v7449 = vpop.f32.mrf.mxu0
      %v7450 = vadd.f32 0.0, %v7449
      %v7451 = vpop.f32.mrf.mxu0
      %v7452 = vadd.f32 0.0, %v7451
      %7453 = vmatmul.bf16.gmra.mxu0 %v3440
      %v7454 = vpop.f32.mrf.mxu0
      %v7455 = vadd.f32 0.0, %v7454
      %v7456 = vpop.f32.mrf.mxu0
      %v7457 = vadd.f32 0.0, %v7456
      %7458 = vmatmul.bf16.gmra.mxu0 %v3443
      %v7459 = vpop.f32.mrf.mxu0
      %v7460 = vadd.f32 0.0, %v7459
      %v7461 = vpop.f32.mrf.mxu0
      %v7462 = vadd.f32 0.0, %v7461
      %7463 = vmatmul.bf16.gmra.mxu0 %v3446
      %v7464 = vpop.f32.mrf.mxu0
      %v7465 = vadd.f32 0.0, %v7464
      %v7466 = vpop.f32.mrf.mxu0
      %v7467 = vadd.f32 0.0, %v7466
      %7468 = vmatmul.bf16.gmra.mxu0 %v3449
      %v7469 = vpop.f32.mrf.mxu0
      %v7470 = vadd.f32 0.0, %v7469
      %v7471 = vpop.f32.mrf.mxu0
      %v7472 = vadd.f32 0.0, %v7471
      %7473 = vmatmul.bf16.gmra.mxu0 %v3452
      %v7474 = vpop.f32.mrf.mxu0
      %v7475 = vadd.f32 0.0, %v7474
      %v7476 = vpop.f32.mrf.mxu0
      %v7477 = vadd.f32 0.0, %v7476
      %7478 = vmatmul.bf16.gmra.mxu0 %v3455
      %v7479 = vpop.f32.mrf.mxu0
      %v7480 = vadd.f32 0.0, %v7479
      %v7481 = vpop.f32.mrf.mxu0
      %v7482 = vadd.f32 0.0, %v7481
      %7483 = vmatmul.bf16.gmra.mxu0 %v3458
      %v7484 = vpop.f32.mrf.mxu0
      %v7485 = vadd.f32 0.0, %v7484
      %v7486 = vpop.f32.mrf.mxu0
      %v7487 = vadd.f32 0.0, %v7486
      %7488 = vmatmul.bf16.gmra.mxu0 %v3461
      %v7489 = vpop.f32.mrf.mxu0
      %v7490 = vadd.f32 0.0, %v7489
      %v7491 = vpop.f32.mrf.mxu0
      %v7492 = vadd.f32 0.0, %v7491
      %7493 = vmatmul.bf16.gmra.mxu0 %v3464
      %v7494 = vpop.f32.mrf.mxu0
      %v7495 = vadd.f32 0.0, %v7494
      %v7496 = vpop.f32.mrf.mxu0
      %v7497 = vadd.f32 0.0, %v7496
      %7498 = vmatmul.bf16.gmra.mxu0 %v3467
      %v7499 = vpop.f32.mrf.mxu0
      %v7500 = vadd.f32 0.0, %v7499
      %v7501 = vpop.f32.mrf.mxu0
      %v7502 = vadd.f32 0.0, %v7501
      %7503 = vmatmul.bf16.gmra.mxu0 %v3470
      %v7504 = vpop.f32.mrf.mxu0
      %v7505 = vadd.f32 0.0, %v7504
      %v7506 = vpop.f32.mrf.mxu0
      %v7507 = vadd.f32 0.0, %v7506
      %7508 = vmatmul.bf16.gmra.mxu0 %v3473
      %v7509 = vpop.f32.mrf.mxu0
      %v7510 = vadd.f32 0.0, %v7509
      %v7511 = vpop.f32.mrf.mxu0
      %v7512 = vadd.f32 0.0, %v7511
      %7513 = vmatmul.bf16.gmra.mxu0 %v3476
      %v7514 = vpop.f32.mrf.mxu0
      %v7515 = vadd.f32 0.0, %v7514
      %v7516 = vpop.f32.mrf.mxu0
      %v7517 = vadd.f32 0.0, %v7516
      %7518 = vmatmul.bf16.gmra.mxu0 %v3479
      %v7519 = vpop.f32.mrf.mxu0
      %v7520 = vadd.f32 0.0, %v7519
      %v7521 = vpop.f32.mrf.mxu0
      %v7522 = vadd.f32 0.0, %v7521
      %7523 = vmatmul.bf16.gmra.mxu0 %v3482
      %v7524 = vpop.f32.mrf.mxu0
      %v7525 = vadd.f32 0.0, %v7524
      %v7526 = vpop.f32.mrf.mxu0
      %v7527 = vadd.f32 0.0, %v7526
      %7528 = vmatmul.bf16.gmra.mxu0 %v3485
      %v7529 = vpop.f32.mrf.mxu0
      %v7530 = vadd.f32 0.0, %v7529
      %v7531 = vpop.f32.mrf.mxu0
      %v7532 = vadd.f32 0.0, %v7531
      %7533 = vmatmul.bf16.gmra.mxu0 %v3488
      %v7534 = vpop.f32.mrf.mxu0
      %v7535 = vadd.f32 0.0, %v7534
      %v7536 = vpop.f32.mrf.mxu0
      %v7537 = vadd.f32 0.0, %v7536
      %7538 = vmatmul.bf16.gmra.mxu0 %v3491
      %v7539 = vpop.f32.mrf.mxu0
      %v7540 = vadd.f32 0.0, %v7539
      %v7541 = vpop.f32.mrf.mxu0
      %v7542 = vadd.f32 0.0, %v7541
      %7543 = vmatmul.bf16.gmra.mxu0 %v3494
      %v7544 = vpop.f32.mrf.mxu0
      %v7545 = vadd.f32 0.0, %v7544
      %v7546 = vpop.f32.mrf.mxu0
      %v7547 = vadd.f32 0.0, %v7546
      %7548 = vmatmul.bf16.gmra.mxu0 %v3497
      %v7549 = vpop.f32.mrf.mxu0
      %v7550 = vadd.f32 0.0, %v7549
      %v7551 = vpop.f32.mrf.mxu0
      %v7552 = vadd.f32 0.0, %v7551
      %7553 = vmatmul.bf16.gmra.mxu0 %v3500
      %v7554 = vpop.f32.mrf.mxu0
      %v7555 = vadd.f32 0.0, %v7554
      %v7556 = vpop.f32.mrf.mxu0
      %v7557 = vadd.f32 0.0, %v7556
      %7558 = vmatmul.bf16.gmra.mxu0 %v3503
      %v7559 = vpop.f32.mrf.mxu0
      %v7560 = vadd.f32 0.0, %v7559
      %v7561 = vpop.f32.mrf.mxu0
      %v7562 = vadd.f32 0.0, %v7561
      %7563 = vmatmul.bf16.gmra.mxu0 %v3506
      %v7564 = vpop.f32.mrf.mxu0
      %v7565 = vadd.f32 0.0, %v7564
      %v7566 = vpop.f32.mrf.mxu0
      %v7567 = vadd.f32 0.0, %v7566
      %7568 = vmatmul.bf16.gmra.mxu0 %v3509
      %v7569 = vpop.f32.mrf.mxu0
      %v7570 = vadd.f32 0.0, %v7569
      %v7571 = vpop.f32.mrf.mxu0
      %v7572 = vadd.f32 0.0, %v7571
      %7573 = vmatmul.bf16.gmra.mxu0 %v3512
      %v7574 = vpop.f32.mrf.mxu0
      %v7575 = vadd.f32 0.0, %v7574
      %v7576 = vpop.f32.mrf.mxu0
      %v7577 = vadd.f32 0.0, %v7576
      %7578 = vmatmul.bf16.gmra.mxu0 %v3515
      %v7579 = vpop.f32.mrf.mxu0
      %v7580 = vadd.f32 0.0, %v7579
      %v7581 = vpop.f32.mrf.mxu0
      %v7582 = vadd.f32 0.0, %v7581
      %7583 = vmatmul.bf16.gmra.mxu0 %v3518
      %v7584 = vpop.f32.mrf.mxu0
      %v7585 = vadd.f32 0.0, %v7584
      %v7586 = vpop.f32.mrf.mxu0
      %v7587 = vadd.f32 0.0, %v7586
      %7588 = vmatmul.bf16.gmra.mxu0 %v3521
      %v7589 = vpop.f32.mrf.mxu0
      %v7590 = vadd.f32 0.0, %v7589
      %v7591 = vpop.f32.mrf.mxu0
      %v7592 = vadd.f32 0.0, %v7591
      %7593 = vmatmul.bf16.gmra.mxu0 %v3524
      %v7594 = vpop.f32.mrf.mxu0
      %v7595 = vadd.f32 0.0, %v7594
      %v7596 = vpop.f32.mrf.mxu0
      %v7597 = vadd.f32 0.0, %v7596
      %7598 = vmatmul.bf16.gmra.mxu0 %v3527
      %v7599 = vpop.f32.mrf.mxu0
      %v7600 = vadd.f32 0.0, %v7599
      %v7601 = vpop.f32.mrf.mxu0
      %v7602 = vadd.f32 0.0, %v7601
      %7603 = vmatmul.bf16.gmra.mxu0 %v3530
      %v7604 = vpop.f32.mrf.mxu0
      %v7605 = vadd.f32 0.0, %v7604
      %v7606 = vpop.f32.mrf.mxu0
      %v7607 = vadd.f32 0.0, %v7606
      %7608 = vmatmul.bf16.gmra.mxu0 %v3533
      %v7609 = vpop.f32.mrf.mxu0
      %v7610 = vadd.f32 0.0, %v7609
      %v7611 = vpop.f32.mrf.mxu0
      %v7612 = vadd.f32 0.0, %v7611
      %7613 = vmatmul.bf16.gmra.mxu0 %v3536
      %v7614 = vpop.f32.mrf.mxu0
      %v7615 = vadd.f32 0.0, %v7614
      %v7616 = vpop.f32.mrf.mxu0
      %v7617 = vadd.f32 0.0, %v7616
      %7618 = vmatmul.bf16.gmra.mxu0 %v3539
      %v7619 = vpop.f32.mrf.mxu0
      %v7620 = vadd.f32 0.0, %v7619
      %v7621 = vpop.f32.mrf.mxu0
      %v7622 = vadd.f32 0.0, %v7621
      %7623 = vmatmul.bf16.gmra.mxu0 %v3542
      %v7624 = vpop.f32.mrf.mxu0
      %v7625 = vadd.f32 0.0, %v7624
      %v7626 = vpop.f32.mrf.mxu0
      %v7627 = vadd.f32 0.0, %v7626
      %7628 = vmatmul.bf16.gmra.mxu0 %v3545
      %v7629 = vpop.f32.mrf.mxu0
      %v7630 = vadd.f32 0.0, %v7629
      %v7631 = vpop.f32.mrf.mxu0
      %v7632 = vadd.f32 0.0, %v7631
      %7633 = vmatmul.bf16.gmra.mxu0 %v3548
      %v7634 = vpop.f32.mrf.mxu0
      %v7635 = vadd.f32 0.0, %v7634
      %v7636 = vpop.f32.mrf.mxu0
      %v7637 = vadd.f32 0.0, %v7636
      %7638 = vmatmul.bf16.gmra.mxu0 %v3551
      %v7639 = vpop.f32.mrf.mxu0
      %v7640 = vadd.f32 0.0, %v7639
      %v7641 = vpop.f32.mrf.mxu0
      %v7642 = vadd.f32 0.0, %v7641
      %7643 = vmatmul.bf16.gmra.mxu0 %v3554
      %v7644 = vpop.f32.mrf.mxu0
      %v7645 = vadd.f32 0.0, %v7644
      %v7646 = vpop.f32.mrf.mxu0
      %v7647 = vadd.f32 0.0, %v7646
      %7648 = vmatmul.bf16.gmra.mxu0 %v3557
      %v7649 = vpop.f32.mrf.mxu0
      %v7650 = vadd.f32 0.0, %v7649
      %v7651 = vpop.f32.mrf.mxu0
      %v7652 = vadd.f32 0.0, %v7651
      %7653 = vmatmul.bf16.gmra.mxu0 %v3560
      %v7654 = vpop.f32.mrf.mxu0
      %v7655 = vadd.f32 0.0, %v7654
      %v7656 = vpop.f32.mrf.mxu0
      %v7657 = vadd.f32 0.0, %v7656
      %7658 = vmatmul.bf16.gmra.mxu0 %v3563
      %v7659 = vpop.f32.mrf.mxu0
      %v7660 = vadd.f32 0.0, %v7659
      %v7661 = vpop.f32.mrf.mxu0
      %v7662 = vadd.f32 0.0, %v7661
      %7663 = vmatmul.bf16.gmra.mxu0 %v3566
      %v7664 = vpop.f32.mrf.mxu0
      %v7665 = vadd.f32 0.0, %v7664
      %v7666 = vpop.f32.mrf.mxu0
      %v7667 = vadd.f32 0.0, %v7666
      %7668 = vmatmul.bf16.gmra.mxu0 %v3569
      %v7669 = vpop.f32.mrf.mxu0
      %v7670 = vadd.f32 0.0, %v7669
      %v7671 = vpop.f32.mrf.mxu0
      %v7672 = vadd.f32 0.0, %v7671
      %7673 = vmatmul.bf16.gmra.mxu0 %v3572
      %v7674 = vpop.f32.mrf.mxu0
      %v7675 = vadd.f32 0.0, %v7674
      %v7676 = vpop.f32.mrf.mxu0
      %v7677 = vadd.f32 0.0, %v7676
      %7678 = vmatmul.bf16.gmra.mxu0 %v3575
      %v7679 = vpop.f32.mrf.mxu0
      %v7680 = vadd.f32 0.0, %v7679
      %v7681 = vpop.f32.mrf.mxu0
      %v7682 = vadd.f32 0.0, %v7681
      %7683 = vmatmul.bf16.gmra.mxu0 %v3578
      %v7684 = vpop.f32.mrf.mxu0
      %v7685 = vadd.f32 0.0, %v7684
      %v7686 = vpop.f32.mrf.mxu0
      %v7687 = vadd.f32 0.0, %v7686
      %7688 = vmatmul.bf16.gmra.mxu0 %v3581
      %v7689 = vpop.f32.mrf.mxu0
      %v7690 = vadd.f32 0.0, %v7689
      %v7691 = vpop.f32.mrf.mxu0
      %v7692 = vadd.f32 0.0, %v7691
      %7693 = vmatmul.bf16.gmra.mxu0 %v3584
      %v7694 = vpop.f32.mrf.mxu0
      %v7695 = vadd.f32 0.0, %v7694
      %v7696 = vpop.f32.mrf.mxu0
      %v7697 = vadd.f32 0.0, %v7696
      %7698 = vmatmul.bf16.gmra.mxu0 %v3587
      %v7699 = vpop.f32.mrf.mxu0
      %v7700 = vadd.f32 0.0, %v7699
      %v7701 = vpop.f32.mrf.mxu0
      %v7702 = vadd.f32 0.0, %v7701
      %7703 = vmatmul.bf16.gmra.mxu0 %v3590
      %v7704 = vpop.f32.mrf.mxu0
      %v7705 = vadd.f32 0.0, %v7704
      %v7706 = vpop.f32.mrf.mxu0
      %v7707 = vadd.f32 0.0, %v7706
      %7708 = vmatmul.bf16.gmra.mxu0 %v3593
      %v7709 = vpop.f32.mrf.mxu0
      %v7710 = vadd.f32 0.0, %v7709
      %v7711 = vpop.f32.mrf.mxu0
      %v7712 = vadd.f32 0.0, %v7711
      %7713 = vmatmul.bf16.gmra.mxu0 %v3596
      %v7714 = vpop.f32.mrf.mxu0
      %v7715 = vadd.f32 0.0, %v7714
      %v7716 = vpop.f32.mrf.mxu0
      %v7717 = vadd.f32 0.0, %v7716
      %7718 = vmatmul.bf16.gmra.mxu0 %v3599
      %v7719 = vpop.f32.mrf.mxu0
      %v7720 = vadd.f32 0.0, %v7719
      %v7721 = vpop.f32.mrf.mxu0
      %v7722 = vadd.f32 0.0, %v7721
      %7723 = vmatmul.bf16.gmra.mxu0 %v5980
      %v7724 = vpop.f32.mrf.mxu0
      %v7725 = vadd.f32 0.0, %v7724
      %v7726 = vpop.f32.mrf.mxu0
      %v7727 = vadd.f32 0.0, %v7726
      %7728 = vmatmul.bf16.gmra.mxu0 %v5983
      %v7729 = vpop.f32.mrf.mxu0
      %v7730 = vadd.f32 0.0, %v7729
      %v7731 = vpop.f32.mrf.mxu0
      %v7732 = vadd.f32 0.0, %v7731
      %7733 = vmatmul.bf16.gmra.mxu0 %v7407
      %v7734 = vpop.f32.mrf.mxu0
      %v7735 = vadd.f32 0.0, %v7734
      %v7736 = vpop.f32.mrf.mxu0
      %v7737 = vadd.f32 0.0, %v7736
      %7738 = vmatmul.bf16.gmra.mxu0 %v7410
      %v7739 = vpop.f32.mrf.mxu0
      %v7740 = vadd.f32 0.0, %v7739
      %v7741 = vpop.f32.mrf.mxu0
      %v7742 = vadd.f32 0.0, %v7741
      %7743 = vdwg.mxu0
      %v7744 = vadd.f32 %v7267, %v7425
      %v7745 = vadd.f32 %v7268, %v7427
      %v7746 = vadd.f32 %v7269, %v7430
      %v7747 = vadd.f32 %v7270, %v7432
      %v7748 = vadd.f32 %v7271, %v7435
      %v7749 = vadd.f32 %v7272, %v7437
      %v7750 = vadd.f32 %v7273, %v7440
      %v7751 = vadd.f32 %v7274, %v7442
      %v7752 = vadd.f32 %v7275, %v7445
      %v7753 = vadd.f32 %v7276, %v7447
      %v7754 = vadd.f32 %v7277, %v7450
      %v7755 = vadd.f32 %v7278, %v7452
      %v7756 = vadd.f32 %v7279, %v7455
      %v7757 = vadd.f32 %v7280, %v7457
      %v7758 = vadd.f32 %v7281, %v7460
      %v7759 = vadd.f32 %v7282, %v7462
      %v7760 = vadd.f32 %v7283, %v7465
      %v7761 = vadd.f32 %v7284, %v7467
      %v7762 = vadd.f32 %v7285, %v7470
      %v7763 = vadd.f32 %v7286, %v7472
      %v7764 = vadd.f32 %v7287, %v7475
      %v7765 = vadd.f32 %v7288, %v7477
      %v7766 = vadd.f32 %v7289, %v7480
      %v7767 = vadd.f32 %v7290, %v7482
      %v7768 = vadd.f32 %v7291, %v7485
      %v7769 = vadd.f32 %v7292, %v7487
      %v7770 = vadd.f32 %v7293, %v7490
      %v7771 = vadd.f32 %v7294, %v7492
      %v7772 = vadd.f32 %v7295, %v7495
      %v7773 = vadd.f32 %v7296, %v7497
      %v7774 = vadd.f32 %v7297, %v7500
      %v7775 = vadd.f32 %v7298, %v7502
      %v7776 = vadd.f32 %v7299, %v7505
      %v7777 = vadd.f32 %v7300, %v7507
      %v7778 = vadd.f32 %v7301, %v7510
      %v7779 = vadd.f32 %v7302, %v7512
      %v7780 = vadd.f32 %v7303, %v7515
      %v7781 = vadd.f32 %v7304, %v7517
      %v7782 = vadd.f32 %v7305, %v7520
      %v7783 = vadd.f32 %v7306, %v7522
      %v7784 = vadd.f32 %v7307, %v7525
      %v7785 = vadd.f32 %v7308, %v7527
      %v7786 = vadd.f32 %v7309, %v7530
      %v7787 = vadd.f32 %v7310, %v7532
      %v7788 = vadd.f32 %v7311, %v7535
      %v7789 = vadd.f32 %v7312, %v7537
      %v7790 = vadd.f32 %v7313, %v7540
      %v7791 = vadd.f32 %v7314, %v7542
      %v7792 = vadd.f32 %v7315, %v7545
      %v7793 = vadd.f32 %v7316, %v7547
      %v7794 = vadd.f32 %v7317, %v7550
      %v7795 = vadd.f32 %v7318, %v7552
      %v7796 = vadd.f32 %v7319, %v7555
      %v7797 = vadd.f32 %v7320, %v7557
      %v7798 = vadd.f32 %v7321, %v7560
      %v7799 = vadd.f32 %v7322, %v7562
      %v7800 = vadd.f32 %v7323, %v7565
      %v7801 = vadd.f32 %v7324, %v7567
      %v7802 = vadd.f32 %v7325, %v7570
      %v7803 = vadd.f32 %v7326, %v7572
      %v7804 = vadd.f32 %v7327, %v7575
      %v7805 = vadd.f32 %v7328, %v7577
      %v7806 = vadd.f32 %v7329, %v7580
      %v7807 = vadd.f32 %v7330, %v7582
      %v7808 = vadd.f32 %v7331, %v7585
      %v7809 = vadd.f32 %v7332, %v7587
      %v7810 = vadd.f32 %v7333, %v7590
      %v7811 = vadd.f32 %v7334, %v7592
      %v7812 = vadd.f32 %v7335, %v7595
      %v7813 = vadd.f32 %v7336, %v7597
      %v7814 = vadd.f32 %v7337, %v7600
      %v7815 = vadd.f32 %v7338, %v7602
      %v7816 = vadd.f32 %v7339, %v7605
      %v7817 = vadd.f32 %v7340, %v7607
      %v7818 = vadd.f32 %v7341, %v7610
      %v7819 = vadd.f32 %v7342, %v7612
      %v7820 = vadd.f32 %v7343, %v7615
      %v7821 = vadd.f32 %v7344, %v7617
      %v7822 = vadd.f32 %v7345, %v7620
      %v7823 = vadd.f32 %v7346, %v7622
      %v7824 = vadd.f32 %v7347, %v7625
      %v7825 = vadd.f32 %v7348, %v7627
      %v7826 = vadd.f32 %v7349, %v7630
      %v7827 = vadd.f32 %v7350, %v7632
      %v7828 = vadd.f32 %v7351, %v7635
      %v7829 = vadd.f32 %v7352, %v7637
      %v7830 = vadd.f32 %v7353, %v7640
      %v7831 = vadd.f32 %v7354, %v7642
      %v7832 = vadd.f32 %v7355, %v7645
      %v7833 = vadd.f32 %v7356, %v7647
      %v7834 = vadd.f32 %v7357, %v7650
      %v7835 = vadd.f32 %v7358, %v7652
      %v7836 = vadd.f32 %v7359, %v7655
      %v7837 = vadd.f32 %v7360, %v7657
      %v7838 = vadd.f32 %v7361, %v7660
      %v7839 = vadd.f32 %v7362, %v7662
      %v7840 = vadd.f32 %v7363, %v7665
      %v7841 = vadd.f32 %v7364, %v7667
      %v7842 = vadd.f32 %v7365, %v7670
      %v7843 = vadd.f32 %v7366, %v7672
      %v7844 = vadd.f32 %v7367, %v7675
      %v7845 = vadd.f32 %v7368, %v7677
      %v7846 = vadd.f32 %v7369, %v7680
      %v7847 = vadd.f32 %v7370, %v7682
      %v7848 = vadd.f32 %v7371, %v7685
      %v7849 = vadd.f32 %v7372, %v7687
      %v7850 = vadd.f32 %v7373, %v7690
      %v7851 = vadd.f32 %v7374, %v7692
      %v7852 = vadd.f32 %v7375, %v7695
      %v7853 = vadd.f32 %v7376, %v7697
      %v7854 = vadd.f32 %v7377, %v7700
      %v7855 = vadd.f32 %v7378, %v7702
      %v7856 = vadd.f32 %v7379, %v7705
      %v7857 = vadd.f32 %v7380, %v7707
      %v7858 = vadd.f32 %v7381, %v7710
      %v7859 = vadd.f32 %v7382, %v7712
      %v7860 = vadd.f32 %v7383, %v7715
      %v7861 = vadd.f32 %v7384, %v7717
      %v7862 = vadd.f32 %v7385, %v7720
      %v7863 = vadd.f32 %v7386, %v7722
      %v7864 = vadd.f32 %v7387, %v7725
      %v7865 = vadd.f32 %v7388, %v7727
      %v7866 = vadd.f32 %v7389, %v7730
      %v7867 = vadd.f32 %v7390, %v7732
      %v7868 = vadd.f32 %v7391, %v7735
      %v7869 = vadd.f32 %v7392, %v7737
      %v7870 = vadd.f32 %v7393, %v7740
      %v7871 = vadd.f32 %v7394, %v7742
      %v7872 = vld [vmem:[%s1 + $0x10] sm:$0x3]
      %v7873 = vunpack.c.l.b16 %v3200
      %v7874 = vunpack.c.l.b16 %v3203
      %v7875 = vunpack.c.l.b16 %v3206
      %v7876 = vunpack.c.l.b16 %v3209
      %v7877 = vpack.c.b16 %v7874, %v7873
      %v7878 = vpack.c.b16 %v7876, %v7875
      %v7880 = vsel %vm3408, %v7877, 0
      %v7883 = vsel %vm3408, %v7878, 0
      %v7886 = vsel %vm3601, %v7872, 0
      %7888 = vmatpush.bf16.msra.mxu0 0
      %7889 = vmatpush.bf16.msra.mxu0 0
      %7890 = vmatpush.bf16.msra.mxu0 0
      %7891 = vmatpush.bf16.msra.mxu0 0
      %7892 = vmatpush.bf16.msra.mxu0 0
      %7893 = vmatpush.bf16.msra.mxu0 0
      %7894 = vmatpush.bf16.msra.mxu0 0
      %7895 = vmatpush.bf16.msra.mxu0 %v7886
      %7896 = vmatmul.bf16.gmra.mxu0 %v4856
      %v7897 = vpop.f32.mrf.mxu0
      %v7898 = vadd.f32 0.0, %v7897
      %v7899 = vpop.f32.mrf.mxu0
      %v7900 = vadd.f32 0.0, %v7899
      %7901 = vmatmul.bf16.gmra.mxu0 %v4859
      %v7902 = vpop.f32.mrf.mxu0
      %v7903 = vadd.f32 0.0, %v7902
      %v7904 = vpop.f32.mrf.mxu0
      %v7905 = vadd.f32 0.0, %v7904
      %7906 = vmatmul.bf16.gmra.mxu0 %v4862
      %v7907 = vpop.f32.mrf.mxu0
      %v7908 = vadd.f32 0.0, %v7907
      %v7909 = vpop.f32.mrf.mxu0
      %v7910 = vadd.f32 0.0, %v7909
      %7911 = vmatmul.bf16.gmra.mxu0 %v4865
      %v7912 = vpop.f32.mrf.mxu0
      %v7913 = vadd.f32 0.0, %v7912
      %v7914 = vpop.f32.mrf.mxu0
      %v7915 = vadd.f32 0.0, %v7914
      %7916 = vmatmul.bf16.gmra.mxu0 %v4868
      %v7917 = vpop.f32.mrf.mxu0
      %v7918 = vadd.f32 0.0, %v7917
      %v7919 = vpop.f32.mrf.mxu0
      %v7920 = vadd.f32 0.0, %v7919
      %7921 = vmatmul.bf16.gmra.mxu0 %v4871
      %v7922 = vpop.f32.mrf.mxu0
      %v7923 = vadd.f32 0.0, %v7922
      %v7924 = vpop.f32.mrf.mxu0
      %v7925 = vadd.f32 0.0, %v7924
      %7926 = vmatmul.bf16.gmra.mxu0 %v4874
      %v7927 = vpop.f32.mrf.mxu0
      %v7928 = vadd.f32 0.0, %v7927
      %v7929 = vpop.f32.mrf.mxu0
      %v7930 = vadd.f32 0.0, %v7929
      %7931 = vmatmul.bf16.gmra.mxu0 %v4877
      %v7932 = vpop.f32.mrf.mxu0
      %v7933 = vadd.f32 0.0, %v7932
      %v7934 = vpop.f32.mrf.mxu0
      %v7935 = vadd.f32 0.0, %v7934
      %7936 = vmatmul.bf16.gmra.mxu0 %v4880
      %v7937 = vpop.f32.mrf.mxu0
      %v7938 = vadd.f32 0.0, %v7937
      %v7939 = vpop.f32.mrf.mxu0
      %v7940 = vadd.f32 0.0, %v7939
      %7941 = vmatmul.bf16.gmra.mxu0 %v4883
      %v7942 = vpop.f32.mrf.mxu0
      %v7943 = vadd.f32 0.0, %v7942
      %v7944 = vpop.f32.mrf.mxu0
      %v7945 = vadd.f32 0.0, %v7944
      %7946 = vmatmul.bf16.gmra.mxu0 %v4886
      %v7947 = vpop.f32.mrf.mxu0
      %v7948 = vadd.f32 0.0, %v7947
      %v7949 = vpop.f32.mrf.mxu0
      %v7950 = vadd.f32 0.0, %v7949
      %7951 = vmatmul.bf16.gmra.mxu0 %v4889
      %v7952 = vpop.f32.mrf.mxu0
      %v7953 = vadd.f32 0.0, %v7952
      %v7954 = vpop.f32.mrf.mxu0
      %v7955 = vadd.f32 0.0, %v7954
      %7956 = vmatmul.bf16.gmra.mxu0 %v4892
      %v7957 = vpop.f32.mrf.mxu0
      %v7958 = vadd.f32 0.0, %v7957
      %v7959 = vpop.f32.mrf.mxu0
      %v7960 = vadd.f32 0.0, %v7959
      %7961 = vmatmul.bf16.gmra.mxu0 %v4895
      %v7962 = vpop.f32.mrf.mxu0
      %v7963 = vadd.f32 0.0, %v7962
      %v7964 = vpop.f32.mrf.mxu0
      %v7965 = vadd.f32 0.0, %v7964
      %7966 = vmatmul.bf16.gmra.mxu0 %v4898
      %v7967 = vpop.f32.mrf.mxu0
      %v7968 = vadd.f32 0.0, %v7967
      %v7969 = vpop.f32.mrf.mxu0
      %v7970 = vadd.f32 0.0, %v7969
      %7971 = vmatmul.bf16.gmra.mxu0 %v4901
      %v7972 = vpop.f32.mrf.mxu0
      %v7973 = vadd.f32 0.0, %v7972
      %v7974 = vpop.f32.mrf.mxu0
      %v7975 = vadd.f32 0.0, %v7974
      %7976 = vmatmul.bf16.gmra.mxu0 %v4904
      %v7977 = vpop.f32.mrf.mxu0
      %v7978 = vadd.f32 0.0, %v7977
      %v7979 = vpop.f32.mrf.mxu0
      %v7980 = vadd.f32 0.0, %v7979
      %7981 = vmatmul.bf16.gmra.mxu0 %v4907
      %v7982 = vpop.f32.mrf.mxu0
      %v7983 = vadd.f32 0.0, %v7982
      %v7984 = vpop.f32.mrf.mxu0
      %v7985 = vadd.f32 0.0, %v7984
      %7986 = vmatmul.bf16.gmra.mxu0 %v4910
      %v7987 = vpop.f32.mrf.mxu0
      %v7988 = vadd.f32 0.0, %v7987
      %v7989 = vpop.f32.mrf.mxu0
      %v7990 = vadd.f32 0.0, %v7989
      %7991 = vmatmul.bf16.gmra.mxu0 %v4913
      %v7992 = vpop.f32.mrf.mxu0
      %v7993 = vadd.f32 0.0, %v7992
      %v7994 = vpop.f32.mrf.mxu0
      %v7995 = vadd.f32 0.0, %v7994
      %7996 = vmatmul.bf16.gmra.mxu0 %v4916
      %v7997 = vpop.f32.mrf.mxu0
      %v7998 = vadd.f32 0.0, %v7997
      %v7999 = vpop.f32.mrf.mxu0
      %v8000 = vadd.f32 0.0, %v7999
      %8001 = vmatmul.bf16.gmra.mxu0 %v4919
      %v8002 = vpop.f32.mrf.mxu0
      %v8003 = vadd.f32 0.0, %v8002
      %v8004 = vpop.f32.mrf.mxu0
      %v8005 = vadd.f32 0.0, %v8004
      %8006 = vmatmul.bf16.gmra.mxu0 %v4922
      %v8007 = vpop.f32.mrf.mxu0
      %v8008 = vadd.f32 0.0, %v8007
      %v8009 = vpop.f32.mrf.mxu0
      %v8010 = vadd.f32 0.0, %v8009
      %8011 = vmatmul.bf16.gmra.mxu0 %v4925
      %v8012 = vpop.f32.mrf.mxu0
      %v8013 = vadd.f32 0.0, %v8012
      %v8014 = vpop.f32.mrf.mxu0
      %v8015 = vadd.f32 0.0, %v8014
      %8016 = vmatmul.bf16.gmra.mxu0 %v4928
      %v8017 = vpop.f32.mrf.mxu0
      %v8018 = vadd.f32 0.0, %v8017
      %v8019 = vpop.f32.mrf.mxu0
      %v8020 = vadd.f32 0.0, %v8019
      %8021 = vmatmul.bf16.gmra.mxu0 %v4931
      %v8022 = vpop.f32.mrf.mxu0
      %v8023 = vadd.f32 0.0, %v8022
      %v8024 = vpop.f32.mrf.mxu0
      %v8025 = vadd.f32 0.0, %v8024
      %8026 = vmatmul.bf16.gmra.mxu0 %v4934
      %v8027 = vpop.f32.mrf.mxu0
      %v8028 = vadd.f32 0.0, %v8027
      %v8029 = vpop.f32.mrf.mxu0
      %v8030 = vadd.f32 0.0, %v8029
      %8031 = vmatmul.bf16.gmra.mxu0 %v4937
      %v8032 = vpop.f32.mrf.mxu0
      %v8033 = vadd.f32 0.0, %v8032
      %v8034 = vpop.f32.mrf.mxu0
      %v8035 = vadd.f32 0.0, %v8034
      %8036 = vmatmul.bf16.gmra.mxu0 %v4940
      %v8037 = vpop.f32.mrf.mxu0
      %v8038 = vadd.f32 0.0, %v8037
      %v8039 = vpop.f32.mrf.mxu0
      %v8040 = vadd.f32 0.0, %v8039
      %8041 = vmatmul.bf16.gmra.mxu0 %v4943
      %v8042 = vpop.f32.mrf.mxu0
      %v8043 = vadd.f32 0.0, %v8042
      %v8044 = vpop.f32.mrf.mxu0
      %v8045 = vadd.f32 0.0, %v8044
      %8046 = vmatmul.bf16.gmra.mxu0 %v4946
      %v8047 = vpop.f32.mrf.mxu0
      %v8048 = vadd.f32 0.0, %v8047
      %v8049 = vpop.f32.mrf.mxu0
      %v8050 = vadd.f32 0.0, %v8049
      %8051 = vmatmul.bf16.gmra.mxu0 %v4949
      %v8052 = vpop.f32.mrf.mxu0
      %v8053 = vadd.f32 0.0, %v8052
      %v8054 = vpop.f32.mrf.mxu0
      %v8055 = vadd.f32 0.0, %v8054
      %8056 = vmatmul.bf16.gmra.mxu0 %v4952
      %v8057 = vpop.f32.mrf.mxu0
      %v8058 = vadd.f32 0.0, %v8057
      %v8059 = vpop.f32.mrf.mxu0
      %v8060 = vadd.f32 0.0, %v8059
      %8061 = vmatmul.bf16.gmra.mxu0 %v4955
      %v8062 = vpop.f32.mrf.mxu0
      %v8063 = vadd.f32 0.0, %v8062
      %v8064 = vpop.f32.mrf.mxu0
      %v8065 = vadd.f32 0.0, %v8064
      %8066 = vmatmul.bf16.gmra.mxu0 %v4958
      %v8067 = vpop.f32.mrf.mxu0
      %v8068 = vadd.f32 0.0, %v8067
      %v8069 = vpop.f32.mrf.mxu0
      %v8070 = vadd.f32 0.0, %v8069
      %8071 = vmatmul.bf16.gmra.mxu0 %v4961
      %v8072 = vpop.f32.mrf.mxu0
      %v8073 = vadd.f32 0.0, %v8072
      %v8074 = vpop.f32.mrf.mxu0
      %v8075 = vadd.f32 0.0, %v8074
      %8076 = vmatmul.bf16.gmra.mxu0 %v4964
      %v8077 = vpop.f32.mrf.mxu0
      %v8078 = vadd.f32 0.0, %v8077
      %v8079 = vpop.f32.mrf.mxu0
      %v8080 = vadd.f32 0.0, %v8079
      %8081 = vmatmul.bf16.gmra.mxu0 %v4967
      %v8082 = vpop.f32.mrf.mxu0
      %v8083 = vadd.f32 0.0, %v8082
      %v8084 = vpop.f32.mrf.mxu0
      %v8085 = vadd.f32 0.0, %v8084
      %8086 = vmatmul.bf16.gmra.mxu0 %v4970
      %v8087 = vpop.f32.mrf.mxu0
      %v8088 = vadd.f32 0.0, %v8087
      %v8089 = vpop.f32.mrf.mxu0
      %v8090 = vadd.f32 0.0, %v8089
      %8091 = vmatmul.bf16.gmra.mxu0 %v4973
      %v8092 = vpop.f32.mrf.mxu0
      %v8093 = vadd.f32 0.0, %v8092
      %v8094 = vpop.f32.mrf.mxu0
      %v8095 = vadd.f32 0.0, %v8094
      %8096 = vmatmul.bf16.gmra.mxu0 %v4976
      %v8097 = vpop.f32.mrf.mxu0
      %v8098 = vadd.f32 0.0, %v8097
      %v8099 = vpop.f32.mrf.mxu0
      %v8100 = vadd.f32 0.0, %v8099
      %8101 = vmatmul.bf16.gmra.mxu0 %v4979
      %v8102 = vpop.f32.mrf.mxu0
      %v8103 = vadd.f32 0.0, %v8102
      %v8104 = vpop.f32.mrf.mxu0
      %v8105 = vadd.f32 0.0, %v8104
      %8106 = vmatmul.bf16.gmra.mxu0 %v4982
      %v8107 = vpop.f32.mrf.mxu0
      %v8108 = vadd.f32 0.0, %v8107
      %v8109 = vpop.f32.mrf.mxu0
      %v8110 = vadd.f32 0.0, %v8109
      %8111 = vmatmul.bf16.gmra.mxu0 %v4985
      %v8112 = vpop.f32.mrf.mxu0
      %v8113 = vadd.f32 0.0, %v8112
      %v8114 = vpop.f32.mrf.mxu0
      %v8115 = vadd.f32 0.0, %v8114
      %8116 = vmatmul.bf16.gmra.mxu0 %v4988
      %v8117 = vpop.f32.mrf.mxu0
      %v8118 = vadd.f32 0.0, %v8117
      %v8119 = vpop.f32.mrf.mxu0
      %v8120 = vadd.f32 0.0, %v8119
      %8121 = vmatmul.bf16.gmra.mxu0 %v4991
      %v8122 = vpop.f32.mrf.mxu0
      %v8123 = vadd.f32 0.0, %v8122
      %v8124 = vpop.f32.mrf.mxu0
      %v8125 = vadd.f32 0.0, %v8124
      %8126 = vmatmul.bf16.gmra.mxu0 %v4994
      %v8127 = vpop.f32.mrf.mxu0
      %v8128 = vadd.f32 0.0, %v8127
      %v8129 = vpop.f32.mrf.mxu0
      %v8130 = vadd.f32 0.0, %v8129
      %8131 = vmatmul.bf16.gmra.mxu0 %v4997
      %v8132 = vpop.f32.mrf.mxu0
      %v8133 = vadd.f32 0.0, %v8132
      %v8134 = vpop.f32.mrf.mxu0
      %v8135 = vadd.f32 0.0, %v8134
      %8136 = vmatmul.bf16.gmra.mxu0 %v5000
      %v8137 = vpop.f32.mrf.mxu0
      %v8138 = vadd.f32 0.0, %v8137
      %v8139 = vpop.f32.mrf.mxu0
      %v8140 = vadd.f32 0.0, %v8139
      %8141 = vmatmul.bf16.gmra.mxu0 %v5003
      %v8142 = vpop.f32.mrf.mxu0
      %v8143 = vadd.f32 0.0, %v8142
      %v8144 = vpop.f32.mrf.mxu0
      %v8145 = vadd.f32 0.0, %v8144
      %8146 = vmatmul.bf16.gmra.mxu0 %v5006
      %v8147 = vpop.f32.mrf.mxu0
      %v8148 = vadd.f32 0.0, %v8147
      %v8149 = vpop.f32.mrf.mxu0
      %v8150 = vadd.f32 0.0, %v8149
      %8151 = vmatmul.bf16.gmra.mxu0 %v5009
      %v8152 = vpop.f32.mrf.mxu0
      %v8153 = vadd.f32 0.0, %v8152
      %v8154 = vpop.f32.mrf.mxu0
      %v8155 = vadd.f32 0.0, %v8154
      %8156 = vmatmul.bf16.gmra.mxu0 %v5012
      %v8157 = vpop.f32.mrf.mxu0
      %v8158 = vadd.f32 0.0, %v8157
      %v8159 = vpop.f32.mrf.mxu0
      %v8160 = vadd.f32 0.0, %v8159
      %8161 = vmatmul.bf16.gmra.mxu0 %v5015
      %v8162 = vpop.f32.mrf.mxu0
      %v8163 = vadd.f32 0.0, %v8162
      %v8164 = vpop.f32.mrf.mxu0
      %v8165 = vadd.f32 0.0, %v8164
      %8166 = vmatmul.bf16.gmra.mxu0 %v5018
      %v8167 = vpop.f32.mrf.mxu0
      %v8168 = vadd.f32 0.0, %v8167
      %v8169 = vpop.f32.mrf.mxu0
      %v8170 = vadd.f32 0.0, %v8169
      %8171 = vmatmul.bf16.gmra.mxu0 %v5021
      %v8172 = vpop.f32.mrf.mxu0
      %v8173 = vadd.f32 0.0, %v8172
      %v8174 = vpop.f32.mrf.mxu0
      %v8175 = vadd.f32 0.0, %v8174
      %8176 = vmatmul.bf16.gmra.mxu0 %v5024
      %v8177 = vpop.f32.mrf.mxu0
      %v8178 = vadd.f32 0.0, %v8177
      %v8179 = vpop.f32.mrf.mxu0
      %v8180 = vadd.f32 0.0, %v8179
      %8181 = vmatmul.bf16.gmra.mxu0 %v5027
      %v8182 = vpop.f32.mrf.mxu0
      %v8183 = vadd.f32 0.0, %v8182
      %v8184 = vpop.f32.mrf.mxu0
      %v8185 = vadd.f32 0.0, %v8184
      %8186 = vmatmul.bf16.gmra.mxu0 %v5030
      %v8187 = vpop.f32.mrf.mxu0
      %v8188 = vadd.f32 0.0, %v8187
      %v8189 = vpop.f32.mrf.mxu0
      %v8190 = vadd.f32 0.0, %v8189
      %8191 = vmatmul.bf16.gmra.mxu0 %v5033
      %v8192 = vpop.f32.mrf.mxu0
      %v8193 = vadd.f32 0.0, %v8192
      %v8194 = vpop.f32.mrf.mxu0
      %v8195 = vadd.f32 0.0, %v8194
      %8196 = vmatmul.bf16.gmra.mxu0 %v6457
      %v8197 = vpop.f32.mrf.mxu0
      %v8198 = vadd.f32 0.0, %v8197
      %v8199 = vpop.f32.mrf.mxu0
      %v8200 = vadd.f32 0.0, %v8199
      %8201 = vmatmul.bf16.gmra.mxu0 %v6460
      %v8202 = vpop.f32.mrf.mxu0
      %v8203 = vadd.f32 0.0, %v8202
      %v8204 = vpop.f32.mrf.mxu0
      %v8205 = vadd.f32 0.0, %v8204
      %8206 = vmatmul.bf16.gmra.mxu0 %v7880
      %v8207 = vpop.f32.mrf.mxu0
      %v8208 = vadd.f32 0.0, %v8207
      %v8209 = vpop.f32.mrf.mxu0
      %v8210 = vadd.f32 0.0, %v8209
      %8211 = vmatmul.bf16.gmra.mxu0 %v7883
      %v8212 = vpop.f32.mrf.mxu0
      %v8213 = vadd.f32 0.0, %v8212
      %v8214 = vpop.f32.mrf.mxu0
      %v8215 = vadd.f32 0.0, %v8214
      %8216 = vdwg.mxu0
      %v8217 = vadd.f32 %v7744, %v7898
      %v8218 = vadd.f32 %v7745, %v7900
      %v8219 = vadd.f32 %v7746, %v7903
      %v8220 = vadd.f32 %v7747, %v7905
      %v8221 = vadd.f32 %v7748, %v7908
      %v8222 = vadd.f32 %v7749, %v7910
      %v8223 = vadd.f32 %v7750, %v7913
      %v8224 = vadd.f32 %v7751, %v7915
      %v8225 = vadd.f32 %v7752, %v7918
      %v8226 = vadd.f32 %v7753, %v7920
      %v8227 = vadd.f32 %v7754, %v7923
      %v8228 = vadd.f32 %v7755, %v7925
      %v8229 = vadd.f32 %v7756, %v7928
      %v8230 = vadd.f32 %v7757, %v7930
      %v8231 = vadd.f32 %v7758, %v7933
      %v8232 = vadd.f32 %v7759, %v7935
      %v8233 = vadd.f32 %v7760, %v7938
      %v8234 = vadd.f32 %v7761, %v7940
      %v8235 = vadd.f32 %v7762, %v7943
      %v8236 = vadd.f32 %v7763, %v7945
      %v8237 = vadd.f32 %v7764, %v7948
      %v8238 = vadd.f32 %v7765, %v7950
      %v8239 = vadd.f32 %v7766, %v7953
      %v8240 = vadd.f32 %v7767, %v7955
      %v8241 = vadd.f32 %v7768, %v7958
      %v8242 = vadd.f32 %v7769, %v7960
      %v8243 = vadd.f32 %v7770, %v7963
      %v8244 = vadd.f32 %v7771, %v7965
      %v8245 = vadd.f32 %v7772, %v7968
      %v8246 = vadd.f32 %v7773, %v7970
      %v8247 = vadd.f32 %v7774, %v7973
      %v8248 = vadd.f32 %v7775, %v7975
      %v8249 = vadd.f32 %v7776, %v7978
      %v8250 = vadd.f32 %v7777, %v7980
      %v8251 = vadd.f32 %v7778, %v7983
      %v8252 = vadd.f32 %v7779, %v7985
      %v8253 = vadd.f32 %v7780, %v7988
      %v8254 = vadd.f32 %v7781, %v7990
      %v8255 = vadd.f32 %v7782, %v7993
      %v8256 = vadd.f32 %v7783, %v7995
      %v8257 = vadd.f32 %v7784, %v7998
      %v8258 = vadd.f32 %v7785, %v8000
      %v8259 = vadd.f32 %v7786, %v8003
      %v8260 = vadd.f32 %v7787, %v8005
      %v8261 = vadd.f32 %v7788, %v8008
      %v8262 = vadd.f32 %v7789, %v8010
      %v8263 = vadd.f32 %v7790, %v8013
      %v8264 = vadd.f32 %v7791, %v8015
      %v8265 = vadd.f32 %v7792, %v8018
      %v8266 = vadd.f32 %v7793, %v8020
      %v8267 = vadd.f32 %v7794, %v8023
      %v8268 = vadd.f32 %v7795, %v8025
      %v8269 = vadd.f32 %v7796, %v8028
      %v8270 = vadd.f32 %v7797, %v8030
      %v8271 = vadd.f32 %v7798, %v8033
      %v8272 = vadd.f32 %v7799, %v8035
      %v8273 = vadd.f32 %v7800, %v8038
      %v8274 = vadd.f32 %v7801, %v8040
      %v8275 = vadd.f32 %v7802, %v8043
      %v8276 = vadd.f32 %v7803, %v8045
      %v8277 = vadd.f32 %v7804, %v8048
      %v8278 = vadd.f32 %v7805, %v8050
      %v8279 = vadd.f32 %v7806, %v8053
      %v8280 = vadd.f32 %v7807, %v8055
      %v8281 = vadd.f32 %v7808, %v8058
      %v8282 = vadd.f32 %v7809, %v8060
      %v8283 = vadd.f32 %v7810, %v8063
      %v8284 = vadd.f32 %v7811, %v8065
      %v8285 = vadd.f32 %v7812, %v8068
      %v8286 = vadd.f32 %v7813, %v8070
      %v8287 = vadd.f32 %v7814, %v8073
      %v8288 = vadd.f32 %v7815, %v8075
      %v8289 = vadd.f32 %v7816, %v8078
      %v8290 = vadd.f32 %v7817, %v8080
      %v8291 = vadd.f32 %v7818, %v8083
      %v8292 = vadd.f32 %v7819, %v8085
      %v8293 = vadd.f32 %v7820, %v8088
      %v8294 = vadd.f32 %v7821, %v8090
      %v8295 = vadd.f32 %v7822, %v8093
      %v8296 = vadd.f32 %v7823, %v8095
      %v8297 = vadd.f32 %v7824, %v8098
      %v8298 = vadd.f32 %v7825, %v8100
      %v8299 = vadd.f32 %v7826, %v8103
      %v8300 = vadd.f32 %v7827, %v8105
      %v8301 = vadd.f32 %v7828, %v8108
      %v8302 = vadd.f32 %v7829, %v8110
      %v8303 = vadd.f32 %v7830, %v8113
      %v8304 = vadd.f32 %v7831, %v8115
      %v8305 = vadd.f32 %v7832, %v8118
      %v8306 = vadd.f32 %v7833, %v8120
      %v8307 = vadd.f32 %v7834, %v8123
      %v8308 = vadd.f32 %v7835, %v8125
      %v8309 = vadd.f32 %v7836, %v8128
      %v8310 = vadd.f32 %v7837, %v8130
      %v8311 = vadd.f32 %v7838, %v8133
      %v8312 = vadd.f32 %v7839, %v8135
      %v8313 = vadd.f32 %v7840, %v8138
      %v8314 = vadd.f32 %v7841, %v8140
      %v8315 = vadd.f32 %v7842, %v8143
      %v8316 = vadd.f32 %v7843, %v8145
      %v8317 = vadd.f32 %v7844, %v8148
      %v8318 = vadd.f32 %v7845, %v8150
      %v8319 = vadd.f32 %v7846, %v8153
      %v8320 = vadd.f32 %v7847, %v8155
      %v8321 = vadd.f32 %v7848, %v8158
      %v8322 = vadd.f32 %v7849, %v8160
      %v8323 = vadd.f32 %v7850, %v8163
      %v8324 = vadd.f32 %v7851, %v8165
      %v8325 = vadd.f32 %v7852, %v8168
      %v8326 = vadd.f32 %v7853, %v8170
      %v8327 = vadd.f32 %v7854, %v8173
      %v8328 = vadd.f32 %v7855, %v8175
      %v8329 = vadd.f32 %v7856, %v8178
      %v8330 = vadd.f32 %v7857, %v8180
      %v8331 = vadd.f32 %v7858, %v8183
      %v8332 = vadd.f32 %v7859, %v8185
      %v8333 = vadd.f32 %v7860, %v8188
      %v8334 = vadd.f32 %v7861, %v8190
      %v8335 = vadd.f32 %v7862, %v8193
      %v8336 = vadd.f32 %v7863, %v8195
      %v8337 = vadd.f32 %v7864, %v8198
      %v8338 = vadd.f32 %v7865, %v8200
      %v8339 = vadd.f32 %v7866, %v8203
      %v8340 = vadd.f32 %v7867, %v8205
      %v8341 = vadd.f32 %v7868, %v8208
      %v8342 = vadd.f32 %v7869, %v8210
      %v8343 = vadd.f32 %v7870, %v8213
      %v8344 = vadd.f32 %v7871, %v8215
      %v8345 = vpack.c.bf16 %v8217, %v8217
      %v8346 = vpack.c.bf16 %v8218, %v8218
      %v8347 = vpack.c.bf16 %v8219, %v8219
      %v8348 = vpack.c.bf16 %v8220, %v8220
      %v8349 = vpack.c.bf16 %v8221, %v8221
      %v8350 = vpack.c.bf16 %v8222, %v8222
      %v8351 = vpack.c.bf16 %v8223, %v8223
      %v8352 = vpack.c.bf16 %v8224, %v8224
      %v8353 = vpack.c.bf16 %v8225, %v8225
      %v8354 = vpack.c.bf16 %v8226, %v8226
      %v8355 = vpack.c.bf16 %v8227, %v8227
      %v8356 = vpack.c.bf16 %v8228, %v8228
      %v8357 = vpack.c.bf16 %v8229, %v8229
      %v8358 = vpack.c.bf16 %v8230, %v8230
      %v8359 = vpack.c.bf16 %v8231, %v8231
      %v8360 = vpack.c.bf16 %v8232, %v8232
      %v8361 = vpack.c.bf16 %v8233, %v8233
      %v8362 = vpack.c.bf16 %v8234, %v8234
      %v8363 = vpack.c.bf16 %v8235, %v8235
      %v8364 = vpack.c.bf16 %v8236, %v8236
      %v8365 = vpack.c.bf16 %v8237, %v8237
      %v8366 = vpack.c.bf16 %v8238, %v8238
      %v8367 = vpack.c.bf16 %v8239, %v8239
      %v8368 = vpack.c.bf16 %v8240, %v8240
      %v8369 = vpack.c.bf16 %v8241, %v8241
      %v8370 = vpack.c.bf16 %v8242, %v8242
      %v8371 = vpack.c.bf16 %v8243, %v8243
      %v8372 = vpack.c.bf16 %v8244, %v8244
      %v8373 = vpack.c.bf16 %v8245, %v8245
      %v8374 = vpack.c.bf16 %v8246, %v8246
      %v8375 = vpack.c.bf16 %v8247, %v8247
      %v8376 = vpack.c.bf16 %v8248, %v8248
      %v8377 = vpack.c.bf16 %v8249, %v8249
      %v8378 = vpack.c.bf16 %v8250, %v8250
      %v8379 = vpack.c.bf16 %v8251, %v8251
      %v8380 = vpack.c.bf16 %v8252, %v8252
      %v8381 = vpack.c.bf16 %v8253, %v8253
      %v8382 = vpack.c.bf16 %v8254, %v8254
      %v8383 = vpack.c.bf16 %v8255, %v8255
      %v8384 = vpack.c.bf16 %v8256, %v8256
      %v8385 = vpack.c.bf16 %v8257, %v8257
      %v8386 = vpack.c.bf16 %v8258, %v8258
      %v8387 = vpack.c.bf16 %v8259, %v8259
      %v8388 = vpack.c.bf16 %v8260, %v8260
      %v8389 = vpack.c.bf16 %v8261, %v8261
      %v8390 = vpack.c.bf16 %v8262, %v8262
      %v8391 = vpack.c.bf16 %v8263, %v8263
      %v8392 = vpack.c.bf16 %v8264, %v8264
      %v8393 = vpack.c.bf16 %v8265, %v8265
      %v8394 = vpack.c.bf16 %v8266, %v8266
      %v8395 = vpack.c.bf16 %v8267, %v8267
      %v8396 = vpack.c.bf16 %v8268, %v8268
      %v8397 = vpack.c.bf16 %v8269, %v8269
      %v8398 = vpack.c.bf16 %v8270, %v8270
      %v8399 = vpack.c.bf16 %v8271, %v8271
      %v8400 = vpack.c.bf16 %v8272, %v8272
      %v8401 = vpack.c.bf16 %v8273, %v8273
      %v8402 = vpack.c.bf16 %v8274, %v8274
      %v8403 = vpack.c.bf16 %v8275, %v8275
      %v8404 = vpack.c.bf16 %v8276, %v8276
      %v8405 = vpack.c.bf16 %v8277, %v8277
      %v8406 = vpack.c.bf16 %v8278, %v8278
      %v8407 = vpack.c.bf16 %v8279, %v8279
      %v8408 = vpack.c.bf16 %v8280, %v8280
      %v8409 = vpack.c.bf16 %v8281, %v8281
      %v8410 = vpack.c.bf16 %v8282, %v8282
      %v8411 = vpack.c.bf16 %v8283, %v8283
      %v8412 = vpack.c.bf16 %v8284, %v8284
      %v8413 = vpack.c.bf16 %v8285, %v8285
      %v8414 = vpack.c.bf16 %v8286, %v8286
      %v8415 = vpack.c.bf16 %v8287, %v8287
      %v8416 = vpack.c.bf16 %v8288, %v8288
      %v8417 = vpack.c.bf16 %v8289, %v8289
      %v8418 = vpack.c.bf16 %v8290, %v8290
      %v8419 = vpack.c.bf16 %v8291, %v8291
      %v8420 = vpack.c.bf16 %v8292, %v8292
      %v8421 = vpack.c.bf16 %v8293, %v8293
      %v8422 = vpack.c.bf16 %v8294, %v8294
      %v8423 = vpack.c.bf16 %v8295, %v8295
      %v8424 = vpack.c.bf16 %v8296, %v8296
      %v8425 = vpack.c.bf16 %v8297, %v8297
      %v8426 = vpack.c.bf16 %v8298, %v8298
      %v8427 = vpack.c.bf16 %v8299, %v8299
      %v8428 = vpack.c.bf16 %v8300, %v8300
      %v8429 = vpack.c.bf16 %v8301, %v8301
      %v8430 = vpack.c.bf16 %v8302, %v8302
      %v8431 = vpack.c.bf16 %v8303, %v8303
      %v8432 = vpack.c.bf16 %v8304, %v8304
      %v8433 = vpack.c.bf16 %v8305, %v8305
      %v8434 = vpack.c.bf16 %v8306, %v8306
      %v8435 = vpack.c.bf16 %v8307, %v8307
      %v8436 = vpack.c.bf16 %v8308, %v8308
      %v8437 = vpack.c.bf16 %v8309, %v8309
      %v8438 = vpack.c.bf16 %v8310, %v8310
      %v8439 = vpack.c.bf16 %v8311, %v8311
      %v8440 = vpack.c.bf16 %v8312, %v8312
      %v8441 = vpack.c.bf16 %v8313, %v8313
      %v8442 = vpack.c.bf16 %v8314, %v8314
      %v8443 = vpack.c.bf16 %v8315, %v8315
      %v8444 = vpack.c.bf16 %v8316, %v8316
      %v8445 = vpack.c.bf16 %v8317, %v8317
      %v8446 = vpack.c.bf16 %v8318, %v8318
      %v8447 = vpack.c.bf16 %v8319, %v8319
      %v8448 = vpack.c.bf16 %v8320, %v8320
      %v8449 = vpack.c.bf16 %v8321, %v8321
      %v8450 = vpack.c.bf16 %v8322, %v8322
      %v8451 = vpack.c.bf16 %v8323, %v8323
      %v8452 = vpack.c.bf16 %v8324, %v8324
      %v8453 = vpack.c.bf16 %v8325, %v8325
      %v8454 = vpack.c.bf16 %v8326, %v8326
      %v8455 = vpack.c.bf16 %v8327, %v8327
      %v8456 = vpack.c.bf16 %v8328, %v8328
      %v8457 = vpack.c.bf16 %v8329, %v8329
      %v8458 = vpack.c.bf16 %v8330, %v8330
      %v8459 = vpack.c.bf16 %v8331, %v8331
      %v8460 = vpack.c.bf16 %v8332, %v8332
      %v8461 = vpack.c.bf16 %v8333, %v8333
      %v8462 = vpack.c.bf16 %v8334, %v8334
      %v8463 = vpack.c.bf16 %v8335, %v8335
      %v8464 = vpack.c.bf16 %v8336, %v8336
      %v8465 = vpack.c.bf16 %v8337, %v8337
      %v8466 = vpack.c.bf16 %v8338, %v8338
      %v8467 = vpack.c.bf16 %v8339, %v8339
      %v8468 = vpack.c.bf16 %v8340, %v8340
      %v8469 = vpack.c.bf16 %v8341, %v8341
      %v8470 = vpack.c.bf16 %v8342, %v8342
      %v8471 = vpack.c.bf16 %v8343, %v8343
      %v8472 = vpack.c.bf16 %v8344, %v8344
      %8473 = vst [vmem:[%s206] sm:$0xf] %v8345
      %8474 = vst [vmem:[%s206 + $0x4] sm:$0xf] %v8346
      %8475 = vst [vmem:[%s206 + $0x8] sm:$0xf] %v8347
      %8476 = vst [vmem:[%s206 + $0xc] sm:$0xf] %v8348
      %8477 = vst [vmem:[%s206 + $0x10] sm:$0xf] %v8349
      %8478 = vst [vmem:[%s206 + $0x14] sm:$0xf] %v8350
      %8479 = vst [vmem:[%s206 + $0x18] sm:$0xf] %v8351
      %8480 = vst [vmem:[%s206 + $0x1c] sm:$0xf] %v8352
      %8481 = vst [vmem:[%s206 + $0x20] sm:$0xf] %v8353
      %8482 = vst [vmem:[%s206 + $0x24] sm:$0xf] %v8354
      %8483 = vst [vmem:[%s206 + $0x28] sm:$0xf] %v8355
      %8484 = vst [vmem:[%s206 + $0x2c] sm:$0xf] %v8356
      %8485 = vst [vmem:[%s206 + $0x30] sm:$0xf] %v8357
      %8486 = vst [vmem:[%s206 + $0x34] sm:$0xf] %v8358
      %8487 = vst [vmem:[%s206 + $0x38] sm:$0xf] %v8359
      %8488 = vst [vmem:[%s206 + $0x3c] sm:$0xf] %v8360
      %8489 = vst [vmem:[%s206 + $0x40] sm:$0xf] %v8361
      %8490 = vst [vmem:[%s206 + $0x44] sm:$0xf] %v8362
      %8491 = vst [vmem:[%s206 + $0x48] sm:$0xf] %v8363
      %8492 = vst [vmem:[%s206 + $0x4c] sm:$0xf] %v8364
      %8493 = vst [vmem:[%s206 + $0x50] sm:$0xf] %v8365
      %8494 = vst [vmem:[%s206 + $0x54] sm:$0xf] %v8366
      %8495 = vst [vmem:[%s206 + $0x58] sm:$0xf] %v8367
      %8496 = vst [vmem:[%s206 + $0x5c] sm:$0xf] %v8368
      %8497 = vst [vmem:[%s206 + $0x60] sm:$0xf] %v8369
      %8498 = vst [vmem:[%s206 + $0x64] sm:$0xf] %v8370
      %8499 = vst [vmem:[%s206 + $0x68] sm:$0xf] %v8371
      %8500 = vst [vmem:[%s206 + $0x6c] sm:$0xf] %v8372
      %8501 = vst [vmem:[%s206 + $0x70] sm:$0xf] %v8373
      %8502 = vst [vmem:[%s206 + $0x74] sm:$0xf] %v8374
      %8503 = vst [vmem:[%s206 + $0x78] sm:$0xf] %v8375
      %8504 = vst [vmem:[%s206 + $0x7c] sm:$0xf] %v8376
      %8505 = vst [vmem:[%s206 + $0x80] sm:$0xf] %v8377
      %8506 = vst [vmem:[%s206 + $0x84] sm:$0xf] %v8378
      %8507 = vst [vmem:[%s206 + $0x88] sm:$0xf] %v8379
      %8508 = vst [vmem:[%s206 + $0x8c] sm:$0xf] %v8380
      %8509 = vst [vmem:[%s206 + $0x90] sm:$0xf] %v8381
      %8510 = vst [vmem:[%s206 + $0x94] sm:$0xf] %v8382
      %8511 = vst [vmem:[%s206 + $0x98] sm:$0xf] %v8383
      %8512 = vst [vmem:[%s206 + $0x9c] sm:$0xf] %v8384
      %8513 = vst [vmem:[%s206 + $0xa0] sm:$0xf] %v8385
      %8514 = vst [vmem:[%s206 + $0xa4] sm:$0xf] %v8386
      %8515 = vst [vmem:[%s206 + $0xa8] sm:$0xf] %v8387
      %8516 = vst [vmem:[%s206 + $0xac] sm:$0xf] %v8388
      %8517 = vst [vmem:[%s206 + $0xb0] sm:$0xf] %v8389
      %8518 = vst [vmem:[%s206 + $0xb4] sm:$0xf] %v8390
      %8519 = vst [vmem:[%s206 + $0xb8] sm:$0xf] %v8391
      %8520 = vst [vmem:[%s206 + $0xbc] sm:$0xf] %v8392
      %8521 = vst [vmem:[%s206 + $0xc0] sm:$0xf] %v8393
      %8522 = vst [vmem:[%s206 + $0xc4] sm:$0xf] %v8394
      %8523 = vst [vmem:[%s206 + $0xc8] sm:$0xf] %v8395
      %8524 = vst [vmem:[%s206 + $0xcc] sm:$0xf] %v8396
      %8525 = vst [vmem:[%s206 + $0xd0] sm:$0xf] %v8397
      %8526 = vst [vmem:[%s206 + $0xd4] sm:$0xf] %v8398
      %8527 = vst [vmem:[%s206 + $0xd8] sm:$0xf] %v8399
      %8528 = vst [vmem:[%s206 + $0xdc] sm:$0xf] %v8400
      %8529 = vst [vmem:[%s206 + $0xe0] sm:$0xf] %v8401
      %8530 = vst [vmem:[%s206 + $0xe4] sm:$0xf] %v8402
      %8531 = vst [vmem:[%s206 + $0xe8] sm:$0xf] %v8403
      %8532 = vst [vmem:[%s206 + $0xec] sm:$0xf] %v8404
      %8533 = vst [vmem:[%s206 + $0xf0] sm:$0xf] %v8405
      %8534 = vst [vmem:[%s206 + $0xf4] sm:$0xf] %v8406
      %8535 = vst [vmem:[%s206 + $0xf8] sm:$0xf] %v8407
      %8536 = vst [vmem:[%s206 + $0xfc] sm:$0xf] %v8408
      %8537 = vst [vmem:[%s206 + $0x100] sm:$0xf] %v8409
      %8538 = vst [vmem:[%s206 + $0x104] sm:$0xf] %v8410
      %8539 = vst [vmem:[%s206 + $0x108] sm:$0xf] %v8411
      %8540 = vst [vmem:[%s206 + $0x10c] sm:$0xf] %v8412
      %8541 = vst [vmem:[%s206 + $0x110] sm:$0xf] %v8413
      %8542 = vst [vmem:[%s206 + $0x114] sm:$0xf] %v8414
      %8543 = vst [vmem:[%s206 + $0x118] sm:$0xf] %v8415
      %8544 = vst [vmem:[%s206 + $0x11c] sm:$0xf] %v8416
      %8545 = vst [vmem:[%s206 + $0x120] sm:$0xf] %v8417
      %8546 = vst [vmem:[%s206 + $0x124] sm:$0xf] %v8418
      %8547 = vst [vmem:[%s206 + $0x128] sm:$0xf] %v8419
      %8548 = vst [vmem:[%s206 + $0x12c] sm:$0xf] %v8420
      %8549 = vst [vmem:[%s206 + $0x130] sm:$0xf] %v8421
      %8550 = vst [vmem:[%s206 + $0x134] sm:$0xf] %v8422
      %8551 = vst [vmem:[%s206 + $0x138] sm:$0xf] %v8423
      %8552 = vst [vmem:[%s206 + $0x13c] sm:$0xf] %v8424
      %8553 = vst [vmem:[%s206 + $0x140] sm:$0xf] %v8425
      %8554 = vst [vmem:[%s206 + $0x144] sm:$0xf] %v8426
      %8555 = vst [vmem:[%s206 + $0x148] sm:$0xf] %v8427
      %8556 = vst [vmem:[%s206 + $0x14c] sm:$0xf] %v8428
      %8557 = vst [vmem:[%s206 + $0x150] sm:$0xf] %v8429
      %8558 = vst [vmem:[%s206 + $0x154] sm:$0xf] %v8430
      %8559 = vst [vmem:[%s206 + $0x158] sm:$0xf] %v8431
      %8560 = vst [vmem:[%s206 + $0x15c] sm:$0xf] %v8432
      %8561 = vst [vmem:[%s206 + $0x160] sm:$0xf] %v8433
      %8562 = vst [vmem:[%s206 + $0x164] sm:$0xf] %v8434
      %8563 = vst [vmem:[%s206 + $0x168] sm:$0xf] %v8435
      %8564 = vst [vmem:[%s206 + $0x16c] sm:$0xf] %v8436
      %8565 = vst [vmem:[%s206 + $0x170] sm:$0xf] %v8437
      %8566 = vst [vmem:[%s206 + $0x174] sm:$0xf] %v8438
      %8567 = vst [vmem:[%s206 + $0x178] sm:$0xf] %v8439
      %8568 = vst [vmem:[%s206 + $0x17c] sm:$0xf] %v8440
      %8569 = vst [vmem:[%s206 + $0x180] sm:$0xf] %v8441
      %8570 = vst [vmem:[%s206 + $0x184] sm:$0xf] %v8442
      %8571 = vst [vmem:[%s206 + $0x188] sm:$0xf] %v8443
      %8572 = vst [vmem:[%s206 + $0x18c] sm:$0xf] %v8444
      %8573 = vst [vmem:[%s206 + $0x190] sm:$0xf] %v8445
      %8574 = vst [vmem:[%s206 + $0x194] sm:$0xf] %v8446
      %8575 = vst [vmem:[%s206 + $0x198] sm:$0xf] %v8447
      %8576 = vst [vmem:[%s206 + $0x19c] sm:$0xf] %v8448
      %8577 = vst [vmem:[%s206 + $0x1a0] sm:$0xf] %v8449
      %8578 = vst [vmem:[%s206 + $0x1a4] sm:$0xf] %v8450
      %8579 = vst [vmem:[%s206 + $0x1a8] sm:$0xf] %v8451
      %8580 = vst [vmem:[%s206 + $0x1ac] sm:$0xf] %v8452
      %8581 = vst [vmem:[%s206 + $0x1b0] sm:$0xf] %v8453
      %8582 = vst [vmem:[%s206 + $0x1b4] sm:$0xf] %v8454
      %8583 = vst [vmem:[%s206 + $0x1b8] sm:$0xf] %v8455
      %8584 = vst [vmem:[%s206 + $0x1bc] sm:$0xf] %v8456
      %8585 = vst [vmem:[%s206 + $0x1c0] sm:$0xf] %v8457
      %8586 = vst [vmem:[%s206 + $0x1c4] sm:$0xf] %v8458
      %8587 = vst [vmem:[%s206 + $0x1c8] sm:$0xf] %v8459
      %8588 = vst [vmem:[%s206 + $0x1cc] sm:$0xf] %v8460
      %8589 = vst [vmem:[%s206 + $0x1d0] sm:$0xf] %v8461
      %8590 = vst [vmem:[%s206 + $0x1d4] sm:$0xf] %v8462
      %8591 = vst [vmem:[%s206 + $0x1d8] sm:$0xf] %v8463
      %8592 = vst [vmem:[%s206 + $0x1dc] sm:$0xf] %v8464
      %8593 = vst [vmem:[%s206 + $0x1e0] sm:$0xf] %v8465
      %8594 = vst [vmem:[%s206 + $0x1e4] sm:$0xf] %v8466
      %8595 = vst [vmem:[%s206 + $0x1e8] sm:$0xf] %v8467
      %8596 = vst [vmem:[%s206 + $0x1ec] sm:$0xf] %v8468
      %8597 = vst [vmem:[%s206 + $0x1f0] sm:$0xf] %v8469
      %8598 = vst [vmem:[%s206 + $0x1f4] sm:$0xf] %v8470
      %8599 = vst [vmem:[%s206 + $0x1f8] sm:$0xf] %v8471
      %8600 = vst [vmem:[%s206 + $0x1fc] sm:$0xf] %v8472
      %v8601 = vadd.f32 %v8217, %v8218
      %v8602 = vadd.f32 %v8601, %v8219
      %v8603 = vadd.f32 %v8602, %v8220
      %v8604 = vadd.f32 %v8603, %v8221
      %v8605 = vadd.f32 %v8604, %v8222
      %v8606 = vadd.f32 %v8605, %v8223
      %v8607 = vadd.f32 %v8606, %v8224
      %v8608 = vadd.f32 %v8607, %v8225
      %v8609 = vadd.f32 %v8608, %v8226
      %v8610 = vadd.f32 %v8609, %v8227
      %v8611 = vadd.f32 %v8610, %v8228
      %v8612 = vadd.f32 %v8611, %v8229
      %v8613 = vadd.f32 %v8612, %v8230
      %v8614 = vadd.f32 %v8613, %v8231
      %v8615 = vadd.f32 %v8614, %v8232
      %v8616 = vadd.f32 %v8615, %v8233
      %v8617 = vadd.f32 %v8616, %v8234
      %v8618 = vadd.f32 %v8617, %v8235
      %v8619 = vadd.f32 %v8618, %v8236
      %v8620 = vadd.f32 %v8619, %v8237
      %v8621 = vadd.f32 %v8620, %v8238
      %v8622 = vadd.f32 %v8621, %v8239
      %v8623 = vadd.f32 %v8622, %v8240
      %v8624 = vadd.f32 %v8623, %v8241
      %v8625 = vadd.f32 %v8624, %v8242
      %v8626 = vadd.f32 %v8625, %v8243
      %v8627 = vadd.f32 %v8626, %v8244
      %v8628 = vadd.f32 %v8627, %v8245
      %v8629 = vadd.f32 %v8628, %v8246
      %v8630 = vadd.f32 %v8629, %v8247
      %v8631 = vadd.f32 %v8630, %v8248
      %v8632 = vadd.f32 %v8631, %v8249
      %v8633 = vadd.f32 %v8632, %v8250
      %v8634 = vadd.f32 %v8633, %v8251
      %v8635 = vadd.f32 %v8634, %v8252
      %v8636 = vadd.f32 %v8635, %v8253
      %v8637 = vadd.f32 %v8636, %v8254
      %v8638 = vadd.f32 %v8637, %v8255
      %v8639 = vadd.f32 %v8638, %v8256
      %v8640 = vadd.f32 %v8639, %v8257
      %v8641 = vadd.f32 %v8640, %v8258
      %v8642 = vadd.f32 %v8641, %v8259
      %v8643 = vadd.f32 %v8642, %v8260
      %v8644 = vadd.f32 %v8643, %v8261
      %v8645 = vadd.f32 %v8644, %v8262
      %v8646 = vadd.f32 %v8645, %v8263
      %v8647 = vadd.f32 %v8646, %v8264
      %v8648 = vadd.f32 %v8647, %v8265
      %v8649 = vadd.f32 %v8648, %v8266
      %v8650 = vadd.f32 %v8649, %v8267
      %v8651 = vadd.f32 %v8650, %v8268
      %v8652 = vadd.f32 %v8651, %v8269
      %v8653 = vadd.f32 %v8652, %v8270
      %v8654 = vadd.f32 %v8653, %v8271
      %v8655 = vadd.f32 %v8654, %v8272
      %v8656 = vadd.f32 %v8655, %v8273
      %v8657 = vadd.f32 %v8656, %v8274
      %v8658 = vadd.f32 %v8657, %v8275
      %v8659 = vadd.f32 %v8658, %v8276
      %v8660 = vadd.f32 %v8659, %v8277
      %v8661 = vadd.f32 %v8660, %v8278
      %v8662 = vadd.f32 %v8661, %v8279
      %v8663 = vadd.f32 %v8662, %v8280
      %v8664 = vadd.f32 %v8663, %v8281
      %v8665 = vadd.f32 %v8664, %v8282
      %v8666 = vadd.f32 %v8665, %v8283
      %v8667 = vadd.f32 %v8666, %v8284
      %v8668 = vadd.f32 %v8667, %v8285
      %v8669 = vadd.f32 %v8668, %v8286
      %v8670 = vadd.f32 %v8669, %v8287
      %v8671 = vadd.f32 %v8670, %v8288
      %v8672 = vadd.f32 %v8671, %v8289
      %v8673 = vadd.f32 %v8672, %v8290
      %v8674 = vadd.f32 %v8673, %v8291
      %v8675 = vadd.f32 %v8674, %v8292
      %v8676 = vadd.f32 %v8675, %v8293
      %v8677 = vadd.f32 %v8676, %v8294
      %v8678 = vadd.f32 %v8677, %v8295
      %v8679 = vadd.f32 %v8678, %v8296
      %v8680 = vadd.f32 %v8679, %v8297
      %v8681 = vadd.f32 %v8680, %v8298
      %v8682 = vadd.f32 %v8681, %v8299
      %v8683 = vadd.f32 %v8682, %v8300
      %v8684 = vadd.f32 %v8683, %v8301
      %v8685 = vadd.f32 %v8684, %v8302
      %v8686 = vadd.f32 %v8685, %v8303
      %v8687 = vadd.f32 %v8686, %v8304
      %v8688 = vadd.f32 %v8687, %v8305
      %v8689 = vadd.f32 %v8688, %v8306
      %v8690 = vadd.f32 %v8689, %v8307
      %v8691 = vadd.f32 %v8690, %v8308
      %v8692 = vadd.f32 %v8691, %v8309
      %v8693 = vadd.f32 %v8692, %v8310
      %v8694 = vadd.f32 %v8693, %v8311
      %v8695 = vadd.f32 %v8694, %v8312
      %v8696 = vadd.f32 %v8695, %v8313
      %v8697 = vadd.f32 %v8696, %v8314
      %v8698 = vadd.f32 %v8697, %v8315
      %v8699 = vadd.f32 %v8698, %v8316
      %v8700 = vadd.f32 %v8699, %v8317
      %v8701 = vadd.f32 %v8700, %v8318
      %v8702 = vadd.f32 %v8701, %v8319
      %v8703 = vadd.f32 %v8702, %v8320
      %v8704 = vadd.f32 %v8703, %v8321
      %v8705 = vadd.f32 %v8704, %v8322
      %v8706 = vadd.f32 %v8705, %v8323
      %v8707 = vadd.f32 %v8706, %v8324
      %v8708 = vadd.f32 %v8707, %v8325
      %v8709 = vadd.f32 %v8708, %v8326
      %v8710 = vadd.f32 %v8709, %v8327
      %v8711 = vadd.f32 %v8710, %v8328
      %v8712 = vadd.f32 %v8711, %v8329
      %v8713 = vadd.f32 %v8712, %v8330
      %v8714 = vadd.f32 %v8713, %v8331
      %v8715 = vadd.f32 %v8714, %v8332
      %v8716 = vadd.f32 %v8715, %v8333
      %v8717 = vadd.f32 %v8716, %v8334
      %v8718 = vadd.f32 %v8717, %v8335
      %v8719 = vadd.f32 %v8718, %v8336
      %v8720 = vadd.f32 %v8719, %v8337
      %v8721 = vadd.f32 %v8720, %v8338
      %v8722 = vadd.f32 %v8721, %v8339
      %v8723 = vadd.f32 %v8722, %v8340
      %v8724 = vadd.f32 %v8723, %v8341
      %v8725 = vadd.f32 %v8724, %v8342
      %v8726 = vadd.f32 %v8725, %v8343
      %v8727 = vadd.f32 %v8726, %v8344
      %v8728 = vrot.slane %v8727, 4
      %v8729 = vadd.f32 %v8727, %v8728
      %v8730 = vrot.slane %v8729, 2
      %v8731 = vadd.f32 %v8729, %v8730
      %v8732 = vrot.slane %v8731, 1
      %v8733 = vadd.f32 %v8731, %v8732
      %v8734 = vrcp.pop 1024.0
      %v8735 = vmul.f32 1024.0, %v8734
      %v8736 = vsub.f32 1.0, %v8735
      %v8737 = vmul.f32 %v8734, %v8736
      %v8738 = vadd.f32 %v8734, %v8737
      %vm8739 = vweird.f32 %v8734
      %v8740 = vsel %vm8739, %v8734, %v8738
      %v8741 = vmul.f32 %v8733, %v8740
      %v8742 = vsub.f32 %v8217, %v8741
      %v8743 = vsub.f32 %v8218, %v8741
      %v8744 = vsub.f32 %v8219, %v8741
      %v8745 = vsub.f32 %v8220, %v8741
      %v8746 = vsub.f32 %v8221, %v8741
      %v8747 = vsub.f32 %v8222, %v8741
      %v8748 = vsub.f32 %v8223, %v8741
      %v8749 = vsub.f32 %v8224, %v8741
      %v8750 = vsub.f32 %v8225, %v8741
      %v8751 = vsub.f32 %v8226, %v8741
      %v8752 = vsub.f32 %v8227, %v8741
      %v8753 = vsub.f32 %v8228, %v8741
      %v8754 = vsub.f32 %v8229, %v8741
      %v8755 = vsub.f32 %v8230, %v8741
      %v8756 = vsub.f32 %v8231, %v8741
      %v8757 = vsub.f32 %v8232, %v8741
      %v8758 = vsub.f32 %v8233, %v8741
      %v8759 = vsub.f32 %v8234, %v8741
      %v8760 = vsub.f32 %v8235, %v8741
      %v8761 = vsub.f32 %v8236, %v8741
      %v8762 = vsub.f32 %v8237, %v8741
      %v8763 = vsub.f32 %v8238, %v8741
      %v8764 = vsub.f32 %v8239, %v8741
      %v8765 = vsub.f32 %v8240, %v8741
      %v8766 = vsub.f32 %v8241, %v8741
      %v8767 = vsub.f32 %v8242, %v8741
      %v8768 = vsub.f32 %v8243, %v8741
      %v8769 = vsub.f32 %v8244, %v8741
      %v8770 = vsub.f32 %v8245, %v8741
      %v8771 = vsub.f32 %v8246, %v8741
      %v8772 = vsub.f32 %v8247, %v8741
      %v8773 = vsub.f32 %v8248, %v8741
      %v8774 = vsub.f32 %v8249, %v8741
      %v8775 = vsub.f32 %v8250, %v8741
      %v8776 = vsub.f32 %v8251, %v8741
      %v8777 = vsub.f32 %v8252, %v8741
      %v8778 = vsub.f32 %v8253, %v8741
      %v8779 = vsub.f32 %v8254, %v8741
      %v8780 = vsub.f32 %v8255, %v8741
      %v8781 = vsub.f32 %v8256, %v8741
      %v8782 = vsub.f32 %v8257, %v8741
      %v8783 = vsub.f32 %v8258, %v8741
      %v8784 = vsub.f32 %v8259, %v8741
      %v8785 = vsub.f32 %v8260, %v8741
      %v8786 = vsub.f32 %v8261, %v8741
      %v8787 = vsub.f32 %v8262, %v8741
      %v8788 = vsub.f32 %v8263, %v8741
      %v8789 = vsub.f32 %v8264, %v8741
      %v8790 = vsub.f32 %v8265, %v8741
      %v8791 = vsub.f32 %v8266, %v8741
      %v8792 = vsub.f32 %v8267, %v8741
      %v8793 = vsub.f32 %v8268, %v8741
      %v8794 = vsub.f32 %v8269, %v8741
      %v8795 = vsub.f32 %v8270, %v8741
      %v8796 = vsub.f32 %v8271, %v8741
      %v8797 = vsub.f32 %v8272, %v8741
      %v8798 = vsub.f32 %v8273, %v8741
      %v8799 = vsub.f32 %v8274, %v8741
      %v8800 = vsub.f32 %v8275, %v8741
      %v8801 = vsub.f32 %v8276, %v8741
      %v8802 = vsub.f32 %v8277, %v8741
      %v8803 = vsub.f32 %v8278, %v8741
      %v8804 = vsub.f32 %v8279, %v8741
      %v8805 = vsub.f32 %v8280, %v8741
      %v8806 = vsub.f32 %v8281, %v8741
      %v8807 = vsub.f32 %v8282, %v8741
      %v8808 = vsub.f32 %v8283, %v8741
      %v8809 = vsub.f32 %v8284, %v8741
      %v8810 = vsub.f32 %v8285, %v8741
      %v8811 = vsub.f32 %v8286, %v8741
      %v8812 = vsub.f32 %v8287, %v8741
      %v8813 = vsub.f32 %v8288, %v8741
      %v8814 = vsub.f32 %v8289, %v8741
      %v8815 = vsub.f32 %v8290, %v8741
      %v8816 = vsub.f32 %v8291, %v8741
      %v8817 = vsub.f32 %v8292, %v8741
      %v8818 = vsub.f32 %v8293, %v8741
      %v8819 = vsub.f32 %v8294, %v8741
      %v8820 = vsub.f32 %v8295, %v8741
      %v8821 = vsub.f32 %v8296, %v8741
      %v8822 = vsub.f32 %v8297, %v8741
      %v8823 = vsub.f32 %v8298, %v8741
      %v8824 = vsub.f32 %v8299, %v8741
      %v8825 = vsub.f32 %v8300, %v8741
      %v8826 = vsub.f32 %v8301, %v8741
      %v8827 = vsub.f32 %v8302, %v8741
      %v8828 = vsub.f32 %v8303, %v8741
      %v8829 = vsub.f32 %v8304, %v8741
      %v8830 = vsub.f32 %v8305, %v8741
      %v8831 = vsub.f32 %v8306, %v8741
      %v8832 = vsub.f32 %v8307, %v8741
      %v8833 = vsub.f32 %v8308, %v8741
      %v8834 = vsub.f32 %v8309, %v8741
      %v8835 = vsub.f32 %v8310, %v8741
      %v8836 = vsub.f32 %v8311, %v8741
      %v8837 = vsub.f32 %v8312, %v8741
      %v8838 = vsub.f32 %v8313, %v8741
      %v8839 = vsub.f32 %v8314, %v8741
      %v8840 = vsub.f32 %v8315, %v8741
      %v8841 = vsub.f32 %v8316, %v8741
      %v8842 = vsub.f32 %v8317, %v8741
      %v8843 = vsub.f32 %v8318, %v8741
      %v8844 = vsub.f32 %v8319, %v8741
      %v8845 = vsub.f32 %v8320, %v8741
      %v8846 = vsub.f32 %v8321, %v8741
      %v8847 = vsub.f32 %v8322, %v8741
      %v8848 = vsub.f32 %v8323, %v8741
      %v8849 = vsub.f32 %v8324, %v8741
      %v8850 = vsub.f32 %v8325, %v8741
      %v8851 = vsub.f32 %v8326, %v8741
      %v8852 = vsub.f32 %v8327, %v8741
      %v8853 = vsub.f32 %v8328, %v8741
      %v8854 = vsub.f32 %v8329, %v8741
      %v8855 = vsub.f32 %v8330, %v8741
      %v8856 = vsub.f32 %v8331, %v8741
      %v8857 = vsub.f32 %v8332, %v8741
      %v8858 = vsub.f32 %v8333, %v8741
      %v8859 = vsub.f32 %v8334, %v8741
      %v8860 = vsub.f32 %v8335, %v8741
      %v8861 = vsub.f32 %v8336, %v8741
      %v8862 = vsub.f32 %v8337, %v8741
      %v8863 = vsub.f32 %v8338, %v8741
      %v8864 = vsub.f32 %v8339, %v8741
      %v8865 = vsub.f32 %v8340, %v8741
      %v8866 = vsub.f32 %v8341, %v8741
      %v8867 = vsub.f32 %v8342, %v8741
      %v8868 = vsub.f32 %v8343, %v8741
      %v8869 = vsub.f32 %v8344, %v8741
      %v8870 = vmul.f32 %v8742, %v8742
      %v8871 = vmul.f32 %v8743, %v8743
      %v8872 = vmul.f32 %v8744, %v8744
      %v8873 = vmul.f32 %v8745, %v8745
      %v8874 = vmul.f32 %v8746, %v8746
      %v8875 = vmul.f32 %v8747, %v8747
      %v8876 = vmul.f32 %v8748, %v8748
      %v8877 = vmul.f32 %v8749, %v8749
      %v8878 = vmul.f32 %v8750, %v8750
      %v8879 = vmul.f32 %v8751, %v8751
      %v8880 = vmul.f32 %v8752, %v8752
      %v8881 = vmul.f32 %v8753, %v8753
      %v8882 = vmul.f32 %v8754, %v8754
      %v8883 = vmul.f32 %v8755, %v8755
      %v8884 = vmul.f32 %v8756, %v8756
      %v8885 = vmul.f32 %v8757, %v8757
      %v8886 = vmul.f32 %v8758, %v8758
      %v8887 = vmul.f32 %v8759, %v8759
      %v8888 = vmul.f32 %v8760, %v8760
      %v8889 = vmul.f32 %v8761, %v8761
      %v8890 = vmul.f32 %v8762, %v8762
      %v8891 = vmul.f32 %v8763, %v8763
      %v8892 = vmul.f32 %v8764, %v8764
      %v8893 = vmul.f32 %v8765, %v8765
      %v8894 = vmul.f32 %v8766, %v8766
      %v8895 = vmul.f32 %v8767, %v8767
      %v8896 = vmul.f32 %v8768, %v8768
      %v8897 = vmul.f32 %v8769, %v8769
      %v8898 = vmul.f32 %v8770, %v8770
      %v8899 = vmul.f32 %v8771, %v8771
      %v8900 = vmul.f32 %v8772, %v8772
      %v8901 = vmul.f32 %v8773, %v8773
      %v8902 = vmul.f32 %v8774, %v8774
      %v8903 = vmul.f32 %v8775, %v8775
      %v8904 = vmul.f32 %v8776, %v8776
      %v8905 = vmul.f32 %v8777, %v8777
      %v8906 = vmul.f32 %v8778, %v8778
      %v8907 = vmul.f32 %v8779, %v8779
      %v8908 = vmul.f32 %v8780, %v8780
      %v8909 = vmul.f32 %v8781, %v8781
      %v8910 = vmul.f32 %v8782, %v8782
      %v8911 = vmul.f32 %v8783, %v8783
      %v8912 = vmul.f32 %v8784, %v8784
      %v8913 = vmul.f32 %v8785, %v8785
      %v8914 = vmul.f32 %v8786, %v8786
      %v8915 = vmul.f32 %v8787, %v8787
      %v8916 = vmul.f32 %v8788, %v8788
      %v8917 = vmul.f32 %v8789, %v8789
      %v8918 = vmul.f32 %v8790, %v8790
      %v8919 = vmul.f32 %v8791, %v8791
      %v8920 = vmul.f32 %v8792, %v8792
      %v8921 = vmul.f32 %v8793, %v8793
      %v8922 = vmul.f32 %v8794, %v8794
      %v8923 = vmul.f32 %v8795, %v8795
      %v8924 = vmul.f32 %v8796, %v8796
      %v8925 = vmul.f32 %v8797, %v8797
      %v8926 = vmul.f32 %v8798, %v8798
      %v8927 = vmul.f32 %v8799, %v8799
      %v8928 = vmul.f32 %v8800, %v8800
      %v8929 = vmul.f32 %v8801, %v8801
      %v8930 = vmul.f32 %v8802, %v8802
      %v8931 = vmul.f32 %v8803, %v8803
      %v8932 = vmul.f32 %v8804, %v8804
      %v8933 = vmul.f32 %v8805, %v8805
      %v8934 = vmul.f32 %v8806, %v8806
      %v8935 = vmul.f32 %v8807, %v8807
      %v8936 = vmul.f32 %v8808, %v8808
      %v8937 = vmul.f32 %v8809, %v8809
      %v8938 = vmul.f32 %v8810, %v8810
      %v8939 = vmul.f32 %v8811, %v8811
      %v8940 = vmul.f32 %v8812, %v8812
      %v8941 = vmul.f32 %v8813, %v8813
      %v8942 = vmul.f32 %v8814, %v8814
      %v8943 = vmul.f32 %v8815, %v8815
      %v8944 = vmul.f32 %v8816, %v8816
      %v8945 = vmul.f32 %v8817, %v8817
      %v8946 = vmul.f32 %v8818, %v8818
      %v8947 = vmul.f32 %v8819, %v8819
      %v8948 = vmul.f32 %v8820, %v8820
      %v8949 = vmul.f32 %v8821, %v8821
      %v8950 = vmul.f32 %v8822, %v8822
      %v8951 = vmul.f32 %v8823, %v8823
      %v8952 = vmul.f32 %v8824, %v8824
      %v8953 = vmul.f32 %v8825, %v8825
      %v8954 = vmul.f32 %v8826, %v8826
      %v8955 = vmul.f32 %v8827, %v8827
      %v8956 = vmul.f32 %v8828, %v8828
      %v8957 = vmul.f32 %v8829, %v8829
      %v8958 = vmul.f32 %v8830, %v8830
      %v8959 = vmul.f32 %v8831, %v8831
      %v8960 = vmul.f32 %v8832, %v8832
      %v8961 = vmul.f32 %v8833, %v8833
      %v8962 = vmul.f32 %v8834, %v8834
      %v8963 = vmul.f32 %v8835, %v8835
      %v8964 = vmul.f32 %v8836, %v8836
      %v8965 = vmul.f32 %v8837, %v8837
      %v8966 = vmul.f32 %v8838, %v8838
      %v8967 = vmul.f32 %v8839, %v8839
      %v8968 = vmul.f32 %v8840, %v8840
      %v8969 = vmul.f32 %v8841, %v8841
      %v8970 = vmul.f32 %v8842, %v8842
      %v8971 = vmul.f32 %v8843, %v8843
      %v8972 = vmul.f32 %v8844, %v8844
      %v8973 = vmul.f32 %v8845, %v8845
      %v8974 = vmul.f32 %v8846, %v8846
      %v8975 = vmul.f32 %v8847, %v8847
      %v8976 = vmul.f32 %v8848, %v8848
      %v8977 = vmul.f32 %v8849, %v8849
      %v8978 = vmul.f32 %v8850, %v8850
      %v8979 = vmul.f32 %v8851, %v8851
      %v8980 = vmul.f32 %v8852, %v8852
      %v8981 = vmul.f32 %v8853, %v8853
      %v8982 = vmul.f32 %v8854, %v8854
      %v8983 = vmul.f32 %v8855, %v8855
      %v8984 = vmul.f32 %v8856, %v8856
      %v8985 = vmul.f32 %v8857, %v8857
      %v8986 = vmul.f32 %v8858, %v8858
      %v8987 = vmul.f32 %v8859, %v8859
      %v8988 = vmul.f32 %v8860, %v8860
      %v8989 = vmul.f32 %v8861, %v8861
      %v8990 = vmul.f32 %v8862, %v8862
      %v8991 = vmul.f32 %v8863, %v8863
      %v8992 = vmul.f32 %v8864, %v8864
      %v8993 = vmul.f32 %v8865, %v8865
      %v8994 = vmul.f32 %v8866, %v8866
      %v8995 = vmul.f32 %v8867, %v8867
      %v8996 = vmul.f32 %v8868, %v8868
      %v8997 = vmul.f32 %v8869, %v8869
      %v8998 = vadd.f32 %v8870, %v8871
      %v8999 = vadd.f32 %v8998, %v8872
      %v9000 = vadd.f32 %v8999, %v8873
      %v9001 = vadd.f32 %v9000, %v8874
      %v9002 = vadd.f32 %v9001, %v8875
      %v9003 = vadd.f32 %v9002, %v8876
      %v9004 = vadd.f32 %v9003, %v8877
      %v9005 = vadd.f32 %v9004, %v8878
      %v9006 = vadd.f32 %v9005, %v8879
      %v9007 = vadd.f32 %v9006, %v8880
      %v9008 = vadd.f32 %v9007, %v8881
      %v9009 = vadd.f32 %v9008, %v8882
      %v9010 = vadd.f32 %v9009, %v8883
      %v9011 = vadd.f32 %v9010, %v8884
      %v9012 = vadd.f32 %v9011, %v8885
      %v9013 = vadd.f32 %v9012, %v8886
      %v9014 = vadd.f32 %v9013, %v8887
      %v9015 = vadd.f32 %v9014, %v8888
      %v9016 = vadd.f32 %v9015, %v8889
      %v9017 = vadd.f32 %v9016, %v8890
      %v9018 = vadd.f32 %v9017, %v8891
      %v9019 = vadd.f32 %v9018, %v8892
      %v9020 = vadd.f32 %v9019, %v8893
      %v9021 = vadd.f32 %v9020, %v8894
      %v9022 = vadd.f32 %v9021, %v8895
      %v9023 = vadd.f32 %v9022, %v8896
      %v9024 = vadd.f32 %v9023, %v8897
      %v9025 = vadd.f32 %v9024, %v8898
      %v9026 = vadd.f32 %v9025, %v8899
      %v9027 = vadd.f32 %v9026, %v8900
      %v9028 = vadd.f32 %v9027, %v8901
      %v9029 = vadd.f32 %v9028, %v8902
      %v9030 = vadd.f32 %v9029, %v8903
      %v9031 = vadd.f32 %v9030, %v8904
      %v9032 = vadd.f32 %v9031, %v8905
      %v9033 = vadd.f32 %v9032, %v8906
      %v9034 = vadd.f32 %v9033, %v8907
      %v9035 = vadd.f32 %v9034, %v8908
      %v9036 = vadd.f32 %v9035, %v8909
      %v9037 = vadd.f32 %v9036, %v8910
      %v9038 = vadd.f32 %v9037, %v8911
      %v9039 = vadd.f32 %v9038, %v8912
      %v9040 = vadd.f32 %v9039, %v8913
      %v9041 = vadd.f32 %v9040, %v8914
      %v9042 = vadd.f32 %v9041, %v8915
      %v9043 = vadd.f32 %v9042, %v8916
      %v9044 = vadd.f32 %v9043, %v8917
      %v9045 = vadd.f32 %v9044, %v8918
      %v9046 = vadd.f32 %v9045, %v8919
      %v9047 = vadd.f32 %v9046, %v8920
      %v9048 = vadd.f32 %v9047, %v8921
      %v9049 = vadd.f32 %v9048, %v8922
      %v9050 = vadd.f32 %v9049, %v8923
      %v9051 = vadd.f32 %v9050, %v8924
      %v9052 = vadd.f32 %v9051, %v8925
      %v9053 = vadd.f32 %v9052, %v8926
      %v9054 = vadd.f32 %v9053, %v8927
      %v9055 = vadd.f32 %v9054, %v8928
      %v9056 = vadd.f32 %v9055, %v8929
      %v9057 = vadd.f32 %v9056, %v8930
      %v9058 = vadd.f32 %v9057, %v8931
      %v9059 = vadd.f32 %v9058, %v8932
      %v9060 = vadd.f32 %v9059, %v8933
      %v9061 = vadd.f32 %v9060, %v8934
      %v9062 = vadd.f32 %v9061, %v8935
      %v9063 = vadd.f32 %v9062, %v8936
      %v9064 = vadd.f32 %v9063, %v8937
      %v9065 = vadd.f32 %v9064, %v8938
      %v9066 = vadd.f32 %v9065, %v8939
      %v9067 = vadd.f32 %v9066, %v8940
      %v9068 = vadd.f32 %v9067, %v8941
      %v9069 = vadd.f32 %v9068, %v8942
      %v9070 = vadd.f32 %v9069, %v8943
      %v9071 = vadd.f32 %v9070, %v8944
      %v9072 = vadd.f32 %v9071, %v8945
      %v9073 = vadd.f32 %v9072, %v8946
      %v9074 = vadd.f32 %v9073, %v8947
      %v9075 = vadd.f32 %v9074, %v8948
      %v9076 = vadd.f32 %v9075, %v8949
      %v9077 = vadd.f32 %v9076, %v8950
      %v9078 = vadd.f32 %v9077, %v8951
      %v9079 = vadd.f32 %v9078, %v8952
      %v9080 = vadd.f32 %v9079, %v8953
      %v9081 = vadd.f32 %v9080, %v8954
      %v9082 = vadd.f32 %v9081, %v8955
      %v9083 = vadd.f32 %v9082, %v8956
      %v9084 = vadd.f32 %v9083, %v8957
      %v9085 = vadd.f32 %v9084, %v8958
      %v9086 = vadd.f32 %v9085, %v8959
      %v9087 = vadd.f32 %v9086, %v8960
      %v9088 = vadd.f32 %v9087, %v8961
      %v9089 = vadd.f32 %v9088, %v8962
      %v9090 = vadd.f32 %v9089, %v8963
      %v9091 = vadd.f32 %v9090, %v8964
      %v9092 = vadd.f32 %v9091, %v8965
      %v9093 = vadd.f32 %v9092, %v8966
      %v9094 = vadd.f32 %v9093, %v8967
      %v9095 = vadd.f32 %v9094, %v8968
      %v9096 = vadd.f32 %v9095, %v8969
      %v9097 = vadd.f32 %v9096, %v8970
      %v9098 = vadd.f32 %v9097, %v8971
      %v9099 = vadd.f32 %v9098, %v8972
      %v9100 = vadd.f32 %v9099, %v8973
      %v9101 = vadd.f32 %v9100, %v8974
      %v9102 = vadd.f32 %v9101, %v8975
      %v9103 = vadd.f32 %v9102, %v8976
      %v9104 = vadd.f32 %v9103, %v8977
      %v9105 = vadd.f32 %v9104, %v8978
      %v9106 = vadd.f32 %v9105, %v8979
      %v9107 = vadd.f32 %v9106, %v8980
      %v9108 = vadd.f32 %v9107, %v8981
      %v9109 = vadd.f32 %v9108, %v8982
      %v9110 = vadd.f32 %v9109, %v8983
      %v9111 = vadd.f32 %v9110, %v8984
      %v9112 = vadd.f32 %v9111, %v8985
      %v9113 = vadd.f32 %v9112, %v8986
      %v9114 = vadd.f32 %v9113, %v8987
      %v9115 = vadd.f32 %v9114, %v8988
      %v9116 = vadd.f32 %v9115, %v8989
      %v9117 = vadd.f32 %v9116, %v8990
      %v9118 = vadd.f32 %v9117, %v8991
      %v9119 = vadd.f32 %v9118, %v8992
      %v9120 = vadd.f32 %v9119, %v8993
      %v9121 = vadd.f32 %v9120, %v8994
      %v9122 = vadd.f32 %v9121, %v8995
      %v9123 = vadd.f32 %v9122, %v8996
      %v9124 = vadd.f32 %v9123, %v8997
      %v9125 = vrot.slane %v9124, 4
      %v9126 = vadd.f32 %v9124, %v9125
      %v9127 = vrot.slane %v9126, 2
      %v9128 = vadd.f32 %v9126, %v9127
      %v9129 = vrot.slane %v9128, 1
      %v9130 = vadd.f32 %v9128, %v9129
      %vm9131 = vcmask 1040384
      %v9132 = vsel %vm9131, %v8741, %v9130
      %9133 = vst [vmem:[%s214] sm:$0x3] %v9132
      %s9134 = smul.u32 32, %s20
      %p9135 = scmp.lt.s32.totalorder %s19, 1
      %s9136 = scalar_select %p9135, %s19, 1
      %p9137 = scmp.lt.s32.totalorder %s9134, 31
      %s9138 = scalar_select %p9137, %s9134, 31
      %s9139 = smul.addr %s9138, 4
      %s9140 = smul.addr %s9136, 128
      %s9141 = sadd.s32 %s9139, %s9140
      %s9142 = smul.addr %s9141, 4
      %s9143 = scalar_lea.vmem %s2, %s9142
      %p9144 = scmp.lt.s32.totalorder %s19, 1
      %s9145 = scalar_select %p9144, %s19, 1
      %p9146 = scmp.lt.s32.totalorder %s20, 0
      %s9147 = scalar_select %p9146, %s20, 0
      %s9148 = sadd.s32 %s9147, %s9145
      %s9149 = smul.addr %s9148, 2
      %s9150 = scalar_lea.vmem %s3, %s9149
      // Predicated region
      $region29: #{_forward.2} parent=27 // pred_check
        %p9151 = pneg %p94
      $region30: #{_forward.2} parent=27 // pred_check_branch
        %9153 = sbr.rel (%p9151) target = $region32
      $region31: #{_forward.2} parent=27 // pred_region
        %s9154 = smul.u32 32, %s20
      $region32: #{_forward.2} parent=27 // pred_fallthru
        _
      // Predicated region
      $region33: #{_forward.2} parent=27 // pred_check
        %p9155 = pneg %p122
      $region34: #{_forward.2} parent=27 // pred_check_branch
        %9157 = sbr.rel (%p9155) target = $region36
      $region35: #{_forward.2} parent=27 // pred_region
        _
      $region36: #{_forward.2} parent=27 // pred_fallthru
        _
    $region28: #{_forward.2} parent=5 // pred_fallthru
      _
    %p9158 = scmp.le.s32.totalorder 2, %s10
    // Predicated region
    $region37: #{_forward.2} parent=5 // pred_check
      %p9159 = pneg %p9158
    $region38: #{_forward.2} parent=5 // pred_check_branch
      %9161 = sbr.rel (%p9159) target = $region40
    $region39: #{_forward.2} parent=5 // pred_region
      %s9162 = ssub.s32 %s10, 2
      // Predicated region
      $region41: #{_forward.2} parent=39 // pred_check
        %p9163 = pneg %p100
      $region42: #{_forward.2} parent=39 // pred_check_branch
        %9165 = sbr.rel (%p9163) target = $region44
      $region43: #{_forward.2} parent=39 // pred_region
        %s9166 = smul.u32 32, %s22
        %p9167 = scmp.lt.s32.totalorder %s21, 1
        %s9168 = scalar_select %p9167, %s21, 1
        %p9169 = scmp.lt.s32.totalorder %s9166, 31
        %s9170 = scalar_select %p9169, %s9166, 31
        %s9171 = smul.addr %s9170, 4
        %s9172 = smul.addr %s9168, 128
        %s9173 = sadd.s32 %s9171, %s9172
        %s9174 = smul.addr %s9173, 4
        %s9175 = scalar_lea.vmem %s2, %s9174
      $region44: #{_forward.2} parent=39 // pred_fallthru
        _
      // Predicated region
      $region45: #{_forward.2} parent=39 // pred_check
        %p9176 = pneg %p128
      $region46: #{_forward.2} parent=39 // pred_check_branch
        %9178 = sbr.rel (%p9176) target = $region48
      $region47: #{_forward.2} parent=39 // pred_region
        %p9179 = scmp.lt.s32.totalorder %s21, 1
        %s9180 = scalar_select %p9179, %s21, 1
        %p9181 = scmp.lt.s32.totalorder %s22, 0
        %s9182 = scalar_select %p9181, %s22, 0
        %s9183 = sadd.s32 %s9182, %s9180
        %s9184 = smul.addr %s9183, 2
        %s9185 = scalar_lea.vmem %s3, %s9184
      $region48: #{_forward.2} parent=39 // pred_fallthru
        _
    $region40: #{_forward.2} parent=5 // pred_fallthru
      _
  $region6: #{_forward.2} parent=0 // loop_footer
    %s14 = sadd.s32 1, %s10
  $region7: #{_forward.2} parent=0 // loop_footer_branch
    %9 = sbr.rel target = $region3
  $region8: #{_forward.2} parent=0 // loop_exit
    _

</llo_original>
